<compile_context>
chip_gen: v7x
topology: tpu7x:2x2x1
jax: 0.10.0
libtpu: 0.0.40
codegen_flags: <defaults>
</compile_context>

<pallas_src>
import math

import numpy as np
import jax
import jax.numpy as jnp
from jax.experimental import pallas as pl
from jax.experimental.pallas import tpu as pltpu


# ----------------------------------------------------------------------------
# Deterministic "parameter" construction (same formula as the nn.Module init).
# ----------------------------------------------------------------------------
def _gaussian_1d(scale):
    """1-D gaussian factor of the (separable) 2-D kernel used by the module."""
    sigma = (1.0 / scale - 1.0) / 2.0
    ksize = 2 * round(sigma * 4) + 1          # Python round(), like the module
    mean = (ksize - 1) / 2.0
    ax = np.arange(ksize, dtype=np.float64)
    g = np.exp(-((ax - mean) ** 2) / (2.0 * sigma ** 2))
    # outer(g, g)/sum(outer(g, g)) == outer(g/sum(g), g/sum(g)) -> exact split
    g = g / g.sum()
    return g, int(ksize)


def _band_matrix(in_size, scale, g, ka):
    """Banded operator folding pad + 1-D blur + nearest downsample.

    out[o] = sum_y A[o, y] * x[y]  reproduces, along one axis:
      zero-pad by ka, K-tap gaussian conv, then nearest pick at
      src = floor(o / scale)  (out_size = floor(in_size * scale)).
    """
    # TODO(synk): PyTorch's legacy 'nearest' uses floor(dst * in/out); this
    # floor(dst/scale) form matches it exactly for scale = 1/2^k (the pyramid
    # scales used here) but may differ by one pixel for exotic scales.
    out_size = int(math.floor(in_size * scale))
    K = g.shape[0]
    inv = 1.0 / scale
    A = np.zeros((out_size, in_size), dtype=np.float64)
    for o in range(out_size):
        src = min(int(math.floor(o * inv)), in_size - 1)
        for t in range(K):
            y = src + t - ka          # index into the *unpadded* input
            if 0 <= y < in_size:      # clipping == zero padding
                A[o, y] += g[t]
    return A.astype(np.float32), out_size


# ----------------------------------------------------------------------------
# Pallas kernel: for one (batch, channel-tile) block, produce every pyramid
# scale via two MXU matmuls per channel:  out_s = A_h_s @ x_c @ A_w_s^T.
# ----------------------------------------------------------------------------
def _make_pyramid_kernel(n_scales, tc):
    def kernel(*refs):
        band_refs = refs[:2 * n_scales]          # (A_h_s, A_w_s^T) pairs
        x_ref = refs[2 * n_scales]                # (1, tc, H, W)
        out_refs = refs[2 * n_scales + 1:]        # (1, tc, oh_s, ow_s) each

        # Hoist the tiny band-matrix loads out of the channel loop.
        bands = [(band_refs[2 * s][...], band_refs[2 * s + 1][...])
                 for s in range(n_scales)]

        for c in range(tc):
            xc = x_ref[0, c].astype(jnp.float32)          # (H, W)
            for s, (ah, awt) in enumerate(bands):
                # Vertical pass: blur + downsample along H  -> (oh, W)
                t = jnp.dot(ah, xc,
                            preferred_element_type=jnp.float32,
                            precision=jax.lax.Precision.HIGHEST)
                # Horizontal pass: blur + downsample along W -> (oh, ow)
                y = jnp.dot(t, awt,
                            preferred_element_type=jnp.float32,
                            precision=jax.lax.Precision.HIGHEST)
                out_refs[s][0, c] = y.astype(out_refs[s].dtype)

    return kernel


# ----------------------------------------------------------------------------
# ImagePyramid.forward
# ----------------------------------------------------------------------------
def image_pyramid(x, scales):
    n, c, h, w = x.shape
    out = {}

    # scale == 1 -> identity (the module returns the input unchanged).
    kernel_scales = []
    for scale in scales:
        key = 'prediction_' + str(scale).replace('.', '-').replace('-', '.')
        if float(scale) == 1.0:
            out[key] = x
        else:
            kernel_scales.append((key, float(scale)))
    if not kernel_scales:
        return out

    # Build the banded operators (trace-time numpy constants -> kernel inputs).
    band_inputs = []
    out_hw = []
    for _, scale in kernel_scales:
        g, ksize = _gaussian_1d(scale)
        ka = ksize // 2                      # ksize is odd -> kb == ka
        ah, out_h = _band_matrix(h, scale, g, ka)      # (out_h, H)
        aw, out_w = _band_matrix(w, scale, g, ka)      # (out_w, W)
        band_inputs.append(jnp.asarray(ah))            # (out_h, H)
        band_inputs.append(jnp.asarray(aw.T))          # (W, out_w) -> no in-kernel transpose
        out_hw.append((out_h, out_w))

    # Channel tile: largest divisor of C whose blocks (input + all outputs)
    # stay within ~6 MiB, so the double-buffered working set fits the default
    # scoped VMEM limit on every generation (16 MiB v5e / 32 MiB v6e, v7x).
    bytes_per_chan = 4 * (h * w + sum(oh * ow for oh, ow in out_hw))
    budget = 6 * 1024 * 1024
    tc = 1
    for cand in range(c, 0, -1):
        if c % cand == 0 and cand * bytes_per_chan <= budget:
            tc = cand
            break
    # TODO(synk): add a row(+halo) grid axis if a single channel slice ever
    # exceeds the VMEM budget (not needed for typical image sizes).

    n_scales = len(kernel_scales)
    in_specs = []
    for s in range(n_scales):
        oh, ow = out_hw[s]
        in_specs.append(pl.BlockSpec((oh, h), lambda b, ct: (0, 0)))
        in_specs.append(pl.BlockSpec((w, ow), lambda b, ct: (0, 0)))
    in_specs.append(pl.BlockSpec((1, tc, h, w), lambda b, ct: (b, ct, 0, 0)))

    out_specs = [pl.BlockSpec((1, tc, oh, ow), lambda b, ct: (b, ct, 0, 0))
                 for (oh, ow) in out_hw]
    out_shape = [jax.ShapeDtypeStruct((n, c, oh, ow), x.dtype)
                 for (oh, ow) in out_hw]

    results = pl.pallas_call(
        _make_pyramid_kernel(n_scales, tc),
        out_shape=out_shape,
        grid_spec=pltpu.PrefetchScalarGridSpec(
            num_scalar_prefetch=0,
            grid=(n, c // tc),
            in_specs=in_specs,
            out_specs=out_specs,
        ),
        compiler_params=pltpu.CompilerParams(
            dimension_semantics=("parallel", "parallel")),
    )(*band_inputs, x)

    for (key, _), r in zip(kernel_scales, results):
        out[key] = r
    return out


# ----------------------------------------------------------------------------
# Pure-JAX reference (direct transcription of the PyTorch op sequence) used
# only for the numerical sanity check in __main__.
# ----------------------------------------------------------------------------
def _reference_downscale(x, scale):
    if scale == 1.0:
        return x
    n, c, h, w = x.shape
    g, ksize = _gaussian_1d(scale)
    k2d = np.outer(g, g)
    ka = ksize // 2
    xp = jnp.pad(x, ((0, 0), (0, 0), (ka, ka), (ka, ka)))
    acc = jnp.zeros_like(x)
    for i in range(ksize):
        for j in range(ksize):
            acc = acc + float(k2d[i, j]) * xp[:, :, i:i + h, j:j + w]
    out_h = int(math.floor(h * scale))
    out_w = int(math.floor(w * scale))
    inv = 1.0 / scale
    hi = np.clip(np.floor(np.arange(out_h) * inv), 0, h - 1).astype(np.int32)
    wi = np.clip(np.floor(np.arange(out_w) * inv), 0, w - 1).astype(np.int32)
    return acc[:, :, hi, :][:, :, :, wi]


if __name__ == "__main__":
    scales = [1, 0.5, 0.25]
    num_channels = 4

    key = jax.random.PRNGKey(0)
    x = jax.random.normal(key, (2, num_channels, 16, 16), dtype=jnp.float32)

    out = image_pyramid(x, scales)
    out = jax.block_until_ready(out)

    # shape / dtype sanity checks
    assert out['prediction_1'].shape == (2, 4, 16, 16)
    assert out['prediction_0.5'].shape == (2, 4, 8, 8)
    assert out['prediction_0.25'].shape == (2, 4, 4, 4)
    for v in out.values():
        assert v.dtype == jnp.float32
        assert bool(jnp.all(jnp.isfinite(v)))

    # numerical check against the direct pad -> conv -> nearest reference
    for scale in scales:
        k = 'prediction_' + str(scale).replace('.', '-').replace('-', '.')
        ref = np.asarray(_reference_downscale(x, float(scale)))
        np.testing.assert_allclose(np.asarray(out[k]), ref,
                                   rtol=1e-3, atol=1e-3)

    print("KERNEL_OK")
</pallas_src>

<mosaic_0001>
module attributes {stable_mosaic.version = 11 : i64} {
  func.func @kernel(%arg0: i32, %arg1: i32, %arg2: memref<8x16xf32, #tpu.memory_space<vmem>>, %arg3: memref<16x8xf32, #tpu.memory_space<vmem>>, %arg4: memref<4x16xf32, #tpu.memory_space<vmem>>, %arg5: memref<16x4xf32, #tpu.memory_space<vmem>>, %arg6: memref<1x4x16x16xf32, #tpu.memory_space<vmem>>, %arg7: memref<1x4x8x8xf32, #tpu.memory_space<vmem>>, %arg8: memref<1x4x4x4xf32, #tpu.memory_space<vmem>>) attributes {dimension_semantics = [#tpu.dimension_semantics<parallel>, #tpu.dimension_semantics<parallel>], iteration_bounds = array<i64: 2, 1>, scalar_prefetch = 0 : i64, scratch_operands = 0 : i64, tpu.core_type = #tpu.core_type<tc>, window_params = [{pipeline_mode = #tpu.pipeline_mode<synchronous>, transform_indices = @transform_0, window_bounds = array<i64: 8, 16>}, {pipeline_mode = #tpu.pipeline_mode<synchronous>, transform_indices = @transform_1, window_bounds = array<i64: 16, 8>}, {pipeline_mode = #tpu.pipeline_mode<synchronous>, transform_indices = @transform_2, window_bounds = array<i64: 4, 16>}, {pipeline_mode = #tpu.pipeline_mode<synchronous>, transform_indices = @transform_3, window_bounds = array<i64: 16, 4>}, {transform_indices = @transform_4, window_bounds = array<i64: 1, 4, 16, 16>}, {transform_indices = @transform_5, window_bounds = array<i64: 1, 4, 8, 8>}, {transform_indices = @transform_6, window_bounds = array<i64: 1, 4, 4, 4>}]} {
    %c0 = arith.constant 0 : index
    %c0_0 = arith.constant 0 : index
    %0 = vector.load %arg2[%c0, %c0_0] : memref<8x16xf32, #tpu.memory_space<vmem>>, vector<8x16xf32>
    %c0_1 = arith.constant 0 : index
    %c0_2 = arith.constant 0 : index
    %1 = vector.load %arg3[%c0_1, %c0_2] : memref<16x8xf32, #tpu.memory_space<vmem>>, vector<16x8xf32>
    %c0_3 = arith.constant 0 : index
    %c0_4 = arith.constant 0 : index
    %2 = vector.load %arg4[%c0_3, %c0_4] : memref<4x16xf32, #tpu.memory_space<vmem>>, vector<4x16xf32>
    %c0_5 = arith.constant 0 : index
    %c0_6 = arith.constant 0 : index
    %3 = vector.load %arg5[%c0_5, %c0_6] : memref<16x4xf32, #tpu.memory_space<vmem>>, vector<16x4xf32>
    %c0_7 = arith.constant 0 : index
    %c0_8 = arith.constant 0 : index
    %c0_9 = arith.constant 0 : index
    %c0_10 = arith.constant 0 : index
    %4 = vector.load %arg6[%c0_7, %c0_8, %c0_9, %c0_10] : memref<1x4x16x16xf32, #tpu.memory_space<vmem>>, vector<1x1x16x16xf32>
    %5 = vector.shape_cast %4 : vector<1x1x16x16xf32> to vector<16x16xf32>
    %cst = arith.constant dense<0.000000e+00> : vector<8x16xf32>
    %6 = tpu.matmul %0, %5, %cst {dimension_numbers = #tpu.dot_dimension_numbers<[1], [0], [0], [1], [0, 0, 1, 1], [], []>, precision = #tpu.contract_precision<fp32>} : vector<8x16xf32>, vector<16x16xf32>, vector<8x16xf32> -> vector<8x16xf32>
    %cst_11 = arith.constant dense<0.000000e+00> : vector<8x8xf32>
    %7 = tpu.matmul %6, %1, %cst_11 {dimension_numbers = #tpu.dot_dimension_numbers<[1], [0], [0], [1], [0, 0, 1, 1], [], []>, precision = #tpu.contract_precision<fp32>} : vector<8x16xf32>, vector<16x8xf32>, vector<8x8xf32> -> vector<8x8xf32>
    %c0_12 = arith.constant 0 : index
    %c0_13 = arith.constant 0 : index
    %c0_14 = arith.constant 0 : index
    %c0_15 = arith.constant 0 : index
    %8 = vector.load %arg7[%c0_12, %c0_13, %c0_14, %c0_15] : memref<1x4x8x8xf32, #tpu.memory_space<vmem>>, vector<1x1x8x8xf32>
    %9 = vector.shape_cast %8 : vector<1x1x8x8xf32> to vector<8x8xf32>
    %10 = vector.shape_cast %7 : vector<8x8xf32> to vector<1x1x8x8xf32>
    tpu.vector_store %arg7[%c0_12, %c0_13, %c0_14, %c0_15], %10 {strides = array<i32>} : memref<1x4x8x8xf32, #tpu.memory_space<vmem>>, vector<1x1x8x8xf32>,
    %cst_16 = arith.constant dense<0.000000e+00> : vector<4x16xf32>
    %11 = tpu.matmul %2, %5, %cst_16 {dimension_numbers = #tpu.dot_dimension_numbers<[1], [0], [0], [1], [0, 0, 1, 1], [], []>, precision = #tpu.contract_precision<fp32>} : vector<4x16xf32>, vector<16x16xf32>, vector<4x16xf32> -> vector<4x16xf32>
    %cst_17 = arith.constant dense<0.000000e+00> : vector<4x4xf32>
    %12 = tpu.matmul %11, %3, %cst_17 {dimension_numbers = #tpu.dot_dimension_numbers<[1], [0], [0], [1], [0, 0, 1, 1], [], []>, precision = #tpu.contract_precision<fp32>} : vector<4x16xf32>, vector<16x4xf32>, vector<4x4xf32> -> vector<4x4xf32>
    %c0_18 = arith.constant 0 : index
    %c0_19 = arith.constant 0 : index
    %c0_20 = arith.constant 0 : index
    %c0_21 = arith.constant 0 : index
    %13 = vector.load %arg8[%c0_18, %c0_19, %c0_20, %c0_21] : memref<1x4x4x4xf32, #tpu.memory_space<vmem>>, vector<1x1x4x4xf32>
    %14 = vector.shape_cast %13 : vector<1x1x4x4xf32> to vector<4x4xf32>
    %15 = vector.shape_cast %12 : vector<4x4xf32> to vector<1x1x4x4xf32>
    tpu.vector_store %arg8[%c0_18, %c0_19, %c0_20, %c0_21], %15 {strides = array<i32>} : memref<1x4x4x4xf32, #tpu.memory_space<vmem>>, vector<1x1x4x4xf32>,
    %c0_22 = arith.constant 0 : index
    %c1 = arith.constant 1 : index
    %c0_23 = arith.constant 0 : index
    %c0_24 = arith.constant 0 : index
    %16 = vector.load %arg6[%c0_22, %c1, %c0_23, %c0_24] : memref<1x4x16x16xf32, #tpu.memory_space<vmem>>, vector<1x1x16x16xf32>
    %17 = vector.shape_cast %16 : vector<1x1x16x16xf32> to vector<16x16xf32>
    %cst_25 = arith.constant dense<0.000000e+00> : vector<8x16xf32>
    %18 = tpu.matmul %0, %17, %cst_25 {dimension_numbers = #tpu.dot_dimension_numbers<[1], [0], [0], [1], [0, 0, 1, 1], [], []>, precision = #tpu.contract_precision<fp32>} : vector<8x16xf32>, vector<16x16xf32>, vector<8x16xf32> -> vector<8x16xf32>
    %cst_26 = arith.constant dense<0.000000e+00> : vector<8x8xf32>
    %19 = tpu.matmul %18, %1, %cst_26 {dimension_numbers = #tpu.dot_dimension_numbers<[1], [0], [0], [1], [0, 0, 1, 1], [], []>, precision = #tpu.contract_precision<fp32>} : vector<8x16xf32>, vector<16x8xf32>, vector<8x8xf32> -> vector<8x8xf32>
    %c0_27 = arith.constant 0 : index
    %c1_28 = arith.constant 1 : index
    %c0_29 = arith.constant 0 : index
    %c0_30 = arith.constant 0 : index
    %20 = vector.load %arg7[%c0_27, %c1_28, %c0_29, %c0_30] : memref<1x4x8x8xf32, #tpu.memory_space<vmem>>, vector<1x1x8x8xf32>
    %21 = vector.shape_cast %20 : vector<1x1x8x8xf32> to vector<8x8xf32>
    %22 = vector.shape_cast %19 : vector<8x8xf32> to vector<1x1x8x8xf32>
    tpu.vector_store %arg7[%c0_27, %c1_28, %c0_29, %c0_30], %22 {strides = array<i32>} : memref<1x4x8x8xf32, #tpu.memory_space<vmem>>, vector<1x1x8x8xf32>,
    %cst_31 = arith.constant dense<0.000000e+00> : vector<4x16xf32>
    %23 = tpu.matmul %2, %17, %cst_31 {dimension_numbers = #tpu.dot_dimension_numbers<[1], [0], [0], [1], [0, 0, 1, 1], [], []>, precision = #tpu.contract_precision<fp32>} : vector<4x16xf32>, vector<16x16xf32>, vector<4x16xf32> -> vector<4x16xf32>
    %cst_32 = arith.constant dense<0.000000e+00> : vector<4x4xf32>
    %24 = tpu.matmul %23, %3, %cst_32 {dimension_numbers = #tpu.dot_dimension_numbers<[1], [0], [0], [1], [0, 0, 1, 1], [], []>, precision = #tpu.contract_precision<fp32>} : vector<4x16xf32>, vector<16x4xf32>, vector<4x4xf32> -> vector<4x4xf32>
    %c0_33 = arith.constant 0 : index
    %c1_34 = arith.constant 1 : index
    %c0_35 = arith.constant 0 : index
    %c0_36 = arith.constant 0 : index
    %25 = vector.load %arg8[%c0_33, %c1_34, %c0_35, %c0_36] : memref<1x4x4x4xf32, #tpu.memory_space<vmem>>, vector<1x1x4x4xf32>
    %26 = vector.shape_cast %25 : vector<1x1x4x4xf32> to vector<4x4xf32>
    %27 = vector.shape_cast %24 : vector<4x4xf32> to vector<1x1x4x4xf32>
    tpu.vector_store %arg8[%c0_33, %c1_34, %c0_35, %c0_36], %27 {strides = array<i32>} : memref<1x4x4x4xf32, #tpu.memory_space<vmem>>, vector<1x1x4x4xf32>,
    %c0_37 = arith.constant 0 : index
    %c2 = arith.constant 2 : index
    %c0_38 = arith.constant 0 : index
    %c0_39 = arith.constant 0 : index
    %28 = vector.load %arg6[%c0_37, %c2, %c0_38, %c0_39] : memref<1x4x16x16xf32, #tpu.memory_space<vmem>>, vector<1x1x16x16xf32>
    %29 = vector.shape_cast %28 : vector<1x1x16x16xf32> to vector<16x16xf32>
    %cst_40 = arith.constant dense<0.000000e+00> : vector<8x16xf32>
    %30 = tpu.matmul %0, %29, %cst_40 {dimension_numbers = #tpu.dot_dimension_numbers<[1], [0], [0], [1], [0, 0, 1, 1], [], []>, precision = #tpu.contract_precision<fp32>} : vector<8x16xf32>, vector<16x16xf32>, vector<8x16xf32> -> vector<8x16xf32>
    %cst_41 = arith.constant dense<0.000000e+00> : vector<8x8xf32>
    %31 = tpu.matmul %30, %1, %cst_41 {dimension_numbers = #tpu.dot_dimension_numbers<[1], [0], [0], [1], [0, 0, 1, 1], [], []>, precision = #tpu.contract_precision<fp32>} : vector<8x16xf32>, vector<16x8xf32>, vector<8x8xf32> -> vector<8x8xf32>
    %c0_42 = arith.constant 0 : index
    %c2_43 = arith.constant 2 : index
    %c0_44 = arith.constant 0 : index
    %c0_45 = arith.constant 0 : index
    %32 = vector.load %arg7[%c0_42, %c2_43, %c0_44, %c0_45] : memref<1x4x8x8xf32, #tpu.memory_space<vmem>>, vector<1x1x8x8xf32>
    %33 = vector.shape_cast %32 : vector<1x1x8x8xf32> to vector<8x8xf32>
    %34 = vector.shape_cast %31 : vector<8x8xf32> to vector<1x1x8x8xf32>
    tpu.vector_store %arg7[%c0_42, %c2_43, %c0_44, %c0_45], %34 {strides = array<i32>} : memref<1x4x8x8xf32, #tpu.memory_space<vmem>>, vector<1x1x8x8xf32>,
    %cst_46 = arith.constant dense<0.000000e+00> : vector<4x16xf32>
    %35 = tpu.matmul %2, %29, %cst_46 {dimension_numbers = #tpu.dot_dimension_numbers<[1], [0], [0], [1], [0, 0, 1, 1], [], []>, precision = #tpu.contract_precision<fp32>} : vector<4x16xf32>, vector<16x16xf32>, vector<4x16xf32> -> vector<4x16xf32>
    %cst_47 = arith.constant dense<0.000000e+00> : vector<4x4xf32>
    %36 = tpu.matmul %35, %3, %cst_47 {dimension_numbers = #tpu.dot_dimension_numbers<[1], [0], [0], [1], [0, 0, 1, 1], [], []>, precision = #tpu.contract_precision<fp32>} : vector<4x16xf32>, vector<16x4xf32>, vector<4x4xf32> -> vector<4x4xf32>
    %c0_48 = arith.constant 0 : index
    %c2_49 = arith.constant 2 : index
    %c0_50 = arith.constant 0 : index
    %c0_51 = arith.constant 0 : index
    %37 = vector.load %arg8[%c0_48, %c2_49, %c0_50, %c0_51] : memref<1x4x4x4xf32, #tpu.memory_space<vmem>>, vector<1x1x4x4xf32>
    %38 = vector.shape_cast %37 : vector<1x1x4x4xf32> to vector<4x4xf32>
    %39 = vector.shape_cast %36 : vector<4x4xf32> to vector<1x1x4x4xf32>
    tpu.vector_store %arg8[%c0_48, %c2_49, %c0_50, %c0_51], %39 {strides = array<i32>} : memref<1x4x4x4xf32, #tpu.memory_space<vmem>>, vector<1x1x4x4xf32>,
    %c0_52 = arith.constant 0 : index
    %c3 = arith.constant 3 : index
    %c0_53 = arith.constant 0 : index
    %c0_54 = arith.constant 0 : index
    %40 = vector.load %arg6[%c0_52, %c3, %c0_53, %c0_54] : memref<1x4x16x16xf32, #tpu.memory_space<vmem>>, vector<1x1x16x16xf32>
    %41 = vector.shape_cast %40 : vector<1x1x16x16xf32> to vector<16x16xf32>
    %cst_55 = arith.constant dense<0.000000e+00> : vector<8x16xf32>
    %42 = tpu.matmul %0, %41, %cst_55 {dimension_numbers = #tpu.dot_dimension_numbers<[1], [0], [0], [1], [0, 0, 1, 1], [], []>, precision = #tpu.contract_precision<fp32>} : vector<8x16xf32>, vector<16x16xf32>, vector<8x16xf32> -> vector<8x16xf32>
    %cst_56 = arith.constant dense<0.000000e+00> : vector<8x8xf32>
    %43 = tpu.matmul %42, %1, %cst_56 {dimension_numbers = #tpu.dot_dimension_numbers<[1], [0], [0], [1], [0, 0, 1, 1], [], []>, precision = #tpu.contract_precision<fp32>} : vector<8x16xf32>, vector<16x8xf32>, vector<8x8xf32> -> vector<8x8xf32>
    %c0_57 = arith.constant 0 : index
    %c3_58 = arith.constant 3 : index
    %c0_59 = arith.constant 0 : index
    %c0_60 = arith.constant 0 : index
    %44 = vector.load %arg7[%c0_57, %c3_58, %c0_59, %c0_60] : memref<1x4x8x8xf32, #tpu.memory_space<vmem>>, vector<1x1x8x8xf32>
    %45 = vector.shape_cast %44 : vector<1x1x8x8xf32> to vector<8x8xf32>
    %46 = vector.shape_cast %43 : vector<8x8xf32> to vector<1x1x8x8xf32>
    tpu.vector_store %arg7[%c0_57, %c3_58, %c0_59, %c0_60], %46 {strides = array<i32>} : memref<1x4x8x8xf32, #tpu.memory_space<vmem>>, vector<1x1x8x8xf32>,
    %cst_61 = arith.constant dense<0.000000e+00> : vector<4x16xf32>
    %47 = tpu.matmul %2, %41, %cst_61 {dimension_numbers = #tpu.dot_dimension_numbers<[1], [0], [0], [1], [0, 0, 1, 1], [], []>, precision = #tpu.contract_precision<fp32>} : vector<4x16xf32>, vector<16x16xf32>, vector<4x16xf32> -> vector<4x16xf32>
    %cst_62 = arith.constant dense<0.000000e+00> : vector<4x4xf32>
    %48 = tpu.matmul %47, %3, %cst_62 {dimension_numbers = #tpu.dot_dimension_numbers<[1], [0], [0], [1], [0, 0, 1, 1], [], []>, precision = #tpu.contract_precision<fp32>} : vector<4x16xf32>, vector<16x4xf32>, vector<4x4xf32> -> vector<4x4xf32>
    %c0_63 = arith.constant 0 : index
    %c3_64 = arith.constant 3 : index
    %c0_65 = arith.constant 0 : index
    %c0_66 = arith.constant 0 : index
    %49 = vector.load %arg8[%c0_63, %c3_64, %c0_65, %c0_66] : memref<1x4x4x4xf32, #tpu.memory_space<vmem>>, vector<1x1x4x4xf32>
    %50 = vector.shape_cast %49 : vector<1x1x4x4xf32> to vector<4x4xf32>
    %51 = vector.shape_cast %48 : vector<4x4xf32> to vector<1x1x4x4xf32>
    tpu.vector_store %arg8[%c0_63, %c3_64, %c0_65, %c0_66], %51 {strides = array<i32>} : memref<1x4x4x4xf32, #tpu.memory_space<vmem>>, vector<1x1x4x4xf32>,
    return
  }
  func.func @transform_0(%arg0: i32, %arg1: i32) -> (i32, i32) {
    %c0_i32 = arith.constant 0 : i32
    %c0_i32_0 = arith.constant 0 : i32
    %c0_i32_1 = arith.constant 0 : i32
    return %c0_i32, %c0_i32_0 : i32, i32
  }
  func.func @transform_1(%arg0: i32, %arg1: i32) -> (i32, i32) {
    %c0_i32 = arith.constant 0 : i32
    %c0_i32_0 = arith.constant 0 : i32
    %c0_i32_1 = arith.constant 0 : i32
    return %c0_i32, %c0_i32_0 : i32, i32
  }
  func.func @transform_2(%arg0: i32, %arg1: i32) -> (i32, i32) {
    %c0_i32 = arith.constant 0 : i32
    %c0_i32_0 = arith.constant 0 : i32
    %c0_i32_1 = arith.constant 0 : i32
    return %c0_i32, %c0_i32_0 : i32, i32
  }
  func.func @transform_3(%arg0: i32, %arg1: i32) -> (i32, i32) {
    %c0_i32 = arith.constant 0 : i32
    %c0_i32_0 = arith.constant 0 : i32
    %c0_i32_1 = arith.constant 0 : i32
    return %c0_i32, %c0_i32_0 : i32, i32
  }
  func.func @transform_4(%arg0: i32, %arg1: i32) -> (i32, i32, i32, i32) {
    %c0_i32 = arith.constant 0 : i32
    %c0_i32_0 = arith.constant 0 : i32
    %c0_i32_1 = arith.constant 0 : i32
    return %arg0, %arg1, %c0_i32, %c0_i32_0 : i32, i32, i32, i32
  }
  func.func @transform_5(%arg0: i32, %arg1: i32) -> (i32, i32, i32, i32) {
    %c0_i32 = arith.constant 0 : i32
    %c0_i32_0 = arith.constant 0 : i32
    %c0_i32_1 = arith.constant 0 : i32
    return %arg0, %arg1, %c0_i32, %c0_i32_0 : i32, i32, i32, i32
  }
  func.func @transform_6(%arg0: i32, %arg1: i32) -> (i32, i32, i32, i32) {
    %c0_i32 = arith.constant 0 : i32
    %c0_i32_0 = arith.constant 0 : i32
    %c0_i32_1 = arith.constant 0 : i32
    return %arg0, %arg1, %c0_i32, %c0_i32_0 : i32, i32, i32, i32
  }
}

</mosaic_0001>

<llo_original>
// kernel: tpu_custom_call.1
$region0: #{tpu_custom_call.1}
  #allocation0 [shape = 'u32[]', space=smem, size = 0x4, offset = 0x4, fixed_abs, tag = 'smem constant byte address 0x4 - core index']
  #allocation1 [shape = 'u32[144,128]{1,0:T(1,128)}', space=vmem, size = 0x12000, scoped, tag = 'internal scratch']
  %s0 = inlined_call_operand.vmem [shape: f32[8,16], index: 0, kind: input, shape index: {}]
  %s1 = inlined_call_operand.vmem [shape: f32[16,8], index: 1, kind: input, shape index: {}]
  %s2 = inlined_call_operand.vmem [shape: f32[4,16], index: 2, kind: input, shape index: {}]
  %s3 = inlined_call_operand.vmem [shape: f32[16,4], index: 3, kind: input, shape index: {}]
  %s4 = inlined_call_operand.hbm [shape: f32[2,4,16,16], index: 4, kind: input, shape index: {}]
  %s5 = inlined_call_operand.hbm [shape: f32[2,4,8,8], index: 5, kind: output, shape index: {0}]
  %s6 = inlined_call_operand.hbm [shape: f32[2,4,4,4], index: 6, kind: output, shape index: {1}]
  %7 = xla_tuple %s5, %s6
  %s8 = sld [smem:[#allocation0]]
  $region65: #{tpu_custom_call.1} parent=0
    _
  %s10 = ssub.s32 1, %s8
  %s11 = scalar_select 0, %s10, %s8
  $region1: #{tpu_custom_call.1} parent=0
    #allocation2 [shape = 'u8[65536]{0}', space=vmem, size = 0x10000, scoped, tag = 'input window, operand 4']
    #allocation3 [shape = 's32[2]{0}', space=sflag, size = 0x8, scoped, tag = 'scoped memory for tpu_custom_call.1']
    #allocation4 [shape = 's32[2]{0}', space=sflag, size = 0x8, scoped, tag = 'scoped memory for tpu_custom_call.1']
    #allocation5 [shape = 'u8[32768]{0}', space=vmem, size = 0x8000, scoped, tag = 'output window, operand 0']
    #allocation6 [shape = 'u8[16384]{0}', space=vmem, size = 0x4000, scoped, tag = 'output window, operand 1']
    #allocation7 [shape = 's32[2]{0}', space=sflag, size = 0x8, scoped, tag = 'scoped memory for tpu_custom_call.1']
    %12 = vsyncpa [#allocation3], 0
    %s13 = scalar_lea.sflag [#allocation3], 1
    %14 = vsyncpa %s13, 0
    %15 = vsyncpa [#allocation4], 0
    %s16 = scalar_lea.sflag [#allocation4], 1
    %17 = vsyncpa %s16, 0
    %18 = vsyncpa [#allocation7], 0
    %s19 = scalar_lea.sflag [#allocation7], 1
    %20 = vsyncpa %s19, 0
    loop: start=0, step=1, limit=4
    $region2: #{tpu_custom_call.1} parent=1 // loop_pre_header
      _
    $region3: #{tpu_custom_call.1} parent=1 // loop_header
      %s22 = sphi 0, %s26
      %p23 = scmp.ge.s32.totalorder %s22, 4
      %s29 = sphi 0, %s41
      %s30 = sphi 0, %s37
      %s31 = sphi 0, %s29
      %s32 = sphi 0, %s30
      %s33 = sphi 0, %s31
      %s34 = sphi 0, %s32
      %s42 = sphi 0, %s42
      %s44 = sphi 0, %s42
      %s45 = sphi 0, %s44
      %s59 = sphi 0, %s45
      %s63 = sphi 0, %s63
      %s65 = sphi 0, %s63
      %s66 = sphi 0, %s65
      %s80 = sphi 0, %s66
      %s84 = sphi 0, %s84
      %s86 = sphi 0, %s84
      %s87 = sphi 0, %s86
      %s101 = sphi 0, %s87
      %s105 = sphi 0, %s105
      %s107 = sphi 0, %s105
      %s108 = sphi 0, %s107
      %s122 = sphi 0, %s108
      %s130 = sphi 0, %s132
      %s133 = sphi 0, %s130
      %s134 = sphi 0, %s133
      %s150 = sphi 0, %s134
      %s158 = sphi 0, %s160
      %s161 = sphi 0, %s158
      %s162 = sphi 0, %s161
      %s178 = sphi 0, %s162
      %s186 = sphi 0, %s188
      %s189 = sphi 0, %s186
      %s190 = sphi 0, %s189
      %s206 = sphi 0, %s190
    $region4: #{tpu_custom_call.1} parent=1 // loop_header_branch
      %25 = sbr.rel (%p23) target = $region8
    $region5: #{tpu_custom_call.1} parent=1 // loop_body
      %s27 = ssub.s32 %s22, 1
      %s28 = ssub.s32 %s22, 2
      %s35 = sadd.s32 1, %s30
      %p36 = scmp.ge.s32.totalorder %s35, 1
      %s37 = scalar_select %p36, 0, %s35
      %s38 = sadd.s32 1, %s29
      %s39 = scalar_select %p36, %s38, %s29
      %p40 = scmp.ge.s32.totalorder %s39, 2
      %s41 = scalar_select %p40, 0, %s39
      %s43 = sadd.s32 %s42, 1
      %p46 = scmp.eq.s32.totalorder %s22, 1
      %p47 = scmp.ne.s32.totalorder %s42, %s44
      %p48 = scmp.eq.s32.totalorder %s22, 0
      %p49 = por %p47, %p48
      %p50 = scmp.ne.s32.totalorder %s42, %s44
      %p51 = scmp.eq.s32.totalorder %s27, 1
      %p52 = por %p50, %p51
      %p53 = scmp.ne.s32.totalorder %s44, %s45
      %p54 = scmp.eq.s32.totalorder %s27, 0
      %p55 = por %p53, %p54
      %p56 = scmp.ne.s32.totalorder %s44, %s45
      %p57 = scmp.eq.s32.totalorder %s28, 1
      %p58 = por %p56, %p57
      %p60 = scmp.ne.s32.totalorder %s45, %s59
      %p61 = scmp.eq.s32.totalorder %s28, 0
      %p62 = por %p60, %p61
      %s64 = sadd.s32 %s63, 1
      %p67 = scmp.eq.s32.totalorder %s22, 1
      %p68 = scmp.ne.s32.totalorder %s63, %s65
      %p69 = scmp.eq.s32.totalorder %s22, 0
      %p70 = por %p68, %p69
      %p71 = scmp.ne.s32.totalorder %s63, %s65
      %p72 = scmp.eq.s32.totalorder %s27, 1
      %p73 = por %p71, %p72
      %p74 = scmp.ne.s32.totalorder %s65, %s66
      %p75 = scmp.eq.s32.totalorder %s27, 0
      %p76 = por %p74, %p75
      %p77 = scmp.ne.s32.totalorder %s65, %s66
      %p78 = scmp.eq.s32.totalorder %s28, 1
      %p79 = por %p77, %p78
      %p81 = scmp.ne.s32.totalorder %s66, %s80
      %p82 = scmp.eq.s32.totalorder %s28, 0
      %p83 = por %p81, %p82
      %s85 = sadd.s32 %s84, 1
      %p88 = scmp.eq.s32.totalorder %s22, 1
      %p89 = scmp.ne.s32.totalorder %s84, %s86
      %p90 = scmp.eq.s32.totalorder %s22, 0
      %p91 = por %p89, %p90
      %p92 = scmp.ne.s32.totalorder %s84, %s86
      %p93 = scmp.eq.s32.totalorder %s27, 1
      %p94 = por %p92, %p93
      %p95 = scmp.ne.s32.totalorder %s86, %s87
      %p96 = scmp.eq.s32.totalorder %s27, 0
      %p97 = por %p95, %p96
      %p98 = scmp.ne.s32.totalorder %s86, %s87
      %p99 = scmp.eq.s32.totalorder %s28, 1
      %p100 = por %p98, %p99
      %p102 = scmp.ne.s32.totalorder %s87, %s101
      %p103 = scmp.eq.s32.totalorder %s28, 0
      %p104 = por %p102, %p103
      %s106 = sadd.s32 %s105, 1
      %p109 = scmp.eq.s32.totalorder %s22, 1
      %p110 = scmp.ne.s32.totalorder %s105, %s107
      %p111 = scmp.eq.s32.totalorder %s22, 0
      %p112 = por %p110, %p111
      %p113 = scmp.ne.s32.totalorder %s105, %s107
      %p114 = scmp.eq.s32.totalorder %s27, 1
      %p115 = por %p113, %p114
      %p116 = scmp.ne.s32.totalorder %s107, %s108
      %p117 = scmp.eq.s32.totalorder %s27, 0
      %p118 = por %p116, %p117
      %p119 = scmp.ne.s32.totalorder %s107, %s108
      %p120 = scmp.eq.s32.totalorder %s28, 1
      %p121 = por %p119, %p120
      %p123 = scmp.ne.s32.totalorder %s108, %s122
      %p124 = scmp.eq.s32.totalorder %s28, 0
      %p125 = por %p123, %p124
      %s126 = ssub.s32 %s29, %s41
      %s127 = ssub.s32 %s30, %s37
      %s128 = sor.u32 %s126, %s127
      %p129 = scmp.eq.s32.totalorder %s128, 0
      %s131 = sadd.s32 %s130, 1
      %s132 = scalar_select %p129, %s130, %s131
      %p135 = pneg %p129
      %p136 = scmp.eq.s32.totalorder %s22, 1
      %p137 = por %p135, %p136
      %p138 = scmp.ne.s32.totalorder %s130, %s133
      %p139 = scmp.eq.s32.totalorder %s22, 0
      %p140 = por %p138, %p139
      %p141 = scmp.ne.s32.totalorder %s130, %s133
      %p142 = scmp.eq.s32.totalorder %s27, 1
      %p143 = por %p141, %p142
      %p144 = scmp.ne.s32.totalorder %s133, %s134
      %p145 = scmp.eq.s32.totalorder %s27, 0
      %p146 = por %p144, %p145
      %p147 = scmp.ne.s32.totalorder %s133, %s134
      %p148 = scmp.eq.s32.totalorder %s28, 1
      %p149 = por %p147, %p148
      %p151 = scmp.ne.s32.totalorder %s134, %s150
      %p152 = scmp.eq.s32.totalorder %s28, 0
      %p153 = por %p151, %p152
      %s154 = ssub.s32 %s29, %s41
      %s155 = ssub.s32 %s30, %s37
      %s156 = sor.u32 %s154, %s155
      %p157 = scmp.eq.s32.totalorder %s156, 0
      %s159 = sadd.s32 %s158, 1
      %s160 = scalar_select %p157, %s158, %s159
      %p163 = pneg %p157
      %p164 = scmp.eq.s32.totalorder %s22, 1
      %p165 = por %p163, %p164
      %p166 = scmp.ne.s32.totalorder %s158, %s161
      %p167 = scmp.eq.s32.totalorder %s22, 0
      %p168 = por %p166, %p167
      %p169 = scmp.ne.s32.totalorder %s158, %s161
      %p170 = scmp.eq.s32.totalorder %s27, 1
      %p171 = por %p169, %p170
      %p172 = scmp.ne.s32.totalorder %s161, %s162
      %p173 = scmp.eq.s32.totalorder %s27, 0
      %p174 = por %p172, %p173
      %p175 = scmp.ne.s32.totalorder %s161, %s162
      %p176 = scmp.eq.s32.totalorder %s28, 1
      %p177 = por %p175, %p176
      %p179 = scmp.ne.s32.totalorder %s162, %s178
      %p180 = scmp.eq.s32.totalorder %s28, 0
      %p181 = por %p179, %p180
      %s182 = ssub.s32 %s29, %s41
      %s183 = ssub.s32 %s30, %s37
      %s184 = sor.u32 %s182, %s183
      %p185 = scmp.eq.s32.totalorder %s184, 0
      %s187 = sadd.s32 %s186, 1
      %s188 = scalar_select %p185, %s186, %s187
      %p191 = pneg %p185
      %p192 = scmp.eq.s32.totalorder %s22, 1
      %p193 = por %p191, %p192
      %p194 = scmp.ne.s32.totalorder %s186, %s189
      %p195 = scmp.eq.s32.totalorder %s22, 0
      %p196 = por %p194, %p195
      %p197 = scmp.ne.s32.totalorder %s186, %s189
      %p198 = scmp.eq.s32.totalorder %s27, 1
      %p199 = por %p197, %p198
      %p200 = scmp.ne.s32.totalorder %s189, %s190
      %p201 = scmp.eq.s32.totalorder %s27, 0
      %p202 = por %p200, %p201
      %p203 = scmp.ne.s32.totalorder %s189, %s190
      %p204 = scmp.eq.s32.totalorder %s28, 1
      %p205 = por %p203, %p204
      %p207 = scmp.ne.s32.totalorder %s190, %s206
      %p208 = scmp.eq.s32.totalorder %s28, 0
      %p209 = por %p207, %p208
      %p210 = scmp.le.s32.totalorder 1, %s22
      %p211 = scmp.lt.s32.totalorder %s22, 3
      %p212 = pnand %p210, %p211
      %p213 = pneg %p212
      // Predicated region
      $region9: #{tpu_custom_call.1} parent=5 // pred_check
        _
      $region10: #{tpu_custom_call.1} parent=5 // pred_check_branch
        %215 = sbr.rel (%p212) target = $region12
      $region11: #{tpu_custom_call.1} parent=5 // pred_region
        %s216 = ssub.s32 %s22, 1
        // Predicated region
        $region13: #{tpu_custom_call.1} parent=11 // pred_check
          %p217 = pneg %p55
        $region14: #{tpu_custom_call.1} parent=11 // pred_check_branch
          %219 = sbr.rel (%p217) target = $region16
        $region15: #{tpu_custom_call.1} parent=11 // pred_region
          _
        $region16: #{tpu_custom_call.1} parent=11 // pred_fallthru
          _
        // Predicated region
        $region17: #{tpu_custom_call.1} parent=11 // pred_check
          %p220 = pneg %p76
        $region18: #{tpu_custom_call.1} parent=11 // pred_check_branch
          %222 = sbr.rel (%p220) target = $region20
        $region19: #{tpu_custom_call.1} parent=11 // pred_region
          _
        $region20: #{tpu_custom_call.1} parent=11 // pred_fallthru
          _
        // Predicated region
        $region21: #{tpu_custom_call.1} parent=11 // pred_check
          %p223 = pneg %p97
        $region22: #{tpu_custom_call.1} parent=11 // pred_check_branch
          %225 = sbr.rel (%p223) target = $region24
        $region23: #{tpu_custom_call.1} parent=11 // pred_region
          _
        $region24: #{tpu_custom_call.1} parent=11 // pred_fallthru
          _
        // Predicated region
        $region25: #{tpu_custom_call.1} parent=11 // pred_check
          %p226 = pneg %p118
        $region26: #{tpu_custom_call.1} parent=11 // pred_check_branch
          %228 = sbr.rel (%p226) target = $region28
        $region27: #{tpu_custom_call.1} parent=11 // pred_region
          _
        $region28: #{tpu_custom_call.1} parent=11 // pred_fallthru
          _
      $region12: #{tpu_custom_call.1} parent=5 // pred_fallthru
        _
      %p229 = scmp.lt.s32.totalorder %s22, 2
      // Predicated region
      $region29: #{tpu_custom_call.1} parent=5 // pred_check
        %p230 = pneg %p229
      $region30: #{tpu_custom_call.1} parent=5 // pred_check_branch
        %232 = sbr.rel (%p230) target = $region32
      $region31: #{tpu_custom_call.1} parent=5 // pred_region
        // Predicated region
        $region33: #{tpu_custom_call.1} parent=31 // pred_check
          %p233 = pneg %p140
        $region34: #{tpu_custom_call.1} parent=31 // pred_check_branch
          %235 = sbr.rel (%p233) target = $region36
        $region35: #{tpu_custom_call.1} parent=31 // pred_region
          %s236 = sand.u32 %s130, 1
          %s237 = scalar_lea.sflag [#allocation3], %s236
          %s238 = sand.u32 %s130, 1
          %s239 = smul.addr %s238, 64
          %s240 = scalar_lea.vmem [#allocation2], %s239
          %s241 = smul.u32 4, %s30
          %s243 = ssub.s32 1024, 1024
          %244 = vsyncadd %s237, %s243
          %s245 = smul.addr %s241, 2
          %s246 = smul.addr %s29, 8
          %s247 = sadd.s32 %s245, %s246
          %s248 = smul.addr %s247, 128
          %s249 = scalar_lea.hbm %s4, %s248
          %s250 = sshll.u32 %s240, 4
          %s251 = int_to_ptr.vmem [resolvable:$true] %s250
          %256 = dma.hbm_to_vmem [thread:$0]  %s249, 1024, %s251, %s237, 128, 128, 8
        $region36: #{tpu_custom_call.1} parent=31 // pred_fallthru
          _
      $region32: #{tpu_custom_call.1} parent=5 // pred_fallthru
        _
      %p257 = scmp.le.s32.totalorder 1, %s22
      %p258 = scmp.lt.s32.totalorder %s22, 3
      %p259 = pnand %p257, %p258
      %p260 = pneg %p259
      // Predicated region
      $region37: #{tpu_custom_call.1} parent=5 // pred_check
        _
      $region38: #{tpu_custom_call.1} parent=5 // pred_check_branch
        %262 = sbr.rel (%p259) target = $region40
      $region39: #{tpu_custom_call.1} parent=5 // pred_region
        %s263 = ssub.s32 %s22, 1
        %s264 = sand.u32 %s133, 1
        %s265 = scalar_lea.sflag [#allocation3], %s264
        %s266 = sand.u32 %s133, 1
        %s267 = smul.addr %s266, 64
        %s268 = scalar_lea.vmem [#allocation2], %s267
        // Predicated region
        $region41: #{tpu_custom_call.1} parent=39 // pred_check
          %p269 = pneg %p146
        $region42: #{tpu_custom_call.1} parent=39 // pred_check_branch
          %271 = sbr.rel (%p269) target = $region44
        $region43: #{tpu_custom_call.1} parent=39 // pred_region
          %272 = dma.done %s265, 1024
        $region44: #{tpu_custom_call.1} parent=39 // pred_fallthru
          _
        %p273 = pneg %p55
        %p274 = pneg %p52
        %p275 = pneg %p76
        %p276 = pneg %p73
        %p277 = pneg %p97
        %p278 = pneg %p94
        %p279 = pneg %p118
        %p280 = pneg %p115
        %s281 = sand.u32 %s133, 1
        %s282 = scalar_lea.sflag [#allocation3], %s281
        %s283 = sand.u32 %s133, 1
        %s284 = smul.addr %s283, 64
        %s285 = scalar_lea.vmem [#allocation2], %s284
        %p286 = pneg %p146
        %p287 = pneg %p143
        %p288 = pneg %p174
        %p289 = pneg %p171
        %s290 = sand.u32 %s161, 1
        %s291 = scalar_lea.sflag [#allocation4], %s290
        %s292 = sand.u32 %s161, 1
        %s293 = smul.addr %s292, 32
        %s294 = scalar_lea.vmem [#allocation5], %s293
        %p295 = pneg %p202
        %p296 = pneg %p199
        %s297 = sand.u32 %s189, 1
        %s298 = scalar_lea.sflag [#allocation7], %s297
        %s299 = sand.u32 %s189, 1
        %s300 = smul.addr %s299, 16
        %s301 = scalar_lea.vmem [#allocation6], %s300
        %s302 = smul.u32 4, %s32
        %s303 = smul.u32 4, %s32
        %s304 = smul.u32 4, %s32
        %v305 = vld [vmem:[%s0] sm:$0xff]
        %v306 = vld [vmem:[%s1] sm:$0xff]
        %v307 = vld [vmem:[%s1 + $0x8] sm:$0xff]
        %v308 = vld [vmem:[%s2] sm:$0xf]
        %v309 = vld [vmem:[%s3] sm:$0xff]
        %v310 = vld [vmem:[%s3 + $0x8] sm:$0xff]
        %v311 = vld [vmem:[%s268] sm:$0xff]
        %v312 = vld [vmem:[%s268 + $0x8] sm:$0xff]
        %vm313 = vcmask 130048
        %v315 = vsel %vm313, %v305, 0
        %317 = vmatprep.subr.mxu0 0.0
        %v318 = vand.u32 %v311, 4294901760
        %319 = vmatpush1.msra.mxu0 %v318
        %320 = vmatprep.subr.mxu0 0.0
        %v321 = vand.u32 %v312, 4294901760
        %322 = vmatpush1.msra.mxu0 %v321
        %323 = vmatprep.subr.mxu0 0.0
        %324 = vmatpush1.msra.mxu0 0.0
        %325 = vmatprep.subr.mxu0 0.0
        %326 = vmatpush1.msra.mxu0 0.0
        %327 = vmatprep.subr.mxu0 0.0
        %328 = vmatpush1.msra.mxu0 0.0
        %329 = vmatprep.subr.mxu0 0.0
        %330 = vmatpush1.msra.mxu0 0.0
        %331 = vmatprep.subr.mxu0 0.0
        %332 = vmatpush1.msra.mxu0 0.0
        %333 = vmatprep.subr.mxu0 0.0
        %334 = vmatpush1.msra.mxu0 0.0
        %335 = vmatprep.subr.mxu0 0.0
        %336 = vmatpush1.msra.mxu0 0.0
        %337 = vmatprep.subr.mxu0 0.0
        %338 = vmatpush1.msra.mxu0 0.0
        %339 = vmatprep.subr.mxu0 0.0
        %340 = vmatpush1.msra.mxu0 0.0
        %341 = vmatprep.subr.mxu0 0.0
        %342 = vmatpush1.msra.mxu0 0.0
        %343 = vmatprep.subr.mxu0 0.0
        %344 = vmatpush1.msra.mxu0 0.0
        %345 = vmatprep.subr.mxu0 0.0
        %346 = vmatpush1.msra.mxu0 0.0
        %347 = vmatprep.subr.mxu0 0.0
        %348 = vmatpush1.msra.mxu0 0.0
        %349 = vmatprep.subr.mxu0 0.0
        %350 = vmatpush1.msra.mxu0 0.0
        %351 = vmatprep.subr.mxu0 0.0
        %352 = vmatpush1.msra.mxu0 0.0
        %353 = vmatprep.subr.mxu0 0.0
        %354 = vmatpush1.msra.mxu0 0.0
        %355 = vmatprep.subr.mxu0 0.0
        %356 = vmatpush1.msra.mxu0 0.0
        %357 = vmatprep.subr.mxu0 0.0
        %358 = vmatpush1.msra.mxu0 0.0
        %359 = vmatprep.subr.mxu0 0.0
        %360 = vmatpush1.msra.mxu0 0.0
        %361 = vmatprep.subr.mxu0 0.0
        %362 = vmatpush1.msra.mxu0 0.0
        %363 = vmatprep.subr.mxu0 0.0
        %364 = vmatpush1.msra.mxu0 0.0
        %365 = vmatprep.subr.mxu0 0.0
        %366 = vmatpush1.msra.mxu0 0.0
        %367 = vmatprep.subr.mxu0 0.0
        %368 = vmatpush1.msra.mxu0 0.0
        %369 = vmatprep.subr.mxu0 0.0
        %370 = vmatpush1.msra.mxu0 0.0
        %371 = vmatprep.subr.mxu0 0.0
        %372 = vmatpush1.msra.mxu0 0.0
        %373 = vmatprep.subr.mxu0 0.0
        %374 = vmatpush1.msra.mxu0 0.0
        %375 = vmatprep.subr.mxu0 0.0
        %376 = vmatpush1.msra.mxu0 0.0
        %377 = vmatprep.subr.mxu0 0.0
        %378 = vmatpush1.msra.mxu0 0.0
        %379 = vmatprep.subr.mxu0 0.0
        %380 = vmatpush1.msra.mxu0 0.0
        %381 = vmatprep.subr.mxu0 0.0
        %382 = vmatpush1.msra.mxu0 0.0
        %383 = vmatprep.mubr.f32.mxu0 0.0
        %v384 = vand.u32 %v315, 4294901760
        %v385 = vsub.f32 %v315, %v384
        %v386 = vand.u32 %v385, 4294901760
        %v387 = vsub.f32 %v385, %v386
        %v388 = vand.u32 %v387, 4294901760
        %389 = vmatmul.mubr.f32.gmra.mrb[0].mxu0 %v388
        %v390 = vpop.f32.mrb[0].mxu0
        %v391 = vadd.f32 0.0, %v390
        %v392 = vpop.f32.mrb[0].mxu0
        %393 = vdwg.mxu0
        %394 = vmatprep.subr.mxu0 0.0
        %v395 = vand.u32 %v311, 4294901760
        %v396 = vsub.f32 %v311, %v395
        %v397 = vand.u32 %v396, 4294901760
        %v398 = vsub.f32 %v396, %v397
        %v399 = vand.u32 %v398, 4294901760
        %400 = vmatpush1.msra.mxu0 %v399
        %401 = vmatprep.subr.mxu0 0.0
        %v402 = vand.u32 %v312, 4294901760
        %v403 = vsub.f32 %v312, %v402
        %v404 = vand.u32 %v403, 4294901760
        %v405 = vsub.f32 %v403, %v404
        %v406 = vand.u32 %v405, 4294901760
        %407 = vmatpush1.msra.mxu0 %v406
        %408 = vmatprep.subr.mxu0 0.0
        %409 = vmatpush1.msra.mxu0 0.0
        %410 = vmatprep.subr.mxu0 0.0
        %411 = vmatpush1.msra.mxu0 0.0
        %412 = vmatprep.subr.mxu0 0.0
        %413 = vmatpush1.msra.mxu0 0.0
        %414 = vmatprep.subr.mxu0 0.0
        %415 = vmatpush1.msra.mxu0 0.0
        %416 = vmatprep.subr.mxu0 0.0
        %417 = vmatpush1.msra.mxu0 0.0
        %418 = vmatprep.subr.mxu0 0.0
        %419 = vmatpush1.msra.mxu0 0.0
        %420 = vmatprep.subr.mxu0 0.0
        %421 = vmatpush1.msra.mxu0 0.0
        %422 = vmatprep.subr.mxu0 0.0
        %423 = vmatpush1.msra.mxu0 0.0
        %424 = vmatprep.subr.mxu0 0.0
        %425 = vmatpush1.msra.mxu0 0.0
        %426 = vmatprep.subr.mxu0 0.0
        %427 = vmatpush1.msra.mxu0 0.0
        %428 = vmatprep.subr.mxu0 0.0
        %429 = vmatpush1.msra.mxu0 0.0
        %430 = vmatprep.subr.mxu0 0.0
        %431 = vmatpush1.msra.mxu0 0.0
        %432 = vmatprep.subr.mxu0 0.0
        %433 = vmatpush1.msra.mxu0 0.0
        %434 = vmatprep.subr.mxu0 0.0
        %435 = vmatpush1.msra.mxu0 0.0
        %436 = vmatprep.subr.mxu0 0.0
        %437 = vmatpush1.msra.mxu0 0.0
        %438 = vmatprep.subr.mxu0 0.0
        %439 = vmatpush1.msra.mxu0 0.0
        %440 = vmatprep.subr.mxu0 0.0
        %441 = vmatpush1.msra.mxu0 0.0
        %442 = vmatprep.subr.mxu0 0.0
        %443 = vmatpush1.msra.mxu0 0.0
        %444 = vmatprep.subr.mxu0 0.0
        %445 = vmatpush1.msra.mxu0 0.0
        %446 = vmatprep.subr.mxu0 0.0
        %447 = vmatpush1.msra.mxu0 0.0
        %448 = vmatprep.subr.mxu0 0.0
        %449 = vmatpush1.msra.mxu0 0.0
        %450 = vmatprep.subr.mxu0 0.0
        %451 = vmatpush1.msra.mxu0 0.0
        %452 = vmatprep.subr.mxu0 0.0
        %453 = vmatpush1.msra.mxu0 0.0
        %454 = vmatprep.subr.mxu0 0.0
        %455 = vmatpush1.msra.mxu0 0.0
        %456 = vmatprep.subr.mxu0 0.0
        %457 = vmatpush1.msra.mxu0 0.0
        %458 = vmatprep.subr.mxu0 0.0
        %459 = vmatpush1.msra.mxu0 0.0
        %460 = vmatprep.subr.mxu0 0.0
        %461 = vmatpush1.msra.mxu0 0.0
        %462 = vmatprep.subr.mxu0 0.0
        %463 = vmatpush1.msra.mxu0 0.0
        %464 = vmatprep.subr.mxu0 0.0
        %465 = vmatpush1.msra.mxu0 0.0
        %466 = vmatprep.subr.mxu0 0.0
        %467 = vmatpush1.msra.mxu0 0.0
        %468 = vmatprep.mubr.f32.mxu0 0.0
        %v469 = vand.u32 %v315, 4294901760
        %470 = vmatmul.mubr.f32.gmra.mrb[0].mxu0 %v469
        %v471 = vpop.f32.mrb[0].mxu0
        %v472 = vadd.f32 %v391, %v471
        %v473 = vpop.f32.mrb[0].mxu0
        %474 = vdwg.mxu0
        %475 = vmatprep.subr.mxu0 0.0
        %v476 = vand.u32 %v311, 4294901760
        %v477 = vsub.f32 %v311, %v476
        %478 = vmatpush1.msra.mxu0 %v477
        %479 = vmatprep.subr.mxu0 0.0
        %v480 = vand.u32 %v312, 4294901760
        %v481 = vsub.f32 %v312, %v480
        %482 = vmatpush1.msra.mxu0 %v481
        %483 = vmatprep.subr.mxu0 0.0
        %484 = vmatpush1.msra.mxu0 0.0
        %485 = vmatprep.subr.mxu0 0.0
        %486 = vmatpush1.msra.mxu0 0.0
        %487 = vmatprep.subr.mxu0 0.0
        %488 = vmatpush1.msra.mxu0 0.0
        %489 = vmatprep.subr.mxu0 0.0
        %490 = vmatpush1.msra.mxu0 0.0
        %491 = vmatprep.subr.mxu0 0.0
        %492 = vmatpush1.msra.mxu0 0.0
        %493 = vmatprep.subr.mxu0 0.0
        %494 = vmatpush1.msra.mxu0 0.0
        %495 = vmatprep.subr.mxu0 0.0
        %496 = vmatpush1.msra.mxu0 0.0
        %497 = vmatprep.subr.mxu0 0.0
        %498 = vmatpush1.msra.mxu0 0.0
        %499 = vmatprep.subr.mxu0 0.0
        %500 = vmatpush1.msra.mxu0 0.0
        %501 = vmatprep.subr.mxu0 0.0
        %502 = vmatpush1.msra.mxu0 0.0
        %503 = vmatprep.subr.mxu0 0.0
        %504 = vmatpush1.msra.mxu0 0.0
        %505 = vmatprep.subr.mxu0 0.0
        %506 = vmatpush1.msra.mxu0 0.0
        %507 = vmatprep.subr.mxu0 0.0
        %508 = vmatpush1.msra.mxu0 0.0
        %509 = vmatprep.subr.mxu0 0.0
        %510 = vmatpush1.msra.mxu0 0.0
        %511 = vmatprep.subr.mxu0 0.0
        %512 = vmatpush1.msra.mxu0 0.0
        %513 = vmatprep.subr.mxu0 0.0
        %514 = vmatpush1.msra.mxu0 0.0
        %515 = vmatprep.subr.mxu0 0.0
        %516 = vmatpush1.msra.mxu0 0.0
        %517 = vmatprep.subr.mxu0 0.0
        %518 = vmatpush1.msra.mxu0 0.0
        %519 = vmatprep.subr.mxu0 0.0
        %520 = vmatpush1.msra.mxu0 0.0
        %521 = vmatprep.subr.mxu0 0.0
        %522 = vmatpush1.msra.mxu0 0.0
        %523 = vmatprep.subr.mxu0 0.0
        %524 = vmatpush1.msra.mxu0 0.0
        %525 = vmatprep.subr.mxu0 0.0
        %526 = vmatpush1.msra.mxu0 0.0
        %527 = vmatprep.subr.mxu0 0.0
        %528 = vmatpush1.msra.mxu0 0.0
        %529 = vmatprep.subr.mxu0 0.0
        %530 = vmatpush1.msra.mxu0 0.0
        %531 = vmatprep.subr.mxu0 0.0
        %532 = vmatpush1.msra.mxu0 0.0
        %533 = vmatprep.subr.mxu0 0.0
        %534 = vmatpush1.msra.mxu0 0.0
        %535 = vmatprep.subr.mxu0 0.0
        %536 = vmatpush1.msra.mxu0 0.0
        %537 = vmatprep.subr.mxu0 0.0
        %538 = vmatpush1.msra.mxu0 0.0
        %539 = vmatprep.subr.mxu0 0.0
        %540 = vmatpush1.msra.mxu0 0.0
        %541 = vmatprep.subr.mxu0 0.0
        %542 = vmatpush1.msra.mxu0 0.0
        %543 = vmatprep.mubr.f32.mxu0 0.0
        %v544 = vand.u32 %v315, 4294901760
        %v545 = vsub.f32 %v315, %v544
        %546 = vmatmul.mubr.f32.gmra.mrb[0].mxu0 %v545
        %v547 = vpop.f32.mrb[0].mxu0
        %v548 = vadd.f32 %v472, %v547
        %v549 = vpop.f32.mrb[0].mxu0
        %550 = vdwg.mxu0
        %551 = vmatprep.subr.mxu0 0.0
        %v552 = vand.u32 %v311, 4294901760
        %553 = vmatpush1.msra.mxu0 %v552
        %554 = vmatprep.subr.mxu0 0.0
        %v555 = vand.u32 %v312, 4294901760
        %556 = vmatpush1.msra.mxu0 %v555
        %557 = vmatprep.subr.mxu0 0.0
        %558 = vmatpush1.msra.mxu0 0.0
        %559 = vmatprep.subr.mxu0 0.0
        %560 = vmatpush1.msra.mxu0 0.0
        %561 = vmatprep.subr.mxu0 0.0
        %562 = vmatpush1.msra.mxu0 0.0
        %563 = vmatprep.subr.mxu0 0.0
        %564 = vmatpush1.msra.mxu0 0.0
        %565 = vmatprep.subr.mxu0 0.0
        %566 = vmatpush1.msra.mxu0 0.0
        %567 = vmatprep.subr.mxu0 0.0
        %568 = vmatpush1.msra.mxu0 0.0
        %569 = vmatprep.subr.mxu0 0.0
        %570 = vmatpush1.msra.mxu0 0.0
        %571 = vmatprep.subr.mxu0 0.0
        %572 = vmatpush1.msra.mxu0 0.0
        %573 = vmatprep.subr.mxu0 0.0
        %574 = vmatpush1.msra.mxu0 0.0
        %575 = vmatprep.subr.mxu0 0.0
        %576 = vmatpush1.msra.mxu0 0.0
        %577 = vmatprep.subr.mxu0 0.0
        %578 = vmatpush1.msra.mxu0 0.0
        %579 = vmatprep.subr.mxu0 0.0
        %580 = vmatpush1.msra.mxu0 0.0
        %581 = vmatprep.subr.mxu0 0.0
        %582 = vmatpush1.msra.mxu0 0.0
        %583 = vmatprep.subr.mxu0 0.0
        %584 = vmatpush1.msra.mxu0 0.0
        %585 = vmatprep.subr.mxu0 0.0
        %586 = vmatpush1.msra.mxu0 0.0
        %587 = vmatprep.subr.mxu0 0.0
        %588 = vmatpush1.msra.mxu0 0.0
        %589 = vmatprep.subr.mxu0 0.0
        %590 = vmatpush1.msra.mxu0 0.0
        %591 = vmatprep.subr.mxu0 0.0
        %592 = vmatpush1.msra.mxu0 0.0
        %593 = vmatprep.subr.mxu0 0.0
        %594 = vmatpush1.msra.mxu0 0.0
        %595 = vmatprep.subr.mxu0 0.0
        %596 = vmatpush1.msra.mxu0 0.0
        %597 = vmatprep.subr.mxu0 0.0
        %598 = vmatpush1.msra.mxu0 0.0
        %599 = vmatprep.subr.mxu0 0.0
        %600 = vmatpush1.msra.mxu0 0.0
        %601 = vmatprep.subr.mxu0 0.0
        %602 = vmatpush1.msra.mxu0 0.0
        %603 = vmatprep.subr.mxu0 0.0
        %604 = vmatpush1.msra.mxu0 0.0
        %605 = vmatprep.subr.mxu0 0.0
        %606 = vmatpush1.msra.mxu0 0.0
        %607 = vmatprep.subr.mxu0 0.0
        %608 = vmatpush1.msra.mxu0 0.0
        %609 = vmatprep.subr.mxu0 0.0
        %610 = vmatpush1.msra.mxu0 0.0
        %611 = vmatprep.subr.mxu0 0.0
        %612 = vmatpush1.msra.mxu0 0.0
        %613 = vmatprep.subr.mxu0 0.0
        %614 = vmatpush1.msra.mxu0 0.0
        %615 = vmatprep.subr.mxu0 0.0
        %616 = vmatpush1.msra.mxu0 0.0
        %617 = vmatprep.mubr.f32.mxu0 0.0
        %v618 = vand.u32 %v315, 4294901760
        %v619 = vsub.f32 %v315, %v618
        %v620 = vand.u32 %v619, 4294901760
        %621 = vmatmul.mubr.f32.gmra.mrb[0].mxu0 %v620
        %v622 = vpop.f32.mrb[0].mxu0
        %v623 = vadd.f32 %v548, %v622
        %v624 = vpop.f32.mrb[0].mxu0
        %625 = vdwg.mxu0
        %626 = vmatprep.subr.mxu0 0.0
        %v627 = vand.u32 %v311, 4294901760
        %v628 = vsub.f32 %v311, %v627
        %v629 = vand.u32 %v628, 4294901760
        %630 = vmatpush1.msra.mxu0 %v629
        %631 = vmatprep.subr.mxu0 0.0
        %v632 = vand.u32 %v312, 4294901760
        %v633 = vsub.f32 %v312, %v632
        %v634 = vand.u32 %v633, 4294901760
        %635 = vmatpush1.msra.mxu0 %v634
        %636 = vmatprep.subr.mxu0 0.0
        %637 = vmatpush1.msra.mxu0 0.0
        %638 = vmatprep.subr.mxu0 0.0
        %639 = vmatpush1.msra.mxu0 0.0
        %640 = vmatprep.subr.mxu0 0.0
        %641 = vmatpush1.msra.mxu0 0.0
        %642 = vmatprep.subr.mxu0 0.0
        %643 = vmatpush1.msra.mxu0 0.0
        %644 = vmatprep.subr.mxu0 0.0
        %645 = vmatpush1.msra.mxu0 0.0
        %646 = vmatprep.subr.mxu0 0.0
        %647 = vmatpush1.msra.mxu0 0.0
        %648 = vmatprep.subr.mxu0 0.0
        %649 = vmatpush1.msra.mxu0 0.0
        %650 = vmatprep.subr.mxu0 0.0
        %651 = vmatpush1.msra.mxu0 0.0
        %652 = vmatprep.subr.mxu0 0.0
        %653 = vmatpush1.msra.mxu0 0.0
        %654 = vmatprep.subr.mxu0 0.0
        %655 = vmatpush1.msra.mxu0 0.0
        %656 = vmatprep.subr.mxu0 0.0
        %657 = vmatpush1.msra.mxu0 0.0
        %658 = vmatprep.subr.mxu0 0.0
        %659 = vmatpush1.msra.mxu0 0.0
        %660 = vmatprep.subr.mxu0 0.0
        %661 = vmatpush1.msra.mxu0 0.0
        %662 = vmatprep.subr.mxu0 0.0
        %663 = vmatpush1.msra.mxu0 0.0
        %664 = vmatprep.subr.mxu0 0.0
        %665 = vmatpush1.msra.mxu0 0.0
        %666 = vmatprep.subr.mxu0 0.0
        %667 = vmatpush1.msra.mxu0 0.0
        %668 = vmatprep.subr.mxu0 0.0
        %669 = vmatpush1.msra.mxu0 0.0
        %670 = vmatprep.subr.mxu0 0.0
        %671 = vmatpush1.msra.mxu0 0.0
        %672 = vmatprep.subr.mxu0 0.0
        %673 = vmatpush1.msra.mxu0 0.0
        %674 = vmatprep.subr.mxu0 0.0
        %675 = vmatpush1.msra.mxu0 0.0
        %676 = vmatprep.subr.mxu0 0.0
        %677 = vmatpush1.msra.mxu0 0.0
        %678 = vmatprep.subr.mxu0 0.0
        %679 = vmatpush1.msra.mxu0 0.0
        %680 = vmatprep.subr.mxu0 0.0
        %681 = vmatpush1.msra.mxu0 0.0
        %682 = vmatprep.subr.mxu0 0.0
        %683 = vmatpush1.msra.mxu0 0.0
        %684 = vmatprep.subr.mxu0 0.0
        %685 = vmatpush1.msra.mxu0 0.0
        %686 = vmatprep.subr.mxu0 0.0
        %687 = vmatpush1.msra.mxu0 0.0
        %688 = vmatprep.subr.mxu0 0.0
        %689 = vmatpush1.msra.mxu0 0.0
        %690 = vmatprep.subr.mxu0 0.0
        %691 = vmatpush1.msra.mxu0 0.0
        %692 = vmatprep.subr.mxu0 0.0
        %693 = vmatpush1.msra.mxu0 0.0
        %694 = vmatprep.subr.mxu0 0.0
        %695 = vmatpush1.msra.mxu0 0.0
        %696 = vmatprep.mubr.f32.mxu0 0.0
        %v697 = vand.u32 %v315, 4294901760
        %698 = vmatmul.mubr.f32.gmra.mrb[0].mxu0 %v697
        %v699 = vpop.f32.mrb[0].mxu0
        %v700 = vadd.f32 %v623, %v699
        %v701 = vpop.f32.mrb[0].mxu0
        %702 = vdwg.mxu0
        %703 = vmatprep.subr.mxu0 0.0
        %v704 = vand.u32 %v311, 4294901760
        %705 = vmatpush1.msra.mxu0 %v704
        %706 = vmatprep.subr.mxu0 0.0
        %v707 = vand.u32 %v312, 4294901760
        %708 = vmatpush1.msra.mxu0 %v707
        %709 = vmatprep.subr.mxu0 0.0
        %710 = vmatpush1.msra.mxu0 0.0
        %711 = vmatprep.subr.mxu0 0.0
        %712 = vmatpush1.msra.mxu0 0.0
        %713 = vmatprep.subr.mxu0 0.0
        %714 = vmatpush1.msra.mxu0 0.0
        %715 = vmatprep.subr.mxu0 0.0
        %716 = vmatpush1.msra.mxu0 0.0
        %717 = vmatprep.subr.mxu0 0.0
        %718 = vmatpush1.msra.mxu0 0.0
        %719 = vmatprep.subr.mxu0 0.0
        %720 = vmatpush1.msra.mxu0 0.0
        %721 = vmatprep.subr.mxu0 0.0
        %722 = vmatpush1.msra.mxu0 0.0
        %723 = vmatprep.subr.mxu0 0.0
        %724 = vmatpush1.msra.mxu0 0.0
        %725 = vmatprep.subr.mxu0 0.0
        %726 = vmatpush1.msra.mxu0 0.0
        %727 = vmatprep.subr.mxu0 0.0
        %728 = vmatpush1.msra.mxu0 0.0
        %729 = vmatprep.subr.mxu0 0.0
        %730 = vmatpush1.msra.mxu0 0.0
        %731 = vmatprep.subr.mxu0 0.0
        %732 = vmatpush1.msra.mxu0 0.0
        %733 = vmatprep.subr.mxu0 0.0
        %734 = vmatpush1.msra.mxu0 0.0
        %735 = vmatprep.subr.mxu0 0.0
        %736 = vmatpush1.msra.mxu0 0.0
        %737 = vmatprep.subr.mxu0 0.0
        %738 = vmatpush1.msra.mxu0 0.0
        %739 = vmatprep.subr.mxu0 0.0
        %740 = vmatpush1.msra.mxu0 0.0
        %741 = vmatprep.subr.mxu0 0.0
        %742 = vmatpush1.msra.mxu0 0.0
        %743 = vmatprep.subr.mxu0 0.0
        %744 = vmatpush1.msra.mxu0 0.0
        %745 = vmatprep.subr.mxu0 0.0
        %746 = vmatpush1.msra.mxu0 0.0
        %747 = vmatprep.subr.mxu0 0.0
        %748 = vmatpush1.msra.mxu0 0.0
        %749 = vmatprep.subr.mxu0 0.0
        %750 = vmatpush1.msra.mxu0 0.0
        %751 = vmatprep.subr.mxu0 0.0
        %752 = vmatpush1.msra.mxu0 0.0
        %753 = vmatprep.subr.mxu0 0.0
        %754 = vmatpush1.msra.mxu0 0.0
        %755 = vmatprep.subr.mxu0 0.0
        %756 = vmatpush1.msra.mxu0 0.0
        %757 = vmatprep.subr.mxu0 0.0
        %758 = vmatpush1.msra.mxu0 0.0
        %759 = vmatprep.subr.mxu0 0.0
        %760 = vmatpush1.msra.mxu0 0.0
        %761 = vmatprep.subr.mxu0 0.0
        %762 = vmatpush1.msra.mxu0 0.0
        %763 = vmatprep.subr.mxu0 0.0
        %764 = vmatpush1.msra.mxu0 0.0
        %765 = vmatprep.subr.mxu0 0.0
        %766 = vmatpush1.msra.mxu0 0.0
        %767 = vmatprep.subr.mxu0 0.0
        %768 = vmatpush1.msra.mxu0 0.0
        %769 = vmatprep.mubr.f32.mxu0 0.0
        %v770 = vand.u32 %v315, 4294901760
        %771 = vmatmul.mubr.f32.gmra.mrb[0].mxu0 %v770
        %v772 = vpop.f32.mrb[0].mxu0
        %v773 = vadd.f32 %v700, %v772
        %v774 = vpop.f32.mrb[0].mxu0
        %775 = vdwg.mxu0
        %v777 = vsel %vm313, %v773, 0
        %779 = vmatprep.subr.mxu0 0.0
        %v780 = vand.u32 %v306, 4294901760
        %781 = vmatpush1.msra.mxu0 %v780
        %782 = vmatprep.subr.mxu0 0.0
        %v783 = vand.u32 %v307, 4294901760
        %784 = vmatpush1.msra.mxu0 %v783
        %785 = vmatprep.subr.mxu0 0.0
        %786 = vmatpush1.msra.mxu0 0.0
        %787 = vmatprep.subr.mxu0 0.0
        %788 = vmatpush1.msra.mxu0 0.0
        %789 = vmatprep.subr.mxu0 0.0
        %790 = vmatpush1.msra.mxu0 0.0
        %791 = vmatprep.subr.mxu0 0.0
        %792 = vmatpush1.msra.mxu0 0.0
        %793 = vmatprep.subr.mxu0 0.0
        %794 = vmatpush1.msra.mxu0 0.0
        %795 = vmatprep.subr.mxu0 0.0
        %796 = vmatpush1.msra.mxu0 0.0
        %797 = vmatprep.subr.mxu0 0.0
        %798 = vmatpush1.msra.mxu0 0.0
        %799 = vmatprep.subr.mxu0 0.0
        %800 = vmatpush1.msra.mxu0 0.0
        %801 = vmatprep.subr.mxu0 0.0
        %802 = vmatpush1.msra.mxu0 0.0
        %803 = vmatprep.subr.mxu0 0.0
        %804 = vmatpush1.msra.mxu0 0.0
        %805 = vmatprep.subr.mxu0 0.0
        %806 = vmatpush1.msra.mxu0 0.0
        %807 = vmatprep.subr.mxu0 0.0
        %808 = vmatpush1.msra.mxu0 0.0
        %809 = vmatprep.subr.mxu0 0.0
        %810 = vmatpush1.msra.mxu0 0.0
        %811 = vmatprep.subr.mxu0 0.0
        %812 = vmatpush1.msra.mxu0 0.0
        %813 = vmatprep.subr.mxu0 0.0
        %814 = vmatpush1.msra.mxu0 0.0
        %815 = vmatprep.subr.mxu0 0.0
        %816 = vmatpush1.msra.mxu0 0.0
        %817 = vmatprep.subr.mxu0 0.0
        %818 = vmatpush1.msra.mxu0 0.0
        %819 = vmatprep.subr.mxu0 0.0
        %820 = vmatpush1.msra.mxu0 0.0
        %821 = vmatprep.subr.mxu0 0.0
        %822 = vmatpush1.msra.mxu0 0.0
        %823 = vmatprep.subr.mxu0 0.0
        %824 = vmatpush1.msra.mxu0 0.0
        %825 = vmatprep.subr.mxu0 0.0
        %826 = vmatpush1.msra.mxu0 0.0
        %827 = vmatprep.subr.mxu0 0.0
        %828 = vmatpush1.msra.mxu0 0.0
        %829 = vmatprep.subr.mxu0 0.0
        %830 = vmatpush1.msra.mxu0 0.0
        %831 = vmatprep.subr.mxu0 0.0
        %832 = vmatpush1.msra.mxu0 0.0
        %833 = vmatprep.subr.mxu0 0.0
        %834 = vmatpush1.msra.mxu0 0.0
        %835 = vmatprep.subr.mxu0 0.0
        %836 = vmatpush1.msra.mxu0 0.0
        %837 = vmatprep.subr.mxu0 0.0
        %838 = vmatpush1.msra.mxu0 0.0
        %839 = vmatprep.subr.mxu0 0.0
        %840 = vmatpush1.msra.mxu0 0.0
        %841 = vmatprep.subr.mxu0 0.0
        %842 = vmatpush1.msra.mxu0 0.0
        %843 = vmatprep.subr.mxu0 0.0
        %844 = vmatpush1.msra.mxu0 0.0
        %845 = vmatprep.mubr.f32.mxu0 0.0
        %v846 = vand.u32 %v777, 4294901760
        %v847 = vsub.f32 %v777, %v846
        %v848 = vand.u32 %v847, 4294901760
        %v849 = vsub.f32 %v847, %v848
        %v850 = vand.u32 %v849, 4294901760
        %851 = vmatmul.mubr.f32.gmra.mrb[0].mxu0 %v850
        %v852 = vpop.f32.mrb[0].mxu0
        %v853 = vadd.f32 0.0, %v852
        %v854 = vpop.f32.mrb[0].mxu0
        %855 = vdwg.mxu0
        %856 = vmatprep.subr.mxu0 0.0
        %v857 = vand.u32 %v306, 4294901760
        %v858 = vsub.f32 %v306, %v857
        %v859 = vand.u32 %v858, 4294901760
        %v860 = vsub.f32 %v858, %v859
        %v861 = vand.u32 %v860, 4294901760
        %862 = vmatpush1.msra.mxu0 %v861
        %863 = vmatprep.subr.mxu0 0.0
        %v864 = vand.u32 %v307, 4294901760
        %v865 = vsub.f32 %v307, %v864
        %v866 = vand.u32 %v865, 4294901760
        %v867 = vsub.f32 %v865, %v866
        %v868 = vand.u32 %v867, 4294901760
        %869 = vmatpush1.msra.mxu0 %v868
        %870 = vmatprep.subr.mxu0 0.0
        %871 = vmatpush1.msra.mxu0 0.0
        %872 = vmatprep.subr.mxu0 0.0
        %873 = vmatpush1.msra.mxu0 0.0
        %874 = vmatprep.subr.mxu0 0.0
        %875 = vmatpush1.msra.mxu0 0.0
        %876 = vmatprep.subr.mxu0 0.0
        %877 = vmatpush1.msra.mxu0 0.0
        %878 = vmatprep.subr.mxu0 0.0
        %879 = vmatpush1.msra.mxu0 0.0
        %880 = vmatprep.subr.mxu0 0.0
        %881 = vmatpush1.msra.mxu0 0.0
        %882 = vmatprep.subr.mxu0 0.0
        %883 = vmatpush1.msra.mxu0 0.0
        %884 = vmatprep.subr.mxu0 0.0
        %885 = vmatpush1.msra.mxu0 0.0
        %886 = vmatprep.subr.mxu0 0.0
        %887 = vmatpush1.msra.mxu0 0.0
        %888 = vmatprep.subr.mxu0 0.0
        %889 = vmatpush1.msra.mxu0 0.0
        %890 = vmatprep.subr.mxu0 0.0
        %891 = vmatpush1.msra.mxu0 0.0
        %892 = vmatprep.subr.mxu0 0.0
        %893 = vmatpush1.msra.mxu0 0.0
        %894 = vmatprep.subr.mxu0 0.0
        %895 = vmatpush1.msra.mxu0 0.0
        %896 = vmatprep.subr.mxu0 0.0
        %897 = vmatpush1.msra.mxu0 0.0
        %898 = vmatprep.subr.mxu0 0.0
        %899 = vmatpush1.msra.mxu0 0.0
        %900 = vmatprep.subr.mxu0 0.0
        %901 = vmatpush1.msra.mxu0 0.0
        %902 = vmatprep.subr.mxu0 0.0
        %903 = vmatpush1.msra.mxu0 0.0
        %904 = vmatprep.subr.mxu0 0.0
        %905 = vmatpush1.msra.mxu0 0.0
        %906 = vmatprep.subr.mxu0 0.0
        %907 = vmatpush1.msra.mxu0 0.0
        %908 = vmatprep.subr.mxu0 0.0
        %909 = vmatpush1.msra.mxu0 0.0
        %910 = vmatprep.subr.mxu0 0.0
        %911 = vmatpush1.msra.mxu0 0.0
        %912 = vmatprep.subr.mxu0 0.0
        %913 = vmatpush1.msra.mxu0 0.0
        %914 = vmatprep.subr.mxu0 0.0
        %915 = vmatpush1.msra.mxu0 0.0
        %916 = vmatprep.subr.mxu0 0.0
        %917 = vmatpush1.msra.mxu0 0.0
        %918 = vmatprep.subr.mxu0 0.0
        %919 = vmatpush1.msra.mxu0 0.0
        %920 = vmatprep.subr.mxu0 0.0
        %921 = vmatpush1.msra.mxu0 0.0
        %922 = vmatprep.subr.mxu0 0.0
        %923 = vmatpush1.msra.mxu0 0.0
        %924 = vmatprep.subr.mxu0 0.0
        %925 = vmatpush1.msra.mxu0 0.0
        %926 = vmatprep.subr.mxu0 0.0
        %927 = vmatpush1.msra.mxu0 0.0
        %928 = vmatprep.subr.mxu0 0.0
        %929 = vmatpush1.msra.mxu0 0.0
        %930 = vmatprep.mubr.f32.mxu0 0.0
        %v931 = vand.u32 %v777, 4294901760
        %932 = vmatmul.mubr.f32.gmra.mrb[0].mxu0 %v931
        %v933 = vpop.f32.mrb[0].mxu0
        %v934 = vadd.f32 %v853, %v933
        %v935 = vpop.f32.mrb[0].mxu0
        %936 = vdwg.mxu0
        %937 = vmatprep.subr.mxu0 0.0
        %v938 = vand.u32 %v306, 4294901760
        %v939 = vsub.f32 %v306, %v938
        %940 = vmatpush1.msra.mxu0 %v939
        %941 = vmatprep.subr.mxu0 0.0
        %v942 = vand.u32 %v307, 4294901760
        %v943 = vsub.f32 %v307, %v942
        %944 = vmatpush1.msra.mxu0 %v943
        %945 = vmatprep.subr.mxu0 0.0
        %946 = vmatpush1.msra.mxu0 0.0
        %947 = vmatprep.subr.mxu0 0.0
        %948 = vmatpush1.msra.mxu0 0.0
        %949 = vmatprep.subr.mxu0 0.0
        %950 = vmatpush1.msra.mxu0 0.0
        %951 = vmatprep.subr.mxu0 0.0
        %952 = vmatpush1.msra.mxu0 0.0
        %953 = vmatprep.subr.mxu0 0.0
        %954 = vmatpush1.msra.mxu0 0.0
        %955 = vmatprep.subr.mxu0 0.0
        %956 = vmatpush1.msra.mxu0 0.0
        %957 = vmatprep.subr.mxu0 0.0
        %958 = vmatpush1.msra.mxu0 0.0
        %959 = vmatprep.subr.mxu0 0.0
        %960 = vmatpush1.msra.mxu0 0.0
        %961 = vmatprep.subr.mxu0 0.0
        %962 = vmatpush1.msra.mxu0 0.0
        %963 = vmatprep.subr.mxu0 0.0
        %964 = vmatpush1.msra.mxu0 0.0
        %965 = vmatprep.subr.mxu0 0.0
        %966 = vmatpush1.msra.mxu0 0.0
        %967 = vmatprep.subr.mxu0 0.0
        %968 = vmatpush1.msra.mxu0 0.0
        %969 = vmatprep.subr.mxu0 0.0
        %970 = vmatpush1.msra.mxu0 0.0
        %971 = vmatprep.subr.mxu0 0.0
        %972 = vmatpush1.msra.mxu0 0.0
        %973 = vmatprep.subr.mxu0 0.0
        %974 = vmatpush1.msra.mxu0 0.0
        %975 = vmatprep.subr.mxu0 0.0
        %976 = vmatpush1.msra.mxu0 0.0
        %977 = vmatprep.subr.mxu0 0.0
        %978 = vmatpush1.msra.mxu0 0.0
        %979 = vmatprep.subr.mxu0 0.0
        %980 = vmatpush1.msra.mxu0 0.0
        %981 = vmatprep.subr.mxu0 0.0
        %982 = vmatpush1.msra.mxu0 0.0
        %983 = vmatprep.subr.mxu0 0.0
        %984 = vmatpush1.msra.mxu0 0.0
        %985 = vmatprep.subr.mxu0 0.0
        %986 = vmatpush1.msra.mxu0 0.0
        %987 = vmatprep.subr.mxu0 0.0
        %988 = vmatpush1.msra.mxu0 0.0
        %989 = vmatprep.subr.mxu0 0.0
        %990 = vmatpush1.msra.mxu0 0.0
        %991 = vmatprep.subr.mxu0 0.0
        %992 = vmatpush1.msra.mxu0 0.0
        %993 = vmatprep.subr.mxu0 0.0
        %994 = vmatpush1.msra.mxu0 0.0
        %995 = vmatprep.subr.mxu0 0.0
        %996 = vmatpush1.msra.mxu0 0.0
        %997 = vmatprep.subr.mxu0 0.0
        %998 = vmatpush1.msra.mxu0 0.0
        %999 = vmatprep.subr.mxu0 0.0
        %1000 = vmatpush1.msra.mxu0 0.0
        %1001 = vmatprep.subr.mxu0 0.0
        %1002 = vmatpush1.msra.mxu0 0.0
        %1003 = vmatprep.subr.mxu0 0.0
        %1004 = vmatpush1.msra.mxu0 0.0
        %1005 = vmatprep.mubr.f32.mxu0 0.0
        %v1006 = vand.u32 %v777, 4294901760
        %v1007 = vsub.f32 %v777, %v1006
        %1008 = vmatmul.mubr.f32.gmra.mrb[0].mxu0 %v1007
        %v1009 = vpop.f32.mrb[0].mxu0
        %v1010 = vadd.f32 %v934, %v1009
        %v1011 = vpop.f32.mrb[0].mxu0
        %1012 = vdwg.mxu0
        %1013 = vmatprep.subr.mxu0 0.0
        %v1014 = vand.u32 %v306, 4294901760
        %1015 = vmatpush1.msra.mxu0 %v1014
        %1016 = vmatprep.subr.mxu0 0.0
        %v1017 = vand.u32 %v307, 4294901760
        %1018 = vmatpush1.msra.mxu0 %v1017
        %1019 = vmatprep.subr.mxu0 0.0
        %1020 = vmatpush1.msra.mxu0 0.0
        %1021 = vmatprep.subr.mxu0 0.0
        %1022 = vmatpush1.msra.mxu0 0.0
        %1023 = vmatprep.subr.mxu0 0.0
        %1024 = vmatpush1.msra.mxu0 0.0
        %1025 = vmatprep.subr.mxu0 0.0
        %1026 = vmatpush1.msra.mxu0 0.0
        %1027 = vmatprep.subr.mxu0 0.0
        %1028 = vmatpush1.msra.mxu0 0.0
        %1029 = vmatprep.subr.mxu0 0.0
        %1030 = vmatpush1.msra.mxu0 0.0
        %1031 = vmatprep.subr.mxu0 0.0
        %1032 = vmatpush1.msra.mxu0 0.0
        %1033 = vmatprep.subr.mxu0 0.0
        %1034 = vmatpush1.msra.mxu0 0.0
        %1035 = vmatprep.subr.mxu0 0.0
        %1036 = vmatpush1.msra.mxu0 0.0
        %1037 = vmatprep.subr.mxu0 0.0
        %1038 = vmatpush1.msra.mxu0 0.0
        %1039 = vmatprep.subr.mxu0 0.0
        %1040 = vmatpush1.msra.mxu0 0.0
        %1041 = vmatprep.subr.mxu0 0.0
        %1042 = vmatpush1.msra.mxu0 0.0
        %1043 = vmatprep.subr.mxu0 0.0
        %1044 = vmatpush1.msra.mxu0 0.0
        %1045 = vmatprep.subr.mxu0 0.0
        %1046 = vmatpush1.msra.mxu0 0.0
        %1047 = vmatprep.subr.mxu0 0.0
        %1048 = vmatpush1.msra.mxu0 0.0
        %1049 = vmatprep.subr.mxu0 0.0
        %1050 = vmatpush1.msra.mxu0 0.0
        %1051 = vmatprep.subr.mxu0 0.0
        %1052 = vmatpush1.msra.mxu0 0.0
        %1053 = vmatprep.subr.mxu0 0.0
        %1054 = vmatpush1.msra.mxu0 0.0
        %1055 = vmatprep.subr.mxu0 0.0
        %1056 = vmatpush1.msra.mxu0 0.0
        %1057 = vmatprep.subr.mxu0 0.0
        %1058 = vmatpush1.msra.mxu0 0.0
        %1059 = vmatprep.subr.mxu0 0.0
        %1060 = vmatpush1.msra.mxu0 0.0
        %1061 = vmatprep.subr.mxu0 0.0
        %1062 = vmatpush1.msra.mxu0 0.0
        %1063 = vmatprep.subr.mxu0 0.0
        %1064 = vmatpush1.msra.mxu0 0.0
        %1065 = vmatprep.subr.mxu0 0.0
        %1066 = vmatpush1.msra.mxu0 0.0
        %1067 = vmatprep.subr.mxu0 0.0
        %1068 = vmatpush1.msra.mxu0 0.0
        %1069 = vmatprep.subr.mxu0 0.0
        %1070 = vmatpush1.msra.mxu0 0.0
        %1071 = vmatprep.subr.mxu0 0.0
        %1072 = vmatpush1.msra.mxu0 0.0
        %1073 = vmatprep.subr.mxu0 0.0
        %1074 = vmatpush1.msra.mxu0 0.0
        %1075 = vmatprep.subr.mxu0 0.0
        %1076 = vmatpush1.msra.mxu0 0.0
        %1077 = vmatprep.subr.mxu0 0.0
        %1078 = vmatpush1.msra.mxu0 0.0
        %1079 = vmatprep.mubr.f32.mxu0 0.0
        %v1080 = vand.u32 %v777, 4294901760
        %v1081 = vsub.f32 %v777, %v1080
        %v1082 = vand.u32 %v1081, 4294901760
        %1083 = vmatmul.mubr.f32.gmra.mrb[0].mxu0 %v1082
        %v1084 = vpop.f32.mrb[0].mxu0
        %v1085 = vadd.f32 %v1010, %v1084
        %v1086 = vpop.f32.mrb[0].mxu0
        %1087 = vdwg.mxu0
        %1088 = vmatprep.subr.mxu0 0.0
        %v1089 = vand.u32 %v306, 4294901760
        %v1090 = vsub.f32 %v306, %v1089
        %v1091 = vand.u32 %v1090, 4294901760
        %1092 = vmatpush1.msra.mxu0 %v1091
        %1093 = vmatprep.subr.mxu0 0.0
        %v1094 = vand.u32 %v307, 4294901760
        %v1095 = vsub.f32 %v307, %v1094
        %v1096 = vand.u32 %v1095, 4294901760
        %1097 = vmatpush1.msra.mxu0 %v1096
        %1098 = vmatprep.subr.mxu0 0.0
        %1099 = vmatpush1.msra.mxu0 0.0
        %1100 = vmatprep.subr.mxu0 0.0
        %1101 = vmatpush1.msra.mxu0 0.0
        %1102 = vmatprep.subr.mxu0 0.0
        %1103 = vmatpush1.msra.mxu0 0.0
        %1104 = vmatprep.subr.mxu0 0.0
        %1105 = vmatpush1.msra.mxu0 0.0
        %1106 = vmatprep.subr.mxu0 0.0
        %1107 = vmatpush1.msra.mxu0 0.0
        %1108 = vmatprep.subr.mxu0 0.0
        %1109 = vmatpush1.msra.mxu0 0.0
        %1110 = vmatprep.subr.mxu0 0.0
        %1111 = vmatpush1.msra.mxu0 0.0
        %1112 = vmatprep.subr.mxu0 0.0
        %1113 = vmatpush1.msra.mxu0 0.0
        %1114 = vmatprep.subr.mxu0 0.0
        %1115 = vmatpush1.msra.mxu0 0.0
        %1116 = vmatprep.subr.mxu0 0.0
        %1117 = vmatpush1.msra.mxu0 0.0
        %1118 = vmatprep.subr.mxu0 0.0
        %1119 = vmatpush1.msra.mxu0 0.0
        %1120 = vmatprep.subr.mxu0 0.0
        %1121 = vmatpush1.msra.mxu0 0.0
        %1122 = vmatprep.subr.mxu0 0.0
        %1123 = vmatpush1.msra.mxu0 0.0
        %1124 = vmatprep.subr.mxu0 0.0
        %1125 = vmatpush1.msra.mxu0 0.0
        %1126 = vmatprep.subr.mxu0 0.0
        %1127 = vmatpush1.msra.mxu0 0.0
        %1128 = vmatprep.subr.mxu0 0.0
        %1129 = vmatpush1.msra.mxu0 0.0
        %1130 = vmatprep.subr.mxu0 0.0
        %1131 = vmatpush1.msra.mxu0 0.0
        %1132 = vmatprep.subr.mxu0 0.0
        %1133 = vmatpush1.msra.mxu0 0.0
        %1134 = vmatprep.subr.mxu0 0.0
        %1135 = vmatpush1.msra.mxu0 0.0
        %1136 = vmatprep.subr.mxu0 0.0
        %1137 = vmatpush1.msra.mxu0 0.0
        %1138 = vmatprep.subr.mxu0 0.0
        %1139 = vmatpush1.msra.mxu0 0.0
        %1140 = vmatprep.subr.mxu0 0.0
        %1141 = vmatpush1.msra.mxu0 0.0
        %1142 = vmatprep.subr.mxu0 0.0
        %1143 = vmatpush1.msra.mxu0 0.0
        %1144 = vmatprep.subr.mxu0 0.0
        %1145 = vmatpush1.msra.mxu0 0.0
        %1146 = vmatprep.subr.mxu0 0.0
        %1147 = vmatpush1.msra.mxu0 0.0
        %1148 = vmatprep.subr.mxu0 0.0
        %1149 = vmatpush1.msra.mxu0 0.0
        %1150 = vmatprep.subr.mxu0 0.0
        %1151 = vmatpush1.msra.mxu0 0.0
        %1152 = vmatprep.subr.mxu0 0.0
        %1153 = vmatpush1.msra.mxu0 0.0
        %1154 = vmatprep.subr.mxu0 0.0
        %1155 = vmatpush1.msra.mxu0 0.0
        %1156 = vmatprep.subr.mxu0 0.0
        %1157 = vmatpush1.msra.mxu0 0.0
        %1158 = vmatprep.mubr.f32.mxu0 0.0
        %v1159 = vand.u32 %v777, 4294901760
        %1160 = vmatmul.mubr.f32.gmra.mrb[0].mxu0 %v1159
        %v1161 = vpop.f32.mrb[0].mxu0
        %v1162 = vadd.f32 %v1085, %v1161
        %v1163 = vpop.f32.mrb[0].mxu0
        %1164 = vdwg.mxu0
        %1165 = vmatprep.subr.mxu0 0.0
        %v1166 = vand.u32 %v306, 4294901760
        %1167 = vmatpush1.msra.mxu0 %v1166
        %1168 = vmatprep.subr.mxu0 0.0
        %v1169 = vand.u32 %v307, 4294901760
        %1170 = vmatpush1.msra.mxu0 %v1169
        %1171 = vmatprep.subr.mxu0 0.0
        %1172 = vmatpush1.msra.mxu0 0.0
        %1173 = vmatprep.subr.mxu0 0.0
        %1174 = vmatpush1.msra.mxu0 0.0
        %1175 = vmatprep.subr.mxu0 0.0
        %1176 = vmatpush1.msra.mxu0 0.0
        %1177 = vmatprep.subr.mxu0 0.0
        %1178 = vmatpush1.msra.mxu0 0.0
        %1179 = vmatprep.subr.mxu0 0.0
        %1180 = vmatpush1.msra.mxu0 0.0
        %1181 = vmatprep.subr.mxu0 0.0
        %1182 = vmatpush1.msra.mxu0 0.0
        %1183 = vmatprep.subr.mxu0 0.0
        %1184 = vmatpush1.msra.mxu0 0.0
        %1185 = vmatprep.subr.mxu0 0.0
        %1186 = vmatpush1.msra.mxu0 0.0
        %1187 = vmatprep.subr.mxu0 0.0
        %1188 = vmatpush1.msra.mxu0 0.0
        %1189 = vmatprep.subr.mxu0 0.0
        %1190 = vmatpush1.msra.mxu0 0.0
        %1191 = vmatprep.subr.mxu0 0.0
        %1192 = vmatpush1.msra.mxu0 0.0
        %1193 = vmatprep.subr.mxu0 0.0
        %1194 = vmatpush1.msra.mxu0 0.0
        %1195 = vmatprep.subr.mxu0 0.0
        %1196 = vmatpush1.msra.mxu0 0.0
        %1197 = vmatprep.subr.mxu0 0.0
        %1198 = vmatpush1.msra.mxu0 0.0
        %1199 = vmatprep.subr.mxu0 0.0
        %1200 = vmatpush1.msra.mxu0 0.0
        %1201 = vmatprep.subr.mxu0 0.0
        %1202 = vmatpush1.msra.mxu0 0.0
        %1203 = vmatprep.subr.mxu0 0.0
        %1204 = vmatpush1.msra.mxu0 0.0
        %1205 = vmatprep.subr.mxu0 0.0
        %1206 = vmatpush1.msra.mxu0 0.0
        %1207 = vmatprep.subr.mxu0 0.0
        %1208 = vmatpush1.msra.mxu0 0.0
        %1209 = vmatprep.subr.mxu0 0.0
        %1210 = vmatpush1.msra.mxu0 0.0
        %1211 = vmatprep.subr.mxu0 0.0
        %1212 = vmatpush1.msra.mxu0 0.0
        %1213 = vmatprep.subr.mxu0 0.0
        %1214 = vmatpush1.msra.mxu0 0.0
        %1215 = vmatprep.subr.mxu0 0.0
        %1216 = vmatpush1.msra.mxu0 0.0
        %1217 = vmatprep.subr.mxu0 0.0
        %1218 = vmatpush1.msra.mxu0 0.0
        %1219 = vmatprep.subr.mxu0 0.0
        %1220 = vmatpush1.msra.mxu0 0.0
        %1221 = vmatprep.subr.mxu0 0.0
        %1222 = vmatpush1.msra.mxu0 0.0
        %1223 = vmatprep.subr.mxu0 0.0
        %1224 = vmatpush1.msra.mxu0 0.0
        %1225 = vmatprep.subr.mxu0 0.0
        %1226 = vmatpush1.msra.mxu0 0.0
        %1227 = vmatprep.subr.mxu0 0.0
        %1228 = vmatpush1.msra.mxu0 0.0
        %1229 = vmatprep.subr.mxu0 0.0
        %1230 = vmatpush1.msra.mxu0 0.0
        %1231 = vmatprep.mubr.f32.mxu0 0.0
        %v1232 = vand.u32 %v777, 4294901760
        %1233 = vmatmul.mubr.f32.gmra.mrb[0].mxu0 %v1232
        %v1234 = vpop.f32.mrb[0].mxu0
        %v1235 = vadd.f32 %v1162, %v1234
        %v1236 = vpop.f32.mrb[0].mxu0
        %1237 = vdwg.mxu0
        %vm1238 = vcmask 64512
        %1239 = vst.msk [vmem:[%s294] sm:$0xff] %vm1238, %v1235
        %v1241 = vsel %vm313, %v308, 0
        %1243 = vmatprep.subr.mxu0 0.0
        %v1244 = vand.u32 %v311, 4294901760
        %1245 = vmatpush1.msra.mxu0 %v1244
        %1246 = vmatprep.subr.mxu0 0.0
        %v1247 = vand.u32 %v312, 4294901760
        %1248 = vmatpush1.msra.mxu0 %v1247
        %1249 = vmatprep.subr.mxu0 0.0
        %1250 = vmatpush1.msra.mxu0 0.0
        %1251 = vmatprep.subr.mxu0 0.0
        %1252 = vmatpush1.msra.mxu0 0.0
        %1253 = vmatprep.subr.mxu0 0.0
        %1254 = vmatpush1.msra.mxu0 0.0
        %1255 = vmatprep.subr.mxu0 0.0
        %1256 = vmatpush1.msra.mxu0 0.0
        %1257 = vmatprep.subr.mxu0 0.0
        %1258 = vmatpush1.msra.mxu0 0.0
        %1259 = vmatprep.subr.mxu0 0.0
        %1260 = vmatpush1.msra.mxu0 0.0
        %1261 = vmatprep.subr.mxu0 0.0
        %1262 = vmatpush1.msra.mxu0 0.0
        %1263 = vmatprep.subr.mxu0 0.0
        %1264 = vmatpush1.msra.mxu0 0.0
        %1265 = vmatprep.subr.mxu0 0.0
        %1266 = vmatpush1.msra.mxu0 0.0
        %1267 = vmatprep.subr.mxu0 0.0
        %1268 = vmatpush1.msra.mxu0 0.0
        %1269 = vmatprep.subr.mxu0 0.0
        %1270 = vmatpush1.msra.mxu0 0.0
        %1271 = vmatprep.subr.mxu0 0.0
        %1272 = vmatpush1.msra.mxu0 0.0
        %1273 = vmatprep.subr.mxu0 0.0
        %1274 = vmatpush1.msra.mxu0 0.0
        %1275 = vmatprep.subr.mxu0 0.0
        %1276 = vmatpush1.msra.mxu0 0.0
        %1277 = vmatprep.subr.mxu0 0.0
        %1278 = vmatpush1.msra.mxu0 0.0
        %1279 = vmatprep.subr.mxu0 0.0
        %1280 = vmatpush1.msra.mxu0 0.0
        %1281 = vmatprep.subr.mxu0 0.0
        %1282 = vmatpush1.msra.mxu0 0.0
        %1283 = vmatprep.subr.mxu0 0.0
        %1284 = vmatpush1.msra.mxu0 0.0
        %1285 = vmatprep.subr.mxu0 0.0
        %1286 = vmatpush1.msra.mxu0 0.0
        %1287 = vmatprep.subr.mxu0 0.0
        %1288 = vmatpush1.msra.mxu0 0.0
        %1289 = vmatprep.subr.mxu0 0.0
        %1290 = vmatpush1.msra.mxu0 0.0
        %1291 = vmatprep.subr.mxu0 0.0
        %1292 = vmatpush1.msra.mxu0 0.0
        %1293 = vmatprep.subr.mxu0 0.0
        %1294 = vmatpush1.msra.mxu0 0.0
        %1295 = vmatprep.subr.mxu0 0.0
        %1296 = vmatpush1.msra.mxu0 0.0
        %1297 = vmatprep.subr.mxu0 0.0
        %1298 = vmatpush1.msra.mxu0 0.0
        %1299 = vmatprep.subr.mxu0 0.0
        %1300 = vmatpush1.msra.mxu0 0.0
        %1301 = vmatprep.subr.mxu0 0.0
        %1302 = vmatpush1.msra.mxu0 0.0
        %1303 = vmatprep.subr.mxu0 0.0
        %1304 = vmatpush1.msra.mxu0 0.0
        %1305 = vmatprep.subr.mxu0 0.0
        %1306 = vmatpush1.msra.mxu0 0.0
        %1307 = vmatprep.subr.mxu0 0.0
        %1308 = vmatpush1.msra.mxu0 0.0
        %1309 = vmatprep.mubr.f32.mxu0 0.0
        %v1310 = vand.u32 %v1241, 4294901760
        %v1311 = vsub.f32 %v1241, %v1310
        %v1312 = vand.u32 %v1311, 4294901760
        %v1313 = vsub.f32 %v1311, %v1312
        %v1314 = vand.u32 %v1313, 4294901760
        %1315 = vmatmul.mubr.f32.gmra.mrb[0].mxu0 %v1314
        %v1316 = vpop.f32.mrb[0].mxu0
        %v1317 = vadd.f32 0.0, %v1316
        %v1318 = vpop.f32.mrb[0].mxu0
        %1319 = vdwg.mxu0
        %1320 = vmatprep.subr.mxu0 0.0
        %v1321 = vand.u32 %v311, 4294901760
        %v1322 = vsub.f32 %v311, %v1321
        %v1323 = vand.u32 %v1322, 4294901760
        %v1324 = vsub.f32 %v1322, %v1323
        %v1325 = vand.u32 %v1324, 4294901760
        %1326 = vmatpush1.msra.mxu0 %v1325
        %1327 = vmatprep.subr.mxu0 0.0
        %v1328 = vand.u32 %v312, 4294901760
        %v1329 = vsub.f32 %v312, %v1328
        %v1330 = vand.u32 %v1329, 4294901760
        %v1331 = vsub.f32 %v1329, %v1330
        %v1332 = vand.u32 %v1331, 4294901760
        %1333 = vmatpush1.msra.mxu0 %v1332
        %1334 = vmatprep.subr.mxu0 0.0
        %1335 = vmatpush1.msra.mxu0 0.0
        %1336 = vmatprep.subr.mxu0 0.0
        %1337 = vmatpush1.msra.mxu0 0.0
        %1338 = vmatprep.subr.mxu0 0.0
        %1339 = vmatpush1.msra.mxu0 0.0
        %1340 = vmatprep.subr.mxu0 0.0
        %1341 = vmatpush1.msra.mxu0 0.0
        %1342 = vmatprep.subr.mxu0 0.0
        %1343 = vmatpush1.msra.mxu0 0.0
        %1344 = vmatprep.subr.mxu0 0.0
        %1345 = vmatpush1.msra.mxu0 0.0
        %1346 = vmatprep.subr.mxu0 0.0
        %1347 = vmatpush1.msra.mxu0 0.0
        %1348 = vmatprep.subr.mxu0 0.0
        %1349 = vmatpush1.msra.mxu0 0.0
        %1350 = vmatprep.subr.mxu0 0.0
        %1351 = vmatpush1.msra.mxu0 0.0
        %1352 = vmatprep.subr.mxu0 0.0
        %1353 = vmatpush1.msra.mxu0 0.0
        %1354 = vmatprep.subr.mxu0 0.0
        %1355 = vmatpush1.msra.mxu0 0.0
        %1356 = vmatprep.subr.mxu0 0.0
        %1357 = vmatpush1.msra.mxu0 0.0
        %1358 = vmatprep.subr.mxu0 0.0
        %1359 = vmatpush1.msra.mxu0 0.0
        %1360 = vmatprep.subr.mxu0 0.0
        %1361 = vmatpush1.msra.mxu0 0.0
        %1362 = vmatprep.subr.mxu0 0.0
        %1363 = vmatpush1.msra.mxu0 0.0
        %1364 = vmatprep.subr.mxu0 0.0
        %1365 = vmatpush1.msra.mxu0 0.0
        %1366 = vmatprep.subr.mxu0 0.0
        %1367 = vmatpush1.msra.mxu0 0.0
        %1368 = vmatprep.subr.mxu0 0.0
        %1369 = vmatpush1.msra.mxu0 0.0
        %1370 = vmatprep.subr.mxu0 0.0
        %1371 = vmatpush1.msra.mxu0 0.0
        %1372 = vmatprep.subr.mxu0 0.0
        %1373 = vmatpush1.msra.mxu0 0.0
        %1374 = vmatprep.subr.mxu0 0.0
        %1375 = vmatpush1.msra.mxu0 0.0
        %1376 = vmatprep.subr.mxu0 0.0
        %1377 = vmatpush1.msra.mxu0 0.0
        %1378 = vmatprep.subr.mxu0 0.0
        %1379 = vmatpush1.msra.mxu0 0.0
        %1380 = vmatprep.subr.mxu0 0.0
        %1381 = vmatpush1.msra.mxu0 0.0
        %1382 = vmatprep.subr.mxu0 0.0
        %1383 = vmatpush1.msra.mxu0 0.0
        %1384 = vmatprep.subr.mxu0 0.0
        %1385 = vmatpush1.msra.mxu0 0.0
        %1386 = vmatprep.subr.mxu0 0.0
        %1387 = vmatpush1.msra.mxu0 0.0
        %1388 = vmatprep.subr.mxu0 0.0
        %1389 = vmatpush1.msra.mxu0 0.0
        %1390 = vmatprep.subr.mxu0 0.0
        %1391 = vmatpush1.msra.mxu0 0.0
        %1392 = vmatprep.subr.mxu0 0.0
        %1393 = vmatpush1.msra.mxu0 0.0
        %1394 = vmatprep.mubr.f32.mxu0 0.0
        %v1395 = vand.u32 %v1241, 4294901760
        %1396 = vmatmul.mubr.f32.gmra.mrb[0].mxu0 %v1395
        %v1397 = vpop.f32.mrb[0].mxu0
        %v1398 = vadd.f32 %v1317, %v1397
        %v1399 = vpop.f32.mrb[0].mxu0
        %1400 = vdwg.mxu0
        %1401 = vmatprep.subr.mxu0 0.0
        %v1402 = vand.u32 %v311, 4294901760
        %v1403 = vsub.f32 %v311, %v1402
        %1404 = vmatpush1.msra.mxu0 %v1403
        %1405 = vmatprep.subr.mxu0 0.0
        %v1406 = vand.u32 %v312, 4294901760
        %v1407 = vsub.f32 %v312, %v1406
        %1408 = vmatpush1.msra.mxu0 %v1407
        %1409 = vmatprep.subr.mxu0 0.0
        %1410 = vmatpush1.msra.mxu0 0.0
        %1411 = vmatprep.subr.mxu0 0.0
        %1412 = vmatpush1.msra.mxu0 0.0
        %1413 = vmatprep.subr.mxu0 0.0
        %1414 = vmatpush1.msra.mxu0 0.0
        %1415 = vmatprep.subr.mxu0 0.0
        %1416 = vmatpush1.msra.mxu0 0.0
        %1417 = vmatprep.subr.mxu0 0.0
        %1418 = vmatpush1.msra.mxu0 0.0
        %1419 = vmatprep.subr.mxu0 0.0
        %1420 = vmatpush1.msra.mxu0 0.0
        %1421 = vmatprep.subr.mxu0 0.0
        %1422 = vmatpush1.msra.mxu0 0.0
        %1423 = vmatprep.subr.mxu0 0.0
        %1424 = vmatpush1.msra.mxu0 0.0
        %1425 = vmatprep.subr.mxu0 0.0
        %1426 = vmatpush1.msra.mxu0 0.0
        %1427 = vmatprep.subr.mxu0 0.0
        %1428 = vmatpush1.msra.mxu0 0.0
        %1429 = vmatprep.subr.mxu0 0.0
        %1430 = vmatpush1.msra.mxu0 0.0
        %1431 = vmatprep.subr.mxu0 0.0
        %1432 = vmatpush1.msra.mxu0 0.0
        %1433 = vmatprep.subr.mxu0 0.0
        %1434 = vmatpush1.msra.mxu0 0.0
        %1435 = vmatprep.subr.mxu0 0.0
        %1436 = vmatpush1.msra.mxu0 0.0
        %1437 = vmatprep.subr.mxu0 0.0
        %1438 = vmatpush1.msra.mxu0 0.0
        %1439 = vmatprep.subr.mxu0 0.0
        %1440 = vmatpush1.msra.mxu0 0.0
        %1441 = vmatprep.subr.mxu0 0.0
        %1442 = vmatpush1.msra.mxu0 0.0
        %1443 = vmatprep.subr.mxu0 0.0
        %1444 = vmatpush1.msra.mxu0 0.0
        %1445 = vmatprep.subr.mxu0 0.0
        %1446 = vmatpush1.msra.mxu0 0.0
        %1447 = vmatprep.subr.mxu0 0.0
        %1448 = vmatpush1.msra.mxu0 0.0
        %1449 = vmatprep.subr.mxu0 0.0
        %1450 = vmatpush1.msra.mxu0 0.0
        %1451 = vmatprep.subr.mxu0 0.0
        %1452 = vmatpush1.msra.mxu0 0.0
        %1453 = vmatprep.subr.mxu0 0.0
        %1454 = vmatpush1.msra.mxu0 0.0
        %1455 = vmatprep.subr.mxu0 0.0
        %1456 = vmatpush1.msra.mxu0 0.0
        %1457 = vmatprep.subr.mxu0 0.0
        %1458 = vmatpush1.msra.mxu0 0.0
        %1459 = vmatprep.subr.mxu0 0.0
        %1460 = vmatpush1.msra.mxu0 0.0
        %1461 = vmatprep.subr.mxu0 0.0
        %1462 = vmatpush1.msra.mxu0 0.0
        %1463 = vmatprep.subr.mxu0 0.0
        %1464 = vmatpush1.msra.mxu0 0.0
        %1465 = vmatprep.subr.mxu0 0.0
        %1466 = vmatpush1.msra.mxu0 0.0
        %1467 = vmatprep.subr.mxu0 0.0
        %1468 = vmatpush1.msra.mxu0 0.0
        %1469 = vmatprep.mubr.f32.mxu0 0.0
        %v1470 = vand.u32 %v1241, 4294901760
        %v1471 = vsub.f32 %v1241, %v1470
        %1472 = vmatmul.mubr.f32.gmra.mrb[0].mxu0 %v1471
        %v1473 = vpop.f32.mrb[0].mxu0
        %v1474 = vadd.f32 %v1398, %v1473
        %v1475 = vpop.f32.mrb[0].mxu0
        %1476 = vdwg.mxu0
        %1477 = vmatprep.subr.mxu0 0.0
        %v1478 = vand.u32 %v311, 4294901760
        %1479 = vmatpush1.msra.mxu0 %v1478
        %1480 = vmatprep.subr.mxu0 0.0
        %v1481 = vand.u32 %v312, 4294901760
        %1482 = vmatpush1.msra.mxu0 %v1481
        %1483 = vmatprep.subr.mxu0 0.0
        %1484 = vmatpush1.msra.mxu0 0.0
        %1485 = vmatprep.subr.mxu0 0.0
        %1486 = vmatpush1.msra.mxu0 0.0
        %1487 = vmatprep.subr.mxu0 0.0
        %1488 = vmatpush1.msra.mxu0 0.0
        %1489 = vmatprep.subr.mxu0 0.0
        %1490 = vmatpush1.msra.mxu0 0.0
        %1491 = vmatprep.subr.mxu0 0.0
        %1492 = vmatpush1.msra.mxu0 0.0
        %1493 = vmatprep.subr.mxu0 0.0
        %1494 = vmatpush1.msra.mxu0 0.0
        %1495 = vmatprep.subr.mxu0 0.0
        %1496 = vmatpush1.msra.mxu0 0.0
        %1497 = vmatprep.subr.mxu0 0.0
        %1498 = vmatpush1.msra.mxu0 0.0
        %1499 = vmatprep.subr.mxu0 0.0
        %1500 = vmatpush1.msra.mxu0 0.0
        %1501 = vmatprep.subr.mxu0 0.0
        %1502 = vmatpush1.msra.mxu0 0.0
        %1503 = vmatprep.subr.mxu0 0.0
        %1504 = vmatpush1.msra.mxu0 0.0
        %1505 = vmatprep.subr.mxu0 0.0
        %1506 = vmatpush1.msra.mxu0 0.0
        %1507 = vmatprep.subr.mxu0 0.0
        %1508 = vmatpush1.msra.mxu0 0.0
        %1509 = vmatprep.subr.mxu0 0.0
        %1510 = vmatpush1.msra.mxu0 0.0
        %1511 = vmatprep.subr.mxu0 0.0
        %1512 = vmatpush1.msra.mxu0 0.0
        %1513 = vmatprep.subr.mxu0 0.0
        %1514 = vmatpush1.msra.mxu0 0.0
        %1515 = vmatprep.subr.mxu0 0.0
        %1516 = vmatpush1.msra.mxu0 0.0
        %1517 = vmatprep.subr.mxu0 0.0
        %1518 = vmatpush1.msra.mxu0 0.0
        %1519 = vmatprep.subr.mxu0 0.0
        %1520 = vmatpush1.msra.mxu0 0.0
        %1521 = vmatprep.subr.mxu0 0.0
        %1522 = vmatpush1.msra.mxu0 0.0
        %1523 = vmatprep.subr.mxu0 0.0
        %1524 = vmatpush1.msra.mxu0 0.0
        %1525 = vmatprep.subr.mxu0 0.0
        %1526 = vmatpush1.msra.mxu0 0.0
        %1527 = vmatprep.subr.mxu0 0.0
        %1528 = vmatpush1.msra.mxu0 0.0
        %1529 = vmatprep.subr.mxu0 0.0
        %1530 = vmatpush1.msra.mxu0 0.0
        %1531 = vmatprep.subr.mxu0 0.0
        %1532 = vmatpush1.msra.mxu0 0.0
        %1533 = vmatprep.subr.mxu0 0.0
        %1534 = vmatpush1.msra.mxu0 0.0
        %1535 = vmatprep.subr.mxu0 0.0
        %1536 = vmatpush1.msra.mxu0 0.0
        %1537 = vmatprep.subr.mxu0 0.0
        %1538 = vmatpush1.msra.mxu0 0.0
        %1539 = vmatprep.subr.mxu0 0.0
        %1540 = vmatpush1.msra.mxu0 0.0
        %1541 = vmatprep.subr.mxu0 0.0
        %1542 = vmatpush1.msra.mxu0 0.0
        %1543 = vmatprep.mubr.f32.mxu0 0.0
        %v1544 = vand.u32 %v1241, 4294901760
        %v1545 = vsub.f32 %v1241, %v1544
        %v1546 = vand.u32 %v1545, 4294901760
        %1547 = vmatmul.mubr.f32.gmra.mrb[0].mxu0 %v1546
        %v1548 = vpop.f32.mrb[0].mxu0
        %v1549 = vadd.f32 %v1474, %v1548
        %v1550 = vpop.f32.mrb[0].mxu0
        %1551 = vdwg.mxu0
        %1552 = vmatprep.subr.mxu0 0.0
        %v1553 = vand.u32 %v311, 4294901760
        %v1554 = vsub.f32 %v311, %v1553
        %v1555 = vand.u32 %v1554, 4294901760
        %1556 = vmatpush1.msra.mxu0 %v1555
        %1557 = vmatprep.subr.mxu0 0.0
        %v1558 = vand.u32 %v312, 4294901760
        %v1559 = vsub.f32 %v312, %v1558
        %v1560 = vand.u32 %v1559, 4294901760
        %1561 = vmatpush1.msra.mxu0 %v1560
        %1562 = vmatprep.subr.mxu0 0.0
        %1563 = vmatpush1.msra.mxu0 0.0
        %1564 = vmatprep.subr.mxu0 0.0
        %1565 = vmatpush1.msra.mxu0 0.0
        %1566 = vmatprep.subr.mxu0 0.0
        %1567 = vmatpush1.msra.mxu0 0.0
        %1568 = vmatprep.subr.mxu0 0.0
        %1569 = vmatpush1.msra.mxu0 0.0
        %1570 = vmatprep.subr.mxu0 0.0
        %1571 = vmatpush1.msra.mxu0 0.0
        %1572 = vmatprep.subr.mxu0 0.0
        %1573 = vmatpush1.msra.mxu0 0.0
        %1574 = vmatprep.subr.mxu0 0.0
        %1575 = vmatpush1.msra.mxu0 0.0
        %1576 = vmatprep.subr.mxu0 0.0
        %1577 = vmatpush1.msra.mxu0 0.0
        %1578 = vmatprep.subr.mxu0 0.0
        %1579 = vmatpush1.msra.mxu0 0.0
        %1580 = vmatprep.subr.mxu0 0.0
        %1581 = vmatpush1.msra.mxu0 0.0
        %1582 = vmatprep.subr.mxu0 0.0
        %1583 = vmatpush1.msra.mxu0 0.0
        %1584 = vmatprep.subr.mxu0 0.0
        %1585 = vmatpush1.msra.mxu0 0.0
        %1586 = vmatprep.subr.mxu0 0.0
        %1587 = vmatpush1.msra.mxu0 0.0
        %1588 = vmatprep.subr.mxu0 0.0
        %1589 = vmatpush1.msra.mxu0 0.0
        %1590 = vmatprep.subr.mxu0 0.0
        %1591 = vmatpush1.msra.mxu0 0.0
        %1592 = vmatprep.subr.mxu0 0.0
        %1593 = vmatpush1.msra.mxu0 0.0
        %1594 = vmatprep.subr.mxu0 0.0
        %1595 = vmatpush1.msra.mxu0 0.0
        %1596 = vmatprep.subr.mxu0 0.0
        %1597 = vmatpush1.msra.mxu0 0.0
        %1598 = vmatprep.subr.mxu0 0.0
        %1599 = vmatpush1.msra.mxu0 0.0
        %1600 = vmatprep.subr.mxu0 0.0
        %1601 = vmatpush1.msra.mxu0 0.0
        %1602 = vmatprep.subr.mxu0 0.0
        %1603 = vmatpush1.msra.mxu0 0.0
        %1604 = vmatprep.subr.mxu0 0.0
        %1605 = vmatpush1.msra.mxu0 0.0
        %1606 = vmatprep.subr.mxu0 0.0
        %1607 = vmatpush1.msra.mxu0 0.0
        %1608 = vmatprep.subr.mxu0 0.0
        %1609 = vmatpush1.msra.mxu0 0.0
        %1610 = vmatprep.subr.mxu0 0.0
        %1611 = vmatpush1.msra.mxu0 0.0
        %1612 = vmatprep.subr.mxu0 0.0
        %1613 = vmatpush1.msra.mxu0 0.0
        %1614 = vmatprep.subr.mxu0 0.0
        %1615 = vmatpush1.msra.mxu0 0.0
        %1616 = vmatprep.subr.mxu0 0.0
        %1617 = vmatpush1.msra.mxu0 0.0
        %1618 = vmatprep.subr.mxu0 0.0
        %1619 = vmatpush1.msra.mxu0 0.0
        %1620 = vmatprep.subr.mxu0 0.0
        %1621 = vmatpush1.msra.mxu0 0.0
        %1622 = vmatprep.mubr.f32.mxu0 0.0
        %v1623 = vand.u32 %v1241, 4294901760
        %1624 = vmatmul.mubr.f32.gmra.mrb[0].mxu0 %v1623
        %v1625 = vpop.f32.mrb[0].mxu0
        %v1626 = vadd.f32 %v1549, %v1625
        %v1627 = vpop.f32.mrb[0].mxu0
        %1628 = vdwg.mxu0
        %1629 = vmatprep.subr.mxu0 0.0
        %v1630 = vand.u32 %v311, 4294901760
        %1631 = vmatpush1.msra.mxu0 %v1630
        %1632 = vmatprep.subr.mxu0 0.0
        %v1633 = vand.u32 %v312, 4294901760
        %1634 = vmatpush1.msra.mxu0 %v1633
        %1635 = vmatprep.subr.mxu0 0.0
        %1636 = vmatpush1.msra.mxu0 0.0
        %1637 = vmatprep.subr.mxu0 0.0
        %1638 = vmatpush1.msra.mxu0 0.0
        %1639 = vmatprep.subr.mxu0 0.0
        %1640 = vmatpush1.msra.mxu0 0.0
        %1641 = vmatprep.subr.mxu0 0.0
        %1642 = vmatpush1.msra.mxu0 0.0
        %1643 = vmatprep.subr.mxu0 0.0
        %1644 = vmatpush1.msra.mxu0 0.0
        %1645 = vmatprep.subr.mxu0 0.0
        %1646 = vmatpush1.msra.mxu0 0.0
        %1647 = vmatprep.subr.mxu0 0.0
        %1648 = vmatpush1.msra.mxu0 0.0
        %1649 = vmatprep.subr.mxu0 0.0
        %1650 = vmatpush1.msra.mxu0 0.0
        %1651 = vmatprep.subr.mxu0 0.0
        %1652 = vmatpush1.msra.mxu0 0.0
        %1653 = vmatprep.subr.mxu0 0.0
        %1654 = vmatpush1.msra.mxu0 0.0
        %1655 = vmatprep.subr.mxu0 0.0
        %1656 = vmatpush1.msra.mxu0 0.0
        %1657 = vmatprep.subr.mxu0 0.0
        %1658 = vmatpush1.msra.mxu0 0.0
        %1659 = vmatprep.subr.mxu0 0.0
        %1660 = vmatpush1.msra.mxu0 0.0
        %1661 = vmatprep.subr.mxu0 0.0
        %1662 = vmatpush1.msra.mxu0 0.0
        %1663 = vmatprep.subr.mxu0 0.0
        %1664 = vmatpush1.msra.mxu0 0.0
        %1665 = vmatprep.subr.mxu0 0.0
        %1666 = vmatpush1.msra.mxu0 0.0
        %1667 = vmatprep.subr.mxu0 0.0
        %1668 = vmatpush1.msra.mxu0 0.0
        %1669 = vmatprep.subr.mxu0 0.0
        %1670 = vmatpush1.msra.mxu0 0.0
        %1671 = vmatprep.subr.mxu0 0.0
        %1672 = vmatpush1.msra.mxu0 0.0
        %1673 = vmatprep.subr.mxu0 0.0
        %1674 = vmatpush1.msra.mxu0 0.0
        %1675 = vmatprep.subr.mxu0 0.0
        %1676 = vmatpush1.msra.mxu0 0.0
        %1677 = vmatprep.subr.mxu0 0.0
        %1678 = vmatpush1.msra.mxu0 0.0
        %1679 = vmatprep.subr.mxu0 0.0
        %1680 = vmatpush1.msra.mxu0 0.0
        %1681 = vmatprep.subr.mxu0 0.0
        %1682 = vmatpush1.msra.mxu0 0.0
        %1683 = vmatprep.subr.mxu0 0.0
        %1684 = vmatpush1.msra.mxu0 0.0
        %1685 = vmatprep.subr.mxu0 0.0
        %1686 = vmatpush1.msra.mxu0 0.0
        %1687 = vmatprep.subr.mxu0 0.0
        %1688 = vmatpush1.msra.mxu0 0.0
        %1689 = vmatprep.subr.mxu0 0.0
        %1690 = vmatpush1.msra.mxu0 0.0
        %1691 = vmatprep.subr.mxu0 0.0
        %1692 = vmatpush1.msra.mxu0 0.0
        %1693 = vmatprep.subr.mxu0 0.0
        %1694 = vmatpush1.msra.mxu0 0.0
        %1695 = vmatprep.mubr.f32.mxu0 0.0
        %v1696 = vand.u32 %v1241, 4294901760
        %1697 = vmatmul.mubr.f32.gmra.mrb[0].mxu0 %v1696
        %v1698 = vpop.f32.mrb[0].mxu0
        %v1699 = vadd.f32 %v1626, %v1698
        %v1700 = vpop.f32.mrb[0].mxu0
        %1701 = vdwg.mxu0
        %v1703 = vsel %vm313, %v1699, 0
        %1705 = vmatprep.subr.mxu0 0.0
        %v1706 = vand.u32 %v309, 4294901760
        %1707 = vmatpush1.msra.mxu0 %v1706
        %1708 = vmatprep.subr.mxu0 0.0
        %v1709 = vand.u32 %v310, 4294901760
        %1710 = vmatpush1.msra.mxu0 %v1709
        %1711 = vmatprep.subr.mxu0 0.0
        %1712 = vmatpush1.msra.mxu0 0.0
        %1713 = vmatprep.subr.mxu0 0.0
        %1714 = vmatpush1.msra.mxu0 0.0
        %1715 = vmatprep.subr.mxu0 0.0
        %1716 = vmatpush1.msra.mxu0 0.0
        %1717 = vmatprep.subr.mxu0 0.0
        %1718 = vmatpush1.msra.mxu0 0.0
        %1719 = vmatprep.subr.mxu0 0.0
        %1720 = vmatpush1.msra.mxu0 0.0
        %1721 = vmatprep.subr.mxu0 0.0
        %1722 = vmatpush1.msra.mxu0 0.0
        %1723 = vmatprep.subr.mxu0 0.0
        %1724 = vmatpush1.msra.mxu0 0.0
        %1725 = vmatprep.subr.mxu0 0.0
        %1726 = vmatpush1.msra.mxu0 0.0
        %1727 = vmatprep.subr.mxu0 0.0
        %1728 = vmatpush1.msra.mxu0 0.0
        %1729 = vmatprep.subr.mxu0 0.0
        %1730 = vmatpush1.msra.mxu0 0.0
        %1731 = vmatprep.subr.mxu0 0.0
        %1732 = vmatpush1.msra.mxu0 0.0
        %1733 = vmatprep.subr.mxu0 0.0
        %1734 = vmatpush1.msra.mxu0 0.0
        %1735 = vmatprep.subr.mxu0 0.0
        %1736 = vmatpush1.msra.mxu0 0.0
        %1737 = vmatprep.subr.mxu0 0.0
        %1738 = vmatpush1.msra.mxu0 0.0
        %1739 = vmatprep.subr.mxu0 0.0
        %1740 = vmatpush1.msra.mxu0 0.0
        %1741 = vmatprep.subr.mxu0 0.0
        %1742 = vmatpush1.msra.mxu0 0.0
        %1743 = vmatprep.subr.mxu0 0.0
        %1744 = vmatpush1.msra.mxu0 0.0
        %1745 = vmatprep.subr.mxu0 0.0
        %1746 = vmatpush1.msra.mxu0 0.0
        %1747 = vmatprep.subr.mxu0 0.0
        %1748 = vmatpush1.msra.mxu0 0.0
        %1749 = vmatprep.subr.mxu0 0.0
        %1750 = vmatpush1.msra.mxu0 0.0
        %1751 = vmatprep.subr.mxu0 0.0
        %1752 = vmatpush1.msra.mxu0 0.0
        %1753 = vmatprep.subr.mxu0 0.0
        %1754 = vmatpush1.msra.mxu0 0.0
        %1755 = vmatprep.subr.mxu0 0.0
        %1756 = vmatpush1.msra.mxu0 0.0
        %1757 = vmatprep.subr.mxu0 0.0
        %1758 = vmatpush1.msra.mxu0 0.0
        %1759 = vmatprep.subr.mxu0 0.0
        %1760 = vmatpush1.msra.mxu0 0.0
        %1761 = vmatprep.subr.mxu0 0.0
        %1762 = vmatpush1.msra.mxu0 0.0
        %1763 = vmatprep.subr.mxu0 0.0
        %1764 = vmatpush1.msra.mxu0 0.0
        %1765 = vmatprep.subr.mxu0 0.0
        %1766 = vmatpush1.msra.mxu0 0.0
        %1767 = vmatprep.subr.mxu0 0.0
        %1768 = vmatpush1.msra.mxu0 0.0
        %1769 = vmatprep.subr.mxu0 0.0
        %1770 = vmatpush1.msra.mxu0 0.0
        %1771 = vmatprep.mubr.f32.mxu0 0.0
        %v1772 = vand.u32 %v1703, 4294901760
        %v1773 = vsub.f32 %v1703, %v1772
        %v1774 = vand.u32 %v1773, 4294901760
        %v1775 = vsub.f32 %v1773, %v1774
        %v1776 = vand.u32 %v1775, 4294901760
        %1777 = vmatmul.mubr.f32.gmra.mrb[0].mxu0 %v1776
        %v1778 = vpop.f32.mrb[0].mxu0
        %v1779 = vadd.f32 0.0, %v1778
        %v1780 = vpop.f32.mrb[0].mxu0
        %1781 = vdwg.mxu0
        %1782 = vmatprep.subr.mxu0 0.0
        %v1783 = vand.u32 %v309, 4294901760
        %v1784 = vsub.f32 %v309, %v1783
        %v1785 = vand.u32 %v1784, 4294901760
        %v1786 = vsub.f32 %v1784, %v1785
        %v1787 = vand.u32 %v1786, 4294901760
        %1788 = vmatpush1.msra.mxu0 %v1787
        %1789 = vmatprep.subr.mxu0 0.0
        %v1790 = vand.u32 %v310, 4294901760
        %v1791 = vsub.f32 %v310, %v1790
        %v1792 = vand.u32 %v1791, 4294901760
        %v1793 = vsub.f32 %v1791, %v1792
        %v1794 = vand.u32 %v1793, 4294901760
        %1795 = vmatpush1.msra.mxu0 %v1794
        %1796 = vmatprep.subr.mxu0 0.0
        %1797 = vmatpush1.msra.mxu0 0.0
        %1798 = vmatprep.subr.mxu0 0.0
        %1799 = vmatpush1.msra.mxu0 0.0
        %1800 = vmatprep.subr.mxu0 0.0
        %1801 = vmatpush1.msra.mxu0 0.0
        %1802 = vmatprep.subr.mxu0 0.0
        %1803 = vmatpush1.msra.mxu0 0.0
        %1804 = vmatprep.subr.mxu0 0.0
        %1805 = vmatpush1.msra.mxu0 0.0
        %1806 = vmatprep.subr.mxu0 0.0
        %1807 = vmatpush1.msra.mxu0 0.0
        %1808 = vmatprep.subr.mxu0 0.0
        %1809 = vmatpush1.msra.mxu0 0.0
        %1810 = vmatprep.subr.mxu0 0.0
        %1811 = vmatpush1.msra.mxu0 0.0
        %1812 = vmatprep.subr.mxu0 0.0
        %1813 = vmatpush1.msra.mxu0 0.0
        %1814 = vmatprep.subr.mxu0 0.0
        %1815 = vmatpush1.msra.mxu0 0.0
        %1816 = vmatprep.subr.mxu0 0.0
        %1817 = vmatpush1.msra.mxu0 0.0
        %1818 = vmatprep.subr.mxu0 0.0
        %1819 = vmatpush1.msra.mxu0 0.0
        %1820 = vmatprep.subr.mxu0 0.0
        %1821 = vmatpush1.msra.mxu0 0.0
        %1822 = vmatprep.subr.mxu0 0.0
        %1823 = vmatpush1.msra.mxu0 0.0
        %1824 = vmatprep.subr.mxu0 0.0
        %1825 = vmatpush1.msra.mxu0 0.0
        %1826 = vmatprep.subr.mxu0 0.0
        %1827 = vmatpush1.msra.mxu0 0.0
        %1828 = vmatprep.subr.mxu0 0.0
        %1829 = vmatpush1.msra.mxu0 0.0
        %1830 = vmatprep.subr.mxu0 0.0
        %1831 = vmatpush1.msra.mxu0 0.0
        %1832 = vmatprep.subr.mxu0 0.0
        %1833 = vmatpush1.msra.mxu0 0.0
        %1834 = vmatprep.subr.mxu0 0.0
        %1835 = vmatpush1.msra.mxu0 0.0
        %1836 = vmatprep.subr.mxu0 0.0
        %1837 = vmatpush1.msra.mxu0 0.0
        %1838 = vmatprep.subr.mxu0 0.0
        %1839 = vmatpush1.msra.mxu0 0.0
        %1840 = vmatprep.subr.mxu0 0.0
        %1841 = vmatpush1.msra.mxu0 0.0
        %1842 = vmatprep.subr.mxu0 0.0
        %1843 = vmatpush1.msra.mxu0 0.0
        %1844 = vmatprep.subr.mxu0 0.0
        %1845 = vmatpush1.msra.mxu0 0.0
        %1846 = vmatprep.subr.mxu0 0.0
        %1847 = vmatpush1.msra.mxu0 0.0
        %1848 = vmatprep.subr.mxu0 0.0
        %1849 = vmatpush1.msra.mxu0 0.0
        %1850 = vmatprep.subr.mxu0 0.0
        %1851 = vmatpush1.msra.mxu0 0.0
        %1852 = vmatprep.subr.mxu0 0.0
        %1853 = vmatpush1.msra.mxu0 0.0
        %1854 = vmatprep.subr.mxu0 0.0
        %1855 = vmatpush1.msra.mxu0 0.0
        %1856 = vmatprep.mubr.f32.mxu0 0.0
        %v1857 = vand.u32 %v1703, 4294901760
        %1858 = vmatmul.mubr.f32.gmra.mrb[0].mxu0 %v1857
        %v1859 = vpop.f32.mrb[0].mxu0
        %v1860 = vadd.f32 %v1779, %v1859
        %v1861 = vpop.f32.mrb[0].mxu0
        %1862 = vdwg.mxu0
        %1863 = vmatprep.subr.mxu0 0.0
        %v1864 = vand.u32 %v309, 4294901760
        %v1865 = vsub.f32 %v309, %v1864
        %1866 = vmatpush1.msra.mxu0 %v1865
        %1867 = vmatprep.subr.mxu0 0.0
        %v1868 = vand.u32 %v310, 4294901760
        %v1869 = vsub.f32 %v310, %v1868
        %1870 = vmatpush1.msra.mxu0 %v1869
        %1871 = vmatprep.subr.mxu0 0.0
        %1872 = vmatpush1.msra.mxu0 0.0
        %1873 = vmatprep.subr.mxu0 0.0
        %1874 = vmatpush1.msra.mxu0 0.0
        %1875 = vmatprep.subr.mxu0 0.0
        %1876 = vmatpush1.msra.mxu0 0.0
        %1877 = vmatprep.subr.mxu0 0.0
        %1878 = vmatpush1.msra.mxu0 0.0
        %1879 = vmatprep.subr.mxu0 0.0
        %1880 = vmatpush1.msra.mxu0 0.0
        %1881 = vmatprep.subr.mxu0 0.0
        %1882 = vmatpush1.msra.mxu0 0.0
        %1883 = vmatprep.subr.mxu0 0.0
        %1884 = vmatpush1.msra.mxu0 0.0
        %1885 = vmatprep.subr.mxu0 0.0
        %1886 = vmatpush1.msra.mxu0 0.0
        %1887 = vmatprep.subr.mxu0 0.0
        %1888 = vmatpush1.msra.mxu0 0.0
        %1889 = vmatprep.subr.mxu0 0.0
        %1890 = vmatpush1.msra.mxu0 0.0
        %1891 = vmatprep.subr.mxu0 0.0
        %1892 = vmatpush1.msra.mxu0 0.0
        %1893 = vmatprep.subr.mxu0 0.0
        %1894 = vmatpush1.msra.mxu0 0.0
        %1895 = vmatprep.subr.mxu0 0.0
        %1896 = vmatpush1.msra.mxu0 0.0
        %1897 = vmatprep.subr.mxu0 0.0
        %1898 = vmatpush1.msra.mxu0 0.0
        %1899 = vmatprep.subr.mxu0 0.0
        %1900 = vmatpush1.msra.mxu0 0.0
        %1901 = vmatprep.subr.mxu0 0.0
        %1902 = vmatpush1.msra.mxu0 0.0
        %1903 = vmatprep.subr.mxu0 0.0
        %1904 = vmatpush1.msra.mxu0 0.0
        %1905 = vmatprep.subr.mxu0 0.0
        %1906 = vmatpush1.msra.mxu0 0.0
        %1907 = vmatprep.subr.mxu0 0.0
        %1908 = vmatpush1.msra.mxu0 0.0
        %1909 = vmatprep.subr.mxu0 0.0
        %1910 = vmatpush1.msra.mxu0 0.0
        %1911 = vmatprep.subr.mxu0 0.0
        %1912 = vmatpush1.msra.mxu0 0.0
        %1913 = vmatprep.subr.mxu0 0.0
        %1914 = vmatpush1.msra.mxu0 0.0
        %1915 = vmatprep.subr.mxu0 0.0
        %1916 = vmatpush1.msra.mxu0 0.0
        %1917 = vmatprep.subr.mxu0 0.0
        %1918 = vmatpush1.msra.mxu0 0.0
        %1919 = vmatprep.subr.mxu0 0.0
        %1920 = vmatpush1.msra.mxu0 0.0
        %1921 = vmatprep.subr.mxu0 0.0
        %1922 = vmatpush1.msra.mxu0 0.0
        %1923 = vmatprep.subr.mxu0 0.0
        %1924 = vmatpush1.msra.mxu0 0.0
        %1925 = vmatprep.subr.mxu0 0.0
        %1926 = vmatpush1.msra.mxu0 0.0
        %1927 = vmatprep.subr.mxu0 0.0
        %1928 = vmatpush1.msra.mxu0 0.0
        %1929 = vmatprep.subr.mxu0 0.0
        %1930 = vmatpush1.msra.mxu0 0.0
        %1931 = vmatprep.mubr.f32.mxu0 0.0
        %v1932 = vand.u32 %v1703, 4294901760
        %v1933 = vsub.f32 %v1703, %v1932
        %1934 = vmatmul.mubr.f32.gmra.mrb[0].mxu0 %v1933
        %v1935 = vpop.f32.mrb[0].mxu0
        %v1936 = vadd.f32 %v1860, %v1935
        %v1937 = vpop.f32.mrb[0].mxu0
        %1938 = vdwg.mxu0
        %1939 = vmatprep.subr.mxu0 0.0
        %v1940 = vand.u32 %v309, 4294901760
        %1941 = vmatpush1.msra.mxu0 %v1940
        %1942 = vmatprep.subr.mxu0 0.0
        %v1943 = vand.u32 %v310, 4294901760
        %1944 = vmatpush1.msra.mxu0 %v1943
        %1945 = vmatprep.subr.mxu0 0.0
        %1946 = vmatpush1.msra.mxu0 0.0
        %1947 = vmatprep.subr.mxu0 0.0
        %1948 = vmatpush1.msra.mxu0 0.0
        %1949 = vmatprep.subr.mxu0 0.0
        %1950 = vmatpush1.msra.mxu0 0.0
        %1951 = vmatprep.subr.mxu0 0.0
        %1952 = vmatpush1.msra.mxu0 0.0
        %1953 = vmatprep.subr.mxu0 0.0
        %1954 = vmatpush1.msra.mxu0 0.0
        %1955 = vmatprep.subr.mxu0 0.0
        %1956 = vmatpush1.msra.mxu0 0.0
        %1957 = vmatprep.subr.mxu0 0.0
        %1958 = vmatpush1.msra.mxu0 0.0
        %1959 = vmatprep.subr.mxu0 0.0
        %1960 = vmatpush1.msra.mxu0 0.0
        %1961 = vmatprep.subr.mxu0 0.0
        %1962 = vmatpush1.msra.mxu0 0.0
        %1963 = vmatprep.subr.mxu0 0.0
        %1964 = vmatpush1.msra.mxu0 0.0
        %1965 = vmatprep.subr.mxu0 0.0
        %1966 = vmatpush1.msra.mxu0 0.0
        %1967 = vmatprep.subr.mxu0 0.0
        %1968 = vmatpush1.msra.mxu0 0.0
        %1969 = vmatprep.subr.mxu0 0.0
        %1970 = vmatpush1.msra.mxu0 0.0
        %1971 = vmatprep.subr.mxu0 0.0
        %1972 = vmatpush1.msra.mxu0 0.0
        %1973 = vmatprep.subr.mxu0 0.0
        %1974 = vmatpush1.msra.mxu0 0.0
        %1975 = vmatprep.subr.mxu0 0.0
        %1976 = vmatpush1.msra.mxu0 0.0
        %1977 = vmatprep.subr.mxu0 0.0
        %1978 = vmatpush1.msra.mxu0 0.0
        %1979 = vmatprep.subr.mxu0 0.0
        %1980 = vmatpush1.msra.mxu0 0.0
        %1981 = vmatprep.subr.mxu0 0.0
        %1982 = vmatpush1.msra.mxu0 0.0
        %1983 = vmatprep.subr.mxu0 0.0
        %1984 = vmatpush1.msra.mxu0 0.0
        %1985 = vmatprep.subr.mxu0 0.0
        %1986 = vmatpush1.msra.mxu0 0.0
        %1987 = vmatprep.subr.mxu0 0.0
        %1988 = vmatpush1.msra.mxu0 0.0
        %1989 = vmatprep.subr.mxu0 0.0
        %1990 = vmatpush1.msra.mxu0 0.0
        %1991 = vmatprep.subr.mxu0 0.0
        %1992 = vmatpush1.msra.mxu0 0.0
        %1993 = vmatprep.subr.mxu0 0.0
        %1994 = vmatpush1.msra.mxu0 0.0
        %1995 = vmatprep.subr.mxu0 0.0
        %1996 = vmatpush1.msra.mxu0 0.0
        %1997 = vmatprep.subr.mxu0 0.0
        %1998 = vmatpush1.msra.mxu0 0.0
        %1999 = vmatprep.subr.mxu0 0.0
        %2000 = vmatpush1.msra.mxu0 0.0
        %2001 = vmatprep.subr.mxu0 0.0
        %2002 = vmatpush1.msra.mxu0 0.0
        %2003 = vmatprep.subr.mxu0 0.0
        %2004 = vmatpush1.msra.mxu0 0.0
        %2005 = vmatprep.mubr.f32.mxu0 0.0
        %v2006 = vand.u32 %v1703, 4294901760
        %v2007 = vsub.f32 %v1703, %v2006
        %v2008 = vand.u32 %v2007, 4294901760
        %2009 = vmatmul.mubr.f32.gmra.mrb[0].mxu0 %v2008
        %v2010 = vpop.f32.mrb[0].mxu0
        %v2011 = vadd.f32 %v1936, %v2010
        %v2012 = vpop.f32.mrb[0].mxu0
        %2013 = vdwg.mxu0
        %2014 = vmatprep.subr.mxu0 0.0
        %v2015 = vand.u32 %v309, 4294901760
        %v2016 = vsub.f32 %v309, %v2015
        %v2017 = vand.u32 %v2016, 4294901760
        %2018 = vmatpush1.msra.mxu0 %v2017
        %2019 = vmatprep.subr.mxu0 0.0
        %v2020 = vand.u32 %v310, 4294901760
        %v2021 = vsub.f32 %v310, %v2020
        %v2022 = vand.u32 %v2021, 4294901760
        %2023 = vmatpush1.msra.mxu0 %v2022
        %2024 = vmatprep.subr.mxu0 0.0
        %2025 = vmatpush1.msra.mxu0 0.0
        %2026 = vmatprep.subr.mxu0 0.0
        %2027 = vmatpush1.msra.mxu0 0.0
        %2028 = vmatprep.subr.mxu0 0.0
        %2029 = vmatpush1.msra.mxu0 0.0
        %2030 = vmatprep.subr.mxu0 0.0
        %2031 = vmatpush1.msra.mxu0 0.0
        %2032 = vmatprep.subr.mxu0 0.0
        %2033 = vmatpush1.msra.mxu0 0.0
        %2034 = vmatprep.subr.mxu0 0.0
        %2035 = vmatpush1.msra.mxu0 0.0
        %2036 = vmatprep.subr.mxu0 0.0
        %2037 = vmatpush1.msra.mxu0 0.0
        %2038 = vmatprep.subr.mxu0 0.0
        %2039 = vmatpush1.msra.mxu0 0.0
        %2040 = vmatprep.subr.mxu0 0.0
        %2041 = vmatpush1.msra.mxu0 0.0
        %2042 = vmatprep.subr.mxu0 0.0
        %2043 = vmatpush1.msra.mxu0 0.0
        %2044 = vmatprep.subr.mxu0 0.0
        %2045 = vmatpush1.msra.mxu0 0.0
        %2046 = vmatprep.subr.mxu0 0.0
        %2047 = vmatpush1.msra.mxu0 0.0
        %2048 = vmatprep.subr.mxu0 0.0
        %2049 = vmatpush1.msra.mxu0 0.0
        %2050 = vmatprep.subr.mxu0 0.0
        %2051 = vmatpush1.msra.mxu0 0.0
        %2052 = vmatprep.subr.mxu0 0.0
        %2053 = vmatpush1.msra.mxu0 0.0
        %2054 = vmatprep.subr.mxu0 0.0
        %2055 = vmatpush1.msra.mxu0 0.0
        %2056 = vmatprep.subr.mxu0 0.0
        %2057 = vmatpush1.msra.mxu0 0.0
        %2058 = vmatprep.subr.mxu0 0.0
        %2059 = vmatpush1.msra.mxu0 0.0
        %2060 = vmatprep.subr.mxu0 0.0
        %2061 = vmatpush1.msra.mxu0 0.0
        %2062 = vmatprep.subr.mxu0 0.0
        %2063 = vmatpush1.msra.mxu0 0.0
        %2064 = vmatprep.subr.mxu0 0.0
        %2065 = vmatpush1.msra.mxu0 0.0
        %2066 = vmatprep.subr.mxu0 0.0
        %2067 = vmatpush1.msra.mxu0 0.0
        %2068 = vmatprep.subr.mxu0 0.0
        %2069 = vmatpush1.msra.mxu0 0.0
        %2070 = vmatprep.subr.mxu0 0.0
        %2071 = vmatpush1.msra.mxu0 0.0
        %2072 = vmatprep.subr.mxu0 0.0
        %2073 = vmatpush1.msra.mxu0 0.0
        %2074 = vmatprep.subr.mxu0 0.0
        %2075 = vmatpush1.msra.mxu0 0.0
        %2076 = vmatprep.subr.mxu0 0.0
        %2077 = vmatpush1.msra.mxu0 0.0
        %2078 = vmatprep.subr.mxu0 0.0
        %2079 = vmatpush1.msra.mxu0 0.0
        %2080 = vmatprep.subr.mxu0 0.0
        %2081 = vmatpush1.msra.mxu0 0.0
        %2082 = vmatprep.subr.mxu0 0.0
        %2083 = vmatpush1.msra.mxu0 0.0
        %2084 = vmatprep.mubr.f32.mxu0 0.0
        %v2085 = vand.u32 %v1703, 4294901760
        %2086 = vmatmul.mubr.f32.gmra.mrb[0].mxu0 %v2085
        %v2087 = vpop.f32.mrb[0].mxu0
        %v2088 = vadd.f32 %v2011, %v2087
        %v2089 = vpop.f32.mrb[0].mxu0
        %2090 = vdwg.mxu0
        %2091 = vmatprep.subr.mxu0 0.0
        %v2092 = vand.u32 %v309, 4294901760
        %2093 = vmatpush1.msra.mxu0 %v2092
        %2094 = vmatprep.subr.mxu0 0.0
        %v2095 = vand.u32 %v310, 4294901760
        %2096 = vmatpush1.msra.mxu0 %v2095
        %2097 = vmatprep.subr.mxu0 0.0
        %2098 = vmatpush1.msra.mxu0 0.0
        %2099 = vmatprep.subr.mxu0 0.0
        %2100 = vmatpush1.msra.mxu0 0.0
        %2101 = vmatprep.subr.mxu0 0.0
        %2102 = vmatpush1.msra.mxu0 0.0
        %2103 = vmatprep.subr.mxu0 0.0
        %2104 = vmatpush1.msra.mxu0 0.0
        %2105 = vmatprep.subr.mxu0 0.0
        %2106 = vmatpush1.msra.mxu0 0.0
        %2107 = vmatprep.subr.mxu0 0.0
        %2108 = vmatpush1.msra.mxu0 0.0
        %2109 = vmatprep.subr.mxu0 0.0
        %2110 = vmatpush1.msra.mxu0 0.0
        %2111 = vmatprep.subr.mxu0 0.0
        %2112 = vmatpush1.msra.mxu0 0.0
        %2113 = vmatprep.subr.mxu0 0.0
        %2114 = vmatpush1.msra.mxu0 0.0
        %2115 = vmatprep.subr.mxu0 0.0
        %2116 = vmatpush1.msra.mxu0 0.0
        %2117 = vmatprep.subr.mxu0 0.0
        %2118 = vmatpush1.msra.mxu0 0.0
        %2119 = vmatprep.subr.mxu0 0.0
        %2120 = vmatpush1.msra.mxu0 0.0
        %2121 = vmatprep.subr.mxu0 0.0
        %2122 = vmatpush1.msra.mxu0 0.0
        %2123 = vmatprep.subr.mxu0 0.0
        %2124 = vmatpush1.msra.mxu0 0.0
        %2125 = vmatprep.subr.mxu0 0.0
        %2126 = vmatpush1.msra.mxu0 0.0
        %2127 = vmatprep.subr.mxu0 0.0
        %2128 = vmatpush1.msra.mxu0 0.0
        %2129 = vmatprep.subr.mxu0 0.0
        %2130 = vmatpush1.msra.mxu0 0.0
        %2131 = vmatprep.subr.mxu0 0.0
        %2132 = vmatpush1.msra.mxu0 0.0
        %2133 = vmatprep.subr.mxu0 0.0
        %2134 = vmatpush1.msra.mxu0 0.0
        %2135 = vmatprep.subr.mxu0 0.0
        %2136 = vmatpush1.msra.mxu0 0.0
        %2137 = vmatprep.subr.mxu0 0.0
        %2138 = vmatpush1.msra.mxu0 0.0
        %2139 = vmatprep.subr.mxu0 0.0
        %2140 = vmatpush1.msra.mxu0 0.0
        %2141 = vmatprep.subr.mxu0 0.0
        %2142 = vmatpush1.msra.mxu0 0.0
        %2143 = vmatprep.subr.mxu0 0.0
        %2144 = vmatpush1.msra.mxu0 0.0
        %2145 = vmatprep.subr.mxu0 0.0
        %2146 = vmatpush1.msra.mxu0 0.0
        %2147 = vmatprep.subr.mxu0 0.0
        %2148 = vmatpush1.msra.mxu0 0.0
        %2149 = vmatprep.subr.mxu0 0.0
        %2150 = vmatpush1.msra.mxu0 0.0
        %2151 = vmatprep.subr.mxu0 0.0
        %2152 = vmatpush1.msra.mxu0 0.0
        %2153 = vmatprep.subr.mxu0 0.0
        %2154 = vmatpush1.msra.mxu0 0.0
        %2155 = vmatprep.subr.mxu0 0.0
        %2156 = vmatpush1.msra.mxu0 0.0
        %2157 = vmatprep.mubr.f32.mxu0 0.0
        %v2158 = vand.u32 %v1703, 4294901760
        %2159 = vmatmul.mubr.f32.gmra.mrb[0].mxu0 %v2158
        %v2160 = vpop.f32.mrb[0].mxu0
        %v2161 = vadd.f32 %v2088, %v2160
        %v2162 = vpop.f32.mrb[0].mxu0
        %2163 = vdwg.mxu0
        %vm2164 = vcmask 27648
        %2165 = vst.msk [vmem:[%s301] sm:$0xf] %vm2164, %v2161
        %s2166 = scalar_lea.vmem %s268, 16 [#allocation2]
        %v2167 = vld [vmem:[%s2166] sm:$0xff]
        %v2168 = vld [vmem:[%s2166 + $0x8] sm:$0xff]
        %2169 = vmatprep.subr.mxu0 0.0
        %v2170 = vand.u32 %v2167, 4294901760
        %2171 = vmatpush1.msra.mxu0 %v2170
        %2172 = vmatprep.subr.mxu0 0.0
        %v2173 = vand.u32 %v2168, 4294901760
        %2174 = vmatpush1.msra.mxu0 %v2173
        %2175 = vmatprep.subr.mxu0 0.0
        %2176 = vmatpush1.msra.mxu0 0.0
        %2177 = vmatprep.subr.mxu0 0.0
        %2178 = vmatpush1.msra.mxu0 0.0
        %2179 = vmatprep.subr.mxu0 0.0
        %2180 = vmatpush1.msra.mxu0 0.0
        %2181 = vmatprep.subr.mxu0 0.0
        %2182 = vmatpush1.msra.mxu0 0.0
        %2183 = vmatprep.subr.mxu0 0.0
        %2184 = vmatpush1.msra.mxu0 0.0
        %2185 = vmatprep.subr.mxu0 0.0
        %2186 = vmatpush1.msra.mxu0 0.0
        %2187 = vmatprep.subr.mxu0 0.0
        %2188 = vmatpush1.msra.mxu0 0.0
        %2189 = vmatprep.subr.mxu0 0.0
        %2190 = vmatpush1.msra.mxu0 0.0
        %2191 = vmatprep.subr.mxu0 0.0
        %2192 = vmatpush1.msra.mxu0 0.0
        %2193 = vmatprep.subr.mxu0 0.0
        %2194 = vmatpush1.msra.mxu0 0.0
        %2195 = vmatprep.subr.mxu0 0.0
        %2196 = vmatpush1.msra.mxu0 0.0
        %2197 = vmatprep.subr.mxu0 0.0
        %2198 = vmatpush1.msra.mxu0 0.0
        %2199 = vmatprep.subr.mxu0 0.0
        %2200 = vmatpush1.msra.mxu0 0.0
        %2201 = vmatprep.subr.mxu0 0.0
        %2202 = vmatpush1.msra.mxu0 0.0
        %2203 = vmatprep.subr.mxu0 0.0
        %2204 = vmatpush1.msra.mxu0 0.0
        %2205 = vmatprep.subr.mxu0 0.0
        %2206 = vmatpush1.msra.mxu0 0.0
        %2207 = vmatprep.subr.mxu0 0.0
        %2208 = vmatpush1.msra.mxu0 0.0
        %2209 = vmatprep.subr.mxu0 0.0
        %2210 = vmatpush1.msra.mxu0 0.0
        %2211 = vmatprep.subr.mxu0 0.0
        %2212 = vmatpush1.msra.mxu0 0.0
        %2213 = vmatprep.subr.mxu0 0.0
        %2214 = vmatpush1.msra.mxu0 0.0
        %2215 = vmatprep.subr.mxu0 0.0
        %2216 = vmatpush1.msra.mxu0 0.0
        %2217 = vmatprep.subr.mxu0 0.0
        %2218 = vmatpush1.msra.mxu0 0.0
        %2219 = vmatprep.subr.mxu0 0.0
        %2220 = vmatpush1.msra.mxu0 0.0
        %2221 = vmatprep.subr.mxu0 0.0
        %2222 = vmatpush1.msra.mxu0 0.0
        %2223 = vmatprep.subr.mxu0 0.0
        %2224 = vmatpush1.msra.mxu0 0.0
        %2225 = vmatprep.subr.mxu0 0.0
        %2226 = vmatpush1.msra.mxu0 0.0
        %2227 = vmatprep.subr.mxu0 0.0
        %2228 = vmatpush1.msra.mxu0 0.0
        %2229 = vmatprep.subr.mxu0 0.0
        %2230 = vmatpush1.msra.mxu0 0.0
        %2231 = vmatprep.subr.mxu0 0.0
        %2232 = vmatpush1.msra.mxu0 0.0
        %2233 = vmatprep.subr.mxu0 0.0
        %2234 = vmatpush1.msra.mxu0 0.0
        %2235 = vmatprep.mubr.f32.mxu0 0.0
        %v2236 = vand.u32 %v315, 4294901760
        %v2237 = vsub.f32 %v315, %v2236
        %v2238 = vand.u32 %v2237, 4294901760
        %v2239 = vsub.f32 %v2237, %v2238
        %v2240 = vand.u32 %v2239, 4294901760
        %2241 = vmatmul.mubr.f32.gmra.mrb[0].mxu0 %v2240
        %v2242 = vpop.f32.mrb[0].mxu0
        %v2243 = vadd.f32 0.0, %v2242
        %v2244 = vpop.f32.mrb[0].mxu0
        %2245 = vdwg.mxu0
        %2246 = vmatprep.subr.mxu0 0.0
        %v2247 = vand.u32 %v2167, 4294901760
        %v2248 = vsub.f32 %v2167, %v2247
        %v2249 = vand.u32 %v2248, 4294901760
        %v2250 = vsub.f32 %v2248, %v2249
        %v2251 = vand.u32 %v2250, 4294901760
        %2252 = vmatpush1.msra.mxu0 %v2251
        %2253 = vmatprep.subr.mxu0 0.0
        %v2254 = vand.u32 %v2168, 4294901760
        %v2255 = vsub.f32 %v2168, %v2254
        %v2256 = vand.u32 %v2255, 4294901760
        %v2257 = vsub.f32 %v2255, %v2256
        %v2258 = vand.u32 %v2257, 4294901760
        %2259 = vmatpush1.msra.mxu0 %v2258
        %2260 = vmatprep.subr.mxu0 0.0
        %2261 = vmatpush1.msra.mxu0 0.0
        %2262 = vmatprep.subr.mxu0 0.0
        %2263 = vmatpush1.msra.mxu0 0.0
        %2264 = vmatprep.subr.mxu0 0.0
        %2265 = vmatpush1.msra.mxu0 0.0
        %2266 = vmatprep.subr.mxu0 0.0
        %2267 = vmatpush1.msra.mxu0 0.0
        %2268 = vmatprep.subr.mxu0 0.0
        %2269 = vmatpush1.msra.mxu0 0.0
        %2270 = vmatprep.subr.mxu0 0.0
        %2271 = vmatpush1.msra.mxu0 0.0
        %2272 = vmatprep.subr.mxu0 0.0
        %2273 = vmatpush1.msra.mxu0 0.0
        %2274 = vmatprep.subr.mxu0 0.0
        %2275 = vmatpush1.msra.mxu0 0.0
        %2276 = vmatprep.subr.mxu0 0.0
        %2277 = vmatpush1.msra.mxu0 0.0
        %2278 = vmatprep.subr.mxu0 0.0
        %2279 = vmatpush1.msra.mxu0 0.0
        %2280 = vmatprep.subr.mxu0 0.0
        %2281 = vmatpush1.msra.mxu0 0.0
        %2282 = vmatprep.subr.mxu0 0.0
        %2283 = vmatpush1.msra.mxu0 0.0
        %2284 = vmatprep.subr.mxu0 0.0
        %2285 = vmatpush1.msra.mxu0 0.0
        %2286 = vmatprep.subr.mxu0 0.0
        %2287 = vmatpush1.msra.mxu0 0.0
        %2288 = vmatprep.subr.mxu0 0.0
        %2289 = vmatpush1.msra.mxu0 0.0
        %2290 = vmatprep.subr.mxu0 0.0
        %2291 = vmatpush1.msra.mxu0 0.0
        %2292 = vmatprep.subr.mxu0 0.0
        %2293 = vmatpush1.msra.mxu0 0.0
        %2294 = vmatprep.subr.mxu0 0.0
        %2295 = vmatpush1.msra.mxu0 0.0
        %2296 = vmatprep.subr.mxu0 0.0
        %2297 = vmatpush1.msra.mxu0 0.0
        %2298 = vmatprep.subr.mxu0 0.0
        %2299 = vmatpush1.msra.mxu0 0.0
        %2300 = vmatprep.subr.mxu0 0.0
        %2301 = vmatpush1.msra.mxu0 0.0
        %2302 = vmatprep.subr.mxu0 0.0
        %2303 = vmatpush1.msra.mxu0 0.0
        %2304 = vmatprep.subr.mxu0 0.0
        %2305 = vmatpush1.msra.mxu0 0.0
        %2306 = vmatprep.subr.mxu0 0.0
        %2307 = vmatpush1.msra.mxu0 0.0
        %2308 = vmatprep.subr.mxu0 0.0
        %2309 = vmatpush1.msra.mxu0 0.0
        %2310 = vmatprep.subr.mxu0 0.0
        %2311 = vmatpush1.msra.mxu0 0.0
        %2312 = vmatprep.subr.mxu0 0.0
        %2313 = vmatpush1.msra.mxu0 0.0
        %2314 = vmatprep.subr.mxu0 0.0
        %2315 = vmatpush1.msra.mxu0 0.0
        %2316 = vmatprep.subr.mxu0 0.0
        %2317 = vmatpush1.msra.mxu0 0.0
        %2318 = vmatprep.subr.mxu0 0.0
        %2319 = vmatpush1.msra.mxu0 0.0
        %2320 = vmatprep.mubr.f32.mxu0 0.0
        %v2321 = vand.u32 %v315, 4294901760
        %2322 = vmatmul.mubr.f32.gmra.mrb[0].mxu0 %v2321
        %v2323 = vpop.f32.mrb[0].mxu0
        %v2324 = vadd.f32 %v2243, %v2323
        %v2325 = vpop.f32.mrb[0].mxu0
        %2326 = vdwg.mxu0
        %2327 = vmatprep.subr.mxu0 0.0
        %v2328 = vand.u32 %v2167, 4294901760
        %v2329 = vsub.f32 %v2167, %v2328
        %2330 = vmatpush1.msra.mxu0 %v2329
        %2331 = vmatprep.subr.mxu0 0.0
        %v2332 = vand.u32 %v2168, 4294901760
        %v2333 = vsub.f32 %v2168, %v2332
        %2334 = vmatpush1.msra.mxu0 %v2333
        %2335 = vmatprep.subr.mxu0 0.0
        %2336 = vmatpush1.msra.mxu0 0.0
        %2337 = vmatprep.subr.mxu0 0.0
        %2338 = vmatpush1.msra.mxu0 0.0
        %2339 = vmatprep.subr.mxu0 0.0
        %2340 = vmatpush1.msra.mxu0 0.0
        %2341 = vmatprep.subr.mxu0 0.0
        %2342 = vmatpush1.msra.mxu0 0.0
        %2343 = vmatprep.subr.mxu0 0.0
        %2344 = vmatpush1.msra.mxu0 0.0
        %2345 = vmatprep.subr.mxu0 0.0
        %2346 = vmatpush1.msra.mxu0 0.0
        %2347 = vmatprep.subr.mxu0 0.0
        %2348 = vmatpush1.msra.mxu0 0.0
        %2349 = vmatprep.subr.mxu0 0.0
        %2350 = vmatpush1.msra.mxu0 0.0
        %2351 = vmatprep.subr.mxu0 0.0
        %2352 = vmatpush1.msra.mxu0 0.0
        %2353 = vmatprep.subr.mxu0 0.0
        %2354 = vmatpush1.msra.mxu0 0.0
        %2355 = vmatprep.subr.mxu0 0.0
        %2356 = vmatpush1.msra.mxu0 0.0
        %2357 = vmatprep.subr.mxu0 0.0
        %2358 = vmatpush1.msra.mxu0 0.0
        %2359 = vmatprep.subr.mxu0 0.0
        %2360 = vmatpush1.msra.mxu0 0.0
        %2361 = vmatprep.subr.mxu0 0.0
        %2362 = vmatpush1.msra.mxu0 0.0
        %2363 = vmatprep.subr.mxu0 0.0
        %2364 = vmatpush1.msra.mxu0 0.0
        %2365 = vmatprep.subr.mxu0 0.0
        %2366 = vmatpush1.msra.mxu0 0.0
        %2367 = vmatprep.subr.mxu0 0.0
        %2368 = vmatpush1.msra.mxu0 0.0
        %2369 = vmatprep.subr.mxu0 0.0
        %2370 = vmatpush1.msra.mxu0 0.0
        %2371 = vmatprep.subr.mxu0 0.0
        %2372 = vmatpush1.msra.mxu0 0.0
        %2373 = vmatprep.subr.mxu0 0.0
        %2374 = vmatpush1.msra.mxu0 0.0
        %2375 = vmatprep.subr.mxu0 0.0
        %2376 = vmatpush1.msra.mxu0 0.0
        %2377 = vmatprep.subr.mxu0 0.0
        %2378 = vmatpush1.msra.mxu0 0.0
        %2379 = vmatprep.subr.mxu0 0.0
        %2380 = vmatpush1.msra.mxu0 0.0
        %2381 = vmatprep.subr.mxu0 0.0
        %2382 = vmatpush1.msra.mxu0 0.0
        %2383 = vmatprep.subr.mxu0 0.0
        %2384 = vmatpush1.msra.mxu0 0.0
        %2385 = vmatprep.subr.mxu0 0.0
        %2386 = vmatpush1.msra.mxu0 0.0
        %2387 = vmatprep.subr.mxu0 0.0
        %2388 = vmatpush1.msra.mxu0 0.0
        %2389 = vmatprep.subr.mxu0 0.0
        %2390 = vmatpush1.msra.mxu0 0.0
        %2391 = vmatprep.subr.mxu0 0.0
        %2392 = vmatpush1.msra.mxu0 0.0
        %2393 = vmatprep.subr.mxu0 0.0
        %2394 = vmatpush1.msra.mxu0 0.0
        %2395 = vmatprep.mubr.f32.mxu0 0.0
        %v2396 = vand.u32 %v315, 4294901760
        %v2397 = vsub.f32 %v315, %v2396
        %2398 = vmatmul.mubr.f32.gmra.mrb[0].mxu0 %v2397
        %v2399 = vpop.f32.mrb[0].mxu0
        %v2400 = vadd.f32 %v2324, %v2399
        %v2401 = vpop.f32.mrb[0].mxu0
        %2402 = vdwg.mxu0
        %2403 = vmatprep.subr.mxu0 0.0
        %v2404 = vand.u32 %v2167, 4294901760
        %2405 = vmatpush1.msra.mxu0 %v2404
        %2406 = vmatprep.subr.mxu0 0.0
        %v2407 = vand.u32 %v2168, 4294901760
        %2408 = vmatpush1.msra.mxu0 %v2407
        %2409 = vmatprep.subr.mxu0 0.0
        %2410 = vmatpush1.msra.mxu0 0.0
        %2411 = vmatprep.subr.mxu0 0.0
        %2412 = vmatpush1.msra.mxu0 0.0
        %2413 = vmatprep.subr.mxu0 0.0
        %2414 = vmatpush1.msra.mxu0 0.0
        %2415 = vmatprep.subr.mxu0 0.0
        %2416 = vmatpush1.msra.mxu0 0.0
        %2417 = vmatprep.subr.mxu0 0.0
        %2418 = vmatpush1.msra.mxu0 0.0
        %2419 = vmatprep.subr.mxu0 0.0
        %2420 = vmatpush1.msra.mxu0 0.0
        %2421 = vmatprep.subr.mxu0 0.0
        %2422 = vmatpush1.msra.mxu0 0.0
        %2423 = vmatprep.subr.mxu0 0.0
        %2424 = vmatpush1.msra.mxu0 0.0
        %2425 = vmatprep.subr.mxu0 0.0
        %2426 = vmatpush1.msra.mxu0 0.0
        %2427 = vmatprep.subr.mxu0 0.0
        %2428 = vmatpush1.msra.mxu0 0.0
        %2429 = vmatprep.subr.mxu0 0.0
        %2430 = vmatpush1.msra.mxu0 0.0
        %2431 = vmatprep.subr.mxu0 0.0
        %2432 = vmatpush1.msra.mxu0 0.0
        %2433 = vmatprep.subr.mxu0 0.0
        %2434 = vmatpush1.msra.mxu0 0.0
        %2435 = vmatprep.subr.mxu0 0.0
        %2436 = vmatpush1.msra.mxu0 0.0
        %2437 = vmatprep.subr.mxu0 0.0
        %2438 = vmatpush1.msra.mxu0 0.0
        %2439 = vmatprep.subr.mxu0 0.0
        %2440 = vmatpush1.msra.mxu0 0.0
        %2441 = vmatprep.subr.mxu0 0.0
        %2442 = vmatpush1.msra.mxu0 0.0
        %2443 = vmatprep.subr.mxu0 0.0
        %2444 = vmatpush1.msra.mxu0 0.0
        %2445 = vmatprep.subr.mxu0 0.0
        %2446 = vmatpush1.msra.mxu0 0.0
        %2447 = vmatprep.subr.mxu0 0.0
        %2448 = vmatpush1.msra.mxu0 0.0
        %2449 = vmatprep.subr.mxu0 0.0
        %2450 = vmatpush1.msra.mxu0 0.0
        %2451 = vmatprep.subr.mxu0 0.0
        %2452 = vmatpush1.msra.mxu0 0.0
        %2453 = vmatprep.subr.mxu0 0.0
        %2454 = vmatpush1.msra.mxu0 0.0
        %2455 = vmatprep.subr.mxu0 0.0
        %2456 = vmatpush1.msra.mxu0 0.0
        %2457 = vmatprep.subr.mxu0 0.0
        %2458 = vmatpush1.msra.mxu0 0.0
        %2459 = vmatprep.subr.mxu0 0.0
        %2460 = vmatpush1.msra.mxu0 0.0
        %2461 = vmatprep.subr.mxu0 0.0
        %2462 = vmatpush1.msra.mxu0 0.0
        %2463 = vmatprep.subr.mxu0 0.0
        %2464 = vmatpush1.msra.mxu0 0.0
        %2465 = vmatprep.subr.mxu0 0.0
        %2466 = vmatpush1.msra.mxu0 0.0
        %2467 = vmatprep.subr.mxu0 0.0
        %2468 = vmatpush1.msra.mxu0 0.0
        %2469 = vmatprep.mubr.f32.mxu0 0.0
        %v2470 = vand.u32 %v315, 4294901760
        %v2471 = vsub.f32 %v315, %v2470
        %v2472 = vand.u32 %v2471, 4294901760
        %2473 = vmatmul.mubr.f32.gmra.mrb[0].mxu0 %v2472
        %v2474 = vpop.f32.mrb[0].mxu0
        %v2475 = vadd.f32 %v2400, %v2474
        %v2476 = vpop.f32.mrb[0].mxu0
        %2477 = vdwg.mxu0
        %2478 = vmatprep.subr.mxu0 0.0
        %v2479 = vand.u32 %v2167, 4294901760
        %v2480 = vsub.f32 %v2167, %v2479
        %v2481 = vand.u32 %v2480, 4294901760
        %2482 = vmatpush1.msra.mxu0 %v2481
        %2483 = vmatprep.subr.mxu0 0.0
        %v2484 = vand.u32 %v2168, 4294901760
        %v2485 = vsub.f32 %v2168, %v2484
        %v2486 = vand.u32 %v2485, 4294901760
        %2487 = vmatpush1.msra.mxu0 %v2486
        %2488 = vmatprep.subr.mxu0 0.0
        %2489 = vmatpush1.msra.mxu0 0.0
        %2490 = vmatprep.subr.mxu0 0.0
        %2491 = vmatpush1.msra.mxu0 0.0
        %2492 = vmatprep.subr.mxu0 0.0
        %2493 = vmatpush1.msra.mxu0 0.0
        %2494 = vmatprep.subr.mxu0 0.0
        %2495 = vmatpush1.msra.mxu0 0.0
        %2496 = vmatprep.subr.mxu0 0.0
        %2497 = vmatpush1.msra.mxu0 0.0
        %2498 = vmatprep.subr.mxu0 0.0
        %2499 = vmatpush1.msra.mxu0 0.0
        %2500 = vmatprep.subr.mxu0 0.0
        %2501 = vmatpush1.msra.mxu0 0.0
        %2502 = vmatprep.subr.mxu0 0.0
        %2503 = vmatpush1.msra.mxu0 0.0
        %2504 = vmatprep.subr.mxu0 0.0
        %2505 = vmatpush1.msra.mxu0 0.0
        %2506 = vmatprep.subr.mxu0 0.0
        %2507 = vmatpush1.msra.mxu0 0.0
        %2508 = vmatprep.subr.mxu0 0.0
        %2509 = vmatpush1.msra.mxu0 0.0
        %2510 = vmatprep.subr.mxu0 0.0
        %2511 = vmatpush1.msra.mxu0 0.0
        %2512 = vmatprep.subr.mxu0 0.0
        %2513 = vmatpush1.msra.mxu0 0.0
        %2514 = vmatprep.subr.mxu0 0.0
        %2515 = vmatpush1.msra.mxu0 0.0
        %2516 = vmatprep.subr.mxu0 0.0
        %2517 = vmatpush1.msra.mxu0 0.0
        %2518 = vmatprep.subr.mxu0 0.0
        %2519 = vmatpush1.msra.mxu0 0.0
        %2520 = vmatprep.subr.mxu0 0.0
        %2521 = vmatpush1.msra.mxu0 0.0
        %2522 = vmatprep.subr.mxu0 0.0
        %2523 = vmatpush1.msra.mxu0 0.0
        %2524 = vmatprep.subr.mxu0 0.0
        %2525 = vmatpush1.msra.mxu0 0.0
        %2526 = vmatprep.subr.mxu0 0.0
        %2527 = vmatpush1.msra.mxu0 0.0
        %2528 = vmatprep.subr.mxu0 0.0
        %2529 = vmatpush1.msra.mxu0 0.0
        %2530 = vmatprep.subr.mxu0 0.0
        %2531 = vmatpush1.msra.mxu0 0.0
        %2532 = vmatprep.subr.mxu0 0.0
        %2533 = vmatpush1.msra.mxu0 0.0
        %2534 = vmatprep.subr.mxu0 0.0
        %2535 = vmatpush1.msra.mxu0 0.0
        %2536 = vmatprep.subr.mxu0 0.0
        %2537 = vmatpush1.msra.mxu0 0.0
        %2538 = vmatprep.subr.mxu0 0.0
        %2539 = vmatpush1.msra.mxu0 0.0
        %2540 = vmatprep.subr.mxu0 0.0
        %2541 = vmatpush1.msra.mxu0 0.0
        %2542 = vmatprep.subr.mxu0 0.0
        %2543 = vmatpush1.msra.mxu0 0.0
        %2544 = vmatprep.subr.mxu0 0.0
        %2545 = vmatpush1.msra.mxu0 0.0
        %2546 = vmatprep.subr.mxu0 0.0
        %2547 = vmatpush1.msra.mxu0 0.0
        %2548 = vmatprep.mubr.f32.mxu0 0.0
        %v2549 = vand.u32 %v315, 4294901760
        %2550 = vmatmul.mubr.f32.gmra.mrb[0].mxu0 %v2549
        %v2551 = vpop.f32.mrb[0].mxu0
        %v2552 = vadd.f32 %v2475, %v2551
        %v2553 = vpop.f32.mrb[0].mxu0
        %2554 = vdwg.mxu0
        %2555 = vmatprep.subr.mxu0 0.0
        %v2556 = vand.u32 %v2167, 4294901760
        %2557 = vmatpush1.msra.mxu0 %v2556
        %2558 = vmatprep.subr.mxu0 0.0
        %v2559 = vand.u32 %v2168, 4294901760
        %2560 = vmatpush1.msra.mxu0 %v2559
        %2561 = vmatprep.subr.mxu0 0.0
        %2562 = vmatpush1.msra.mxu0 0.0
        %2563 = vmatprep.subr.mxu0 0.0
        %2564 = vmatpush1.msra.mxu0 0.0
        %2565 = vmatprep.subr.mxu0 0.0
        %2566 = vmatpush1.msra.mxu0 0.0
        %2567 = vmatprep.subr.mxu0 0.0
        %2568 = vmatpush1.msra.mxu0 0.0
        %2569 = vmatprep.subr.mxu0 0.0
        %2570 = vmatpush1.msra.mxu0 0.0
        %2571 = vmatprep.subr.mxu0 0.0
        %2572 = vmatpush1.msra.mxu0 0.0
        %2573 = vmatprep.subr.mxu0 0.0
        %2574 = vmatpush1.msra.mxu0 0.0
        %2575 = vmatprep.subr.mxu0 0.0
        %2576 = vmatpush1.msra.mxu0 0.0
        %2577 = vmatprep.subr.mxu0 0.0
        %2578 = vmatpush1.msra.mxu0 0.0
        %2579 = vmatprep.subr.mxu0 0.0
        %2580 = vmatpush1.msra.mxu0 0.0
        %2581 = vmatprep.subr.mxu0 0.0
        %2582 = vmatpush1.msra.mxu0 0.0
        %2583 = vmatprep.subr.mxu0 0.0
        %2584 = vmatpush1.msra.mxu0 0.0
        %2585 = vmatprep.subr.mxu0 0.0
        %2586 = vmatpush1.msra.mxu0 0.0
        %2587 = vmatprep.subr.mxu0 0.0
        %2588 = vmatpush1.msra.mxu0 0.0
        %2589 = vmatprep.subr.mxu0 0.0
        %2590 = vmatpush1.msra.mxu0 0.0
        %2591 = vmatprep.subr.mxu0 0.0
        %2592 = vmatpush1.msra.mxu0 0.0
        %2593 = vmatprep.subr.mxu0 0.0
        %2594 = vmatpush1.msra.mxu0 0.0
        %2595 = vmatprep.subr.mxu0 0.0
        %2596 = vmatpush1.msra.mxu0 0.0
        %2597 = vmatprep.subr.mxu0 0.0
        %2598 = vmatpush1.msra.mxu0 0.0
        %2599 = vmatprep.subr.mxu0 0.0
        %2600 = vmatpush1.msra.mxu0 0.0
        %2601 = vmatprep.subr.mxu0 0.0
        %2602 = vmatpush1.msra.mxu0 0.0
        %2603 = vmatprep.subr.mxu0 0.0
        %2604 = vmatpush1.msra.mxu0 0.0
        %2605 = vmatprep.subr.mxu0 0.0
        %2606 = vmatpush1.msra.mxu0 0.0
        %2607 = vmatprep.subr.mxu0 0.0
        %2608 = vmatpush1.msra.mxu0 0.0
        %2609 = vmatprep.subr.mxu0 0.0
        %2610 = vmatpush1.msra.mxu0 0.0
        %2611 = vmatprep.subr.mxu0 0.0
        %2612 = vmatpush1.msra.mxu0 0.0
        %2613 = vmatprep.subr.mxu0 0.0
        %2614 = vmatpush1.msra.mxu0 0.0
        %2615 = vmatprep.subr.mxu0 0.0
        %2616 = vmatpush1.msra.mxu0 0.0
        %2617 = vmatprep.subr.mxu0 0.0
        %2618 = vmatpush1.msra.mxu0 0.0
        %2619 = vmatprep.subr.mxu0 0.0
        %2620 = vmatpush1.msra.mxu0 0.0
        %2621 = vmatprep.mubr.f32.mxu0 0.0
        %v2622 = vand.u32 %v315, 4294901760
        %2623 = vmatmul.mubr.f32.gmra.mrb[0].mxu0 %v2622
        %v2624 = vpop.f32.mrb[0].mxu0
        %v2625 = vadd.f32 %v2552, %v2624
        %v2626 = vpop.f32.mrb[0].mxu0
        %2627 = vdwg.mxu0
        %v2629 = vsel %vm313, %v2625, 0
        %2631 = vmatprep.subr.mxu0 0.0
        %v2632 = vand.u32 %v306, 4294901760
        %2633 = vmatpush1.msra.mxu0 %v2632
        %2634 = vmatprep.subr.mxu0 0.0
        %v2635 = vand.u32 %v307, 4294901760
        %2636 = vmatpush1.msra.mxu0 %v2635
        %2637 = vmatprep.subr.mxu0 0.0
        %2638 = vmatpush1.msra.mxu0 0.0
        %2639 = vmatprep.subr.mxu0 0.0
        %2640 = vmatpush1.msra.mxu0 0.0
        %2641 = vmatprep.subr.mxu0 0.0
        %2642 = vmatpush1.msra.mxu0 0.0
        %2643 = vmatprep.subr.mxu0 0.0
        %2644 = vmatpush1.msra.mxu0 0.0
        %2645 = vmatprep.subr.mxu0 0.0
        %2646 = vmatpush1.msra.mxu0 0.0
        %2647 = vmatprep.subr.mxu0 0.0
        %2648 = vmatpush1.msra.mxu0 0.0
        %2649 = vmatprep.subr.mxu0 0.0
        %2650 = vmatpush1.msra.mxu0 0.0
        %2651 = vmatprep.subr.mxu0 0.0
        %2652 = vmatpush1.msra.mxu0 0.0
        %2653 = vmatprep.subr.mxu0 0.0
        %2654 = vmatpush1.msra.mxu0 0.0
        %2655 = vmatprep.subr.mxu0 0.0
        %2656 = vmatpush1.msra.mxu0 0.0
        %2657 = vmatprep.subr.mxu0 0.0
        %2658 = vmatpush1.msra.mxu0 0.0
        %2659 = vmatprep.subr.mxu0 0.0
        %2660 = vmatpush1.msra.mxu0 0.0
        %2661 = vmatprep.subr.mxu0 0.0
        %2662 = vmatpush1.msra.mxu0 0.0
        %2663 = vmatprep.subr.mxu0 0.0
        %2664 = vmatpush1.msra.mxu0 0.0
        %2665 = vmatprep.subr.mxu0 0.0
        %2666 = vmatpush1.msra.mxu0 0.0
        %2667 = vmatprep.subr.mxu0 0.0
        %2668 = vmatpush1.msra.mxu0 0.0
        %2669 = vmatprep.subr.mxu0 0.0
        %2670 = vmatpush1.msra.mxu0 0.0
        %2671 = vmatprep.subr.mxu0 0.0
        %2672 = vmatpush1.msra.mxu0 0.0
        %2673 = vmatprep.subr.mxu0 0.0
        %2674 = vmatpush1.msra.mxu0 0.0
        %2675 = vmatprep.subr.mxu0 0.0
        %2676 = vmatpush1.msra.mxu0 0.0
        %2677 = vmatprep.subr.mxu0 0.0
        %2678 = vmatpush1.msra.mxu0 0.0
        %2679 = vmatprep.subr.mxu0 0.0
        %2680 = vmatpush1.msra.mxu0 0.0
        %2681 = vmatprep.subr.mxu0 0.0
        %2682 = vmatpush1.msra.mxu0 0.0
        %2683 = vmatprep.subr.mxu0 0.0
        %2684 = vmatpush1.msra.mxu0 0.0
        %2685 = vmatprep.subr.mxu0 0.0
        %2686 = vmatpush1.msra.mxu0 0.0
        %2687 = vmatprep.subr.mxu0 0.0
        %2688 = vmatpush1.msra.mxu0 0.0
        %2689 = vmatprep.subr.mxu0 0.0
        %2690 = vmatpush1.msra.mxu0 0.0
        %2691 = vmatprep.subr.mxu0 0.0
        %2692 = vmatpush1.msra.mxu0 0.0
        %2693 = vmatprep.subr.mxu0 0.0
        %2694 = vmatpush1.msra.mxu0 0.0
        %2695 = vmatprep.subr.mxu0 0.0
        %2696 = vmatpush1.msra.mxu0 0.0
        %2697 = vmatprep.mubr.f32.mxu0 0.0
        %v2698 = vand.u32 %v2629, 4294901760
        %v2699 = vsub.f32 %v2629, %v2698
        %v2700 = vand.u32 %v2699, 4294901760
        %v2701 = vsub.f32 %v2699, %v2700
        %v2702 = vand.u32 %v2701, 4294901760
        %2703 = vmatmul.mubr.f32.gmra.mrb[0].mxu0 %v2702
        %v2704 = vpop.f32.mrb[0].mxu0
        %v2705 = vadd.f32 0.0, %v2704
        %v2706 = vpop.f32.mrb[0].mxu0
        %2707 = vdwg.mxu0
        %2708 = vmatprep.subr.mxu0 0.0
        %v2709 = vand.u32 %v306, 4294901760
        %v2710 = vsub.f32 %v306, %v2709
        %v2711 = vand.u32 %v2710, 4294901760
        %v2712 = vsub.f32 %v2710, %v2711
        %v2713 = vand.u32 %v2712, 4294901760
        %2714 = vmatpush1.msra.mxu0 %v2713
        %2715 = vmatprep.subr.mxu0 0.0
        %v2716 = vand.u32 %v307, 4294901760
        %v2717 = vsub.f32 %v307, %v2716
        %v2718 = vand.u32 %v2717, 4294901760
        %v2719 = vsub.f32 %v2717, %v2718
        %v2720 = vand.u32 %v2719, 4294901760
        %2721 = vmatpush1.msra.mxu0 %v2720
        %2722 = vmatprep.subr.mxu0 0.0
        %2723 = vmatpush1.msra.mxu0 0.0
        %2724 = vmatprep.subr.mxu0 0.0
        %2725 = vmatpush1.msra.mxu0 0.0
        %2726 = vmatprep.subr.mxu0 0.0
        %2727 = vmatpush1.msra.mxu0 0.0
        %2728 = vmatprep.subr.mxu0 0.0
        %2729 = vmatpush1.msra.mxu0 0.0
        %2730 = vmatprep.subr.mxu0 0.0
        %2731 = vmatpush1.msra.mxu0 0.0
        %2732 = vmatprep.subr.mxu0 0.0
        %2733 = vmatpush1.msra.mxu0 0.0
        %2734 = vmatprep.subr.mxu0 0.0
        %2735 = vmatpush1.msra.mxu0 0.0
        %2736 = vmatprep.subr.mxu0 0.0
        %2737 = vmatpush1.msra.mxu0 0.0
        %2738 = vmatprep.subr.mxu0 0.0
        %2739 = vmatpush1.msra.mxu0 0.0
        %2740 = vmatprep.subr.mxu0 0.0
        %2741 = vmatpush1.msra.mxu0 0.0
        %2742 = vmatprep.subr.mxu0 0.0
        %2743 = vmatpush1.msra.mxu0 0.0
        %2744 = vmatprep.subr.mxu0 0.0
        %2745 = vmatpush1.msra.mxu0 0.0
        %2746 = vmatprep.subr.mxu0 0.0
        %2747 = vmatpush1.msra.mxu0 0.0
        %2748 = vmatprep.subr.mxu0 0.0
        %2749 = vmatpush1.msra.mxu0 0.0
        %2750 = vmatprep.subr.mxu0 0.0
        %2751 = vmatpush1.msra.mxu0 0.0
        %2752 = vmatprep.subr.mxu0 0.0
        %2753 = vmatpush1.msra.mxu0 0.0
        %2754 = vmatprep.subr.mxu0 0.0
        %2755 = vmatpush1.msra.mxu0 0.0
        %2756 = vmatprep.subr.mxu0 0.0
        %2757 = vmatpush1.msra.mxu0 0.0
        %2758 = vmatprep.subr.mxu0 0.0
        %2759 = vmatpush1.msra.mxu0 0.0
        %2760 = vmatprep.subr.mxu0 0.0
        %2761 = vmatpush1.msra.mxu0 0.0
        %2762 = vmatprep.subr.mxu0 0.0
        %2763 = vmatpush1.msra.mxu0 0.0
        %2764 = vmatprep.subr.mxu0 0.0
        %2765 = vmatpush1.msra.mxu0 0.0
        %2766 = vmatprep.subr.mxu0 0.0
        %2767 = vmatpush1.msra.mxu0 0.0
        %2768 = vmatprep.subr.mxu0 0.0
        %2769 = vmatpush1.msra.mxu0 0.0
        %2770 = vmatprep.subr.mxu0 0.0
        %2771 = vmatpush1.msra.mxu0 0.0
        %2772 = vmatprep.subr.mxu0 0.0
        %2773 = vmatpush1.msra.mxu0 0.0
        %2774 = vmatprep.subr.mxu0 0.0
        %2775 = vmatpush1.msra.mxu0 0.0
        %2776 = vmatprep.subr.mxu0 0.0
        %2777 = vmatpush1.msra.mxu0 0.0
        %2778 = vmatprep.subr.mxu0 0.0
        %2779 = vmatpush1.msra.mxu0 0.0
        %2780 = vmatprep.subr.mxu0 0.0
        %2781 = vmatpush1.msra.mxu0 0.0
        %2782 = vmatprep.mubr.f32.mxu0 0.0
        %v2783 = vand.u32 %v2629, 4294901760
        %2784 = vmatmul.mubr.f32.gmra.mrb[0].mxu0 %v2783
        %v2785 = vpop.f32.mrb[0].mxu0
        %v2786 = vadd.f32 %v2705, %v2785
        %v2787 = vpop.f32.mrb[0].mxu0
        %2788 = vdwg.mxu0
        %2789 = vmatprep.subr.mxu0 0.0
        %v2790 = vand.u32 %v306, 4294901760
        %v2791 = vsub.f32 %v306, %v2790
        %2792 = vmatpush1.msra.mxu0 %v2791
        %2793 = vmatprep.subr.mxu0 0.0
        %v2794 = vand.u32 %v307, 4294901760
        %v2795 = vsub.f32 %v307, %v2794
        %2796 = vmatpush1.msra.mxu0 %v2795
        %2797 = vmatprep.subr.mxu0 0.0
        %2798 = vmatpush1.msra.mxu0 0.0
        %2799 = vmatprep.subr.mxu0 0.0
        %2800 = vmatpush1.msra.mxu0 0.0
        %2801 = vmatprep.subr.mxu0 0.0
        %2802 = vmatpush1.msra.mxu0 0.0
        %2803 = vmatprep.subr.mxu0 0.0
        %2804 = vmatpush1.msra.mxu0 0.0
        %2805 = vmatprep.subr.mxu0 0.0
        %2806 = vmatpush1.msra.mxu0 0.0
        %2807 = vmatprep.subr.mxu0 0.0
        %2808 = vmatpush1.msra.mxu0 0.0
        %2809 = vmatprep.subr.mxu0 0.0
        %2810 = vmatpush1.msra.mxu0 0.0
        %2811 = vmatprep.subr.mxu0 0.0
        %2812 = vmatpush1.msra.mxu0 0.0
        %2813 = vmatprep.subr.mxu0 0.0
        %2814 = vmatpush1.msra.mxu0 0.0
        %2815 = vmatprep.subr.mxu0 0.0
        %2816 = vmatpush1.msra.mxu0 0.0
        %2817 = vmatprep.subr.mxu0 0.0
        %2818 = vmatpush1.msra.mxu0 0.0
        %2819 = vmatprep.subr.mxu0 0.0
        %2820 = vmatpush1.msra.mxu0 0.0
        %2821 = vmatprep.subr.mxu0 0.0
        %2822 = vmatpush1.msra.mxu0 0.0
        %2823 = vmatprep.subr.mxu0 0.0
        %2824 = vmatpush1.msra.mxu0 0.0
        %2825 = vmatprep.subr.mxu0 0.0
        %2826 = vmatpush1.msra.mxu0 0.0
        %2827 = vmatprep.subr.mxu0 0.0
        %2828 = vmatpush1.msra.mxu0 0.0
        %2829 = vmatprep.subr.mxu0 0.0
        %2830 = vmatpush1.msra.mxu0 0.0
        %2831 = vmatprep.subr.mxu0 0.0
        %2832 = vmatpush1.msra.mxu0 0.0
        %2833 = vmatprep.subr.mxu0 0.0
        %2834 = vmatpush1.msra.mxu0 0.0
        %2835 = vmatprep.subr.mxu0 0.0
        %2836 = vmatpush1.msra.mxu0 0.0
        %2837 = vmatprep.subr.mxu0 0.0
        %2838 = vmatpush1.msra.mxu0 0.0
        %2839 = vmatprep.subr.mxu0 0.0
        %2840 = vmatpush1.msra.mxu0 0.0
        %2841 = vmatprep.subr.mxu0 0.0
        %2842 = vmatpush1.msra.mxu0 0.0
        %2843 = vmatprep.subr.mxu0 0.0
        %2844 = vmatpush1.msra.mxu0 0.0
        %2845 = vmatprep.subr.mxu0 0.0
        %2846 = vmatpush1.msra.mxu0 0.0
        %2847 = vmatprep.subr.mxu0 0.0
        %2848 = vmatpush1.msra.mxu0 0.0
        %2849 = vmatprep.subr.mxu0 0.0
        %2850 = vmatpush1.msra.mxu0 0.0
        %2851 = vmatprep.subr.mxu0 0.0
        %2852 = vmatpush1.msra.mxu0 0.0
        %2853 = vmatprep.subr.mxu0 0.0
        %2854 = vmatpush1.msra.mxu0 0.0
        %2855 = vmatprep.subr.mxu0 0.0
        %2856 = vmatpush1.msra.mxu0 0.0
        %2857 = vmatprep.mubr.f32.mxu0 0.0
        %v2858 = vand.u32 %v2629, 4294901760
        %v2859 = vsub.f32 %v2629, %v2858
        %2860 = vmatmul.mubr.f32.gmra.mrb[0].mxu0 %v2859
        %v2861 = vpop.f32.mrb[0].mxu0
        %v2862 = vadd.f32 %v2786, %v2861
        %v2863 = vpop.f32.mrb[0].mxu0
        %2864 = vdwg.mxu0
        %2865 = vmatprep.subr.mxu0 0.0
        %v2866 = vand.u32 %v306, 4294901760
        %2867 = vmatpush1.msra.mxu0 %v2866
        %2868 = vmatprep.subr.mxu0 0.0
        %v2869 = vand.u32 %v307, 4294901760
        %2870 = vmatpush1.msra.mxu0 %v2869
        %2871 = vmatprep.subr.mxu0 0.0
        %2872 = vmatpush1.msra.mxu0 0.0
        %2873 = vmatprep.subr.mxu0 0.0
        %2874 = vmatpush1.msra.mxu0 0.0
        %2875 = vmatprep.subr.mxu0 0.0
        %2876 = vmatpush1.msra.mxu0 0.0
        %2877 = vmatprep.subr.mxu0 0.0
        %2878 = vmatpush1.msra.mxu0 0.0
        %2879 = vmatprep.subr.mxu0 0.0
        %2880 = vmatpush1.msra.mxu0 0.0
        %2881 = vmatprep.subr.mxu0 0.0
        %2882 = vmatpush1.msra.mxu0 0.0
        %2883 = vmatprep.subr.mxu0 0.0
        %2884 = vmatpush1.msra.mxu0 0.0
        %2885 = vmatprep.subr.mxu0 0.0
        %2886 = vmatpush1.msra.mxu0 0.0
        %2887 = vmatprep.subr.mxu0 0.0
        %2888 = vmatpush1.msra.mxu0 0.0
        %2889 = vmatprep.subr.mxu0 0.0
        %2890 = vmatpush1.msra.mxu0 0.0
        %2891 = vmatprep.subr.mxu0 0.0
        %2892 = vmatpush1.msra.mxu0 0.0
        %2893 = vmatprep.subr.mxu0 0.0
        %2894 = vmatpush1.msra.mxu0 0.0
        %2895 = vmatprep.subr.mxu0 0.0
        %2896 = vmatpush1.msra.mxu0 0.0
        %2897 = vmatprep.subr.mxu0 0.0
        %2898 = vmatpush1.msra.mxu0 0.0
        %2899 = vmatprep.subr.mxu0 0.0
        %2900 = vmatpush1.msra.mxu0 0.0
        %2901 = vmatprep.subr.mxu0 0.0
        %2902 = vmatpush1.msra.mxu0 0.0
        %2903 = vmatprep.subr.mxu0 0.0
        %2904 = vmatpush1.msra.mxu0 0.0
        %2905 = vmatprep.subr.mxu0 0.0
        %2906 = vmatpush1.msra.mxu0 0.0
        %2907 = vmatprep.subr.mxu0 0.0
        %2908 = vmatpush1.msra.mxu0 0.0
        %2909 = vmatprep.subr.mxu0 0.0
        %2910 = vmatpush1.msra.mxu0 0.0
        %2911 = vmatprep.subr.mxu0 0.0
        %2912 = vmatpush1.msra.mxu0 0.0
        %2913 = vmatprep.subr.mxu0 0.0
        %2914 = vmatpush1.msra.mxu0 0.0
        %2915 = vmatprep.subr.mxu0 0.0
        %2916 = vmatpush1.msra.mxu0 0.0
        %2917 = vmatprep.subr.mxu0 0.0
        %2918 = vmatpush1.msra.mxu0 0.0
        %2919 = vmatprep.subr.mxu0 0.0
        %2920 = vmatpush1.msra.mxu0 0.0
        %2921 = vmatprep.subr.mxu0 0.0
        %2922 = vmatpush1.msra.mxu0 0.0
        %2923 = vmatprep.subr.mxu0 0.0
        %2924 = vmatpush1.msra.mxu0 0.0
        %2925 = vmatprep.subr.mxu0 0.0
        %2926 = vmatpush1.msra.mxu0 0.0
        %2927 = vmatprep.subr.mxu0 0.0
        %2928 = vmatpush1.msra.mxu0 0.0
        %2929 = vmatprep.subr.mxu0 0.0
        %2930 = vmatpush1.msra.mxu0 0.0
        %2931 = vmatprep.mubr.f32.mxu0 0.0
        %v2932 = vand.u32 %v2629, 4294901760
        %v2933 = vsub.f32 %v2629, %v2932
        %v2934 = vand.u32 %v2933, 4294901760
        %2935 = vmatmul.mubr.f32.gmra.mrb[0].mxu0 %v2934
        %v2936 = vpop.f32.mrb[0].mxu0
        %v2937 = vadd.f32 %v2862, %v2936
        %v2938 = vpop.f32.mrb[0].mxu0
        %2939 = vdwg.mxu0
        %2940 = vmatprep.subr.mxu0 0.0
        %v2941 = vand.u32 %v306, 4294901760
        %v2942 = vsub.f32 %v306, %v2941
        %v2943 = vand.u32 %v2942, 4294901760
        %2944 = vmatpush1.msra.mxu0 %v2943
        %2945 = vmatprep.subr.mxu0 0.0
        %v2946 = vand.u32 %v307, 4294901760
        %v2947 = vsub.f32 %v307, %v2946
        %v2948 = vand.u32 %v2947, 4294901760
        %2949 = vmatpush1.msra.mxu0 %v2948
        %2950 = vmatprep.subr.mxu0 0.0
        %2951 = vmatpush1.msra.mxu0 0.0
        %2952 = vmatprep.subr.mxu0 0.0
        %2953 = vmatpush1.msra.mxu0 0.0
        %2954 = vmatprep.subr.mxu0 0.0
        %2955 = vmatpush1.msra.mxu0 0.0
        %2956 = vmatprep.subr.mxu0 0.0
        %2957 = vmatpush1.msra.mxu0 0.0
        %2958 = vmatprep.subr.mxu0 0.0
        %2959 = vmatpush1.msra.mxu0 0.0
        %2960 = vmatprep.subr.mxu0 0.0
        %2961 = vmatpush1.msra.mxu0 0.0
        %2962 = vmatprep.subr.mxu0 0.0
        %2963 = vmatpush1.msra.mxu0 0.0
        %2964 = vmatprep.subr.mxu0 0.0
        %2965 = vmatpush1.msra.mxu0 0.0
        %2966 = vmatprep.subr.mxu0 0.0
        %2967 = vmatpush1.msra.mxu0 0.0
        %2968 = vmatprep.subr.mxu0 0.0
        %2969 = vmatpush1.msra.mxu0 0.0
        %2970 = vmatprep.subr.mxu0 0.0
        %2971 = vmatpush1.msra.mxu0 0.0
        %2972 = vmatprep.subr.mxu0 0.0
        %2973 = vmatpush1.msra.mxu0 0.0
        %2974 = vmatprep.subr.mxu0 0.0
        %2975 = vmatpush1.msra.mxu0 0.0
        %2976 = vmatprep.subr.mxu0 0.0
        %2977 = vmatpush1.msra.mxu0 0.0
        %2978 = vmatprep.subr.mxu0 0.0
        %2979 = vmatpush1.msra.mxu0 0.0
        %2980 = vmatprep.subr.mxu0 0.0
        %2981 = vmatpush1.msra.mxu0 0.0
        %2982 = vmatprep.subr.mxu0 0.0
        %2983 = vmatpush1.msra.mxu0 0.0
        %2984 = vmatprep.subr.mxu0 0.0
        %2985 = vmatpush1.msra.mxu0 0.0
        %2986 = vmatprep.subr.mxu0 0.0
        %2987 = vmatpush1.msra.mxu0 0.0
        %2988 = vmatprep.subr.mxu0 0.0
        %2989 = vmatpush1.msra.mxu0 0.0
        %2990 = vmatprep.subr.mxu0 0.0
        %2991 = vmatpush1.msra.mxu0 0.0
        %2992 = vmatprep.subr.mxu0 0.0
        %2993 = vmatpush1.msra.mxu0 0.0
        %2994 = vmatprep.subr.mxu0 0.0
        %2995 = vmatpush1.msra.mxu0 0.0
        %2996 = vmatprep.subr.mxu0 0.0
        %2997 = vmatpush1.msra.mxu0 0.0
        %2998 = vmatprep.subr.mxu0 0.0
        %2999 = vmatpush1.msra.mxu0 0.0
        %3000 = vmatprep.subr.mxu0 0.0
        %3001 = vmatpush1.msra.mxu0 0.0
        %3002 = vmatprep.subr.mxu0 0.0
        %3003 = vmatpush1.msra.mxu0 0.0
        %3004 = vmatprep.subr.mxu0 0.0
        %3005 = vmatpush1.msra.mxu0 0.0
        %3006 = vmatprep.subr.mxu0 0.0
        %3007 = vmatpush1.msra.mxu0 0.0
        %3008 = vmatprep.subr.mxu0 0.0
        %3009 = vmatpush1.msra.mxu0 0.0
        %3010 = vmatprep.mubr.f32.mxu0 0.0
        %v3011 = vand.u32 %v2629, 4294901760
        %3012 = vmatmul.mubr.f32.gmra.mrb[0].mxu0 %v3011
        %v3013 = vpop.f32.mrb[0].mxu0
        %v3014 = vadd.f32 %v2937, %v3013
        %v3015 = vpop.f32.mrb[0].mxu0
        %3016 = vdwg.mxu0
        %3017 = vmatprep.subr.mxu0 0.0
        %v3018 = vand.u32 %v306, 4294901760
        %3019 = vmatpush1.msra.mxu0 %v3018
        %3020 = vmatprep.subr.mxu0 0.0
        %v3021 = vand.u32 %v307, 4294901760
        %3022 = vmatpush1.msra.mxu0 %v3021
        %3023 = vmatprep.subr.mxu0 0.0
        %3024 = vmatpush1.msra.mxu0 0.0
        %3025 = vmatprep.subr.mxu0 0.0
        %3026 = vmatpush1.msra.mxu0 0.0
        %3027 = vmatprep.subr.mxu0 0.0
        %3028 = vmatpush1.msra.mxu0 0.0
        %3029 = vmatprep.subr.mxu0 0.0
        %3030 = vmatpush1.msra.mxu0 0.0
        %3031 = vmatprep.subr.mxu0 0.0
        %3032 = vmatpush1.msra.mxu0 0.0
        %3033 = vmatprep.subr.mxu0 0.0
        %3034 = vmatpush1.msra.mxu0 0.0
        %3035 = vmatprep.subr.mxu0 0.0
        %3036 = vmatpush1.msra.mxu0 0.0
        %3037 = vmatprep.subr.mxu0 0.0
        %3038 = vmatpush1.msra.mxu0 0.0
        %3039 = vmatprep.subr.mxu0 0.0
        %3040 = vmatpush1.msra.mxu0 0.0
        %3041 = vmatprep.subr.mxu0 0.0
        %3042 = vmatpush1.msra.mxu0 0.0
        %3043 = vmatprep.subr.mxu0 0.0
        %3044 = vmatpush1.msra.mxu0 0.0
        %3045 = vmatprep.subr.mxu0 0.0
        %3046 = vmatpush1.msra.mxu0 0.0
        %3047 = vmatprep.subr.mxu0 0.0
        %3048 = vmatpush1.msra.mxu0 0.0
        %3049 = vmatprep.subr.mxu0 0.0
        %3050 = vmatpush1.msra.mxu0 0.0
        %3051 = vmatprep.subr.mxu0 0.0
        %3052 = vmatpush1.msra.mxu0 0.0
        %3053 = vmatprep.subr.mxu0 0.0
        %3054 = vmatpush1.msra.mxu0 0.0
        %3055 = vmatprep.subr.mxu0 0.0
        %3056 = vmatpush1.msra.mxu0 0.0
        %3057 = vmatprep.subr.mxu0 0.0
        %3058 = vmatpush1.msra.mxu0 0.0
        %3059 = vmatprep.subr.mxu0 0.0
        %3060 = vmatpush1.msra.mxu0 0.0
        %3061 = vmatprep.subr.mxu0 0.0
        %3062 = vmatpush1.msra.mxu0 0.0
        %3063 = vmatprep.subr.mxu0 0.0
        %3064 = vmatpush1.msra.mxu0 0.0
        %3065 = vmatprep.subr.mxu0 0.0
        %3066 = vmatpush1.msra.mxu0 0.0
        %3067 = vmatprep.subr.mxu0 0.0
        %3068 = vmatpush1.msra.mxu0 0.0
        %3069 = vmatprep.subr.mxu0 0.0
        %3070 = vmatpush1.msra.mxu0 0.0
        %3071 = vmatprep.subr.mxu0 0.0
        %3072 = vmatpush1.msra.mxu0 0.0
        %3073 = vmatprep.subr.mxu0 0.0
        %3074 = vmatpush1.msra.mxu0 0.0
        %3075 = vmatprep.subr.mxu0 0.0
        %3076 = vmatpush1.msra.mxu0 0.0
        %3077 = vmatprep.subr.mxu0 0.0
        %3078 = vmatpush1.msra.mxu0 0.0
        %3079 = vmatprep.subr.mxu0 0.0
        %3080 = vmatpush1.msra.mxu0 0.0
        %3081 = vmatprep.subr.mxu0 0.0
        %3082 = vmatpush1.msra.mxu0 0.0
        %3083 = vmatprep.mubr.f32.mxu0 0.0
        %v3084 = vand.u32 %v2629, 4294901760
        %3085 = vmatmul.mubr.f32.gmra.mrb[0].mxu0 %v3084
        %v3086 = vpop.f32.mrb[0].mxu0
        %v3087 = vadd.f32 %v3014, %v3086
        %v3088 = vpop.f32.mrb[0].mxu0
        %3089 = vdwg.mxu0
        %s3090 = scalar_lea.vmem %s294, 8 [#allocation5]
        %3091 = vst.msk [vmem:[%s3090] sm:$0xff] %vm1238, %v3087
        %3092 = vmatprep.subr.mxu0 0.0
        %v3093 = vand.u32 %v2167, 4294901760
        %3094 = vmatpush1.msra.mxu0 %v3093
        %3095 = vmatprep.subr.mxu0 0.0
        %v3096 = vand.u32 %v2168, 4294901760
        %3097 = vmatpush1.msra.mxu0 %v3096
        %3098 = vmatprep.subr.mxu0 0.0
        %3099 = vmatpush1.msra.mxu0 0.0
        %3100 = vmatprep.subr.mxu0 0.0
        %3101 = vmatpush1.msra.mxu0 0.0
        %3102 = vmatprep.subr.mxu0 0.0
        %3103 = vmatpush1.msra.mxu0 0.0
        %3104 = vmatprep.subr.mxu0 0.0
        %3105 = vmatpush1.msra.mxu0 0.0
        %3106 = vmatprep.subr.mxu0 0.0
        %3107 = vmatpush1.msra.mxu0 0.0
        %3108 = vmatprep.subr.mxu0 0.0
        %3109 = vmatpush1.msra.mxu0 0.0
        %3110 = vmatprep.subr.mxu0 0.0
        %3111 = vmatpush1.msra.mxu0 0.0
        %3112 = vmatprep.subr.mxu0 0.0
        %3113 = vmatpush1.msra.mxu0 0.0
        %3114 = vmatprep.subr.mxu0 0.0
        %3115 = vmatpush1.msra.mxu0 0.0
        %3116 = vmatprep.subr.mxu0 0.0
        %3117 = vmatpush1.msra.mxu0 0.0
        %3118 = vmatprep.subr.mxu0 0.0
        %3119 = vmatpush1.msra.mxu0 0.0
        %3120 = vmatprep.subr.mxu0 0.0
        %3121 = vmatpush1.msra.mxu0 0.0
        %3122 = vmatprep.subr.mxu0 0.0
        %3123 = vmatpush1.msra.mxu0 0.0
        %3124 = vmatprep.subr.mxu0 0.0
        %3125 = vmatpush1.msra.mxu0 0.0
        %3126 = vmatprep.subr.mxu0 0.0
        %3127 = vmatpush1.msra.mxu0 0.0
        %3128 = vmatprep.subr.mxu0 0.0
        %3129 = vmatpush1.msra.mxu0 0.0
        %3130 = vmatprep.subr.mxu0 0.0
        %3131 = vmatpush1.msra.mxu0 0.0
        %3132 = vmatprep.subr.mxu0 0.0
        %3133 = vmatpush1.msra.mxu0 0.0
        %3134 = vmatprep.subr.mxu0 0.0
        %3135 = vmatpush1.msra.mxu0 0.0
        %3136 = vmatprep.subr.mxu0 0.0
        %3137 = vmatpush1.msra.mxu0 0.0
        %3138 = vmatprep.subr.mxu0 0.0
        %3139 = vmatpush1.msra.mxu0 0.0
        %3140 = vmatprep.subr.mxu0 0.0
        %3141 = vmatpush1.msra.mxu0 0.0
        %3142 = vmatprep.subr.mxu0 0.0
        %3143 = vmatpush1.msra.mxu0 0.0
        %3144 = vmatprep.subr.mxu0 0.0
        %3145 = vmatpush1.msra.mxu0 0.0
        %3146 = vmatprep.subr.mxu0 0.0
        %3147 = vmatpush1.msra.mxu0 0.0
        %3148 = vmatprep.subr.mxu0 0.0
        %3149 = vmatpush1.msra.mxu0 0.0
        %3150 = vmatprep.subr.mxu0 0.0
        %3151 = vmatpush1.msra.mxu0 0.0
        %3152 = vmatprep.subr.mxu0 0.0
        %3153 = vmatpush1.msra.mxu0 0.0
        %3154 = vmatprep.subr.mxu0 0.0
        %3155 = vmatpush1.msra.mxu0 0.0
        %3156 = vmatprep.subr.mxu0 0.0
        %3157 = vmatpush1.msra.mxu0 0.0
        %3158 = vmatprep.mubr.f32.mxu0 0.0
        %v3159 = vand.u32 %v1241, 4294901760
        %v3160 = vsub.f32 %v1241, %v3159
        %v3161 = vand.u32 %v3160, 4294901760
        %v3162 = vsub.f32 %v3160, %v3161
        %v3163 = vand.u32 %v3162, 4294901760
        %3164 = vmatmul.mubr.f32.gmra.mrb[0].mxu0 %v3163
        %v3165 = vpop.f32.mrb[0].mxu0
        %v3166 = vadd.f32 0.0, %v3165
        %v3167 = vpop.f32.mrb[0].mxu0
        %3168 = vdwg.mxu0
        %3169 = vmatprep.subr.mxu0 0.0
        %v3170 = vand.u32 %v2167, 4294901760
        %v3171 = vsub.f32 %v2167, %v3170
        %v3172 = vand.u32 %v3171, 4294901760
        %v3173 = vsub.f32 %v3171, %v3172
        %v3174 = vand.u32 %v3173, 4294901760
        %3175 = vmatpush1.msra.mxu0 %v3174
        %3176 = vmatprep.subr.mxu0 0.0
        %v3177 = vand.u32 %v2168, 4294901760
        %v3178 = vsub.f32 %v2168, %v3177
        %v3179 = vand.u32 %v3178, 4294901760
        %v3180 = vsub.f32 %v3178, %v3179
        %v3181 = vand.u32 %v3180, 4294901760
        %3182 = vmatpush1.msra.mxu0 %v3181
        %3183 = vmatprep.subr.mxu0 0.0
        %3184 = vmatpush1.msra.mxu0 0.0
        %3185 = vmatprep.subr.mxu0 0.0
        %3186 = vmatpush1.msra.mxu0 0.0
        %3187 = vmatprep.subr.mxu0 0.0
        %3188 = vmatpush1.msra.mxu0 0.0
        %3189 = vmatprep.subr.mxu0 0.0
        %3190 = vmatpush1.msra.mxu0 0.0
        %3191 = vmatprep.subr.mxu0 0.0
        %3192 = vmatpush1.msra.mxu0 0.0
        %3193 = vmatprep.subr.mxu0 0.0
        %3194 = vmatpush1.msra.mxu0 0.0
        %3195 = vmatprep.subr.mxu0 0.0
        %3196 = vmatpush1.msra.mxu0 0.0
        %3197 = vmatprep.subr.mxu0 0.0
        %3198 = vmatpush1.msra.mxu0 0.0
        %3199 = vmatprep.subr.mxu0 0.0
        %3200 = vmatpush1.msra.mxu0 0.0
        %3201 = vmatprep.subr.mxu0 0.0
        %3202 = vmatpush1.msra.mxu0 0.0
        %3203 = vmatprep.subr.mxu0 0.0
        %3204 = vmatpush1.msra.mxu0 0.0
        %3205 = vmatprep.subr.mxu0 0.0
        %3206 = vmatpush1.msra.mxu0 0.0
        %3207 = vmatprep.subr.mxu0 0.0
        %3208 = vmatpush1.msra.mxu0 0.0
        %3209 = vmatprep.subr.mxu0 0.0
        %3210 = vmatpush1.msra.mxu0 0.0
        %3211 = vmatprep.subr.mxu0 0.0
        %3212 = vmatpush1.msra.mxu0 0.0
        %3213 = vmatprep.subr.mxu0 0.0
        %3214 = vmatpush1.msra.mxu0 0.0
        %3215 = vmatprep.subr.mxu0 0.0
        %3216 = vmatpush1.msra.mxu0 0.0
        %3217 = vmatprep.subr.mxu0 0.0
        %3218 = vmatpush1.msra.mxu0 0.0
        %3219 = vmatprep.subr.mxu0 0.0
        %3220 = vmatpush1.msra.mxu0 0.0
        %3221 = vmatprep.subr.mxu0 0.0
        %3222 = vmatpush1.msra.mxu0 0.0
        %3223 = vmatprep.subr.mxu0 0.0
        %3224 = vmatpush1.msra.mxu0 0.0
        %3225 = vmatprep.subr.mxu0 0.0
        %3226 = vmatpush1.msra.mxu0 0.0
        %3227 = vmatprep.subr.mxu0 0.0
        %3228 = vmatpush1.msra.mxu0 0.0
        %3229 = vmatprep.subr.mxu0 0.0
        %3230 = vmatpush1.msra.mxu0 0.0
        %3231 = vmatprep.subr.mxu0 0.0
        %3232 = vmatpush1.msra.mxu0 0.0
        %3233 = vmatprep.subr.mxu0 0.0
        %3234 = vmatpush1.msra.mxu0 0.0
        %3235 = vmatprep.subr.mxu0 0.0
        %3236 = vmatpush1.msra.mxu0 0.0
        %3237 = vmatprep.subr.mxu0 0.0
        %3238 = vmatpush1.msra.mxu0 0.0
        %3239 = vmatprep.subr.mxu0 0.0
        %3240 = vmatpush1.msra.mxu0 0.0
        %3241 = vmatprep.subr.mxu0 0.0
        %3242 = vmatpush1.msra.mxu0 0.0
        %3243 = vmatprep.mubr.f32.mxu0 0.0
        %v3244 = vand.u32 %v1241, 4294901760
        %3245 = vmatmul.mubr.f32.gmra.mrb[0].mxu0 %v3244
        %v3246 = vpop.f32.mrb[0].mxu0
        %v3247 = vadd.f32 %v3166, %v3246
        %v3248 = vpop.f32.mrb[0].mxu0
        %3249 = vdwg.mxu0
        %3250 = vmatprep.subr.mxu0 0.0
        %v3251 = vand.u32 %v2167, 4294901760
        %v3252 = vsub.f32 %v2167, %v3251
        %3253 = vmatpush1.msra.mxu0 %v3252
        %3254 = vmatprep.subr.mxu0 0.0
        %v3255 = vand.u32 %v2168, 4294901760
        %v3256 = vsub.f32 %v2168, %v3255
        %3257 = vmatpush1.msra.mxu0 %v3256
        %3258 = vmatprep.subr.mxu0 0.0
        %3259 = vmatpush1.msra.mxu0 0.0
        %3260 = vmatprep.subr.mxu0 0.0
        %3261 = vmatpush1.msra.mxu0 0.0
        %3262 = vmatprep.subr.mxu0 0.0
        %3263 = vmatpush1.msra.mxu0 0.0
        %3264 = vmatprep.subr.mxu0 0.0
        %3265 = vmatpush1.msra.mxu0 0.0
        %3266 = vmatprep.subr.mxu0 0.0
        %3267 = vmatpush1.msra.mxu0 0.0
        %3268 = vmatprep.subr.mxu0 0.0
        %3269 = vmatpush1.msra.mxu0 0.0
        %3270 = vmatprep.subr.mxu0 0.0
        %3271 = vmatpush1.msra.mxu0 0.0
        %3272 = vmatprep.subr.mxu0 0.0
        %3273 = vmatpush1.msra.mxu0 0.0
        %3274 = vmatprep.subr.mxu0 0.0
        %3275 = vmatpush1.msra.mxu0 0.0
        %3276 = vmatprep.subr.mxu0 0.0
        %3277 = vmatpush1.msra.mxu0 0.0
        %3278 = vmatprep.subr.mxu0 0.0
        %3279 = vmatpush1.msra.mxu0 0.0
        %3280 = vmatprep.subr.mxu0 0.0
        %3281 = vmatpush1.msra.mxu0 0.0
        %3282 = vmatprep.subr.mxu0 0.0
        %3283 = vmatpush1.msra.mxu0 0.0
        %3284 = vmatprep.subr.mxu0 0.0
        %3285 = vmatpush1.msra.mxu0 0.0
        %3286 = vmatprep.subr.mxu0 0.0
        %3287 = vmatpush1.msra.mxu0 0.0
        %3288 = vmatprep.subr.mxu0 0.0
        %3289 = vmatpush1.msra.mxu0 0.0
        %3290 = vmatprep.subr.mxu0 0.0
        %3291 = vmatpush1.msra.mxu0 0.0
        %3292 = vmatprep.subr.mxu0 0.0
        %3293 = vmatpush1.msra.mxu0 0.0
        %3294 = vmatprep.subr.mxu0 0.0
        %3295 = vmatpush1.msra.mxu0 0.0
        %3296 = vmatprep.subr.mxu0 0.0
        %3297 = vmatpush1.msra.mxu0 0.0
        %3298 = vmatprep.subr.mxu0 0.0
        %3299 = vmatpush1.msra.mxu0 0.0
        %3300 = vmatprep.subr.mxu0 0.0
        %3301 = vmatpush1.msra.mxu0 0.0
        %3302 = vmatprep.subr.mxu0 0.0
        %3303 = vmatpush1.msra.mxu0 0.0
        %3304 = vmatprep.subr.mxu0 0.0
        %3305 = vmatpush1.msra.mxu0 0.0
        %3306 = vmatprep.subr.mxu0 0.0
        %3307 = vmatpush1.msra.mxu0 0.0
        %3308 = vmatprep.subr.mxu0 0.0
        %3309 = vmatpush1.msra.mxu0 0.0
        %3310 = vmatprep.subr.mxu0 0.0
        %3311 = vmatpush1.msra.mxu0 0.0
        %3312 = vmatprep.subr.mxu0 0.0
        %3313 = vmatpush1.msra.mxu0 0.0
        %3314 = vmatprep.subr.mxu0 0.0
        %3315 = vmatpush1.msra.mxu0 0.0
        %3316 = vmatprep.subr.mxu0 0.0
        %3317 = vmatpush1.msra.mxu0 0.0
        %3318 = vmatprep.mubr.f32.mxu0 0.0
        %v3319 = vand.u32 %v1241, 4294901760
        %v3320 = vsub.f32 %v1241, %v3319
        %3321 = vmatmul.mubr.f32.gmra.mrb[0].mxu0 %v3320
        %v3322 = vpop.f32.mrb[0].mxu0
        %v3323 = vadd.f32 %v3247, %v3322
        %v3324 = vpop.f32.mrb[0].mxu0
        %3325 = vdwg.mxu0
        %3326 = vmatprep.subr.mxu0 0.0
        %v3327 = vand.u32 %v2167, 4294901760
        %3328 = vmatpush1.msra.mxu0 %v3327
        %3329 = vmatprep.subr.mxu0 0.0
        %v3330 = vand.u32 %v2168, 4294901760
        %3331 = vmatpush1.msra.mxu0 %v3330
        %3332 = vmatprep.subr.mxu0 0.0
        %3333 = vmatpush1.msra.mxu0 0.0
        %3334 = vmatprep.subr.mxu0 0.0
        %3335 = vmatpush1.msra.mxu0 0.0
        %3336 = vmatprep.subr.mxu0 0.0
        %3337 = vmatpush1.msra.mxu0 0.0
        %3338 = vmatprep.subr.mxu0 0.0
        %3339 = vmatpush1.msra.mxu0 0.0
        %3340 = vmatprep.subr.mxu0 0.0
        %3341 = vmatpush1.msra.mxu0 0.0
        %3342 = vmatprep.subr.mxu0 0.0
        %3343 = vmatpush1.msra.mxu0 0.0
        %3344 = vmatprep.subr.mxu0 0.0
        %3345 = vmatpush1.msra.mxu0 0.0
        %3346 = vmatprep.subr.mxu0 0.0
        %3347 = vmatpush1.msra.mxu0 0.0
        %3348 = vmatprep.subr.mxu0 0.0
        %3349 = vmatpush1.msra.mxu0 0.0
        %3350 = vmatprep.subr.mxu0 0.0
        %3351 = vmatpush1.msra.mxu0 0.0
        %3352 = vmatprep.subr.mxu0 0.0
        %3353 = vmatpush1.msra.mxu0 0.0
        %3354 = vmatprep.subr.mxu0 0.0
        %3355 = vmatpush1.msra.mxu0 0.0
        %3356 = vmatprep.subr.mxu0 0.0
        %3357 = vmatpush1.msra.mxu0 0.0
        %3358 = vmatprep.subr.mxu0 0.0
        %3359 = vmatpush1.msra.mxu0 0.0
        %3360 = vmatprep.subr.mxu0 0.0
        %3361 = vmatpush1.msra.mxu0 0.0
        %3362 = vmatprep.subr.mxu0 0.0
        %3363 = vmatpush1.msra.mxu0 0.0
        %3364 = vmatprep.subr.mxu0 0.0
        %3365 = vmatpush1.msra.mxu0 0.0
        %3366 = vmatprep.subr.mxu0 0.0
        %3367 = vmatpush1.msra.mxu0 0.0
        %3368 = vmatprep.subr.mxu0 0.0
        %3369 = vmatpush1.msra.mxu0 0.0
        %3370 = vmatprep.subr.mxu0 0.0
        %3371 = vmatpush1.msra.mxu0 0.0
        %3372 = vmatprep.subr.mxu0 0.0
        %3373 = vmatpush1.msra.mxu0 0.0
        %3374 = vmatprep.subr.mxu0 0.0
        %3375 = vmatpush1.msra.mxu0 0.0
        %3376 = vmatprep.subr.mxu0 0.0
        %3377 = vmatpush1.msra.mxu0 0.0
        %3378 = vmatprep.subr.mxu0 0.0
        %3379 = vmatpush1.msra.mxu0 0.0
        %3380 = vmatprep.subr.mxu0 0.0
        %3381 = vmatpush1.msra.mxu0 0.0
        %3382 = vmatprep.subr.mxu0 0.0
        %3383 = vmatpush1.msra.mxu0 0.0
        %3384 = vmatprep.subr.mxu0 0.0
        %3385 = vmatpush1.msra.mxu0 0.0
        %3386 = vmatprep.subr.mxu0 0.0
        %3387 = vmatpush1.msra.mxu0 0.0
        %3388 = vmatprep.subr.mxu0 0.0
        %3389 = vmatpush1.msra.mxu0 0.0
        %3390 = vmatprep.subr.mxu0 0.0
        %3391 = vmatpush1.msra.mxu0 0.0
        %3392 = vmatprep.mubr.f32.mxu0 0.0
        %v3393 = vand.u32 %v1241, 4294901760
        %v3394 = vsub.f32 %v1241, %v3393
        %v3395 = vand.u32 %v3394, 4294901760
        %3396 = vmatmul.mubr.f32.gmra.mrb[0].mxu0 %v3395
        %v3397 = vpop.f32.mrb[0].mxu0
        %v3398 = vadd.f32 %v3323, %v3397
        %v3399 = vpop.f32.mrb[0].mxu0
        %3400 = vdwg.mxu0
        %3401 = vmatprep.subr.mxu0 0.0
        %v3402 = vand.u32 %v2167, 4294901760
        %v3403 = vsub.f32 %v2167, %v3402
        %v3404 = vand.u32 %v3403, 4294901760
        %3405 = vmatpush1.msra.mxu0 %v3404
        %3406 = vmatprep.subr.mxu0 0.0
        %v3407 = vand.u32 %v2168, 4294901760
        %v3408 = vsub.f32 %v2168, %v3407
        %v3409 = vand.u32 %v3408, 4294901760
        %3410 = vmatpush1.msra.mxu0 %v3409
        %3411 = vmatprep.subr.mxu0 0.0
        %3412 = vmatpush1.msra.mxu0 0.0
        %3413 = vmatprep.subr.mxu0 0.0
        %3414 = vmatpush1.msra.mxu0 0.0
        %3415 = vmatprep.subr.mxu0 0.0
        %3416 = vmatpush1.msra.mxu0 0.0
        %3417 = vmatprep.subr.mxu0 0.0
        %3418 = vmatpush1.msra.mxu0 0.0
        %3419 = vmatprep.subr.mxu0 0.0
        %3420 = vmatpush1.msra.mxu0 0.0
        %3421 = vmatprep.subr.mxu0 0.0
        %3422 = vmatpush1.msra.mxu0 0.0
        %3423 = vmatprep.subr.mxu0 0.0
        %3424 = vmatpush1.msra.mxu0 0.0
        %3425 = vmatprep.subr.mxu0 0.0
        %3426 = vmatpush1.msra.mxu0 0.0
        %3427 = vmatprep.subr.mxu0 0.0
        %3428 = vmatpush1.msra.mxu0 0.0
        %3429 = vmatprep.subr.mxu0 0.0
        %3430 = vmatpush1.msra.mxu0 0.0
        %3431 = vmatprep.subr.mxu0 0.0
        %3432 = vmatpush1.msra.mxu0 0.0
        %3433 = vmatprep.subr.mxu0 0.0
        %3434 = vmatpush1.msra.mxu0 0.0
        %3435 = vmatprep.subr.mxu0 0.0
        %3436 = vmatpush1.msra.mxu0 0.0
        %3437 = vmatprep.subr.mxu0 0.0
        %3438 = vmatpush1.msra.mxu0 0.0
        %3439 = vmatprep.subr.mxu0 0.0
        %3440 = vmatpush1.msra.mxu0 0.0
        %3441 = vmatprep.subr.mxu0 0.0
        %3442 = vmatpush1.msra.mxu0 0.0
        %3443 = vmatprep.subr.mxu0 0.0
        %3444 = vmatpush1.msra.mxu0 0.0
        %3445 = vmatprep.subr.mxu0 0.0
        %3446 = vmatpush1.msra.mxu0 0.0
        %3447 = vmatprep.subr.mxu0 0.0
        %3448 = vmatpush1.msra.mxu0 0.0
        %3449 = vmatprep.subr.mxu0 0.0
        %3450 = vmatpush1.msra.mxu0 0.0
        %3451 = vmatprep.subr.mxu0 0.0
        %3452 = vmatpush1.msra.mxu0 0.0
        %3453 = vmatprep.subr.mxu0 0.0
        %3454 = vmatpush1.msra.mxu0 0.0
        %3455 = vmatprep.subr.mxu0 0.0
        %3456 = vmatpush1.msra.mxu0 0.0
        %3457 = vmatprep.subr.mxu0 0.0
        %3458 = vmatpush1.msra.mxu0 0.0
        %3459 = vmatprep.subr.mxu0 0.0
        %3460 = vmatpush1.msra.mxu0 0.0
        %3461 = vmatprep.subr.mxu0 0.0
        %3462 = vmatpush1.msra.mxu0 0.0
        %3463 = vmatprep.subr.mxu0 0.0
        %3464 = vmatpush1.msra.mxu0 0.0
        %3465 = vmatprep.subr.mxu0 0.0
        %3466 = vmatpush1.msra.mxu0 0.0
        %3467 = vmatprep.subr.mxu0 0.0
        %3468 = vmatpush1.msra.mxu0 0.0
        %3469 = vmatprep.subr.mxu0 0.0
        %3470 = vmatpush1.msra.mxu0 0.0
        %3471 = vmatprep.mubr.f32.mxu0 0.0
        %v3472 = vand.u32 %v1241, 4294901760
        %3473 = vmatmul.mubr.f32.gmra.mrb[0].mxu0 %v3472
        %v3474 = vpop.f32.mrb[0].mxu0
        %v3475 = vadd.f32 %v3398, %v3474
        %v3476 = vpop.f32.mrb[0].mxu0
        %3477 = vdwg.mxu0
        %3478 = vmatprep.subr.mxu0 0.0
        %v3479 = vand.u32 %v2167, 4294901760
        %3480 = vmatpush1.msra.mxu0 %v3479
        %3481 = vmatprep.subr.mxu0 0.0
        %v3482 = vand.u32 %v2168, 4294901760
        %3483 = vmatpush1.msra.mxu0 %v3482
        %3484 = vmatprep.subr.mxu0 0.0
        %3485 = vmatpush1.msra.mxu0 0.0
        %3486 = vmatprep.subr.mxu0 0.0
        %3487 = vmatpush1.msra.mxu0 0.0
        %3488 = vmatprep.subr.mxu0 0.0
        %3489 = vmatpush1.msra.mxu0 0.0
        %3490 = vmatprep.subr.mxu0 0.0
        %3491 = vmatpush1.msra.mxu0 0.0
        %3492 = vmatprep.subr.mxu0 0.0
        %3493 = vmatpush1.msra.mxu0 0.0
        %3494 = vmatprep.subr.mxu0 0.0
        %3495 = vmatpush1.msra.mxu0 0.0
        %3496 = vmatprep.subr.mxu0 0.0
        %3497 = vmatpush1.msra.mxu0 0.0
        %3498 = vmatprep.subr.mxu0 0.0
        %3499 = vmatpush1.msra.mxu0 0.0
        %3500 = vmatprep.subr.mxu0 0.0
        %3501 = vmatpush1.msra.mxu0 0.0
        %3502 = vmatprep.subr.mxu0 0.0
        %3503 = vmatpush1.msra.mxu0 0.0
        %3504 = vmatprep.subr.mxu0 0.0
        %3505 = vmatpush1.msra.mxu0 0.0
        %3506 = vmatprep.subr.mxu0 0.0
        %3507 = vmatpush1.msra.mxu0 0.0
        %3508 = vmatprep.subr.mxu0 0.0
        %3509 = vmatpush1.msra.mxu0 0.0
        %3510 = vmatprep.subr.mxu0 0.0
        %3511 = vmatpush1.msra.mxu0 0.0
        %3512 = vmatprep.subr.mxu0 0.0
        %3513 = vmatpush1.msra.mxu0 0.0
        %3514 = vmatprep.subr.mxu0 0.0
        %3515 = vmatpush1.msra.mxu0 0.0
        %3516 = vmatprep.subr.mxu0 0.0
        %3517 = vmatpush1.msra.mxu0 0.0
        %3518 = vmatprep.subr.mxu0 0.0
        %3519 = vmatpush1.msra.mxu0 0.0
        %3520 = vmatprep.subr.mxu0 0.0
        %3521 = vmatpush1.msra.mxu0 0.0
        %3522 = vmatprep.subr.mxu0 0.0
        %3523 = vmatpush1.msra.mxu0 0.0
        %3524 = vmatprep.subr.mxu0 0.0
        %3525 = vmatpush1.msra.mxu0 0.0
        %3526 = vmatprep.subr.mxu0 0.0
        %3527 = vmatpush1.msra.mxu0 0.0
        %3528 = vmatprep.subr.mxu0 0.0
        %3529 = vmatpush1.msra.mxu0 0.0
        %3530 = vmatprep.subr.mxu0 0.0
        %3531 = vmatpush1.msra.mxu0 0.0
        %3532 = vmatprep.subr.mxu0 0.0
        %3533 = vmatpush1.msra.mxu0 0.0
        %3534 = vmatprep.subr.mxu0 0.0
        %3535 = vmatpush1.msra.mxu0 0.0
        %3536 = vmatprep.subr.mxu0 0.0
        %3537 = vmatpush1.msra.mxu0 0.0
        %3538 = vmatprep.subr.mxu0 0.0
        %3539 = vmatpush1.msra.mxu0 0.0
        %3540 = vmatprep.subr.mxu0 0.0
        %3541 = vmatpush1.msra.mxu0 0.0
        %3542 = vmatprep.subr.mxu0 0.0
        %3543 = vmatpush1.msra.mxu0 0.0
        %3544 = vmatprep.mubr.f32.mxu0 0.0
        %v3545 = vand.u32 %v1241, 4294901760
        %3546 = vmatmul.mubr.f32.gmra.mrb[0].mxu0 %v3545
        %v3547 = vpop.f32.mrb[0].mxu0
        %v3548 = vadd.f32 %v3475, %v3547
        %v3549 = vpop.f32.mrb[0].mxu0
        %3550 = vdwg.mxu0
        %v3552 = vsel %vm313, %v3548, 0
        %3554 = vmatprep.subr.mxu0 0.0
        %v3555 = vand.u32 %v309, 4294901760
        %3556 = vmatpush1.msra.mxu0 %v3555
        %3557 = vmatprep.subr.mxu0 0.0
        %v3558 = vand.u32 %v310, 4294901760
        %3559 = vmatpush1.msra.mxu0 %v3558
        %3560 = vmatprep.subr.mxu0 0.0
        %3561 = vmatpush1.msra.mxu0 0.0
        %3562 = vmatprep.subr.mxu0 0.0
        %3563 = vmatpush1.msra.mxu0 0.0
        %3564 = vmatprep.subr.mxu0 0.0
        %3565 = vmatpush1.msra.mxu0 0.0
        %3566 = vmatprep.subr.mxu0 0.0
        %3567 = vmatpush1.msra.mxu0 0.0
        %3568 = vmatprep.subr.mxu0 0.0
        %3569 = vmatpush1.msra.mxu0 0.0
        %3570 = vmatprep.subr.mxu0 0.0
        %3571 = vmatpush1.msra.mxu0 0.0
        %3572 = vmatprep.subr.mxu0 0.0
        %3573 = vmatpush1.msra.mxu0 0.0
        %3574 = vmatprep.subr.mxu0 0.0
        %3575 = vmatpush1.msra.mxu0 0.0
        %3576 = vmatprep.subr.mxu0 0.0
        %3577 = vmatpush1.msra.mxu0 0.0
        %3578 = vmatprep.subr.mxu0 0.0
        %3579 = vmatpush1.msra.mxu0 0.0
        %3580 = vmatprep.subr.mxu0 0.0
        %3581 = vmatpush1.msra.mxu0 0.0
        %3582 = vmatprep.subr.mxu0 0.0
        %3583 = vmatpush1.msra.mxu0 0.0
        %3584 = vmatprep.subr.mxu0 0.0
        %3585 = vmatpush1.msra.mxu0 0.0
        %3586 = vmatprep.subr.mxu0 0.0
        %3587 = vmatpush1.msra.mxu0 0.0
        %3588 = vmatprep.subr.mxu0 0.0
        %3589 = vmatpush1.msra.mxu0 0.0
        %3590 = vmatprep.subr.mxu0 0.0
        %3591 = vmatpush1.msra.mxu0 0.0
        %3592 = vmatprep.subr.mxu0 0.0
        %3593 = vmatpush1.msra.mxu0 0.0
        %3594 = vmatprep.subr.mxu0 0.0
        %3595 = vmatpush1.msra.mxu0 0.0
        %3596 = vmatprep.subr.mxu0 0.0
        %3597 = vmatpush1.msra.mxu0 0.0
        %3598 = vmatprep.subr.mxu0 0.0
        %3599 = vmatpush1.msra.mxu0 0.0
        %3600 = vmatprep.subr.mxu0 0.0
        %3601 = vmatpush1.msra.mxu0 0.0
        %3602 = vmatprep.subr.mxu0 0.0
        %3603 = vmatpush1.msra.mxu0 0.0
        %3604 = vmatprep.subr.mxu0 0.0
        %3605 = vmatpush1.msra.mxu0 0.0
        %3606 = vmatprep.subr.mxu0 0.0
        %3607 = vmatpush1.msra.mxu0 0.0
        %3608 = vmatprep.subr.mxu0 0.0
        %3609 = vmatpush1.msra.mxu0 0.0
        %3610 = vmatprep.subr.mxu0 0.0
        %3611 = vmatpush1.msra.mxu0 0.0
        %3612 = vmatprep.subr.mxu0 0.0
        %3613 = vmatpush1.msra.mxu0 0.0
        %3614 = vmatprep.subr.mxu0 0.0
        %3615 = vmatpush1.msra.mxu0 0.0
        %3616 = vmatprep.subr.mxu0 0.0
        %3617 = vmatpush1.msra.mxu0 0.0
        %3618 = vmatprep.subr.mxu0 0.0
        %3619 = vmatpush1.msra.mxu0 0.0
        %3620 = vmatprep.mubr.f32.mxu0 0.0
        %v3621 = vand.u32 %v3552, 4294901760
        %v3622 = vsub.f32 %v3552, %v3621
        %v3623 = vand.u32 %v3622, 4294901760
        %v3624 = vsub.f32 %v3622, %v3623
        %v3625 = vand.u32 %v3624, 4294901760
        %3626 = vmatmul.mubr.f32.gmra.mrb[0].mxu0 %v3625
        %v3627 = vpop.f32.mrb[0].mxu0
        %v3628 = vadd.f32 0.0, %v3627
        %v3629 = vpop.f32.mrb[0].mxu0
        %3630 = vdwg.mxu0
        %3631 = vmatprep.subr.mxu0 0.0
        %v3632 = vand.u32 %v309, 4294901760
        %v3633 = vsub.f32 %v309, %v3632
        %v3634 = vand.u32 %v3633, 4294901760
        %v3635 = vsub.f32 %v3633, %v3634
        %v3636 = vand.u32 %v3635, 4294901760
        %3637 = vmatpush1.msra.mxu0 %v3636
        %3638 = vmatprep.subr.mxu0 0.0
        %v3639 = vand.u32 %v310, 4294901760
        %v3640 = vsub.f32 %v310, %v3639
        %v3641 = vand.u32 %v3640, 4294901760
        %v3642 = vsub.f32 %v3640, %v3641
        %v3643 = vand.u32 %v3642, 4294901760
        %3644 = vmatpush1.msra.mxu0 %v3643
        %3645 = vmatprep.subr.mxu0 0.0
        %3646 = vmatpush1.msra.mxu0 0.0
        %3647 = vmatprep.subr.mxu0 0.0
        %3648 = vmatpush1.msra.mxu0 0.0
        %3649 = vmatprep.subr.mxu0 0.0
        %3650 = vmatpush1.msra.mxu0 0.0
        %3651 = vmatprep.subr.mxu0 0.0
        %3652 = vmatpush1.msra.mxu0 0.0
        %3653 = vmatprep.subr.mxu0 0.0
        %3654 = vmatpush1.msra.mxu0 0.0
        %3655 = vmatprep.subr.mxu0 0.0
        %3656 = vmatpush1.msra.mxu0 0.0
        %3657 = vmatprep.subr.mxu0 0.0
        %3658 = vmatpush1.msra.mxu0 0.0
        %3659 = vmatprep.subr.mxu0 0.0
        %3660 = vmatpush1.msra.mxu0 0.0
        %3661 = vmatprep.subr.mxu0 0.0
        %3662 = vmatpush1.msra.mxu0 0.0
        %3663 = vmatprep.subr.mxu0 0.0
        %3664 = vmatpush1.msra.mxu0 0.0
        %3665 = vmatprep.subr.mxu0 0.0
        %3666 = vmatpush1.msra.mxu0 0.0
        %3667 = vmatprep.subr.mxu0 0.0
        %3668 = vmatpush1.msra.mxu0 0.0
        %3669 = vmatprep.subr.mxu0 0.0
        %3670 = vmatpush1.msra.mxu0 0.0
        %3671 = vmatprep.subr.mxu0 0.0
        %3672 = vmatpush1.msra.mxu0 0.0
        %3673 = vmatprep.subr.mxu0 0.0
        %3674 = vmatpush1.msra.mxu0 0.0
        %3675 = vmatprep.subr.mxu0 0.0
        %3676 = vmatpush1.msra.mxu0 0.0
        %3677 = vmatprep.subr.mxu0 0.0
        %3678 = vmatpush1.msra.mxu0 0.0
        %3679 = vmatprep.subr.mxu0 0.0
        %3680 = vmatpush1.msra.mxu0 0.0
        %3681 = vmatprep.subr.mxu0 0.0
        %3682 = vmatpush1.msra.mxu0 0.0
        %3683 = vmatprep.subr.mxu0 0.0
        %3684 = vmatpush1.msra.mxu0 0.0
        %3685 = vmatprep.subr.mxu0 0.0
        %3686 = vmatpush1.msra.mxu0 0.0
        %3687 = vmatprep.subr.mxu0 0.0
        %3688 = vmatpush1.msra.mxu0 0.0
        %3689 = vmatprep.subr.mxu0 0.0
        %3690 = vmatpush1.msra.mxu0 0.0
        %3691 = vmatprep.subr.mxu0 0.0
        %3692 = vmatpush1.msra.mxu0 0.0
        %3693 = vmatprep.subr.mxu0 0.0
        %3694 = vmatpush1.msra.mxu0 0.0
        %3695 = vmatprep.subr.mxu0 0.0
        %3696 = vmatpush1.msra.mxu0 0.0
        %3697 = vmatprep.subr.mxu0 0.0
        %3698 = vmatpush1.msra.mxu0 0.0
        %3699 = vmatprep.subr.mxu0 0.0
        %3700 = vmatpush1.msra.mxu0 0.0
        %3701 = vmatprep.subr.mxu0 0.0
        %3702 = vmatpush1.msra.mxu0 0.0
        %3703 = vmatprep.subr.mxu0 0.0
        %3704 = vmatpush1.msra.mxu0 0.0
        %3705 = vmatprep.mubr.f32.mxu0 0.0
        %v3706 = vand.u32 %v3552, 4294901760
        %3707 = vmatmul.mubr.f32.gmra.mrb[0].mxu0 %v3706
        %v3708 = vpop.f32.mrb[0].mxu0
        %v3709 = vadd.f32 %v3628, %v3708
        %v3710 = vpop.f32.mrb[0].mxu0
        %3711 = vdwg.mxu0
        %3712 = vmatprep.subr.mxu0 0.0
        %v3713 = vand.u32 %v309, 4294901760
        %v3714 = vsub.f32 %v309, %v3713
        %3715 = vmatpush1.msra.mxu0 %v3714
        %3716 = vmatprep.subr.mxu0 0.0
        %v3717 = vand.u32 %v310, 4294901760
        %v3718 = vsub.f32 %v310, %v3717
        %3719 = vmatpush1.msra.mxu0 %v3718
        %3720 = vmatprep.subr.mxu0 0.0
        %3721 = vmatpush1.msra.mxu0 0.0
        %3722 = vmatprep.subr.mxu0 0.0
        %3723 = vmatpush1.msra.mxu0 0.0
        %3724 = vmatprep.subr.mxu0 0.0
        %3725 = vmatpush1.msra.mxu0 0.0
        %3726 = vmatprep.subr.mxu0 0.0
        %3727 = vmatpush1.msra.mxu0 0.0
        %3728 = vmatprep.subr.mxu0 0.0
        %3729 = vmatpush1.msra.mxu0 0.0
        %3730 = vmatprep.subr.mxu0 0.0
        %3731 = vmatpush1.msra.mxu0 0.0
        %3732 = vmatprep.subr.mxu0 0.0
        %3733 = vmatpush1.msra.mxu0 0.0
        %3734 = vmatprep.subr.mxu0 0.0
        %3735 = vmatpush1.msra.mxu0 0.0
        %3736 = vmatprep.subr.mxu0 0.0
        %3737 = vmatpush1.msra.mxu0 0.0
        %3738 = vmatprep.subr.mxu0 0.0
        %3739 = vmatpush1.msra.mxu0 0.0
        %3740 = vmatprep.subr.mxu0 0.0
        %3741 = vmatpush1.msra.mxu0 0.0
        %3742 = vmatprep.subr.mxu0 0.0
        %3743 = vmatpush1.msra.mxu0 0.0
        %3744 = vmatprep.subr.mxu0 0.0
        %3745 = vmatpush1.msra.mxu0 0.0
        %3746 = vmatprep.subr.mxu0 0.0
        %3747 = vmatpush1.msra.mxu0 0.0
        %3748 = vmatprep.subr.mxu0 0.0
        %3749 = vmatpush1.msra.mxu0 0.0
        %3750 = vmatprep.subr.mxu0 0.0
        %3751 = vmatpush1.msra.mxu0 0.0
        %3752 = vmatprep.subr.mxu0 0.0
        %3753 = vmatpush1.msra.mxu0 0.0
        %3754 = vmatprep.subr.mxu0 0.0
        %3755 = vmatpush1.msra.mxu0 0.0
        %3756 = vmatprep.subr.mxu0 0.0
        %3757 = vmatpush1.msra.mxu0 0.0
        %3758 = vmatprep.subr.mxu0 0.0
        %3759 = vmatpush1.msra.mxu0 0.0
        %3760 = vmatprep.subr.mxu0 0.0
        %3761 = vmatpush1.msra.mxu0 0.0
        %3762 = vmatprep.subr.mxu0 0.0
        %3763 = vmatpush1.msra.mxu0 0.0
        %3764 = vmatprep.subr.mxu0 0.0
        %3765 = vmatpush1.msra.mxu0 0.0
        %3766 = vmatprep.subr.mxu0 0.0
        %3767 = vmatpush1.msra.mxu0 0.0
        %3768 = vmatprep.subr.mxu0 0.0
        %3769 = vmatpush1.msra.mxu0 0.0
        %3770 = vmatprep.subr.mxu0 0.0
        %3771 = vmatpush1.msra.mxu0 0.0
        %3772 = vmatprep.subr.mxu0 0.0
        %3773 = vmatpush1.msra.mxu0 0.0
        %3774 = vmatprep.subr.mxu0 0.0
        %3775 = vmatpush1.msra.mxu0 0.0
        %3776 = vmatprep.subr.mxu0 0.0
        %3777 = vmatpush1.msra.mxu0 0.0
        %3778 = vmatprep.subr.mxu0 0.0
        %3779 = vmatpush1.msra.mxu0 0.0
        %3780 = vmatprep.mubr.f32.mxu0 0.0
        %v3781 = vand.u32 %v3552, 4294901760
        %v3782 = vsub.f32 %v3552, %v3781
        %3783 = vmatmul.mubr.f32.gmra.mrb[0].mxu0 %v3782
        %v3784 = vpop.f32.mrb[0].mxu0
        %v3785 = vadd.f32 %v3709, %v3784
        %v3786 = vpop.f32.mrb[0].mxu0
        %3787 = vdwg.mxu0
        %3788 = vmatprep.subr.mxu0 0.0
        %v3789 = vand.u32 %v309, 4294901760
        %3790 = vmatpush1.msra.mxu0 %v3789
        %3791 = vmatprep.subr.mxu0 0.0
        %v3792 = vand.u32 %v310, 4294901760
        %3793 = vmatpush1.msra.mxu0 %v3792
        %3794 = vmatprep.subr.mxu0 0.0
        %3795 = vmatpush1.msra.mxu0 0.0
        %3796 = vmatprep.subr.mxu0 0.0
        %3797 = vmatpush1.msra.mxu0 0.0
        %3798 = vmatprep.subr.mxu0 0.0
        %3799 = vmatpush1.msra.mxu0 0.0
        %3800 = vmatprep.subr.mxu0 0.0
        %3801 = vmatpush1.msra.mxu0 0.0
        %3802 = vmatprep.subr.mxu0 0.0
        %3803 = vmatpush1.msra.mxu0 0.0
        %3804 = vmatprep.subr.mxu0 0.0
        %3805 = vmatpush1.msra.mxu0 0.0
        %3806 = vmatprep.subr.mxu0 0.0
        %3807 = vmatpush1.msra.mxu0 0.0
        %3808 = vmatprep.subr.mxu0 0.0
        %3809 = vmatpush1.msra.mxu0 0.0
        %3810 = vmatprep.subr.mxu0 0.0
        %3811 = vmatpush1.msra.mxu0 0.0
        %3812 = vmatprep.subr.mxu0 0.0
        %3813 = vmatpush1.msra.mxu0 0.0
        %3814 = vmatprep.subr.mxu0 0.0
        %3815 = vmatpush1.msra.mxu0 0.0
        %3816 = vmatprep.subr.mxu0 0.0
        %3817 = vmatpush1.msra.mxu0 0.0
        %3818 = vmatprep.subr.mxu0 0.0
        %3819 = vmatpush1.msra.mxu0 0.0
        %3820 = vmatprep.subr.mxu0 0.0
        %3821 = vmatpush1.msra.mxu0 0.0
        %3822 = vmatprep.subr.mxu0 0.0
        %3823 = vmatpush1.msra.mxu0 0.0
        %3824 = vmatprep.subr.mxu0 0.0
        %3825 = vmatpush1.msra.mxu0 0.0
        %3826 = vmatprep.subr.mxu0 0.0
        %3827 = vmatpush1.msra.mxu0 0.0
        %3828 = vmatprep.subr.mxu0 0.0
        %3829 = vmatpush1.msra.mxu0 0.0
        %3830 = vmatprep.subr.mxu0 0.0
        %3831 = vmatpush1.msra.mxu0 0.0
        %3832 = vmatprep.subr.mxu0 0.0
        %3833 = vmatpush1.msra.mxu0 0.0
        %3834 = vmatprep.subr.mxu0 0.0
        %3835 = vmatpush1.msra.mxu0 0.0
        %3836 = vmatprep.subr.mxu0 0.0
        %3837 = vmatpush1.msra.mxu0 0.0
        %3838 = vmatprep.subr.mxu0 0.0
        %3839 = vmatpush1.msra.mxu0 0.0
        %3840 = vmatprep.subr.mxu0 0.0
        %3841 = vmatpush1.msra.mxu0 0.0
        %3842 = vmatprep.subr.mxu0 0.0
        %3843 = vmatpush1.msra.mxu0 0.0
        %3844 = vmatprep.subr.mxu0 0.0
        %3845 = vmatpush1.msra.mxu0 0.0
        %3846 = vmatprep.subr.mxu0 0.0
        %3847 = vmatpush1.msra.mxu0 0.0
        %3848 = vmatprep.subr.mxu0 0.0
        %3849 = vmatpush1.msra.mxu0 0.0
        %3850 = vmatprep.subr.mxu0 0.0
        %3851 = vmatpush1.msra.mxu0 0.0
        %3852 = vmatprep.subr.mxu0 0.0
        %3853 = vmatpush1.msra.mxu0 0.0
        %3854 = vmatprep.mubr.f32.mxu0 0.0
        %v3855 = vand.u32 %v3552, 4294901760
        %v3856 = vsub.f32 %v3552, %v3855
        %v3857 = vand.u32 %v3856, 4294901760
        %3858 = vmatmul.mubr.f32.gmra.mrb[0].mxu0 %v3857
        %v3859 = vpop.f32.mrb[0].mxu0
        %v3860 = vadd.f32 %v3785, %v3859
        %v3861 = vpop.f32.mrb[0].mxu0
        %3862 = vdwg.mxu0
        %3863 = vmatprep.subr.mxu0 0.0
        %v3864 = vand.u32 %v309, 4294901760
        %v3865 = vsub.f32 %v309, %v3864
        %v3866 = vand.u32 %v3865, 4294901760
        %3867 = vmatpush1.msra.mxu0 %v3866
        %3868 = vmatprep.subr.mxu0 0.0
        %v3869 = vand.u32 %v310, 4294901760
        %v3870 = vsub.f32 %v310, %v3869
        %v3871 = vand.u32 %v3870, 4294901760
        %3872 = vmatpush1.msra.mxu0 %v3871
        %3873 = vmatprep.subr.mxu0 0.0
        %3874 = vmatpush1.msra.mxu0 0.0
        %3875 = vmatprep.subr.mxu0 0.0
        %3876 = vmatpush1.msra.mxu0 0.0
        %3877 = vmatprep.subr.mxu0 0.0
        %3878 = vmatpush1.msra.mxu0 0.0
        %3879 = vmatprep.subr.mxu0 0.0
        %3880 = vmatpush1.msra.mxu0 0.0
        %3881 = vmatprep.subr.mxu0 0.0
        %3882 = vmatpush1.msra.mxu0 0.0
        %3883 = vmatprep.subr.mxu0 0.0
        %3884 = vmatpush1.msra.mxu0 0.0
        %3885 = vmatprep.subr.mxu0 0.0
        %3886 = vmatpush1.msra.mxu0 0.0
        %3887 = vmatprep.subr.mxu0 0.0
        %3888 = vmatpush1.msra.mxu0 0.0
        %3889 = vmatprep.subr.mxu0 0.0
        %3890 = vmatpush1.msra.mxu0 0.0
        %3891 = vmatprep.subr.mxu0 0.0
        %3892 = vmatpush1.msra.mxu0 0.0
        %3893 = vmatprep.subr.mxu0 0.0
        %3894 = vmatpush1.msra.mxu0 0.0
        %3895 = vmatprep.subr.mxu0 0.0
        %3896 = vmatpush1.msra.mxu0 0.0
        %3897 = vmatprep.subr.mxu0 0.0
        %3898 = vmatpush1.msra.mxu0 0.0
        %3899 = vmatprep.subr.mxu0 0.0
        %3900 = vmatpush1.msra.mxu0 0.0
        %3901 = vmatprep.subr.mxu0 0.0
        %3902 = vmatpush1.msra.mxu0 0.0
        %3903 = vmatprep.subr.mxu0 0.0
        %3904 = vmatpush1.msra.mxu0 0.0
        %3905 = vmatprep.subr.mxu0 0.0
        %3906 = vmatpush1.msra.mxu0 0.0
        %3907 = vmatprep.subr.mxu0 0.0
        %3908 = vmatpush1.msra.mxu0 0.0
        %3909 = vmatprep.subr.mxu0 0.0
        %3910 = vmatpush1.msra.mxu0 0.0
        %3911 = vmatprep.subr.mxu0 0.0
        %3912 = vmatpush1.msra.mxu0 0.0
        %3913 = vmatprep.subr.mxu0 0.0
        %3914 = vmatpush1.msra.mxu0 0.0
        %3915 = vmatprep.subr.mxu0 0.0
        %3916 = vmatpush1.msra.mxu0 0.0
        %3917 = vmatprep.subr.mxu0 0.0
        %3918 = vmatpush1.msra.mxu0 0.0
        %3919 = vmatprep.subr.mxu0 0.0
        %3920 = vmatpush1.msra.mxu0 0.0
        %3921 = vmatprep.subr.mxu0 0.0
        %3922 = vmatpush1.msra.mxu0 0.0
        %3923 = vmatprep.subr.mxu0 0.0
        %3924 = vmatpush1.msra.mxu0 0.0
        %3925 = vmatprep.subr.mxu0 0.0
        %3926 = vmatpush1.msra.mxu0 0.0
        %3927 = vmatprep.subr.mxu0 0.0
        %3928 = vmatpush1.msra.mxu0 0.0
        %3929 = vmatprep.subr.mxu0 0.0
        %3930 = vmatpush1.msra.mxu0 0.0
        %3931 = vmatprep.subr.mxu0 0.0
        %3932 = vmatpush1.msra.mxu0 0.0
        %3933 = vmatprep.mubr.f32.mxu0 0.0
        %v3934 = vand.u32 %v3552, 4294901760
        %3935 = vmatmul.mubr.f32.gmra.mrb[0].mxu0 %v3934
        %v3936 = vpop.f32.mrb[0].mxu0
        %v3937 = vadd.f32 %v3860, %v3936
        %v3938 = vpop.f32.mrb[0].mxu0
        %3939 = vdwg.mxu0
        %3940 = vmatprep.subr.mxu0 0.0
        %v3941 = vand.u32 %v309, 4294901760
        %3942 = vmatpush1.msra.mxu0 %v3941
        %3943 = vmatprep.subr.mxu0 0.0
        %v3944 = vand.u32 %v310, 4294901760
        %3945 = vmatpush1.msra.mxu0 %v3944
        %3946 = vmatprep.subr.mxu0 0.0
        %3947 = vmatpush1.msra.mxu0 0.0
        %3948 = vmatprep.subr.mxu0 0.0
        %3949 = vmatpush1.msra.mxu0 0.0
        %3950 = vmatprep.subr.mxu0 0.0
        %3951 = vmatpush1.msra.mxu0 0.0
        %3952 = vmatprep.subr.mxu0 0.0
        %3953 = vmatpush1.msra.mxu0 0.0
        %3954 = vmatprep.subr.mxu0 0.0
        %3955 = vmatpush1.msra.mxu0 0.0
        %3956 = vmatprep.subr.mxu0 0.0
        %3957 = vmatpush1.msra.mxu0 0.0
        %3958 = vmatprep.subr.mxu0 0.0
        %3959 = vmatpush1.msra.mxu0 0.0
        %3960 = vmatprep.subr.mxu0 0.0
        %3961 = vmatpush1.msra.mxu0 0.0
        %3962 = vmatprep.subr.mxu0 0.0
        %3963 = vmatpush1.msra.mxu0 0.0
        %3964 = vmatprep.subr.mxu0 0.0
        %3965 = vmatpush1.msra.mxu0 0.0
        %3966 = vmatprep.subr.mxu0 0.0
        %3967 = vmatpush1.msra.mxu0 0.0
        %3968 = vmatprep.subr.mxu0 0.0
        %3969 = vmatpush1.msra.mxu0 0.0
        %3970 = vmatprep.subr.mxu0 0.0
        %3971 = vmatpush1.msra.mxu0 0.0
        %3972 = vmatprep.subr.mxu0 0.0
        %3973 = vmatpush1.msra.mxu0 0.0
        %3974 = vmatprep.subr.mxu0 0.0
        %3975 = vmatpush1.msra.mxu0 0.0
        %3976 = vmatprep.subr.mxu0 0.0
        %3977 = vmatpush1.msra.mxu0 0.0
        %3978 = vmatprep.subr.mxu0 0.0
        %3979 = vmatpush1.msra.mxu0 0.0
        %3980 = vmatprep.subr.mxu0 0.0
        %3981 = vmatpush1.msra.mxu0 0.0
        %3982 = vmatprep.subr.mxu0 0.0
        %3983 = vmatpush1.msra.mxu0 0.0
        %3984 = vmatprep.subr.mxu0 0.0
        %3985 = vmatpush1.msra.mxu0 0.0
        %3986 = vmatprep.subr.mxu0 0.0
        %3987 = vmatpush1.msra.mxu0 0.0
        %3988 = vmatprep.subr.mxu0 0.0
        %3989 = vmatpush1.msra.mxu0 0.0
        %3990 = vmatprep.subr.mxu0 0.0
        %3991 = vmatpush1.msra.mxu0 0.0
        %3992 = vmatprep.subr.mxu0 0.0
        %3993 = vmatpush1.msra.mxu0 0.0
        %3994 = vmatprep.subr.mxu0 0.0
        %3995 = vmatpush1.msra.mxu0 0.0
        %3996 = vmatprep.subr.mxu0 0.0
        %3997 = vmatpush1.msra.mxu0 0.0
        %3998 = vmatprep.subr.mxu0 0.0
        %3999 = vmatpush1.msra.mxu0 0.0
        %4000 = vmatprep.subr.mxu0 0.0
        %4001 = vmatpush1.msra.mxu0 0.0
        %4002 = vmatprep.subr.mxu0 0.0
        %4003 = vmatpush1.msra.mxu0 0.0
        %4004 = vmatprep.subr.mxu0 0.0
        %4005 = vmatpush1.msra.mxu0 0.0
        %4006 = vmatprep.mubr.f32.mxu0 0.0
        %v4007 = vand.u32 %v3552, 4294901760
        %4008 = vmatmul.mubr.f32.gmra.mrb[0].mxu0 %v4007
        %v4009 = vpop.f32.mrb[0].mxu0
        %v4010 = vadd.f32 %v3937, %v4009
        %v4011 = vpop.f32.mrb[0].mxu0
        %4012 = vdwg.mxu0
        %s4013 = scalar_lea.vmem %s301, 4 [#allocation6]
        %4014 = vst.msk [vmem:[%s4013] sm:$0xf] %vm2164, %v4010
        %s4015 = scalar_lea.vmem %s268, 32 [#allocation2]
        %v4016 = vld [vmem:[%s4015] sm:$0xff]
        %v4017 = vld [vmem:[%s4015 + $0x8] sm:$0xff]
        %4018 = vmatprep.subr.mxu0 0.0
        %v4019 = vand.u32 %v4016, 4294901760
        %4020 = vmatpush1.msra.mxu0 %v4019
        %4021 = vmatprep.subr.mxu0 0.0
        %v4022 = vand.u32 %v4017, 4294901760
        %4023 = vmatpush1.msra.mxu0 %v4022
        %4024 = vmatprep.subr.mxu0 0.0
        %4025 = vmatpush1.msra.mxu0 0.0
        %4026 = vmatprep.subr.mxu0 0.0
        %4027 = vmatpush1.msra.mxu0 0.0
        %4028 = vmatprep.subr.mxu0 0.0
        %4029 = vmatpush1.msra.mxu0 0.0
        %4030 = vmatprep.subr.mxu0 0.0
        %4031 = vmatpush1.msra.mxu0 0.0
        %4032 = vmatprep.subr.mxu0 0.0
        %4033 = vmatpush1.msra.mxu0 0.0
        %4034 = vmatprep.subr.mxu0 0.0
        %4035 = vmatpush1.msra.mxu0 0.0
        %4036 = vmatprep.subr.mxu0 0.0
        %4037 = vmatpush1.msra.mxu0 0.0
        %4038 = vmatprep.subr.mxu0 0.0
        %4039 = vmatpush1.msra.mxu0 0.0
        %4040 = vmatprep.subr.mxu0 0.0
        %4041 = vmatpush1.msra.mxu0 0.0
        %4042 = vmatprep.subr.mxu0 0.0
        %4043 = vmatpush1.msra.mxu0 0.0
        %4044 = vmatprep.subr.mxu0 0.0
        %4045 = vmatpush1.msra.mxu0 0.0
        %4046 = vmatprep.subr.mxu0 0.0
        %4047 = vmatpush1.msra.mxu0 0.0
        %4048 = vmatprep.subr.mxu0 0.0
        %4049 = vmatpush1.msra.mxu0 0.0
        %4050 = vmatprep.subr.mxu0 0.0
        %4051 = vmatpush1.msra.mxu0 0.0
        %4052 = vmatprep.subr.mxu0 0.0
        %4053 = vmatpush1.msra.mxu0 0.0
        %4054 = vmatprep.subr.mxu0 0.0
        %4055 = vmatpush1.msra.mxu0 0.0
        %4056 = vmatprep.subr.mxu0 0.0
        %4057 = vmatpush1.msra.mxu0 0.0
        %4058 = vmatprep.subr.mxu0 0.0
        %4059 = vmatpush1.msra.mxu0 0.0
        %4060 = vmatprep.subr.mxu0 0.0
        %4061 = vmatpush1.msra.mxu0 0.0
        %4062 = vmatprep.subr.mxu0 0.0
        %4063 = vmatpush1.msra.mxu0 0.0
        %4064 = vmatprep.subr.mxu0 0.0
        %4065 = vmatpush1.msra.mxu0 0.0
        %4066 = vmatprep.subr.mxu0 0.0
        %4067 = vmatpush1.msra.mxu0 0.0
        %4068 = vmatprep.subr.mxu0 0.0
        %4069 = vmatpush1.msra.mxu0 0.0
        %4070 = vmatprep.subr.mxu0 0.0
        %4071 = vmatpush1.msra.mxu0 0.0
        %4072 = vmatprep.subr.mxu0 0.0
        %4073 = vmatpush1.msra.mxu0 0.0
        %4074 = vmatprep.subr.mxu0 0.0
        %4075 = vmatpush1.msra.mxu0 0.0
        %4076 = vmatprep.subr.mxu0 0.0
        %4077 = vmatpush1.msra.mxu0 0.0
        %4078 = vmatprep.subr.mxu0 0.0
        %4079 = vmatpush1.msra.mxu0 0.0
        %4080 = vmatprep.subr.mxu0 0.0
        %4081 = vmatpush1.msra.mxu0 0.0
        %4082 = vmatprep.subr.mxu0 0.0
        %4083 = vmatpush1.msra.mxu0 0.0
        %4084 = vmatprep.mubr.f32.mxu0 0.0
        %v4085 = vand.u32 %v315, 4294901760
        %v4086 = vsub.f32 %v315, %v4085
        %v4087 = vand.u32 %v4086, 4294901760
        %v4088 = vsub.f32 %v4086, %v4087
        %v4089 = vand.u32 %v4088, 4294901760
        %4090 = vmatmul.mubr.f32.gmra.mrb[0].mxu0 %v4089
        %v4091 = vpop.f32.mrb[0].mxu0
        %v4092 = vadd.f32 0.0, %v4091
        %v4093 = vpop.f32.mrb[0].mxu0
        %4094 = vdwg.mxu0
        %4095 = vmatprep.subr.mxu0 0.0
        %v4096 = vand.u32 %v4016, 4294901760
        %v4097 = vsub.f32 %v4016, %v4096
        %v4098 = vand.u32 %v4097, 4294901760
        %v4099 = vsub.f32 %v4097, %v4098
        %v4100 = vand.u32 %v4099, 4294901760
        %4101 = vmatpush1.msra.mxu0 %v4100
        %4102 = vmatprep.subr.mxu0 0.0
        %v4103 = vand.u32 %v4017, 4294901760
        %v4104 = vsub.f32 %v4017, %v4103
        %v4105 = vand.u32 %v4104, 4294901760
        %v4106 = vsub.f32 %v4104, %v4105
        %v4107 = vand.u32 %v4106, 4294901760
        %4108 = vmatpush1.msra.mxu0 %v4107
        %4109 = vmatprep.subr.mxu0 0.0
        %4110 = vmatpush1.msra.mxu0 0.0
        %4111 = vmatprep.subr.mxu0 0.0
        %4112 = vmatpush1.msra.mxu0 0.0
        %4113 = vmatprep.subr.mxu0 0.0
        %4114 = vmatpush1.msra.mxu0 0.0
        %4115 = vmatprep.subr.mxu0 0.0
        %4116 = vmatpush1.msra.mxu0 0.0
        %4117 = vmatprep.subr.mxu0 0.0
        %4118 = vmatpush1.msra.mxu0 0.0
        %4119 = vmatprep.subr.mxu0 0.0
        %4120 = vmatpush1.msra.mxu0 0.0
        %4121 = vmatprep.subr.mxu0 0.0
        %4122 = vmatpush1.msra.mxu0 0.0
        %4123 = vmatprep.subr.mxu0 0.0
        %4124 = vmatpush1.msra.mxu0 0.0
        %4125 = vmatprep.subr.mxu0 0.0
        %4126 = vmatpush1.msra.mxu0 0.0
        %4127 = vmatprep.subr.mxu0 0.0
        %4128 = vmatpush1.msra.mxu0 0.0
        %4129 = vmatprep.subr.mxu0 0.0
        %4130 = vmatpush1.msra.mxu0 0.0
        %4131 = vmatprep.subr.mxu0 0.0
        %4132 = vmatpush1.msra.mxu0 0.0
        %4133 = vmatprep.subr.mxu0 0.0
        %4134 = vmatpush1.msra.mxu0 0.0
        %4135 = vmatprep.subr.mxu0 0.0
        %4136 = vmatpush1.msra.mxu0 0.0
        %4137 = vmatprep.subr.mxu0 0.0
        %4138 = vmatpush1.msra.mxu0 0.0
        %4139 = vmatprep.subr.mxu0 0.0
        %4140 = vmatpush1.msra.mxu0 0.0
        %4141 = vmatprep.subr.mxu0 0.0
        %4142 = vmatpush1.msra.mxu0 0.0
        %4143 = vmatprep.subr.mxu0 0.0
        %4144 = vmatpush1.msra.mxu0 0.0
        %4145 = vmatprep.subr.mxu0 0.0
        %4146 = vmatpush1.msra.mxu0 0.0
        %4147 = vmatprep.subr.mxu0 0.0
        %4148 = vmatpush1.msra.mxu0 0.0
        %4149 = vmatprep.subr.mxu0 0.0
        %4150 = vmatpush1.msra.mxu0 0.0
        %4151 = vmatprep.subr.mxu0 0.0
        %4152 = vmatpush1.msra.mxu0 0.0
        %4153 = vmatprep.subr.mxu0 0.0
        %4154 = vmatpush1.msra.mxu0 0.0
        %4155 = vmatprep.subr.mxu0 0.0
        %4156 = vmatpush1.msra.mxu0 0.0
        %4157 = vmatprep.subr.mxu0 0.0
        %4158 = vmatpush1.msra.mxu0 0.0
        %4159 = vmatprep.subr.mxu0 0.0
        %4160 = vmatpush1.msra.mxu0 0.0
        %4161 = vmatprep.subr.mxu0 0.0
        %4162 = vmatpush1.msra.mxu0 0.0
        %4163 = vmatprep.subr.mxu0 0.0
        %4164 = vmatpush1.msra.mxu0 0.0
        %4165 = vmatprep.subr.mxu0 0.0
        %4166 = vmatpush1.msra.mxu0 0.0
        %4167 = vmatprep.subr.mxu0 0.0
        %4168 = vmatpush1.msra.mxu0 0.0
        %4169 = vmatprep.mubr.f32.mxu0 0.0
        %v4170 = vand.u32 %v315, 4294901760
        %4171 = vmatmul.mubr.f32.gmra.mrb[0].mxu0 %v4170
        %v4172 = vpop.f32.mrb[0].mxu0
        %v4173 = vadd.f32 %v4092, %v4172
        %v4174 = vpop.f32.mrb[0].mxu0
        %4175 = vdwg.mxu0
        %4176 = vmatprep.subr.mxu0 0.0
        %v4177 = vand.u32 %v4016, 4294901760
        %v4178 = vsub.f32 %v4016, %v4177
        %4179 = vmatpush1.msra.mxu0 %v4178
        %4180 = vmatprep.subr.mxu0 0.0
        %v4181 = vand.u32 %v4017, 4294901760
        %v4182 = vsub.f32 %v4017, %v4181
        %4183 = vmatpush1.msra.mxu0 %v4182
        %4184 = vmatprep.subr.mxu0 0.0
        %4185 = vmatpush1.msra.mxu0 0.0
        %4186 = vmatprep.subr.mxu0 0.0
        %4187 = vmatpush1.msra.mxu0 0.0
        %4188 = vmatprep.subr.mxu0 0.0
        %4189 = vmatpush1.msra.mxu0 0.0
        %4190 = vmatprep.subr.mxu0 0.0
        %4191 = vmatpush1.msra.mxu0 0.0
        %4192 = vmatprep.subr.mxu0 0.0
        %4193 = vmatpush1.msra.mxu0 0.0
        %4194 = vmatprep.subr.mxu0 0.0
        %4195 = vmatpush1.msra.mxu0 0.0
        %4196 = vmatprep.subr.mxu0 0.0
        %4197 = vmatpush1.msra.mxu0 0.0
        %4198 = vmatprep.subr.mxu0 0.0
        %4199 = vmatpush1.msra.mxu0 0.0
        %4200 = vmatprep.subr.mxu0 0.0
        %4201 = vmatpush1.msra.mxu0 0.0
        %4202 = vmatprep.subr.mxu0 0.0
        %4203 = vmatpush1.msra.mxu0 0.0
        %4204 = vmatprep.subr.mxu0 0.0
        %4205 = vmatpush1.msra.mxu0 0.0
        %4206 = vmatprep.subr.mxu0 0.0
        %4207 = vmatpush1.msra.mxu0 0.0
        %4208 = vmatprep.subr.mxu0 0.0
        %4209 = vmatpush1.msra.mxu0 0.0
        %4210 = vmatprep.subr.mxu0 0.0
        %4211 = vmatpush1.msra.mxu0 0.0
        %4212 = vmatprep.subr.mxu0 0.0
        %4213 = vmatpush1.msra.mxu0 0.0
        %4214 = vmatprep.subr.mxu0 0.0
        %4215 = vmatpush1.msra.mxu0 0.0
        %4216 = vmatprep.subr.mxu0 0.0
        %4217 = vmatpush1.msra.mxu0 0.0
        %4218 = vmatprep.subr.mxu0 0.0
        %4219 = vmatpush1.msra.mxu0 0.0
        %4220 = vmatprep.subr.mxu0 0.0
        %4221 = vmatpush1.msra.mxu0 0.0
        %4222 = vmatprep.subr.mxu0 0.0
        %4223 = vmatpush1.msra.mxu0 0.0
        %4224 = vmatprep.subr.mxu0 0.0
        %4225 = vmatpush1.msra.mxu0 0.0
        %4226 = vmatprep.subr.mxu0 0.0
        %4227 = vmatpush1.msra.mxu0 0.0
        %4228 = vmatprep.subr.mxu0 0.0
        %4229 = vmatpush1.msra.mxu0 0.0
        %4230 = vmatprep.subr.mxu0 0.0
        %4231 = vmatpush1.msra.mxu0 0.0
        %4232 = vmatprep.subr.mxu0 0.0
        %4233 = vmatpush1.msra.mxu0 0.0
        %4234 = vmatprep.subr.mxu0 0.0
        %4235 = vmatpush1.msra.mxu0 0.0
        %4236 = vmatprep.subr.mxu0 0.0
        %4237 = vmatpush1.msra.mxu0 0.0
        %4238 = vmatprep.subr.mxu0 0.0
        %4239 = vmatpush1.msra.mxu0 0.0
        %4240 = vmatprep.subr.mxu0 0.0
        %4241 = vmatpush1.msra.mxu0 0.0
        %4242 = vmatprep.subr.mxu0 0.0
        %4243 = vmatpush1.msra.mxu0 0.0
        %4244 = vmatprep.mubr.f32.mxu0 0.0
        %v4245 = vand.u32 %v315, 4294901760
        %v4246 = vsub.f32 %v315, %v4245
        %4247 = vmatmul.mubr.f32.gmra.mrb[0].mxu0 %v4246
        %v4248 = vpop.f32.mrb[0].mxu0
        %v4249 = vadd.f32 %v4173, %v4248
        %v4250 = vpop.f32.mrb[0].mxu0
        %4251 = vdwg.mxu0
        %4252 = vmatprep.subr.mxu0 0.0
        %v4253 = vand.u32 %v4016, 4294901760
        %4254 = vmatpush1.msra.mxu0 %v4253
        %4255 = vmatprep.subr.mxu0 0.0
        %v4256 = vand.u32 %v4017, 4294901760
        %4257 = vmatpush1.msra.mxu0 %v4256
        %4258 = vmatprep.subr.mxu0 0.0
        %4259 = vmatpush1.msra.mxu0 0.0
        %4260 = vmatprep.subr.mxu0 0.0
        %4261 = vmatpush1.msra.mxu0 0.0
        %4262 = vmatprep.subr.mxu0 0.0
        %4263 = vmatpush1.msra.mxu0 0.0
        %4264 = vmatprep.subr.mxu0 0.0
        %4265 = vmatpush1.msra.mxu0 0.0
        %4266 = vmatprep.subr.mxu0 0.0
        %4267 = vmatpush1.msra.mxu0 0.0
        %4268 = vmatprep.subr.mxu0 0.0
        %4269 = vmatpush1.msra.mxu0 0.0
        %4270 = vmatprep.subr.mxu0 0.0
        %4271 = vmatpush1.msra.mxu0 0.0
        %4272 = vmatprep.subr.mxu0 0.0
        %4273 = vmatpush1.msra.mxu0 0.0
        %4274 = vmatprep.subr.mxu0 0.0
        %4275 = vmatpush1.msra.mxu0 0.0
        %4276 = vmatprep.subr.mxu0 0.0
        %4277 = vmatpush1.msra.mxu0 0.0
        %4278 = vmatprep.subr.mxu0 0.0
        %4279 = vmatpush1.msra.mxu0 0.0
        %4280 = vmatprep.subr.mxu0 0.0
        %4281 = vmatpush1.msra.mxu0 0.0
        %4282 = vmatprep.subr.mxu0 0.0
        %4283 = vmatpush1.msra.mxu0 0.0
        %4284 = vmatprep.subr.mxu0 0.0
        %4285 = vmatpush1.msra.mxu0 0.0
        %4286 = vmatprep.subr.mxu0 0.0
        %4287 = vmatpush1.msra.mxu0 0.0
        %4288 = vmatprep.subr.mxu0 0.0
        %4289 = vmatpush1.msra.mxu0 0.0
        %4290 = vmatprep.subr.mxu0 0.0
        %4291 = vmatpush1.msra.mxu0 0.0
        %4292 = vmatprep.subr.mxu0 0.0
        %4293 = vmatpush1.msra.mxu0 0.0
        %4294 = vmatprep.subr.mxu0 0.0
        %4295 = vmatpush1.msra.mxu0 0.0
        %4296 = vmatprep.subr.mxu0 0.0
        %4297 = vmatpush1.msra.mxu0 0.0
        %4298 = vmatprep.subr.mxu0 0.0
        %4299 = vmatpush1.msra.mxu0 0.0
        %4300 = vmatprep.subr.mxu0 0.0
        %4301 = vmatpush1.msra.mxu0 0.0
        %4302 = vmatprep.subr.mxu0 0.0
        %4303 = vmatpush1.msra.mxu0 0.0
        %4304 = vmatprep.subr.mxu0 0.0
        %4305 = vmatpush1.msra.mxu0 0.0
        %4306 = vmatprep.subr.mxu0 0.0
        %4307 = vmatpush1.msra.mxu0 0.0
        %4308 = vmatprep.subr.mxu0 0.0
        %4309 = vmatpush1.msra.mxu0 0.0
        %4310 = vmatprep.subr.mxu0 0.0
        %4311 = vmatpush1.msra.mxu0 0.0
        %4312 = vmatprep.subr.mxu0 0.0
        %4313 = vmatpush1.msra.mxu0 0.0
        %4314 = vmatprep.subr.mxu0 0.0
        %4315 = vmatpush1.msra.mxu0 0.0
        %4316 = vmatprep.subr.mxu0 0.0
        %4317 = vmatpush1.msra.mxu0 0.0
        %4318 = vmatprep.mubr.f32.mxu0 0.0
        %v4319 = vand.u32 %v315, 4294901760
        %v4320 = vsub.f32 %v315, %v4319
        %v4321 = vand.u32 %v4320, 4294901760
        %4322 = vmatmul.mubr.f32.gmra.mrb[0].mxu0 %v4321
        %v4323 = vpop.f32.mrb[0].mxu0
        %v4324 = vadd.f32 %v4249, %v4323
        %v4325 = vpop.f32.mrb[0].mxu0
        %4326 = vdwg.mxu0
        %4327 = vmatprep.subr.mxu0 0.0
        %v4328 = vand.u32 %v4016, 4294901760
        %v4329 = vsub.f32 %v4016, %v4328
        %v4330 = vand.u32 %v4329, 4294901760
        %4331 = vmatpush1.msra.mxu0 %v4330
        %4332 = vmatprep.subr.mxu0 0.0
        %v4333 = vand.u32 %v4017, 4294901760
        %v4334 = vsub.f32 %v4017, %v4333
        %v4335 = vand.u32 %v4334, 4294901760
        %4336 = vmatpush1.msra.mxu0 %v4335
        %4337 = vmatprep.subr.mxu0 0.0
        %4338 = vmatpush1.msra.mxu0 0.0
        %4339 = vmatprep.subr.mxu0 0.0
        %4340 = vmatpush1.msra.mxu0 0.0
        %4341 = vmatprep.subr.mxu0 0.0
        %4342 = vmatpush1.msra.mxu0 0.0
        %4343 = vmatprep.subr.mxu0 0.0
        %4344 = vmatpush1.msra.mxu0 0.0
        %4345 = vmatprep.subr.mxu0 0.0
        %4346 = vmatpush1.msra.mxu0 0.0
        %4347 = vmatprep.subr.mxu0 0.0
        %4348 = vmatpush1.msra.mxu0 0.0
        %4349 = vmatprep.subr.mxu0 0.0
        %4350 = vmatpush1.msra.mxu0 0.0
        %4351 = vmatprep.subr.mxu0 0.0
        %4352 = vmatpush1.msra.mxu0 0.0
        %4353 = vmatprep.subr.mxu0 0.0
        %4354 = vmatpush1.msra.mxu0 0.0
        %4355 = vmatprep.subr.mxu0 0.0
        %4356 = vmatpush1.msra.mxu0 0.0
        %4357 = vmatprep.subr.mxu0 0.0
        %4358 = vmatpush1.msra.mxu0 0.0
        %4359 = vmatprep.subr.mxu0 0.0
        %4360 = vmatpush1.msra.mxu0 0.0
        %4361 = vmatprep.subr.mxu0 0.0
        %4362 = vmatpush1.msra.mxu0 0.0
        %4363 = vmatprep.subr.mxu0 0.0
        %4364 = vmatpush1.msra.mxu0 0.0
        %4365 = vmatprep.subr.mxu0 0.0
        %4366 = vmatpush1.msra.mxu0 0.0
        %4367 = vmatprep.subr.mxu0 0.0
        %4368 = vmatpush1.msra.mxu0 0.0
        %4369 = vmatprep.subr.mxu0 0.0
        %4370 = vmatpush1.msra.mxu0 0.0
        %4371 = vmatprep.subr.mxu0 0.0
        %4372 = vmatpush1.msra.mxu0 0.0
        %4373 = vmatprep.subr.mxu0 0.0
        %4374 = vmatpush1.msra.mxu0 0.0
        %4375 = vmatprep.subr.mxu0 0.0
        %4376 = vmatpush1.msra.mxu0 0.0
        %4377 = vmatprep.subr.mxu0 0.0
        %4378 = vmatpush1.msra.mxu0 0.0
        %4379 = vmatprep.subr.mxu0 0.0
        %4380 = vmatpush1.msra.mxu0 0.0
        %4381 = vmatprep.subr.mxu0 0.0
        %4382 = vmatpush1.msra.mxu0 0.0
        %4383 = vmatprep.subr.mxu0 0.0
        %4384 = vmatpush1.msra.mxu0 0.0
        %4385 = vmatprep.subr.mxu0 0.0
        %4386 = vmatpush1.msra.mxu0 0.0
        %4387 = vmatprep.subr.mxu0 0.0
        %4388 = vmatpush1.msra.mxu0 0.0
        %4389 = vmatprep.subr.mxu0 0.0
        %4390 = vmatpush1.msra.mxu0 0.0
        %4391 = vmatprep.subr.mxu0 0.0
        %4392 = vmatpush1.msra.mxu0 0.0
        %4393 = vmatprep.subr.mxu0 0.0
        %4394 = vmatpush1.msra.mxu0 0.0
        %4395 = vmatprep.subr.mxu0 0.0
        %4396 = vmatpush1.msra.mxu0 0.0
        %4397 = vmatprep.mubr.f32.mxu0 0.0
        %v4398 = vand.u32 %v315, 4294901760
        %4399 = vmatmul.mubr.f32.gmra.mrb[0].mxu0 %v4398
        %v4400 = vpop.f32.mrb[0].mxu0
        %v4401 = vadd.f32 %v4324, %v4400
        %v4402 = vpop.f32.mrb[0].mxu0
        %4403 = vdwg.mxu0
        %4404 = vmatprep.subr.mxu0 0.0
        %v4405 = vand.u32 %v4016, 4294901760
        %4406 = vmatpush1.msra.mxu0 %v4405
        %4407 = vmatprep.subr.mxu0 0.0
        %v4408 = vand.u32 %v4017, 4294901760
        %4409 = vmatpush1.msra.mxu0 %v4408
        %4410 = vmatprep.subr.mxu0 0.0
        %4411 = vmatpush1.msra.mxu0 0.0
        %4412 = vmatprep.subr.mxu0 0.0
        %4413 = vmatpush1.msra.mxu0 0.0
        %4414 = vmatprep.subr.mxu0 0.0
        %4415 = vmatpush1.msra.mxu0 0.0
        %4416 = vmatprep.subr.mxu0 0.0
        %4417 = vmatpush1.msra.mxu0 0.0
        %4418 = vmatprep.subr.mxu0 0.0
        %4419 = vmatpush1.msra.mxu0 0.0
        %4420 = vmatprep.subr.mxu0 0.0
        %4421 = vmatpush1.msra.mxu0 0.0
        %4422 = vmatprep.subr.mxu0 0.0
        %4423 = vmatpush1.msra.mxu0 0.0
        %4424 = vmatprep.subr.mxu0 0.0
        %4425 = vmatpush1.msra.mxu0 0.0
        %4426 = vmatprep.subr.mxu0 0.0
        %4427 = vmatpush1.msra.mxu0 0.0
        %4428 = vmatprep.subr.mxu0 0.0
        %4429 = vmatpush1.msra.mxu0 0.0
        %4430 = vmatprep.subr.mxu0 0.0
        %4431 = vmatpush1.msra.mxu0 0.0
        %4432 = vmatprep.subr.mxu0 0.0
        %4433 = vmatpush1.msra.mxu0 0.0
        %4434 = vmatprep.subr.mxu0 0.0
        %4435 = vmatpush1.msra.mxu0 0.0
        %4436 = vmatprep.subr.mxu0 0.0
        %4437 = vmatpush1.msra.mxu0 0.0
        %4438 = vmatprep.subr.mxu0 0.0
        %4439 = vmatpush1.msra.mxu0 0.0
        %4440 = vmatprep.subr.mxu0 0.0
        %4441 = vmatpush1.msra.mxu0 0.0
        %4442 = vmatprep.subr.mxu0 0.0
        %4443 = vmatpush1.msra.mxu0 0.0
        %4444 = vmatprep.subr.mxu0 0.0
        %4445 = vmatpush1.msra.mxu0 0.0
        %4446 = vmatprep.subr.mxu0 0.0
        %4447 = vmatpush1.msra.mxu0 0.0
        %4448 = vmatprep.subr.mxu0 0.0
        %4449 = vmatpush1.msra.mxu0 0.0
        %4450 = vmatprep.subr.mxu0 0.0
        %4451 = vmatpush1.msra.mxu0 0.0
        %4452 = vmatprep.subr.mxu0 0.0
        %4453 = vmatpush1.msra.mxu0 0.0
        %4454 = vmatprep.subr.mxu0 0.0
        %4455 = vmatpush1.msra.mxu0 0.0
        %4456 = vmatprep.subr.mxu0 0.0
        %4457 = vmatpush1.msra.mxu0 0.0
        %4458 = vmatprep.subr.mxu0 0.0
        %4459 = vmatpush1.msra.mxu0 0.0
        %4460 = vmatprep.subr.mxu0 0.0
        %4461 = vmatpush1.msra.mxu0 0.0
        %4462 = vmatprep.subr.mxu0 0.0
        %4463 = vmatpush1.msra.mxu0 0.0
        %4464 = vmatprep.subr.mxu0 0.0
        %4465 = vmatpush1.msra.mxu0 0.0
        %4466 = vmatprep.subr.mxu0 0.0
        %4467 = vmatpush1.msra.mxu0 0.0
        %4468 = vmatprep.subr.mxu0 0.0
        %4469 = vmatpush1.msra.mxu0 0.0
        %4470 = vmatprep.mubr.f32.mxu0 0.0
        %v4471 = vand.u32 %v315, 4294901760
        %4472 = vmatmul.mubr.f32.gmra.mrb[0].mxu0 %v4471
        %v4473 = vpop.f32.mrb[0].mxu0
        %v4474 = vadd.f32 %v4401, %v4473
        %v4475 = vpop.f32.mrb[0].mxu0
        %4476 = vdwg.mxu0
        %v4478 = vsel %vm313, %v4474, 0
        %4480 = vmatprep.subr.mxu0 0.0
        %v4481 = vand.u32 %v306, 4294901760
        %4482 = vmatpush1.msra.mxu0 %v4481
        %4483 = vmatprep.subr.mxu0 0.0
        %v4484 = vand.u32 %v307, 4294901760
        %4485 = vmatpush1.msra.mxu0 %v4484
        %4486 = vmatprep.subr.mxu0 0.0
        %4487 = vmatpush1.msra.mxu0 0.0
        %4488 = vmatprep.subr.mxu0 0.0
        %4489 = vmatpush1.msra.mxu0 0.0
        %4490 = vmatprep.subr.mxu0 0.0
        %4491 = vmatpush1.msra.mxu0 0.0
        %4492 = vmatprep.subr.mxu0 0.0
        %4493 = vmatpush1.msra.mxu0 0.0
        %4494 = vmatprep.subr.mxu0 0.0
        %4495 = vmatpush1.msra.mxu0 0.0
        %4496 = vmatprep.subr.mxu0 0.0
        %4497 = vmatpush1.msra.mxu0 0.0
        %4498 = vmatprep.subr.mxu0 0.0
        %4499 = vmatpush1.msra.mxu0 0.0
        %4500 = vmatprep.subr.mxu0 0.0
        %4501 = vmatpush1.msra.mxu0 0.0
        %4502 = vmatprep.subr.mxu0 0.0
        %4503 = vmatpush1.msra.mxu0 0.0
        %4504 = vmatprep.subr.mxu0 0.0
        %4505 = vmatpush1.msra.mxu0 0.0
        %4506 = vmatprep.subr.mxu0 0.0
        %4507 = vmatpush1.msra.mxu0 0.0
        %4508 = vmatprep.subr.mxu0 0.0
        %4509 = vmatpush1.msra.mxu0 0.0
        %4510 = vmatprep.subr.mxu0 0.0
        %4511 = vmatpush1.msra.mxu0 0.0
        %4512 = vmatprep.subr.mxu0 0.0
        %4513 = vmatpush1.msra.mxu0 0.0
        %4514 = vmatprep.subr.mxu0 0.0
        %4515 = vmatpush1.msra.mxu0 0.0
        %4516 = vmatprep.subr.mxu0 0.0
        %4517 = vmatpush1.msra.mxu0 0.0
        %4518 = vmatprep.subr.mxu0 0.0
        %4519 = vmatpush1.msra.mxu0 0.0
        %4520 = vmatprep.subr.mxu0 0.0
        %4521 = vmatpush1.msra.mxu0 0.0
        %4522 = vmatprep.subr.mxu0 0.0
        %4523 = vmatpush1.msra.mxu0 0.0
        %4524 = vmatprep.subr.mxu0 0.0
        %4525 = vmatpush1.msra.mxu0 0.0
        %4526 = vmatprep.subr.mxu0 0.0
        %4527 = vmatpush1.msra.mxu0 0.0
        %4528 = vmatprep.subr.mxu0 0.0
        %4529 = vmatpush1.msra.mxu0 0.0
        %4530 = vmatprep.subr.mxu0 0.0
        %4531 = vmatpush1.msra.mxu0 0.0
        %4532 = vmatprep.subr.mxu0 0.0
        %4533 = vmatpush1.msra.mxu0 0.0
        %4534 = vmatprep.subr.mxu0 0.0
        %4535 = vmatpush1.msra.mxu0 0.0
        %4536 = vmatprep.subr.mxu0 0.0
        %4537 = vmatpush1.msra.mxu0 0.0
        %4538 = vmatprep.subr.mxu0 0.0
        %4539 = vmatpush1.msra.mxu0 0.0
        %4540 = vmatprep.subr.mxu0 0.0
        %4541 = vmatpush1.msra.mxu0 0.0
        %4542 = vmatprep.subr.mxu0 0.0
        %4543 = vmatpush1.msra.mxu0 0.0
        %4544 = vmatprep.subr.mxu0 0.0
        %4545 = vmatpush1.msra.mxu0 0.0
        %4546 = vmatprep.mubr.f32.mxu0 0.0
        %v4547 = vand.u32 %v4478, 4294901760
        %v4548 = vsub.f32 %v4478, %v4547
        %v4549 = vand.u32 %v4548, 4294901760
        %v4550 = vsub.f32 %v4548, %v4549
        %v4551 = vand.u32 %v4550, 4294901760
        %4552 = vmatmul.mubr.f32.gmra.mrb[0].mxu0 %v4551
        %v4553 = vpop.f32.mrb[0].mxu0
        %v4554 = vadd.f32 0.0, %v4553
        %v4555 = vpop.f32.mrb[0].mxu0
        %4556 = vdwg.mxu0
        %4557 = vmatprep.subr.mxu0 0.0
        %v4558 = vand.u32 %v306, 4294901760
        %v4559 = vsub.f32 %v306, %v4558
        %v4560 = vand.u32 %v4559, 4294901760
        %v4561 = vsub.f32 %v4559, %v4560
        %v4562 = vand.u32 %v4561, 4294901760
        %4563 = vmatpush1.msra.mxu0 %v4562
        %4564 = vmatprep.subr.mxu0 0.0
        %v4565 = vand.u32 %v307, 4294901760
        %v4566 = vsub.f32 %v307, %v4565
        %v4567 = vand.u32 %v4566, 4294901760
        %v4568 = vsub.f32 %v4566, %v4567
        %v4569 = vand.u32 %v4568, 4294901760
        %4570 = vmatpush1.msra.mxu0 %v4569
        %4571 = vmatprep.subr.mxu0 0.0
        %4572 = vmatpush1.msra.mxu0 0.0
        %4573 = vmatprep.subr.mxu0 0.0
        %4574 = vmatpush1.msra.mxu0 0.0
        %4575 = vmatprep.subr.mxu0 0.0
        %4576 = vmatpush1.msra.mxu0 0.0
        %4577 = vmatprep.subr.mxu0 0.0
        %4578 = vmatpush1.msra.mxu0 0.0
        %4579 = vmatprep.subr.mxu0 0.0
        %4580 = vmatpush1.msra.mxu0 0.0
        %4581 = vmatprep.subr.mxu0 0.0
        %4582 = vmatpush1.msra.mxu0 0.0
        %4583 = vmatprep.subr.mxu0 0.0
        %4584 = vmatpush1.msra.mxu0 0.0
        %4585 = vmatprep.subr.mxu0 0.0
        %4586 = vmatpush1.msra.mxu0 0.0
        %4587 = vmatprep.subr.mxu0 0.0
        %4588 = vmatpush1.msra.mxu0 0.0
        %4589 = vmatprep.subr.mxu0 0.0
        %4590 = vmatpush1.msra.mxu0 0.0
        %4591 = vmatprep.subr.mxu0 0.0
        %4592 = vmatpush1.msra.mxu0 0.0
        %4593 = vmatprep.subr.mxu0 0.0
        %4594 = vmatpush1.msra.mxu0 0.0
        %4595 = vmatprep.subr.mxu0 0.0
        %4596 = vmatpush1.msra.mxu0 0.0
        %4597 = vmatprep.subr.mxu0 0.0
        %4598 = vmatpush1.msra.mxu0 0.0
        %4599 = vmatprep.subr.mxu0 0.0
        %4600 = vmatpush1.msra.mxu0 0.0
        %4601 = vmatprep.subr.mxu0 0.0
        %4602 = vmatpush1.msra.mxu0 0.0
        %4603 = vmatprep.subr.mxu0 0.0
        %4604 = vmatpush1.msra.mxu0 0.0
        %4605 = vmatprep.subr.mxu0 0.0
        %4606 = vmatpush1.msra.mxu0 0.0
        %4607 = vmatprep.subr.mxu0 0.0
        %4608 = vmatpush1.msra.mxu0 0.0
        %4609 = vmatprep.subr.mxu0 0.0
        %4610 = vmatpush1.msra.mxu0 0.0
        %4611 = vmatprep.subr.mxu0 0.0
        %4612 = vmatpush1.msra.mxu0 0.0
        %4613 = vmatprep.subr.mxu0 0.0
        %4614 = vmatpush1.msra.mxu0 0.0
        %4615 = vmatprep.subr.mxu0 0.0
        %4616 = vmatpush1.msra.mxu0 0.0
        %4617 = vmatprep.subr.mxu0 0.0
        %4618 = vmatpush1.msra.mxu0 0.0
        %4619 = vmatprep.subr.mxu0 0.0
        %4620 = vmatpush1.msra.mxu0 0.0
        %4621 = vmatprep.subr.mxu0 0.0
        %4622 = vmatpush1.msra.mxu0 0.0
        %4623 = vmatprep.subr.mxu0 0.0
        %4624 = vmatpush1.msra.mxu0 0.0
        %4625 = vmatprep.subr.mxu0 0.0
        %4626 = vmatpush1.msra.mxu0 0.0
        %4627 = vmatprep.subr.mxu0 0.0
        %4628 = vmatpush1.msra.mxu0 0.0
        %4629 = vmatprep.subr.mxu0 0.0
        %4630 = vmatpush1.msra.mxu0 0.0
        %4631 = vmatprep.mubr.f32.mxu0 0.0
        %v4632 = vand.u32 %v4478, 4294901760
        %4633 = vmatmul.mubr.f32.gmra.mrb[0].mxu0 %v4632
        %v4634 = vpop.f32.mrb[0].mxu0
        %v4635 = vadd.f32 %v4554, %v4634
        %v4636 = vpop.f32.mrb[0].mxu0
        %4637 = vdwg.mxu0
        %4638 = vmatprep.subr.mxu0 0.0
        %v4639 = vand.u32 %v306, 4294901760
        %v4640 = vsub.f32 %v306, %v4639
        %4641 = vmatpush1.msra.mxu0 %v4640
        %4642 = vmatprep.subr.mxu0 0.0
        %v4643 = vand.u32 %v307, 4294901760
        %v4644 = vsub.f32 %v307, %v4643
        %4645 = vmatpush1.msra.mxu0 %v4644
        %4646 = vmatprep.subr.mxu0 0.0
        %4647 = vmatpush1.msra.mxu0 0.0
        %4648 = vmatprep.subr.mxu0 0.0
        %4649 = vmatpush1.msra.mxu0 0.0
        %4650 = vmatprep.subr.mxu0 0.0
        %4651 = vmatpush1.msra.mxu0 0.0
        %4652 = vmatprep.subr.mxu0 0.0
        %4653 = vmatpush1.msra.mxu0 0.0
        %4654 = vmatprep.subr.mxu0 0.0
        %4655 = vmatpush1.msra.mxu0 0.0
        %4656 = vmatprep.subr.mxu0 0.0
        %4657 = vmatpush1.msra.mxu0 0.0
        %4658 = vmatprep.subr.mxu0 0.0
        %4659 = vmatpush1.msra.mxu0 0.0
        %4660 = vmatprep.subr.mxu0 0.0
        %4661 = vmatpush1.msra.mxu0 0.0
        %4662 = vmatprep.subr.mxu0 0.0
        %4663 = vmatpush1.msra.mxu0 0.0
        %4664 = vmatprep.subr.mxu0 0.0
        %4665 = vmatpush1.msra.mxu0 0.0
        %4666 = vmatprep.subr.mxu0 0.0
        %4667 = vmatpush1.msra.mxu0 0.0
        %4668 = vmatprep.subr.mxu0 0.0
        %4669 = vmatpush1.msra.mxu0 0.0
        %4670 = vmatprep.subr.mxu0 0.0
        %4671 = vmatpush1.msra.mxu0 0.0
        %4672 = vmatprep.subr.mxu0 0.0
        %4673 = vmatpush1.msra.mxu0 0.0
        %4674 = vmatprep.subr.mxu0 0.0
        %4675 = vmatpush1.msra.mxu0 0.0
        %4676 = vmatprep.subr.mxu0 0.0
        %4677 = vmatpush1.msra.mxu0 0.0
        %4678 = vmatprep.subr.mxu0 0.0
        %4679 = vmatpush1.msra.mxu0 0.0
        %4680 = vmatprep.subr.mxu0 0.0
        %4681 = vmatpush1.msra.mxu0 0.0
        %4682 = vmatprep.subr.mxu0 0.0
        %4683 = vmatpush1.msra.mxu0 0.0
        %4684 = vmatprep.subr.mxu0 0.0
        %4685 = vmatpush1.msra.mxu0 0.0
        %4686 = vmatprep.subr.mxu0 0.0
        %4687 = vmatpush1.msra.mxu0 0.0
        %4688 = vmatprep.subr.mxu0 0.0
        %4689 = vmatpush1.msra.mxu0 0.0
        %4690 = vmatprep.subr.mxu0 0.0
        %4691 = vmatpush1.msra.mxu0 0.0
        %4692 = vmatprep.subr.mxu0 0.0
        %4693 = vmatpush1.msra.mxu0 0.0
        %4694 = vmatprep.subr.mxu0 0.0
        %4695 = vmatpush1.msra.mxu0 0.0
        %4696 = vmatprep.subr.mxu0 0.0
        %4697 = vmatpush1.msra.mxu0 0.0
        %4698 = vmatprep.subr.mxu0 0.0
        %4699 = vmatpush1.msra.mxu0 0.0
        %4700 = vmatprep.subr.mxu0 0.0
        %4701 = vmatpush1.msra.mxu0 0.0
        %4702 = vmatprep.subr.mxu0 0.0
        %4703 = vmatpush1.msra.mxu0 0.0
        %4704 = vmatprep.subr.mxu0 0.0
        %4705 = vmatpush1.msra.mxu0 0.0
        %4706 = vmatprep.mubr.f32.mxu0 0.0
        %v4707 = vand.u32 %v4478, 4294901760
        %v4708 = vsub.f32 %v4478, %v4707
        %4709 = vmatmul.mubr.f32.gmra.mrb[0].mxu0 %v4708
        %v4710 = vpop.f32.mrb[0].mxu0
        %v4711 = vadd.f32 %v4635, %v4710
        %v4712 = vpop.f32.mrb[0].mxu0
        %4713 = vdwg.mxu0
        %4714 = vmatprep.subr.mxu0 0.0
        %v4715 = vand.u32 %v306, 4294901760
        %4716 = vmatpush1.msra.mxu0 %v4715
        %4717 = vmatprep.subr.mxu0 0.0
        %v4718 = vand.u32 %v307, 4294901760
        %4719 = vmatpush1.msra.mxu0 %v4718
        %4720 = vmatprep.subr.mxu0 0.0
        %4721 = vmatpush1.msra.mxu0 0.0
        %4722 = vmatprep.subr.mxu0 0.0
        %4723 = vmatpush1.msra.mxu0 0.0
        %4724 = vmatprep.subr.mxu0 0.0
        %4725 = vmatpush1.msra.mxu0 0.0
        %4726 = vmatprep.subr.mxu0 0.0
        %4727 = vmatpush1.msra.mxu0 0.0
        %4728 = vmatprep.subr.mxu0 0.0
        %4729 = vmatpush1.msra.mxu0 0.0
        %4730 = vmatprep.subr.mxu0 0.0
        %4731 = vmatpush1.msra.mxu0 0.0
        %4732 = vmatprep.subr.mxu0 0.0
        %4733 = vmatpush1.msra.mxu0 0.0
        %4734 = vmatprep.subr.mxu0 0.0
        %4735 = vmatpush1.msra.mxu0 0.0
        %4736 = vmatprep.subr.mxu0 0.0
        %4737 = vmatpush1.msra.mxu0 0.0
        %4738 = vmatprep.subr.mxu0 0.0
        %4739 = vmatpush1.msra.mxu0 0.0
        %4740 = vmatprep.subr.mxu0 0.0
        %4741 = vmatpush1.msra.mxu0 0.0
        %4742 = vmatprep.subr.mxu0 0.0
        %4743 = vmatpush1.msra.mxu0 0.0
        %4744 = vmatprep.subr.mxu0 0.0
        %4745 = vmatpush1.msra.mxu0 0.0
        %4746 = vmatprep.subr.mxu0 0.0
        %4747 = vmatpush1.msra.mxu0 0.0
        %4748 = vmatprep.subr.mxu0 0.0
        %4749 = vmatpush1.msra.mxu0 0.0
        %4750 = vmatprep.subr.mxu0 0.0
        %4751 = vmatpush1.msra.mxu0 0.0
        %4752 = vmatprep.subr.mxu0 0.0
        %4753 = vmatpush1.msra.mxu0 0.0
        %4754 = vmatprep.subr.mxu0 0.0
        %4755 = vmatpush1.msra.mxu0 0.0
        %4756 = vmatprep.subr.mxu0 0.0
        %4757 = vmatpush1.msra.mxu0 0.0
        %4758 = vmatprep.subr.mxu0 0.0
        %4759 = vmatpush1.msra.mxu0 0.0
        %4760 = vmatprep.subr.mxu0 0.0
        %4761 = vmatpush1.msra.mxu0 0.0
        %4762 = vmatprep.subr.mxu0 0.0
        %4763 = vmatpush1.msra.mxu0 0.0
        %4764 = vmatprep.subr.mxu0 0.0
        %4765 = vmatpush1.msra.mxu0 0.0
        %4766 = vmatprep.subr.mxu0 0.0
        %4767 = vmatpush1.msra.mxu0 0.0
        %4768 = vmatprep.subr.mxu0 0.0
        %4769 = vmatpush1.msra.mxu0 0.0
        %4770 = vmatprep.subr.mxu0 0.0
        %4771 = vmatpush1.msra.mxu0 0.0
        %4772 = vmatprep.subr.mxu0 0.0
        %4773 = vmatpush1.msra.mxu0 0.0
        %4774 = vmatprep.subr.mxu0 0.0
        %4775 = vmatpush1.msra.mxu0 0.0
        %4776 = vmatprep.subr.mxu0 0.0
        %4777 = vmatpush1.msra.mxu0 0.0
        %4778 = vmatprep.subr.mxu0 0.0
        %4779 = vmatpush1.msra.mxu0 0.0
        %4780 = vmatprep.mubr.f32.mxu0 0.0
        %v4781 = vand.u32 %v4478, 4294901760
        %v4782 = vsub.f32 %v4478, %v4781
        %v4783 = vand.u32 %v4782, 4294901760
        %4784 = vmatmul.mubr.f32.gmra.mrb[0].mxu0 %v4783
        %v4785 = vpop.f32.mrb[0].mxu0
        %v4786 = vadd.f32 %v4711, %v4785
        %v4787 = vpop.f32.mrb[0].mxu0
        %4788 = vdwg.mxu0
        %4789 = vmatprep.subr.mxu0 0.0
        %v4790 = vand.u32 %v306, 4294901760
        %v4791 = vsub.f32 %v306, %v4790
        %v4792 = vand.u32 %v4791, 4294901760
        %4793 = vmatpush1.msra.mxu0 %v4792
        %4794 = vmatprep.subr.mxu0 0.0
        %v4795 = vand.u32 %v307, 4294901760
        %v4796 = vsub.f32 %v307, %v4795
        %v4797 = vand.u32 %v4796, 4294901760
        %4798 = vmatpush1.msra.mxu0 %v4797
        %4799 = vmatprep.subr.mxu0 0.0
        %4800 = vmatpush1.msra.mxu0 0.0
        %4801 = vmatprep.subr.mxu0 0.0
        %4802 = vmatpush1.msra.mxu0 0.0
        %4803 = vmatprep.subr.mxu0 0.0
        %4804 = vmatpush1.msra.mxu0 0.0
        %4805 = vmatprep.subr.mxu0 0.0
        %4806 = vmatpush1.msra.mxu0 0.0
        %4807 = vmatprep.subr.mxu0 0.0
        %4808 = vmatpush1.msra.mxu0 0.0
        %4809 = vmatprep.subr.mxu0 0.0
        %4810 = vmatpush1.msra.mxu0 0.0
        %4811 = vmatprep.subr.mxu0 0.0
        %4812 = vmatpush1.msra.mxu0 0.0
        %4813 = vmatprep.subr.mxu0 0.0
        %4814 = vmatpush1.msra.mxu0 0.0
        %4815 = vmatprep.subr.mxu0 0.0
        %4816 = vmatpush1.msra.mxu0 0.0
        %4817 = vmatprep.subr.mxu0 0.0
        %4818 = vmatpush1.msra.mxu0 0.0
        %4819 = vmatprep.subr.mxu0 0.0
        %4820 = vmatpush1.msra.mxu0 0.0
        %4821 = vmatprep.subr.mxu0 0.0
        %4822 = vmatpush1.msra.mxu0 0.0
        %4823 = vmatprep.subr.mxu0 0.0
        %4824 = vmatpush1.msra.mxu0 0.0
        %4825 = vmatprep.subr.mxu0 0.0
        %4826 = vmatpush1.msra.mxu0 0.0
        %4827 = vmatprep.subr.mxu0 0.0
        %4828 = vmatpush1.msra.mxu0 0.0
        %4829 = vmatprep.subr.mxu0 0.0
        %4830 = vmatpush1.msra.mxu0 0.0
        %4831 = vmatprep.subr.mxu0 0.0
        %4832 = vmatpush1.msra.mxu0 0.0
        %4833 = vmatprep.subr.mxu0 0.0
        %4834 = vmatpush1.msra.mxu0 0.0
        %4835 = vmatprep.subr.mxu0 0.0
        %4836 = vmatpush1.msra.mxu0 0.0
        %4837 = vmatprep.subr.mxu0 0.0
        %4838 = vmatpush1.msra.mxu0 0.0
        %4839 = vmatprep.subr.mxu0 0.0
        %4840 = vmatpush1.msra.mxu0 0.0
        %4841 = vmatprep.subr.mxu0 0.0
        %4842 = vmatpush1.msra.mxu0 0.0
        %4843 = vmatprep.subr.mxu0 0.0
        %4844 = vmatpush1.msra.mxu0 0.0
        %4845 = vmatprep.subr.mxu0 0.0
        %4846 = vmatpush1.msra.mxu0 0.0
        %4847 = vmatprep.subr.mxu0 0.0
        %4848 = vmatpush1.msra.mxu0 0.0
        %4849 = vmatprep.subr.mxu0 0.0
        %4850 = vmatpush1.msra.mxu0 0.0
        %4851 = vmatprep.subr.mxu0 0.0
        %4852 = vmatpush1.msra.mxu0 0.0
        %4853 = vmatprep.subr.mxu0 0.0
        %4854 = vmatpush1.msra.mxu0 0.0
        %4855 = vmatprep.subr.mxu0 0.0
        %4856 = vmatpush1.msra.mxu0 0.0
        %4857 = vmatprep.subr.mxu0 0.0
        %4858 = vmatpush1.msra.mxu0 0.0
        %4859 = vmatprep.mubr.f32.mxu0 0.0
        %v4860 = vand.u32 %v4478, 4294901760
        %4861 = vmatmul.mubr.f32.gmra.mrb[0].mxu0 %v4860
        %v4862 = vpop.f32.mrb[0].mxu0
        %v4863 = vadd.f32 %v4786, %v4862
        %v4864 = vpop.f32.mrb[0].mxu0
        %4865 = vdwg.mxu0
        %4866 = vmatprep.subr.mxu0 0.0
        %v4867 = vand.u32 %v306, 4294901760
        %4868 = vmatpush1.msra.mxu0 %v4867
        %4869 = vmatprep.subr.mxu0 0.0
        %v4870 = vand.u32 %v307, 4294901760
        %4871 = vmatpush1.msra.mxu0 %v4870
        %4872 = vmatprep.subr.mxu0 0.0
        %4873 = vmatpush1.msra.mxu0 0.0
        %4874 = vmatprep.subr.mxu0 0.0
        %4875 = vmatpush1.msra.mxu0 0.0
        %4876 = vmatprep.subr.mxu0 0.0
        %4877 = vmatpush1.msra.mxu0 0.0
        %4878 = vmatprep.subr.mxu0 0.0
        %4879 = vmatpush1.msra.mxu0 0.0
        %4880 = vmatprep.subr.mxu0 0.0
        %4881 = vmatpush1.msra.mxu0 0.0
        %4882 = vmatprep.subr.mxu0 0.0
        %4883 = vmatpush1.msra.mxu0 0.0
        %4884 = vmatprep.subr.mxu0 0.0
        %4885 = vmatpush1.msra.mxu0 0.0
        %4886 = vmatprep.subr.mxu0 0.0
        %4887 = vmatpush1.msra.mxu0 0.0
        %4888 = vmatprep.subr.mxu0 0.0
        %4889 = vmatpush1.msra.mxu0 0.0
        %4890 = vmatprep.subr.mxu0 0.0
        %4891 = vmatpush1.msra.mxu0 0.0
        %4892 = vmatprep.subr.mxu0 0.0
        %4893 = vmatpush1.msra.mxu0 0.0
        %4894 = vmatprep.subr.mxu0 0.0
        %4895 = vmatpush1.msra.mxu0 0.0
        %4896 = vmatprep.subr.mxu0 0.0
        %4897 = vmatpush1.msra.mxu0 0.0
        %4898 = vmatprep.subr.mxu0 0.0
        %4899 = vmatpush1.msra.mxu0 0.0
        %4900 = vmatprep.subr.mxu0 0.0
        %4901 = vmatpush1.msra.mxu0 0.0
        %4902 = vmatprep.subr.mxu0 0.0
        %4903 = vmatpush1.msra.mxu0 0.0
        %4904 = vmatprep.subr.mxu0 0.0
        %4905 = vmatpush1.msra.mxu0 0.0
        %4906 = vmatprep.subr.mxu0 0.0
        %4907 = vmatpush1.msra.mxu0 0.0
        %4908 = vmatprep.subr.mxu0 0.0
        %4909 = vmatpush1.msra.mxu0 0.0
        %4910 = vmatprep.subr.mxu0 0.0
        %4911 = vmatpush1.msra.mxu0 0.0
        %4912 = vmatprep.subr.mxu0 0.0
        %4913 = vmatpush1.msra.mxu0 0.0
        %4914 = vmatprep.subr.mxu0 0.0
        %4915 = vmatpush1.msra.mxu0 0.0
        %4916 = vmatprep.subr.mxu0 0.0
        %4917 = vmatpush1.msra.mxu0 0.0
        %4918 = vmatprep.subr.mxu0 0.0
        %4919 = vmatpush1.msra.mxu0 0.0
        %4920 = vmatprep.subr.mxu0 0.0
        %4921 = vmatpush1.msra.mxu0 0.0
        %4922 = vmatprep.subr.mxu0 0.0
        %4923 = vmatpush1.msra.mxu0 0.0
        %4924 = vmatprep.subr.mxu0 0.0
        %4925 = vmatpush1.msra.mxu0 0.0
        %4926 = vmatprep.subr.mxu0 0.0
        %4927 = vmatpush1.msra.mxu0 0.0
        %4928 = vmatprep.subr.mxu0 0.0
        %4929 = vmatpush1.msra.mxu0 0.0
        %4930 = vmatprep.subr.mxu0 0.0
        %4931 = vmatpush1.msra.mxu0 0.0
        %4932 = vmatprep.mubr.f32.mxu0 0.0
        %v4933 = vand.u32 %v4478, 4294901760
        %4934 = vmatmul.mubr.f32.gmra.mrb[0].mxu0 %v4933
        %v4935 = vpop.f32.mrb[0].mxu0
        %v4936 = vadd.f32 %v4863, %v4935
        %v4937 = vpop.f32.mrb[0].mxu0
        %4938 = vdwg.mxu0
        %s4939 = scalar_lea.vmem %s294, 16 [#allocation5]
        %4940 = vst.msk [vmem:[%s4939] sm:$0xff] %vm1238, %v4936
        %4941 = vmatprep.subr.mxu0 0.0
        %v4942 = vand.u32 %v4016, 4294901760
        %4943 = vmatpush1.msra.mxu0 %v4942
        %4944 = vmatprep.subr.mxu0 0.0
        %v4945 = vand.u32 %v4017, 4294901760
        %4946 = vmatpush1.msra.mxu0 %v4945
        %4947 = vmatprep.subr.mxu0 0.0
        %4948 = vmatpush1.msra.mxu0 0.0
        %4949 = vmatprep.subr.mxu0 0.0
        %4950 = vmatpush1.msra.mxu0 0.0
        %4951 = vmatprep.subr.mxu0 0.0
        %4952 = vmatpush1.msra.mxu0 0.0
        %4953 = vmatprep.subr.mxu0 0.0
        %4954 = vmatpush1.msra.mxu0 0.0
        %4955 = vmatprep.subr.mxu0 0.0
        %4956 = vmatpush1.msra.mxu0 0.0
        %4957 = vmatprep.subr.mxu0 0.0
        %4958 = vmatpush1.msra.mxu0 0.0
        %4959 = vmatprep.subr.mxu0 0.0
        %4960 = vmatpush1.msra.mxu0 0.0
        %4961 = vmatprep.subr.mxu0 0.0
        %4962 = vmatpush1.msra.mxu0 0.0
        %4963 = vmatprep.subr.mxu0 0.0
        %4964 = vmatpush1.msra.mxu0 0.0
        %4965 = vmatprep.subr.mxu0 0.0
        %4966 = vmatpush1.msra.mxu0 0.0
        %4967 = vmatprep.subr.mxu0 0.0
        %4968 = vmatpush1.msra.mxu0 0.0
        %4969 = vmatprep.subr.mxu0 0.0
        %4970 = vmatpush1.msra.mxu0 0.0
        %4971 = vmatprep.subr.mxu0 0.0
        %4972 = vmatpush1.msra.mxu0 0.0
        %4973 = vmatprep.subr.mxu0 0.0
        %4974 = vmatpush1.msra.mxu0 0.0
        %4975 = vmatprep.subr.mxu0 0.0
        %4976 = vmatpush1.msra.mxu0 0.0
        %4977 = vmatprep.subr.mxu0 0.0
        %4978 = vmatpush1.msra.mxu0 0.0
        %4979 = vmatprep.subr.mxu0 0.0
        %4980 = vmatpush1.msra.mxu0 0.0
        %4981 = vmatprep.subr.mxu0 0.0
        %4982 = vmatpush1.msra.mxu0 0.0
        %4983 = vmatprep.subr.mxu0 0.0
        %4984 = vmatpush1.msra.mxu0 0.0
        %4985 = vmatprep.subr.mxu0 0.0
        %4986 = vmatpush1.msra.mxu0 0.0
        %4987 = vmatprep.subr.mxu0 0.0
        %4988 = vmatpush1.msra.mxu0 0.0
        %4989 = vmatprep.subr.mxu0 0.0
        %4990 = vmatpush1.msra.mxu0 0.0
        %4991 = vmatprep.subr.mxu0 0.0
        %4992 = vmatpush1.msra.mxu0 0.0
        %4993 = vmatprep.subr.mxu0 0.0
        %4994 = vmatpush1.msra.mxu0 0.0
        %4995 = vmatprep.subr.mxu0 0.0
        %4996 = vmatpush1.msra.mxu0 0.0
        %4997 = vmatprep.subr.mxu0 0.0
        %4998 = vmatpush1.msra.mxu0 0.0
        %4999 = vmatprep.subr.mxu0 0.0
        %5000 = vmatpush1.msra.mxu0 0.0
        %5001 = vmatprep.subr.mxu0 0.0
        %5002 = vmatpush1.msra.mxu0 0.0
        %5003 = vmatprep.subr.mxu0 0.0
        %5004 = vmatpush1.msra.mxu0 0.0
        %5005 = vmatprep.subr.mxu0 0.0
        %5006 = vmatpush1.msra.mxu0 0.0
        %5007 = vmatprep.mubr.f32.mxu0 0.0
        %v5008 = vand.u32 %v1241, 4294901760
        %v5009 = vsub.f32 %v1241, %v5008
        %v5010 = vand.u32 %v5009, 4294901760
        %v5011 = vsub.f32 %v5009, %v5010
        %v5012 = vand.u32 %v5011, 4294901760
        %5013 = vmatmul.mubr.f32.gmra.mrb[0].mxu0 %v5012
        %v5014 = vpop.f32.mrb[0].mxu0
        %v5015 = vadd.f32 0.0, %v5014
        %v5016 = vpop.f32.mrb[0].mxu0
        %5017 = vdwg.mxu0
        %5018 = vmatprep.subr.mxu0 0.0
        %v5019 = vand.u32 %v4016, 4294901760
        %v5020 = vsub.f32 %v4016, %v5019
        %v5021 = vand.u32 %v5020, 4294901760
        %v5022 = vsub.f32 %v5020, %v5021
        %v5023 = vand.u32 %v5022, 4294901760
        %5024 = vmatpush1.msra.mxu0 %v5023
        %5025 = vmatprep.subr.mxu0 0.0
        %v5026 = vand.u32 %v4017, 4294901760
        %v5027 = vsub.f32 %v4017, %v5026
        %v5028 = vand.u32 %v5027, 4294901760
        %v5029 = vsub.f32 %v5027, %v5028
        %v5030 = vand.u32 %v5029, 4294901760
        %5031 = vmatpush1.msra.mxu0 %v5030
        %5032 = vmatprep.subr.mxu0 0.0
        %5033 = vmatpush1.msra.mxu0 0.0
        %5034 = vmatprep.subr.mxu0 0.0
        %5035 = vmatpush1.msra.mxu0 0.0
        %5036 = vmatprep.subr.mxu0 0.0
        %5037 = vmatpush1.msra.mxu0 0.0
        %5038 = vmatprep.subr.mxu0 0.0
        %5039 = vmatpush1.msra.mxu0 0.0
        %5040 = vmatprep.subr.mxu0 0.0
        %5041 = vmatpush1.msra.mxu0 0.0
        %5042 = vmatprep.subr.mxu0 0.0
        %5043 = vmatpush1.msra.mxu0 0.0
        %5044 = vmatprep.subr.mxu0 0.0
        %5045 = vmatpush1.msra.mxu0 0.0
        %5046 = vmatprep.subr.mxu0 0.0
        %5047 = vmatpush1.msra.mxu0 0.0
        %5048 = vmatprep.subr.mxu0 0.0
        %5049 = vmatpush1.msra.mxu0 0.0
        %5050 = vmatprep.subr.mxu0 0.0
        %5051 = vmatpush1.msra.mxu0 0.0
        %5052 = vmatprep.subr.mxu0 0.0
        %5053 = vmatpush1.msra.mxu0 0.0
        %5054 = vmatprep.subr.mxu0 0.0
        %5055 = vmatpush1.msra.mxu0 0.0
        %5056 = vmatprep.subr.mxu0 0.0
        %5057 = vmatpush1.msra.mxu0 0.0
        %5058 = vmatprep.subr.mxu0 0.0
        %5059 = vmatpush1.msra.mxu0 0.0
        %5060 = vmatprep.subr.mxu0 0.0
        %5061 = vmatpush1.msra.mxu0 0.0
        %5062 = vmatprep.subr.mxu0 0.0
        %5063 = vmatpush1.msra.mxu0 0.0
        %5064 = vmatprep.subr.mxu0 0.0
        %5065 = vmatpush1.msra.mxu0 0.0
        %5066 = vmatprep.subr.mxu0 0.0
        %5067 = vmatpush1.msra.mxu0 0.0
        %5068 = vmatprep.subr.mxu0 0.0
        %5069 = vmatpush1.msra.mxu0 0.0
        %5070 = vmatprep.subr.mxu0 0.0
        %5071 = vmatpush1.msra.mxu0 0.0
        %5072 = vmatprep.subr.mxu0 0.0
        %5073 = vmatpush1.msra.mxu0 0.0
        %5074 = vmatprep.subr.mxu0 0.0
        %5075 = vmatpush1.msra.mxu0 0.0
        %5076 = vmatprep.subr.mxu0 0.0
        %5077 = vmatpush1.msra.mxu0 0.0
        %5078 = vmatprep.subr.mxu0 0.0
        %5079 = vmatpush1.msra.mxu0 0.0
        %5080 = vmatprep.subr.mxu0 0.0
        %5081 = vmatpush1.msra.mxu0 0.0
        %5082 = vmatprep.subr.mxu0 0.0
        %5083 = vmatpush1.msra.mxu0 0.0
        %5084 = vmatprep.subr.mxu0 0.0
        %5085 = vmatpush1.msra.mxu0 0.0
        %5086 = vmatprep.subr.mxu0 0.0
        %5087 = vmatpush1.msra.mxu0 0.0
        %5088 = vmatprep.subr.mxu0 0.0
        %5089 = vmatpush1.msra.mxu0 0.0
        %5090 = vmatprep.subr.mxu0 0.0
        %5091 = vmatpush1.msra.mxu0 0.0
        %5092 = vmatprep.mubr.f32.mxu0 0.0
        %v5093 = vand.u32 %v1241, 4294901760
        %5094 = vmatmul.mubr.f32.gmra.mrb[0].mxu0 %v5093
        %v5095 = vpop.f32.mrb[0].mxu0
        %v5096 = vadd.f32 %v5015, %v5095
        %v5097 = vpop.f32.mrb[0].mxu0
        %5098 = vdwg.mxu0
        %5099 = vmatprep.subr.mxu0 0.0
        %v5100 = vand.u32 %v4016, 4294901760
        %v5101 = vsub.f32 %v4016, %v5100
        %5102 = vmatpush1.msra.mxu0 %v5101
        %5103 = vmatprep.subr.mxu0 0.0
        %v5104 = vand.u32 %v4017, 4294901760
        %v5105 = vsub.f32 %v4017, %v5104
        %5106 = vmatpush1.msra.mxu0 %v5105
        %5107 = vmatprep.subr.mxu0 0.0
        %5108 = vmatpush1.msra.mxu0 0.0
        %5109 = vmatprep.subr.mxu0 0.0
        %5110 = vmatpush1.msra.mxu0 0.0
        %5111 = vmatprep.subr.mxu0 0.0
        %5112 = vmatpush1.msra.mxu0 0.0
        %5113 = vmatprep.subr.mxu0 0.0
        %5114 = vmatpush1.msra.mxu0 0.0
        %5115 = vmatprep.subr.mxu0 0.0
        %5116 = vmatpush1.msra.mxu0 0.0
        %5117 = vmatprep.subr.mxu0 0.0
        %5118 = vmatpush1.msra.mxu0 0.0
        %5119 = vmatprep.subr.mxu0 0.0
        %5120 = vmatpush1.msra.mxu0 0.0
        %5121 = vmatprep.subr.mxu0 0.0
        %5122 = vmatpush1.msra.mxu0 0.0
        %5123 = vmatprep.subr.mxu0 0.0
        %5124 = vmatpush1.msra.mxu0 0.0
        %5125 = vmatprep.subr.mxu0 0.0
        %5126 = vmatpush1.msra.mxu0 0.0
        %5127 = vmatprep.subr.mxu0 0.0
        %5128 = vmatpush1.msra.mxu0 0.0
        %5129 = vmatprep.subr.mxu0 0.0
        %5130 = vmatpush1.msra.mxu0 0.0
        %5131 = vmatprep.subr.mxu0 0.0
        %5132 = vmatpush1.msra.mxu0 0.0
        %5133 = vmatprep.subr.mxu0 0.0
        %5134 = vmatpush1.msra.mxu0 0.0
        %5135 = vmatprep.subr.mxu0 0.0
        %5136 = vmatpush1.msra.mxu0 0.0
        %5137 = vmatprep.subr.mxu0 0.0
        %5138 = vmatpush1.msra.mxu0 0.0
        %5139 = vmatprep.subr.mxu0 0.0
        %5140 = vmatpush1.msra.mxu0 0.0
        %5141 = vmatprep.subr.mxu0 0.0
        %5142 = vmatpush1.msra.mxu0 0.0
        %5143 = vmatprep.subr.mxu0 0.0
        %5144 = vmatpush1.msra.mxu0 0.0
        %5145 = vmatprep.subr.mxu0 0.0
        %5146 = vmatpush1.msra.mxu0 0.0
        %5147 = vmatprep.subr.mxu0 0.0
        %5148 = vmatpush1.msra.mxu0 0.0
        %5149 = vmatprep.subr.mxu0 0.0
        %5150 = vmatpush1.msra.mxu0 0.0
        %5151 = vmatprep.subr.mxu0 0.0
        %5152 = vmatpush1.msra.mxu0 0.0
        %5153 = vmatprep.subr.mxu0 0.0
        %5154 = vmatpush1.msra.mxu0 0.0
        %5155 = vmatprep.subr.mxu0 0.0
        %5156 = vmatpush1.msra.mxu0 0.0
        %5157 = vmatprep.subr.mxu0 0.0
        %5158 = vmatpush1.msra.mxu0 0.0
        %5159 = vmatprep.subr.mxu0 0.0
        %5160 = vmatpush1.msra.mxu0 0.0
        %5161 = vmatprep.subr.mxu0 0.0
        %5162 = vmatpush1.msra.mxu0 0.0
        %5163 = vmatprep.subr.mxu0 0.0
        %5164 = vmatpush1.msra.mxu0 0.0
        %5165 = vmatprep.subr.mxu0 0.0
        %5166 = vmatpush1.msra.mxu0 0.0
        %5167 = vmatprep.mubr.f32.mxu0 0.0
        %v5168 = vand.u32 %v1241, 4294901760
        %v5169 = vsub.f32 %v1241, %v5168
        %5170 = vmatmul.mubr.f32.gmra.mrb[0].mxu0 %v5169
        %v5171 = vpop.f32.mrb[0].mxu0
        %v5172 = vadd.f32 %v5096, %v5171
        %v5173 = vpop.f32.mrb[0].mxu0
        %5174 = vdwg.mxu0
        %5175 = vmatprep.subr.mxu0 0.0
        %v5176 = vand.u32 %v4016, 4294901760
        %5177 = vmatpush1.msra.mxu0 %v5176
        %5178 = vmatprep.subr.mxu0 0.0
        %v5179 = vand.u32 %v4017, 4294901760
        %5180 = vmatpush1.msra.mxu0 %v5179
        %5181 = vmatprep.subr.mxu0 0.0
        %5182 = vmatpush1.msra.mxu0 0.0
        %5183 = vmatprep.subr.mxu0 0.0
        %5184 = vmatpush1.msra.mxu0 0.0
        %5185 = vmatprep.subr.mxu0 0.0
        %5186 = vmatpush1.msra.mxu0 0.0
        %5187 = vmatprep.subr.mxu0 0.0
        %5188 = vmatpush1.msra.mxu0 0.0
        %5189 = vmatprep.subr.mxu0 0.0
        %5190 = vmatpush1.msra.mxu0 0.0
        %5191 = vmatprep.subr.mxu0 0.0
        %5192 = vmatpush1.msra.mxu0 0.0
        %5193 = vmatprep.subr.mxu0 0.0
        %5194 = vmatpush1.msra.mxu0 0.0
        %5195 = vmatprep.subr.mxu0 0.0
        %5196 = vmatpush1.msra.mxu0 0.0
        %5197 = vmatprep.subr.mxu0 0.0
        %5198 = vmatpush1.msra.mxu0 0.0
        %5199 = vmatprep.subr.mxu0 0.0
        %5200 = vmatpush1.msra.mxu0 0.0
        %5201 = vmatprep.subr.mxu0 0.0
        %5202 = vmatpush1.msra.mxu0 0.0
        %5203 = vmatprep.subr.mxu0 0.0
        %5204 = vmatpush1.msra.mxu0 0.0
        %5205 = vmatprep.subr.mxu0 0.0
        %5206 = vmatpush1.msra.mxu0 0.0
        %5207 = vmatprep.subr.mxu0 0.0
        %5208 = vmatpush1.msra.mxu0 0.0
        %5209 = vmatprep.subr.mxu0 0.0
        %5210 = vmatpush1.msra.mxu0 0.0
        %5211 = vmatprep.subr.mxu0 0.0
        %5212 = vmatpush1.msra.mxu0 0.0
        %5213 = vmatprep.subr.mxu0 0.0
        %5214 = vmatpush1.msra.mxu0 0.0
        %5215 = vmatprep.subr.mxu0 0.0
        %5216 = vmatpush1.msra.mxu0 0.0
        %5217 = vmatprep.subr.mxu0 0.0
        %5218 = vmatpush1.msra.mxu0 0.0
        %5219 = vmatprep.subr.mxu0 0.0
        %5220 = vmatpush1.msra.mxu0 0.0
        %5221 = vmatprep.subr.mxu0 0.0
        %5222 = vmatpush1.msra.mxu0 0.0
        %5223 = vmatprep.subr.mxu0 0.0
        %5224 = vmatpush1.msra.mxu0 0.0
        %5225 = vmatprep.subr.mxu0 0.0
        %5226 = vmatpush1.msra.mxu0 0.0
        %5227 = vmatprep.subr.mxu0 0.0
        %5228 = vmatpush1.msra.mxu0 0.0
        %5229 = vmatprep.subr.mxu0 0.0
        %5230 = vmatpush1.msra.mxu0 0.0
        %5231 = vmatprep.subr.mxu0 0.0
        %5232 = vmatpush1.msra.mxu0 0.0
        %5233 = vmatprep.subr.mxu0 0.0
        %5234 = vmatpush1.msra.mxu0 0.0
        %5235 = vmatprep.subr.mxu0 0.0
        %5236 = vmatpush1.msra.mxu0 0.0
        %5237 = vmatprep.subr.mxu0 0.0
        %5238 = vmatpush1.msra.mxu0 0.0
        %5239 = vmatprep.subr.mxu0 0.0
        %5240 = vmatpush1.msra.mxu0 0.0
        %5241 = vmatprep.mubr.f32.mxu0 0.0
        %v5242 = vand.u32 %v1241, 4294901760
        %v5243 = vsub.f32 %v1241, %v5242
        %v5244 = vand.u32 %v5243, 4294901760
        %5245 = vmatmul.mubr.f32.gmra.mrb[0].mxu0 %v5244
        %v5246 = vpop.f32.mrb[0].mxu0
        %v5247 = vadd.f32 %v5172, %v5246
        %v5248 = vpop.f32.mrb[0].mxu0
        %5249 = vdwg.mxu0
        %5250 = vmatprep.subr.mxu0 0.0
        %v5251 = vand.u32 %v4016, 4294901760
        %v5252 = vsub.f32 %v4016, %v5251
        %v5253 = vand.u32 %v5252, 4294901760
        %5254 = vmatpush1.msra.mxu0 %v5253
        %5255 = vmatprep.subr.mxu0 0.0
        %v5256 = vand.u32 %v4017, 4294901760
        %v5257 = vsub.f32 %v4017, %v5256
        %v5258 = vand.u32 %v5257, 4294901760
        %5259 = vmatpush1.msra.mxu0 %v5258
        %5260 = vmatprep.subr.mxu0 0.0
        %5261 = vmatpush1.msra.mxu0 0.0
        %5262 = vmatprep.subr.mxu0 0.0
        %5263 = vmatpush1.msra.mxu0 0.0
        %5264 = vmatprep.subr.mxu0 0.0
        %5265 = vmatpush1.msra.mxu0 0.0
        %5266 = vmatprep.subr.mxu0 0.0
        %5267 = vmatpush1.msra.mxu0 0.0
        %5268 = vmatprep.subr.mxu0 0.0
        %5269 = vmatpush1.msra.mxu0 0.0
        %5270 = vmatprep.subr.mxu0 0.0
        %5271 = vmatpush1.msra.mxu0 0.0
        %5272 = vmatprep.subr.mxu0 0.0
        %5273 = vmatpush1.msra.mxu0 0.0
        %5274 = vmatprep.subr.mxu0 0.0
        %5275 = vmatpush1.msra.mxu0 0.0
        %5276 = vmatprep.subr.mxu0 0.0
        %5277 = vmatpush1.msra.mxu0 0.0
        %5278 = vmatprep.subr.mxu0 0.0
        %5279 = vmatpush1.msra.mxu0 0.0
        %5280 = vmatprep.subr.mxu0 0.0
        %5281 = vmatpush1.msra.mxu0 0.0
        %5282 = vmatprep.subr.mxu0 0.0
        %5283 = vmatpush1.msra.mxu0 0.0
        %5284 = vmatprep.subr.mxu0 0.0
        %5285 = vmatpush1.msra.mxu0 0.0
        %5286 = vmatprep.subr.mxu0 0.0
        %5287 = vmatpush1.msra.mxu0 0.0
        %5288 = vmatprep.subr.mxu0 0.0
        %5289 = vmatpush1.msra.mxu0 0.0
        %5290 = vmatprep.subr.mxu0 0.0
        %5291 = vmatpush1.msra.mxu0 0.0
        %5292 = vmatprep.subr.mxu0 0.0
        %5293 = vmatpush1.msra.mxu0 0.0
        %5294 = vmatprep.subr.mxu0 0.0
        %5295 = vmatpush1.msra.mxu0 0.0
        %5296 = vmatprep.subr.mxu0 0.0
        %5297 = vmatpush1.msra.mxu0 0.0
        %5298 = vmatprep.subr.mxu0 0.0
        %5299 = vmatpush1.msra.mxu0 0.0
        %5300 = vmatprep.subr.mxu0 0.0
        %5301 = vmatpush1.msra.mxu0 0.0
        %5302 = vmatprep.subr.mxu0 0.0
        %5303 = vmatpush1.msra.mxu0 0.0
        %5304 = vmatprep.subr.mxu0 0.0
        %5305 = vmatpush1.msra.mxu0 0.0
        %5306 = vmatprep.subr.mxu0 0.0
        %5307 = vmatpush1.msra.mxu0 0.0
        %5308 = vmatprep.subr.mxu0 0.0
        %5309 = vmatpush1.msra.mxu0 0.0
        %5310 = vmatprep.subr.mxu0 0.0
        %5311 = vmatpush1.msra.mxu0 0.0
        %5312 = vmatprep.subr.mxu0 0.0
        %5313 = vmatpush1.msra.mxu0 0.0
        %5314 = vmatprep.subr.mxu0 0.0
        %5315 = vmatpush1.msra.mxu0 0.0
        %5316 = vmatprep.subr.mxu0 0.0
        %5317 = vmatpush1.msra.mxu0 0.0
        %5318 = vmatprep.subr.mxu0 0.0
        %5319 = vmatpush1.msra.mxu0 0.0
        %5320 = vmatprep.mubr.f32.mxu0 0.0
        %v5321 = vand.u32 %v1241, 4294901760
        %5322 = vmatmul.mubr.f32.gmra.mrb[0].mxu0 %v5321
        %v5323 = vpop.f32.mrb[0].mxu0
        %v5324 = vadd.f32 %v5247, %v5323
        %v5325 = vpop.f32.mrb[0].mxu0
        %5326 = vdwg.mxu0
        %5327 = vmatprep.subr.mxu0 0.0
        %v5328 = vand.u32 %v4016, 4294901760
        %5329 = vmatpush1.msra.mxu0 %v5328
        %5330 = vmatprep.subr.mxu0 0.0
        %v5331 = vand.u32 %v4017, 4294901760
        %5332 = vmatpush1.msra.mxu0 %v5331
        %5333 = vmatprep.subr.mxu0 0.0
        %5334 = vmatpush1.msra.mxu0 0.0
        %5335 = vmatprep.subr.mxu0 0.0
        %5336 = vmatpush1.msra.mxu0 0.0
        %5337 = vmatprep.subr.mxu0 0.0
        %5338 = vmatpush1.msra.mxu0 0.0
        %5339 = vmatprep.subr.mxu0 0.0
        %5340 = vmatpush1.msra.mxu0 0.0
        %5341 = vmatprep.subr.mxu0 0.0
        %5342 = vmatpush1.msra.mxu0 0.0
        %5343 = vmatprep.subr.mxu0 0.0
        %5344 = vmatpush1.msra.mxu0 0.0
        %5345 = vmatprep.subr.mxu0 0.0
        %5346 = vmatpush1.msra.mxu0 0.0
        %5347 = vmatprep.subr.mxu0 0.0
        %5348 = vmatpush1.msra.mxu0 0.0
        %5349 = vmatprep.subr.mxu0 0.0
        %5350 = vmatpush1.msra.mxu0 0.0
        %5351 = vmatprep.subr.mxu0 0.0
        %5352 = vmatpush1.msra.mxu0 0.0
        %5353 = vmatprep.subr.mxu0 0.0
        %5354 = vmatpush1.msra.mxu0 0.0
        %5355 = vmatprep.subr.mxu0 0.0
        %5356 = vmatpush1.msra.mxu0 0.0
        %5357 = vmatprep.subr.mxu0 0.0
        %5358 = vmatpush1.msra.mxu0 0.0
        %5359 = vmatprep.subr.mxu0 0.0
        %5360 = vmatpush1.msra.mxu0 0.0
        %5361 = vmatprep.subr.mxu0 0.0
        %5362 = vmatpush1.msra.mxu0 0.0
        %5363 = vmatprep.subr.mxu0 0.0
        %5364 = vmatpush1.msra.mxu0 0.0
        %5365 = vmatprep.subr.mxu0 0.0
        %5366 = vmatpush1.msra.mxu0 0.0
        %5367 = vmatprep.subr.mxu0 0.0
        %5368 = vmatpush1.msra.mxu0 0.0
        %5369 = vmatprep.subr.mxu0 0.0
        %5370 = vmatpush1.msra.mxu0 0.0
        %5371 = vmatprep.subr.mxu0 0.0
        %5372 = vmatpush1.msra.mxu0 0.0
        %5373 = vmatprep.subr.mxu0 0.0
        %5374 = vmatpush1.msra.mxu0 0.0
        %5375 = vmatprep.subr.mxu0 0.0
        %5376 = vmatpush1.msra.mxu0 0.0
        %5377 = vmatprep.subr.mxu0 0.0
        %5378 = vmatpush1.msra.mxu0 0.0
        %5379 = vmatprep.subr.mxu0 0.0
        %5380 = vmatpush1.msra.mxu0 0.0
        %5381 = vmatprep.subr.mxu0 0.0
        %5382 = vmatpush1.msra.mxu0 0.0
        %5383 = vmatprep.subr.mxu0 0.0
        %5384 = vmatpush1.msra.mxu0 0.0
        %5385 = vmatprep.subr.mxu0 0.0
        %5386 = vmatpush1.msra.mxu0 0.0
        %5387 = vmatprep.subr.mxu0 0.0
        %5388 = vmatpush1.msra.mxu0 0.0
        %5389 = vmatprep.subr.mxu0 0.0
        %5390 = vmatpush1.msra.mxu0 0.0
        %5391 = vmatprep.subr.mxu0 0.0
        %5392 = vmatpush1.msra.mxu0 0.0
        %5393 = vmatprep.mubr.f32.mxu0 0.0
        %v5394 = vand.u32 %v1241, 4294901760
        %5395 = vmatmul.mubr.f32.gmra.mrb[0].mxu0 %v5394
        %v5396 = vpop.f32.mrb[0].mxu0
        %v5397 = vadd.f32 %v5324, %v5396
        %v5398 = vpop.f32.mrb[0].mxu0
        %5399 = vdwg.mxu0
        %v5401 = vsel %vm313, %v5397, 0
        %5403 = vmatprep.subr.mxu0 0.0
        %v5404 = vand.u32 %v309, 4294901760
        %5405 = vmatpush1.msra.mxu0 %v5404
        %5406 = vmatprep.subr.mxu0 0.0
        %v5407 = vand.u32 %v310, 4294901760
        %5408 = vmatpush1.msra.mxu0 %v5407
        %5409 = vmatprep.subr.mxu0 0.0
        %5410 = vmatpush1.msra.mxu0 0.0
        %5411 = vmatprep.subr.mxu0 0.0
        %5412 = vmatpush1.msra.mxu0 0.0
        %5413 = vmatprep.subr.mxu0 0.0
        %5414 = vmatpush1.msra.mxu0 0.0
        %5415 = vmatprep.subr.mxu0 0.0
        %5416 = vmatpush1.msra.mxu0 0.0
        %5417 = vmatprep.subr.mxu0 0.0
        %5418 = vmatpush1.msra.mxu0 0.0
        %5419 = vmatprep.subr.mxu0 0.0
        %5420 = vmatpush1.msra.mxu0 0.0
        %5421 = vmatprep.subr.mxu0 0.0
        %5422 = vmatpush1.msra.mxu0 0.0
        %5423 = vmatprep.subr.mxu0 0.0
        %5424 = vmatpush1.msra.mxu0 0.0
        %5425 = vmatprep.subr.mxu0 0.0
        %5426 = vmatpush1.msra.mxu0 0.0
        %5427 = vmatprep.subr.mxu0 0.0
        %5428 = vmatpush1.msra.mxu0 0.0
        %5429 = vmatprep.subr.mxu0 0.0
        %5430 = vmatpush1.msra.mxu0 0.0
        %5431 = vmatprep.subr.mxu0 0.0
        %5432 = vmatpush1.msra.mxu0 0.0
        %5433 = vmatprep.subr.mxu0 0.0
        %5434 = vmatpush1.msra.mxu0 0.0
        %5435 = vmatprep.subr.mxu0 0.0
        %5436 = vmatpush1.msra.mxu0 0.0
        %5437 = vmatprep.subr.mxu0 0.0
        %5438 = vmatpush1.msra.mxu0 0.0
        %5439 = vmatprep.subr.mxu0 0.0
        %5440 = vmatpush1.msra.mxu0 0.0
        %5441 = vmatprep.subr.mxu0 0.0
        %5442 = vmatpush1.msra.mxu0 0.0
        %5443 = vmatprep.subr.mxu0 0.0
        %5444 = vmatpush1.msra.mxu0 0.0
        %5445 = vmatprep.subr.mxu0 0.0
        %5446 = vmatpush1.msra.mxu0 0.0
        %5447 = vmatprep.subr.mxu0 0.0
        %5448 = vmatpush1.msra.mxu0 0.0
        %5449 = vmatprep.subr.mxu0 0.0
        %5450 = vmatpush1.msra.mxu0 0.0
        %5451 = vmatprep.subr.mxu0 0.0
        %5452 = vmatpush1.msra.mxu0 0.0
        %5453 = vmatprep.subr.mxu0 0.0
        %5454 = vmatpush1.msra.mxu0 0.0
        %5455 = vmatprep.subr.mxu0 0.0
        %5456 = vmatpush1.msra.mxu0 0.0
        %5457 = vmatprep.subr.mxu0 0.0
        %5458 = vmatpush1.msra.mxu0 0.0
        %5459 = vmatprep.subr.mxu0 0.0
        %5460 = vmatpush1.msra.mxu0 0.0
        %5461 = vmatprep.subr.mxu0 0.0
        %5462 = vmatpush1.msra.mxu0 0.0
        %5463 = vmatprep.subr.mxu0 0.0
        %5464 = vmatpush1.msra.mxu0 0.0
        %5465 = vmatprep.subr.mxu0 0.0
        %5466 = vmatpush1.msra.mxu0 0.0
        %5467 = vmatprep.subr.mxu0 0.0
        %5468 = vmatpush1.msra.mxu0 0.0
        %5469 = vmatprep.mubr.f32.mxu0 0.0
        %v5470 = vand.u32 %v5401, 4294901760
        %v5471 = vsub.f32 %v5401, %v5470
        %v5472 = vand.u32 %v5471, 4294901760
        %v5473 = vsub.f32 %v5471, %v5472
        %v5474 = vand.u32 %v5473, 4294901760
        %5475 = vmatmul.mubr.f32.gmra.mrb[0].mxu0 %v5474
        %v5476 = vpop.f32.mrb[0].mxu0
        %v5477 = vadd.f32 0.0, %v5476
        %v5478 = vpop.f32.mrb[0].mxu0
        %5479 = vdwg.mxu0
        %5480 = vmatprep.subr.mxu0 0.0
        %v5481 = vand.u32 %v309, 4294901760
        %v5482 = vsub.f32 %v309, %v5481
        %v5483 = vand.u32 %v5482, 4294901760
        %v5484 = vsub.f32 %v5482, %v5483
        %v5485 = vand.u32 %v5484, 4294901760
        %5486 = vmatpush1.msra.mxu0 %v5485
        %5487 = vmatprep.subr.mxu0 0.0
        %v5488 = vand.u32 %v310, 4294901760
        %v5489 = vsub.f32 %v310, %v5488
        %v5490 = vand.u32 %v5489, 4294901760
        %v5491 = vsub.f32 %v5489, %v5490
        %v5492 = vand.u32 %v5491, 4294901760
        %5493 = vmatpush1.msra.mxu0 %v5492
        %5494 = vmatprep.subr.mxu0 0.0
        %5495 = vmatpush1.msra.mxu0 0.0
        %5496 = vmatprep.subr.mxu0 0.0
        %5497 = vmatpush1.msra.mxu0 0.0
        %5498 = vmatprep.subr.mxu0 0.0
        %5499 = vmatpush1.msra.mxu0 0.0
        %5500 = vmatprep.subr.mxu0 0.0
        %5501 = vmatpush1.msra.mxu0 0.0
        %5502 = vmatprep.subr.mxu0 0.0
        %5503 = vmatpush1.msra.mxu0 0.0
        %5504 = vmatprep.subr.mxu0 0.0
        %5505 = vmatpush1.msra.mxu0 0.0
        %5506 = vmatprep.subr.mxu0 0.0
        %5507 = vmatpush1.msra.mxu0 0.0
        %5508 = vmatprep.subr.mxu0 0.0
        %5509 = vmatpush1.msra.mxu0 0.0
        %5510 = vmatprep.subr.mxu0 0.0
        %5511 = vmatpush1.msra.mxu0 0.0
        %5512 = vmatprep.subr.mxu0 0.0
        %5513 = vmatpush1.msra.mxu0 0.0
        %5514 = vmatprep.subr.mxu0 0.0
        %5515 = vmatpush1.msra.mxu0 0.0
        %5516 = vmatprep.subr.mxu0 0.0
        %5517 = vmatpush1.msra.mxu0 0.0
        %5518 = vmatprep.subr.mxu0 0.0
        %5519 = vmatpush1.msra.mxu0 0.0
        %5520 = vmatprep.subr.mxu0 0.0
        %5521 = vmatpush1.msra.mxu0 0.0
        %5522 = vmatprep.subr.mxu0 0.0
        %5523 = vmatpush1.msra.mxu0 0.0
        %5524 = vmatprep.subr.mxu0 0.0
        %5525 = vmatpush1.msra.mxu0 0.0
        %5526 = vmatprep.subr.mxu0 0.0
        %5527 = vmatpush1.msra.mxu0 0.0
        %5528 = vmatprep.subr.mxu0 0.0
        %5529 = vmatpush1.msra.mxu0 0.0
        %5530 = vmatprep.subr.mxu0 0.0
        %5531 = vmatpush1.msra.mxu0 0.0
        %5532 = vmatprep.subr.mxu0 0.0
        %5533 = vmatpush1.msra.mxu0 0.0
        %5534 = vmatprep.subr.mxu0 0.0
        %5535 = vmatpush1.msra.mxu0 0.0
        %5536 = vmatprep.subr.mxu0 0.0
        %5537 = vmatpush1.msra.mxu0 0.0
        %5538 = vmatprep.subr.mxu0 0.0
        %5539 = vmatpush1.msra.mxu0 0.0
        %5540 = vmatprep.subr.mxu0 0.0
        %5541 = vmatpush1.msra.mxu0 0.0
        %5542 = vmatprep.subr.mxu0 0.0
        %5543 = vmatpush1.msra.mxu0 0.0
        %5544 = vmatprep.subr.mxu0 0.0
        %5545 = vmatpush1.msra.mxu0 0.0
        %5546 = vmatprep.subr.mxu0 0.0
        %5547 = vmatpush1.msra.mxu0 0.0
        %5548 = vmatprep.subr.mxu0 0.0
        %5549 = vmatpush1.msra.mxu0 0.0
        %5550 = vmatprep.subr.mxu0 0.0
        %5551 = vmatpush1.msra.mxu0 0.0
        %5552 = vmatprep.subr.mxu0 0.0
        %5553 = vmatpush1.msra.mxu0 0.0
        %5554 = vmatprep.mubr.f32.mxu0 0.0
        %v5555 = vand.u32 %v5401, 4294901760
        %5556 = vmatmul.mubr.f32.gmra.mrb[0].mxu0 %v5555
        %v5557 = vpop.f32.mrb[0].mxu0
        %v5558 = vadd.f32 %v5477, %v5557
        %v5559 = vpop.f32.mrb[0].mxu0
        %5560 = vdwg.mxu0
        %5561 = vmatprep.subr.mxu0 0.0
        %v5562 = vand.u32 %v309, 4294901760
        %v5563 = vsub.f32 %v309, %v5562
        %5564 = vmatpush1.msra.mxu0 %v5563
        %5565 = vmatprep.subr.mxu0 0.0
        %v5566 = vand.u32 %v310, 4294901760
        %v5567 = vsub.f32 %v310, %v5566
        %5568 = vmatpush1.msra.mxu0 %v5567
        %5569 = vmatprep.subr.mxu0 0.0
        %5570 = vmatpush1.msra.mxu0 0.0
        %5571 = vmatprep.subr.mxu0 0.0
        %5572 = vmatpush1.msra.mxu0 0.0
        %5573 = vmatprep.subr.mxu0 0.0
        %5574 = vmatpush1.msra.mxu0 0.0
        %5575 = vmatprep.subr.mxu0 0.0
        %5576 = vmatpush1.msra.mxu0 0.0
        %5577 = vmatprep.subr.mxu0 0.0
        %5578 = vmatpush1.msra.mxu0 0.0
        %5579 = vmatprep.subr.mxu0 0.0
        %5580 = vmatpush1.msra.mxu0 0.0
        %5581 = vmatprep.subr.mxu0 0.0
        %5582 = vmatpush1.msra.mxu0 0.0
        %5583 = vmatprep.subr.mxu0 0.0
        %5584 = vmatpush1.msra.mxu0 0.0
        %5585 = vmatprep.subr.mxu0 0.0
        %5586 = vmatpush1.msra.mxu0 0.0
        %5587 = vmatprep.subr.mxu0 0.0
        %5588 = vmatpush1.msra.mxu0 0.0
        %5589 = vmatprep.subr.mxu0 0.0
        %5590 = vmatpush1.msra.mxu0 0.0
        %5591 = vmatprep.subr.mxu0 0.0
        %5592 = vmatpush1.msra.mxu0 0.0
        %5593 = vmatprep.subr.mxu0 0.0
        %5594 = vmatpush1.msra.mxu0 0.0
        %5595 = vmatprep.subr.mxu0 0.0
        %5596 = vmatpush1.msra.mxu0 0.0
        %5597 = vmatprep.subr.mxu0 0.0
        %5598 = vmatpush1.msra.mxu0 0.0
        %5599 = vmatprep.subr.mxu0 0.0
        %5600 = vmatpush1.msra.mxu0 0.0
        %5601 = vmatprep.subr.mxu0 0.0
        %5602 = vmatpush1.msra.mxu0 0.0
        %5603 = vmatprep.subr.mxu0 0.0
        %5604 = vmatpush1.msra.mxu0 0.0
        %5605 = vmatprep.subr.mxu0 0.0
        %5606 = vmatpush1.msra.mxu0 0.0
        %5607 = vmatprep.subr.mxu0 0.0
        %5608 = vmatpush1.msra.mxu0 0.0
        %5609 = vmatprep.subr.mxu0 0.0
        %5610 = vmatpush1.msra.mxu0 0.0
        %5611 = vmatprep.subr.mxu0 0.0
        %5612 = vmatpush1.msra.mxu0 0.0
        %5613 = vmatprep.subr.mxu0 0.0
        %5614 = vmatpush1.msra.mxu0 0.0
        %5615 = vmatprep.subr.mxu0 0.0
        %5616 = vmatpush1.msra.mxu0 0.0
        %5617 = vmatprep.subr.mxu0 0.0
        %5618 = vmatpush1.msra.mxu0 0.0
        %5619 = vmatprep.subr.mxu0 0.0
        %5620 = vmatpush1.msra.mxu0 0.0
        %5621 = vmatprep.subr.mxu0 0.0
        %5622 = vmatpush1.msra.mxu0 0.0
        %5623 = vmatprep.subr.mxu0 0.0
        %5624 = vmatpush1.msra.mxu0 0.0
        %5625 = vmatprep.subr.mxu0 0.0
        %5626 = vmatpush1.msra.mxu0 0.0
        %5627 = vmatprep.subr.mxu0 0.0
        %5628 = vmatpush1.msra.mxu0 0.0
        %5629 = vmatprep.mubr.f32.mxu0 0.0
        %v5630 = vand.u32 %v5401, 4294901760
        %v5631 = vsub.f32 %v5401, %v5630
        %5632 = vmatmul.mubr.f32.gmra.mrb[0].mxu0 %v5631
        %v5633 = vpop.f32.mrb[0].mxu0
        %v5634 = vadd.f32 %v5558, %v5633
        %v5635 = vpop.f32.mrb[0].mxu0
        %5636 = vdwg.mxu0
        %5637 = vmatprep.subr.mxu0 0.0
        %v5638 = vand.u32 %v309, 4294901760
        %5639 = vmatpush1.msra.mxu0 %v5638
        %5640 = vmatprep.subr.mxu0 0.0
        %v5641 = vand.u32 %v310, 4294901760
        %5642 = vmatpush1.msra.mxu0 %v5641
        %5643 = vmatprep.subr.mxu0 0.0
        %5644 = vmatpush1.msra.mxu0 0.0
        %5645 = vmatprep.subr.mxu0 0.0
        %5646 = vmatpush1.msra.mxu0 0.0
        %5647 = vmatprep.subr.mxu0 0.0
        %5648 = vmatpush1.msra.mxu0 0.0
        %5649 = vmatprep.subr.mxu0 0.0
        %5650 = vmatpush1.msra.mxu0 0.0
        %5651 = vmatprep.subr.mxu0 0.0
        %5652 = vmatpush1.msra.mxu0 0.0
        %5653 = vmatprep.subr.mxu0 0.0
        %5654 = vmatpush1.msra.mxu0 0.0
        %5655 = vmatprep.subr.mxu0 0.0
        %5656 = vmatpush1.msra.mxu0 0.0
        %5657 = vmatprep.subr.mxu0 0.0
        %5658 = vmatpush1.msra.mxu0 0.0
        %5659 = vmatprep.subr.mxu0 0.0
        %5660 = vmatpush1.msra.mxu0 0.0
        %5661 = vmatprep.subr.mxu0 0.0
        %5662 = vmatpush1.msra.mxu0 0.0
        %5663 = vmatprep.subr.mxu0 0.0
        %5664 = vmatpush1.msra.mxu0 0.0
        %5665 = vmatprep.subr.mxu0 0.0
        %5666 = vmatpush1.msra.mxu0 0.0
        %5667 = vmatprep.subr.mxu0 0.0
        %5668 = vmatpush1.msra.mxu0 0.0
        %5669 = vmatprep.subr.mxu0 0.0
        %5670 = vmatpush1.msra.mxu0 0.0
        %5671 = vmatprep.subr.mxu0 0.0
        %5672 = vmatpush1.msra.mxu0 0.0
        %5673 = vmatprep.subr.mxu0 0.0
        %5674 = vmatpush1.msra.mxu0 0.0
        %5675 = vmatprep.subr.mxu0 0.0
        %5676 = vmatpush1.msra.mxu0 0.0
        %5677 = vmatprep.subr.mxu0 0.0
        %5678 = vmatpush1.msra.mxu0 0.0
        %5679 = vmatprep.subr.mxu0 0.0
        %5680 = vmatpush1.msra.mxu0 0.0
        %5681 = vmatprep.subr.mxu0 0.0
        %5682 = vmatpush1.msra.mxu0 0.0
        %5683 = vmatprep.subr.mxu0 0.0
        %5684 = vmatpush1.msra.mxu0 0.0
        %5685 = vmatprep.subr.mxu0 0.0
        %5686 = vmatpush1.msra.mxu0 0.0
        %5687 = vmatprep.subr.mxu0 0.0
        %5688 = vmatpush1.msra.mxu0 0.0
        %5689 = vmatprep.subr.mxu0 0.0
        %5690 = vmatpush1.msra.mxu0 0.0
        %5691 = vmatprep.subr.mxu0 0.0
        %5692 = vmatpush1.msra.mxu0 0.0
        %5693 = vmatprep.subr.mxu0 0.0
        %5694 = vmatpush1.msra.mxu0 0.0
        %5695 = vmatprep.subr.mxu0 0.0
        %5696 = vmatpush1.msra.mxu0 0.0
        %5697 = vmatprep.subr.mxu0 0.0
        %5698 = vmatpush1.msra.mxu0 0.0
        %5699 = vmatprep.subr.mxu0 0.0
        %5700 = vmatpush1.msra.mxu0 0.0
        %5701 = vmatprep.subr.mxu0 0.0
        %5702 = vmatpush1.msra.mxu0 0.0
        %5703 = vmatprep.mubr.f32.mxu0 0.0
        %v5704 = vand.u32 %v5401, 4294901760
        %v5705 = vsub.f32 %v5401, %v5704
        %v5706 = vand.u32 %v5705, 4294901760
        %5707 = vmatmul.mubr.f32.gmra.mrb[0].mxu0 %v5706
        %v5708 = vpop.f32.mrb[0].mxu0
        %v5709 = vadd.f32 %v5634, %v5708
        %v5710 = vpop.f32.mrb[0].mxu0
        %5711 = vdwg.mxu0
        %5712 = vmatprep.subr.mxu0 0.0
        %v5713 = vand.u32 %v309, 4294901760
        %v5714 = vsub.f32 %v309, %v5713
        %v5715 = vand.u32 %v5714, 4294901760
        %5716 = vmatpush1.msra.mxu0 %v5715
        %5717 = vmatprep.subr.mxu0 0.0
        %v5718 = vand.u32 %v310, 4294901760
        %v5719 = vsub.f32 %v310, %v5718
        %v5720 = vand.u32 %v5719, 4294901760
        %5721 = vmatpush1.msra.mxu0 %v5720
        %5722 = vmatprep.subr.mxu0 0.0
        %5723 = vmatpush1.msra.mxu0 0.0
        %5724 = vmatprep.subr.mxu0 0.0
        %5725 = vmatpush1.msra.mxu0 0.0
        %5726 = vmatprep.subr.mxu0 0.0
        %5727 = vmatpush1.msra.mxu0 0.0
        %5728 = vmatprep.subr.mxu0 0.0
        %5729 = vmatpush1.msra.mxu0 0.0
        %5730 = vmatprep.subr.mxu0 0.0
        %5731 = vmatpush1.msra.mxu0 0.0
        %5732 = vmatprep.subr.mxu0 0.0
        %5733 = vmatpush1.msra.mxu0 0.0
        %5734 = vmatprep.subr.mxu0 0.0
        %5735 = vmatpush1.msra.mxu0 0.0
        %5736 = vmatprep.subr.mxu0 0.0
        %5737 = vmatpush1.msra.mxu0 0.0
        %5738 = vmatprep.subr.mxu0 0.0
        %5739 = vmatpush1.msra.mxu0 0.0
        %5740 = vmatprep.subr.mxu0 0.0
        %5741 = vmatpush1.msra.mxu0 0.0
        %5742 = vmatprep.subr.mxu0 0.0
        %5743 = vmatpush1.msra.mxu0 0.0
        %5744 = vmatprep.subr.mxu0 0.0
        %5745 = vmatpush1.msra.mxu0 0.0
        %5746 = vmatprep.subr.mxu0 0.0
        %5747 = vmatpush1.msra.mxu0 0.0
        %5748 = vmatprep.subr.mxu0 0.0
        %5749 = vmatpush1.msra.mxu0 0.0
        %5750 = vmatprep.subr.mxu0 0.0
        %5751 = vmatpush1.msra.mxu0 0.0
        %5752 = vmatprep.subr.mxu0 0.0
        %5753 = vmatpush1.msra.mxu0 0.0
        %5754 = vmatprep.subr.mxu0 0.0
        %5755 = vmatpush1.msra.mxu0 0.0
        %5756 = vmatprep.subr.mxu0 0.0
        %5757 = vmatpush1.msra.mxu0 0.0
        %5758 = vmatprep.subr.mxu0 0.0
        %5759 = vmatpush1.msra.mxu0 0.0
        %5760 = vmatprep.subr.mxu0 0.0
        %5761 = vmatpush1.msra.mxu0 0.0
        %5762 = vmatprep.subr.mxu0 0.0
        %5763 = vmatpush1.msra.mxu0 0.0
        %5764 = vmatprep.subr.mxu0 0.0
        %5765 = vmatpush1.msra.mxu0 0.0
        %5766 = vmatprep.subr.mxu0 0.0
        %5767 = vmatpush1.msra.mxu0 0.0
        %5768 = vmatprep.subr.mxu0 0.0
        %5769 = vmatpush1.msra.mxu0 0.0
        %5770 = vmatprep.subr.mxu0 0.0
        %5771 = vmatpush1.msra.mxu0 0.0
        %5772 = vmatprep.subr.mxu0 0.0
        %5773 = vmatpush1.msra.mxu0 0.0
        %5774 = vmatprep.subr.mxu0 0.0
        %5775 = vmatpush1.msra.mxu0 0.0
        %5776 = vmatprep.subr.mxu0 0.0
        %5777 = vmatpush1.msra.mxu0 0.0
        %5778 = vmatprep.subr.mxu0 0.0
        %5779 = vmatpush1.msra.mxu0 0.0
        %5780 = vmatprep.subr.mxu0 0.0
        %5781 = vmatpush1.msra.mxu0 0.0
        %5782 = vmatprep.mubr.f32.mxu0 0.0
        %v5783 = vand.u32 %v5401, 4294901760
        %5784 = vmatmul.mubr.f32.gmra.mrb[0].mxu0 %v5783
        %v5785 = vpop.f32.mrb[0].mxu0
        %v5786 = vadd.f32 %v5709, %v5785
        %v5787 = vpop.f32.mrb[0].mxu0
        %5788 = vdwg.mxu0
        %5789 = vmatprep.subr.mxu0 0.0
        %v5790 = vand.u32 %v309, 4294901760
        %5791 = vmatpush1.msra.mxu0 %v5790
        %5792 = vmatprep.subr.mxu0 0.0
        %v5793 = vand.u32 %v310, 4294901760
        %5794 = vmatpush1.msra.mxu0 %v5793
        %5795 = vmatprep.subr.mxu0 0.0
        %5796 = vmatpush1.msra.mxu0 0.0
        %5797 = vmatprep.subr.mxu0 0.0
        %5798 = vmatpush1.msra.mxu0 0.0
        %5799 = vmatprep.subr.mxu0 0.0
        %5800 = vmatpush1.msra.mxu0 0.0
        %5801 = vmatprep.subr.mxu0 0.0
        %5802 = vmatpush1.msra.mxu0 0.0
        %5803 = vmatprep.subr.mxu0 0.0
        %5804 = vmatpush1.msra.mxu0 0.0
        %5805 = vmatprep.subr.mxu0 0.0
        %5806 = vmatpush1.msra.mxu0 0.0
        %5807 = vmatprep.subr.mxu0 0.0
        %5808 = vmatpush1.msra.mxu0 0.0
        %5809 = vmatprep.subr.mxu0 0.0
        %5810 = vmatpush1.msra.mxu0 0.0
        %5811 = vmatprep.subr.mxu0 0.0
        %5812 = vmatpush1.msra.mxu0 0.0
        %5813 = vmatprep.subr.mxu0 0.0
        %5814 = vmatpush1.msra.mxu0 0.0
        %5815 = vmatprep.subr.mxu0 0.0
        %5816 = vmatpush1.msra.mxu0 0.0
        %5817 = vmatprep.subr.mxu0 0.0
        %5818 = vmatpush1.msra.mxu0 0.0
        %5819 = vmatprep.subr.mxu0 0.0
        %5820 = vmatpush1.msra.mxu0 0.0
        %5821 = vmatprep.subr.mxu0 0.0
        %5822 = vmatpush1.msra.mxu0 0.0
        %5823 = vmatprep.subr.mxu0 0.0
        %5824 = vmatpush1.msra.mxu0 0.0
        %5825 = vmatprep.subr.mxu0 0.0
        %5826 = vmatpush1.msra.mxu0 0.0
        %5827 = vmatprep.subr.mxu0 0.0
        %5828 = vmatpush1.msra.mxu0 0.0
        %5829 = vmatprep.subr.mxu0 0.0
        %5830 = vmatpush1.msra.mxu0 0.0
        %5831 = vmatprep.subr.mxu0 0.0
        %5832 = vmatpush1.msra.mxu0 0.0
        %5833 = vmatprep.subr.mxu0 0.0
        %5834 = vmatpush1.msra.mxu0 0.0
        %5835 = vmatprep.subr.mxu0 0.0
        %5836 = vmatpush1.msra.mxu0 0.0
        %5837 = vmatprep.subr.mxu0 0.0
        %5838 = vmatpush1.msra.mxu0 0.0
        %5839 = vmatprep.subr.mxu0 0.0
        %5840 = vmatpush1.msra.mxu0 0.0
        %5841 = vmatprep.subr.mxu0 0.0
        %5842 = vmatpush1.msra.mxu0 0.0
        %5843 = vmatprep.subr.mxu0 0.0
        %5844 = vmatpush1.msra.mxu0 0.0
        %5845 = vmatprep.subr.mxu0 0.0
        %5846 = vmatpush1.msra.mxu0 0.0
        %5847 = vmatprep.subr.mxu0 0.0
        %5848 = vmatpush1.msra.mxu0 0.0
        %5849 = vmatprep.subr.mxu0 0.0
        %5850 = vmatpush1.msra.mxu0 0.0
        %5851 = vmatprep.subr.mxu0 0.0
        %5852 = vmatpush1.msra.mxu0 0.0
        %5853 = vmatprep.subr.mxu0 0.0
        %5854 = vmatpush1.msra.mxu0 0.0
        %5855 = vmatprep.mubr.f32.mxu0 0.0
        %v5856 = vand.u32 %v5401, 4294901760
        %5857 = vmatmul.mubr.f32.gmra.mrb[0].mxu0 %v5856
        %v5858 = vpop.f32.mrb[0].mxu0
        %v5859 = vadd.f32 %v5786, %v5858
        %v5860 = vpop.f32.mrb[0].mxu0
        %5861 = vdwg.mxu0
        %s5862 = scalar_lea.vmem %s301, 8 [#allocation6]
        %5863 = vst.msk [vmem:[%s5862] sm:$0xf] %vm2164, %v5859
        %s5864 = scalar_lea.vmem %s268, 48 [#allocation2]
        %v5865 = vld [vmem:[%s5864] sm:$0xff]
        %v5866 = vld [vmem:[%s5864 + $0x8] sm:$0xff]
        %5867 = vmatprep.subr.mxu0 0.0
        %v5868 = vand.u32 %v5865, 4294901760
        %5869 = vmatpush1.msra.mxu0 %v5868
        %5870 = vmatprep.subr.mxu0 0.0
        %v5871 = vand.u32 %v5866, 4294901760
        %5872 = vmatpush1.msra.mxu0 %v5871
        %5873 = vmatprep.subr.mxu0 0.0
        %5874 = vmatpush1.msra.mxu0 0.0
        %5875 = vmatprep.subr.mxu0 0.0
        %5876 = vmatpush1.msra.mxu0 0.0
        %5877 = vmatprep.subr.mxu0 0.0
        %5878 = vmatpush1.msra.mxu0 0.0
        %5879 = vmatprep.subr.mxu0 0.0
        %5880 = vmatpush1.msra.mxu0 0.0
        %5881 = vmatprep.subr.mxu0 0.0
        %5882 = vmatpush1.msra.mxu0 0.0
        %5883 = vmatprep.subr.mxu0 0.0
        %5884 = vmatpush1.msra.mxu0 0.0
        %5885 = vmatprep.subr.mxu0 0.0
        %5886 = vmatpush1.msra.mxu0 0.0
        %5887 = vmatprep.subr.mxu0 0.0
        %5888 = vmatpush1.msra.mxu0 0.0
        %5889 = vmatprep.subr.mxu0 0.0
        %5890 = vmatpush1.msra.mxu0 0.0
        %5891 = vmatprep.subr.mxu0 0.0
        %5892 = vmatpush1.msra.mxu0 0.0
        %5893 = vmatprep.subr.mxu0 0.0
        %5894 = vmatpush1.msra.mxu0 0.0
        %5895 = vmatprep.subr.mxu0 0.0
        %5896 = vmatpush1.msra.mxu0 0.0
        %5897 = vmatprep.subr.mxu0 0.0
        %5898 = vmatpush1.msra.mxu0 0.0
        %5899 = vmatprep.subr.mxu0 0.0
        %5900 = vmatpush1.msra.mxu0 0.0
        %5901 = vmatprep.subr.mxu0 0.0
        %5902 = vmatpush1.msra.mxu0 0.0
        %5903 = vmatprep.subr.mxu0 0.0
        %5904 = vmatpush1.msra.mxu0 0.0
        %5905 = vmatprep.subr.mxu0 0.0
        %5906 = vmatpush1.msra.mxu0 0.0
        %5907 = vmatprep.subr.mxu0 0.0
        %5908 = vmatpush1.msra.mxu0 0.0
        %5909 = vmatprep.subr.mxu0 0.0
        %5910 = vmatpush1.msra.mxu0 0.0
        %5911 = vmatprep.subr.mxu0 0.0
        %5912 = vmatpush1.msra.mxu0 0.0
        %5913 = vmatprep.subr.mxu0 0.0
        %5914 = vmatpush1.msra.mxu0 0.0
        %5915 = vmatprep.subr.mxu0 0.0
        %5916 = vmatpush1.msra.mxu0 0.0
        %5917 = vmatprep.subr.mxu0 0.0
        %5918 = vmatpush1.msra.mxu0 0.0
        %5919 = vmatprep.subr.mxu0 0.0
        %5920 = vmatpush1.msra.mxu0 0.0
        %5921 = vmatprep.subr.mxu0 0.0
        %5922 = vmatpush1.msra.mxu0 0.0
        %5923 = vmatprep.subr.mxu0 0.0
        %5924 = vmatpush1.msra.mxu0 0.0
        %5925 = vmatprep.subr.mxu0 0.0
        %5926 = vmatpush1.msra.mxu0 0.0
        %5927 = vmatprep.subr.mxu0 0.0
        %5928 = vmatpush1.msra.mxu0 0.0
        %5929 = vmatprep.subr.mxu0 0.0
        %5930 = vmatpush1.msra.mxu0 0.0
        %5931 = vmatprep.subr.mxu0 0.0
        %5932 = vmatpush1.msra.mxu0 0.0
        %5933 = vmatprep.mubr.f32.mxu0 0.0
        %v5934 = vand.u32 %v315, 4294901760
        %v5935 = vsub.f32 %v315, %v5934
        %v5936 = vand.u32 %v5935, 4294901760
        %v5937 = vsub.f32 %v5935, %v5936
        %v5938 = vand.u32 %v5937, 4294901760
        %5939 = vmatmul.mubr.f32.gmra.mrb[0].mxu0 %v5938
        %v5940 = vpop.f32.mrb[0].mxu0
        %v5941 = vadd.f32 0.0, %v5940
        %v5942 = vpop.f32.mrb[0].mxu0
        %5943 = vdwg.mxu0
        %5944 = vmatprep.subr.mxu0 0.0
        %v5945 = vand.u32 %v5865, 4294901760
        %v5946 = vsub.f32 %v5865, %v5945
        %v5947 = vand.u32 %v5946, 4294901760
        %v5948 = vsub.f32 %v5946, %v5947
        %v5949 = vand.u32 %v5948, 4294901760
        %5950 = vmatpush1.msra.mxu0 %v5949
        %5951 = vmatprep.subr.mxu0 0.0
        %v5952 = vand.u32 %v5866, 4294901760
        %v5953 = vsub.f32 %v5866, %v5952
        %v5954 = vand.u32 %v5953, 4294901760
        %v5955 = vsub.f32 %v5953, %v5954
        %v5956 = vand.u32 %v5955, 4294901760
        %5957 = vmatpush1.msra.mxu0 %v5956
        %5958 = vmatprep.subr.mxu0 0.0
        %5959 = vmatpush1.msra.mxu0 0.0
        %5960 = vmatprep.subr.mxu0 0.0
        %5961 = vmatpush1.msra.mxu0 0.0
        %5962 = vmatprep.subr.mxu0 0.0
        %5963 = vmatpush1.msra.mxu0 0.0
        %5964 = vmatprep.subr.mxu0 0.0
        %5965 = vmatpush1.msra.mxu0 0.0
        %5966 = vmatprep.subr.mxu0 0.0
        %5967 = vmatpush1.msra.mxu0 0.0
        %5968 = vmatprep.subr.mxu0 0.0
        %5969 = vmatpush1.msra.mxu0 0.0
        %5970 = vmatprep.subr.mxu0 0.0
        %5971 = vmatpush1.msra.mxu0 0.0
        %5972 = vmatprep.subr.mxu0 0.0
        %5973 = vmatpush1.msra.mxu0 0.0
        %5974 = vmatprep.subr.mxu0 0.0
        %5975 = vmatpush1.msra.mxu0 0.0
        %5976 = vmatprep.subr.mxu0 0.0
        %5977 = vmatpush1.msra.mxu0 0.0
        %5978 = vmatprep.subr.mxu0 0.0
        %5979 = vmatpush1.msra.mxu0 0.0
        %5980 = vmatprep.subr.mxu0 0.0
        %5981 = vmatpush1.msra.mxu0 0.0
        %5982 = vmatprep.subr.mxu0 0.0
        %5983 = vmatpush1.msra.mxu0 0.0
        %5984 = vmatprep.subr.mxu0 0.0
        %5985 = vmatpush1.msra.mxu0 0.0
        %5986 = vmatprep.subr.mxu0 0.0
        %5987 = vmatpush1.msra.mxu0 0.0
        %5988 = vmatprep.subr.mxu0 0.0
        %5989 = vmatpush1.msra.mxu0 0.0
        %5990 = vmatprep.subr.mxu0 0.0
        %5991 = vmatpush1.msra.mxu0 0.0
        %5992 = vmatprep.subr.mxu0 0.0
        %5993 = vmatpush1.msra.mxu0 0.0
        %5994 = vmatprep.subr.mxu0 0.0
        %5995 = vmatpush1.msra.mxu0 0.0
        %5996 = vmatprep.subr.mxu0 0.0
        %5997 = vmatpush1.msra.mxu0 0.0
        %5998 = vmatprep.subr.mxu0 0.0
        %5999 = vmatpush1.msra.mxu0 0.0
        %6000 = vmatprep.subr.mxu0 0.0
        %6001 = vmatpush1.msra.mxu0 0.0
        %6002 = vmatprep.subr.mxu0 0.0
        %6003 = vmatpush1.msra.mxu0 0.0
        %6004 = vmatprep.subr.mxu0 0.0
        %6005 = vmatpush1.msra.mxu0 0.0
        %6006 = vmatprep.subr.mxu0 0.0
        %6007 = vmatpush1.msra.mxu0 0.0
        %6008 = vmatprep.subr.mxu0 0.0
        %6009 = vmatpush1.msra.mxu0 0.0
        %6010 = vmatprep.subr.mxu0 0.0
        %6011 = vmatpush1.msra.mxu0 0.0
        %6012 = vmatprep.subr.mxu0 0.0
        %6013 = vmatpush1.msra.mxu0 0.0
        %6014 = vmatprep.subr.mxu0 0.0
        %6015 = vmatpush1.msra.mxu0 0.0
        %6016 = vmatprep.subr.mxu0 0.0
        %6017 = vmatpush1.msra.mxu0 0.0
        %6018 = vmatprep.mubr.f32.mxu0 0.0
        %v6019 = vand.u32 %v315, 4294901760
        %6020 = vmatmul.mubr.f32.gmra.mrb[0].mxu0 %v6019
        %v6021 = vpop.f32.mrb[0].mxu0
        %v6022 = vadd.f32 %v5941, %v6021
        %v6023 = vpop.f32.mrb[0].mxu0
        %6024 = vdwg.mxu0
        %6025 = vmatprep.subr.mxu0 0.0
        %v6026 = vand.u32 %v5865, 4294901760
        %v6027 = vsub.f32 %v5865, %v6026
        %6028 = vmatpush1.msra.mxu0 %v6027
        %6029 = vmatprep.subr.mxu0 0.0
        %v6030 = vand.u32 %v5866, 4294901760
        %v6031 = vsub.f32 %v5866, %v6030
        %6032 = vmatpush1.msra.mxu0 %v6031
        %6033 = vmatprep.subr.mxu0 0.0
        %6034 = vmatpush1.msra.mxu0 0.0
        %6035 = vmatprep.subr.mxu0 0.0
        %6036 = vmatpush1.msra.mxu0 0.0
        %6037 = vmatprep.subr.mxu0 0.0
        %6038 = vmatpush1.msra.mxu0 0.0
        %6039 = vmatprep.subr.mxu0 0.0
        %6040 = vmatpush1.msra.mxu0 0.0
        %6041 = vmatprep.subr.mxu0 0.0
        %6042 = vmatpush1.msra.mxu0 0.0
        %6043 = vmatprep.subr.mxu0 0.0
        %6044 = vmatpush1.msra.mxu0 0.0
        %6045 = vmatprep.subr.mxu0 0.0
        %6046 = vmatpush1.msra.mxu0 0.0
        %6047 = vmatprep.subr.mxu0 0.0
        %6048 = vmatpush1.msra.mxu0 0.0
        %6049 = vmatprep.subr.mxu0 0.0
        %6050 = vmatpush1.msra.mxu0 0.0
        %6051 = vmatprep.subr.mxu0 0.0
        %6052 = vmatpush1.msra.mxu0 0.0
        %6053 = vmatprep.subr.mxu0 0.0
        %6054 = vmatpush1.msra.mxu0 0.0
        %6055 = vmatprep.subr.mxu0 0.0
        %6056 = vmatpush1.msra.mxu0 0.0
        %6057 = vmatprep.subr.mxu0 0.0
        %6058 = vmatpush1.msra.mxu0 0.0
        %6059 = vmatprep.subr.mxu0 0.0
        %6060 = vmatpush1.msra.mxu0 0.0
        %6061 = vmatprep.subr.mxu0 0.0
        %6062 = vmatpush1.msra.mxu0 0.0
        %6063 = vmatprep.subr.mxu0 0.0
        %6064 = vmatpush1.msra.mxu0 0.0
        %6065 = vmatprep.subr.mxu0 0.0
        %6066 = vmatpush1.msra.mxu0 0.0
        %6067 = vmatprep.subr.mxu0 0.0
        %6068 = vmatpush1.msra.mxu0 0.0
        %6069 = vmatprep.subr.mxu0 0.0
        %6070 = vmatpush1.msra.mxu0 0.0
        %6071 = vmatprep.subr.mxu0 0.0
        %6072 = vmatpush1.msra.mxu0 0.0
        %6073 = vmatprep.subr.mxu0 0.0
        %6074 = vmatpush1.msra.mxu0 0.0
        %6075 = vmatprep.subr.mxu0 0.0
        %6076 = vmatpush1.msra.mxu0 0.0
        %6077 = vmatprep.subr.mxu0 0.0
        %6078 = vmatpush1.msra.mxu0 0.0
        %6079 = vmatprep.subr.mxu0 0.0
        %6080 = vmatpush1.msra.mxu0 0.0
        %6081 = vmatprep.subr.mxu0 0.0
        %6082 = vmatpush1.msra.mxu0 0.0
        %6083 = vmatprep.subr.mxu0 0.0
        %6084 = vmatpush1.msra.mxu0 0.0
        %6085 = vmatprep.subr.mxu0 0.0
        %6086 = vmatpush1.msra.mxu0 0.0
        %6087 = vmatprep.subr.mxu0 0.0
        %6088 = vmatpush1.msra.mxu0 0.0
        %6089 = vmatprep.subr.mxu0 0.0
        %6090 = vmatpush1.msra.mxu0 0.0
        %6091 = vmatprep.subr.mxu0 0.0
        %6092 = vmatpush1.msra.mxu0 0.0
        %6093 = vmatprep.mubr.f32.mxu0 0.0
        %v6094 = vand.u32 %v315, 4294901760
        %v6095 = vsub.f32 %v315, %v6094
        %6096 = vmatmul.mubr.f32.gmra.mrb[0].mxu0 %v6095
        %v6097 = vpop.f32.mrb[0].mxu0
        %v6098 = vadd.f32 %v6022, %v6097
        %v6099 = vpop.f32.mrb[0].mxu0
        %6100 = vdwg.mxu0
        %6101 = vmatprep.subr.mxu0 0.0
        %v6102 = vand.u32 %v5865, 4294901760
        %6103 = vmatpush1.msra.mxu0 %v6102
        %6104 = vmatprep.subr.mxu0 0.0
        %v6105 = vand.u32 %v5866, 4294901760
        %6106 = vmatpush1.msra.mxu0 %v6105
        %6107 = vmatprep.subr.mxu0 0.0
        %6108 = vmatpush1.msra.mxu0 0.0
        %6109 = vmatprep.subr.mxu0 0.0
        %6110 = vmatpush1.msra.mxu0 0.0
        %6111 = vmatprep.subr.mxu0 0.0
        %6112 = vmatpush1.msra.mxu0 0.0
        %6113 = vmatprep.subr.mxu0 0.0
        %6114 = vmatpush1.msra.mxu0 0.0
        %6115 = vmatprep.subr.mxu0 0.0
        %6116 = vmatpush1.msra.mxu0 0.0
        %6117 = vmatprep.subr.mxu0 0.0
        %6118 = vmatpush1.msra.mxu0 0.0
        %6119 = vmatprep.subr.mxu0 0.0
        %6120 = vmatpush1.msra.mxu0 0.0
        %6121 = vmatprep.subr.mxu0 0.0
        %6122 = vmatpush1.msra.mxu0 0.0
        %6123 = vmatprep.subr.mxu0 0.0
        %6124 = vmatpush1.msra.mxu0 0.0
        %6125 = vmatprep.subr.mxu0 0.0
        %6126 = vmatpush1.msra.mxu0 0.0
        %6127 = vmatprep.subr.mxu0 0.0
        %6128 = vmatpush1.msra.mxu0 0.0
        %6129 = vmatprep.subr.mxu0 0.0
        %6130 = vmatpush1.msra.mxu0 0.0
        %6131 = vmatprep.subr.mxu0 0.0
        %6132 = vmatpush1.msra.mxu0 0.0
        %6133 = vmatprep.subr.mxu0 0.0
        %6134 = vmatpush1.msra.mxu0 0.0
        %6135 = vmatprep.subr.mxu0 0.0
        %6136 = vmatpush1.msra.mxu0 0.0
        %6137 = vmatprep.subr.mxu0 0.0
        %6138 = vmatpush1.msra.mxu0 0.0
        %6139 = vmatprep.subr.mxu0 0.0
        %6140 = vmatpush1.msra.mxu0 0.0
        %6141 = vmatprep.subr.mxu0 0.0
        %6142 = vmatpush1.msra.mxu0 0.0
        %6143 = vmatprep.subr.mxu0 0.0
        %6144 = vmatpush1.msra.mxu0 0.0
        %6145 = vmatprep.subr.mxu0 0.0
        %6146 = vmatpush1.msra.mxu0 0.0
        %6147 = vmatprep.subr.mxu0 0.0
        %6148 = vmatpush1.msra.mxu0 0.0
        %6149 = vmatprep.subr.mxu0 0.0
        %6150 = vmatpush1.msra.mxu0 0.0
        %6151 = vmatprep.subr.mxu0 0.0
        %6152 = vmatpush1.msra.mxu0 0.0
        %6153 = vmatprep.subr.mxu0 0.0
        %6154 = vmatpush1.msra.mxu0 0.0
        %6155 = vmatprep.subr.mxu0 0.0
        %6156 = vmatpush1.msra.mxu0 0.0
        %6157 = vmatprep.subr.mxu0 0.0
        %6158 = vmatpush1.msra.mxu0 0.0
        %6159 = vmatprep.subr.mxu0 0.0
        %6160 = vmatpush1.msra.mxu0 0.0
        %6161 = vmatprep.subr.mxu0 0.0
        %6162 = vmatpush1.msra.mxu0 0.0
        %6163 = vmatprep.subr.mxu0 0.0
        %6164 = vmatpush1.msra.mxu0 0.0
        %6165 = vmatprep.subr.mxu0 0.0
        %6166 = vmatpush1.msra.mxu0 0.0
        %6167 = vmatprep.mubr.f32.mxu0 0.0
        %v6168 = vand.u32 %v315, 4294901760
        %v6169 = vsub.f32 %v315, %v6168
        %v6170 = vand.u32 %v6169, 4294901760
        %6171 = vmatmul.mubr.f32.gmra.mrb[0].mxu0 %v6170
        %v6172 = vpop.f32.mrb[0].mxu0
        %v6173 = vadd.f32 %v6098, %v6172
        %v6174 = vpop.f32.mrb[0].mxu0
        %6175 = vdwg.mxu0
        %6176 = vmatprep.subr.mxu0 0.0
        %v6177 = vand.u32 %v5865, 4294901760
        %v6178 = vsub.f32 %v5865, %v6177
        %v6179 = vand.u32 %v6178, 4294901760
        %6180 = vmatpush1.msra.mxu0 %v6179
        %6181 = vmatprep.subr.mxu0 0.0
        %v6182 = vand.u32 %v5866, 4294901760
        %v6183 = vsub.f32 %v5866, %v6182
        %v6184 = vand.u32 %v6183, 4294901760
        %6185 = vmatpush1.msra.mxu0 %v6184
        %6186 = vmatprep.subr.mxu0 0.0
        %6187 = vmatpush1.msra.mxu0 0.0
        %6188 = vmatprep.subr.mxu0 0.0
        %6189 = vmatpush1.msra.mxu0 0.0
        %6190 = vmatprep.subr.mxu0 0.0
        %6191 = vmatpush1.msra.mxu0 0.0
        %6192 = vmatprep.subr.mxu0 0.0
        %6193 = vmatpush1.msra.mxu0 0.0
        %6194 = vmatprep.subr.mxu0 0.0
        %6195 = vmatpush1.msra.mxu0 0.0
        %6196 = vmatprep.subr.mxu0 0.0
        %6197 = vmatpush1.msra.mxu0 0.0
        %6198 = vmatprep.subr.mxu0 0.0
        %6199 = vmatpush1.msra.mxu0 0.0
        %6200 = vmatprep.subr.mxu0 0.0
        %6201 = vmatpush1.msra.mxu0 0.0
        %6202 = vmatprep.subr.mxu0 0.0
        %6203 = vmatpush1.msra.mxu0 0.0
        %6204 = vmatprep.subr.mxu0 0.0
        %6205 = vmatpush1.msra.mxu0 0.0
        %6206 = vmatprep.subr.mxu0 0.0
        %6207 = vmatpush1.msra.mxu0 0.0
        %6208 = vmatprep.subr.mxu0 0.0
        %6209 = vmatpush1.msra.mxu0 0.0
        %6210 = vmatprep.subr.mxu0 0.0
        %6211 = vmatpush1.msra.mxu0 0.0
        %6212 = vmatprep.subr.mxu0 0.0
        %6213 = vmatpush1.msra.mxu0 0.0
        %6214 = vmatprep.subr.mxu0 0.0
        %6215 = vmatpush1.msra.mxu0 0.0
        %6216 = vmatprep.subr.mxu0 0.0
        %6217 = vmatpush1.msra.mxu0 0.0
        %6218 = vmatprep.subr.mxu0 0.0
        %6219 = vmatpush1.msra.mxu0 0.0
        %6220 = vmatprep.subr.mxu0 0.0
        %6221 = vmatpush1.msra.mxu0 0.0
        %6222 = vmatprep.subr.mxu0 0.0
        %6223 = vmatpush1.msra.mxu0 0.0
        %6224 = vmatprep.subr.mxu0 0.0
        %6225 = vmatpush1.msra.mxu0 0.0
        %6226 = vmatprep.subr.mxu0 0.0
        %6227 = vmatpush1.msra.mxu0 0.0
        %6228 = vmatprep.subr.mxu0 0.0
        %6229 = vmatpush1.msra.mxu0 0.0
        %6230 = vmatprep.subr.mxu0 0.0
        %6231 = vmatpush1.msra.mxu0 0.0
        %6232 = vmatprep.subr.mxu0 0.0
        %6233 = vmatpush1.msra.mxu0 0.0
        %6234 = vmatprep.subr.mxu0 0.0
        %6235 = vmatpush1.msra.mxu0 0.0
        %6236 = vmatprep.subr.mxu0 0.0
        %6237 = vmatpush1.msra.mxu0 0.0
        %6238 = vmatprep.subr.mxu0 0.0
        %6239 = vmatpush1.msra.mxu0 0.0
        %6240 = vmatprep.subr.mxu0 0.0
        %6241 = vmatpush1.msra.mxu0 0.0
        %6242 = vmatprep.subr.mxu0 0.0
        %6243 = vmatpush1.msra.mxu0 0.0
        %6244 = vmatprep.subr.mxu0 0.0
        %6245 = vmatpush1.msra.mxu0 0.0
        %6246 = vmatprep.mubr.f32.mxu0 0.0
        %v6247 = vand.u32 %v315, 4294901760
        %6248 = vmatmul.mubr.f32.gmra.mrb[0].mxu0 %v6247
        %v6249 = vpop.f32.mrb[0].mxu0
        %v6250 = vadd.f32 %v6173, %v6249
        %v6251 = vpop.f32.mrb[0].mxu0
        %6252 = vdwg.mxu0
        %6253 = vmatprep.subr.mxu0 0.0
        %v6254 = vand.u32 %v5865, 4294901760
        %6255 = vmatpush1.msra.mxu0 %v6254
        %6256 = vmatprep.subr.mxu0 0.0
        %v6257 = vand.u32 %v5866, 4294901760
        %6258 = vmatpush1.msra.mxu0 %v6257
        %6259 = vmatprep.subr.mxu0 0.0
        %6260 = vmatpush1.msra.mxu0 0.0
        %6261 = vmatprep.subr.mxu0 0.0
        %6262 = vmatpush1.msra.mxu0 0.0
        %6263 = vmatprep.subr.mxu0 0.0
        %6264 = vmatpush1.msra.mxu0 0.0
        %6265 = vmatprep.subr.mxu0 0.0
        %6266 = vmatpush1.msra.mxu0 0.0
        %6267 = vmatprep.subr.mxu0 0.0
        %6268 = vmatpush1.msra.mxu0 0.0
        %6269 = vmatprep.subr.mxu0 0.0
        %6270 = vmatpush1.msra.mxu0 0.0
        %6271 = vmatprep.subr.mxu0 0.0
        %6272 = vmatpush1.msra.mxu0 0.0
        %6273 = vmatprep.subr.mxu0 0.0
        %6274 = vmatpush1.msra.mxu0 0.0
        %6275 = vmatprep.subr.mxu0 0.0
        %6276 = vmatpush1.msra.mxu0 0.0
        %6277 = vmatprep.subr.mxu0 0.0
        %6278 = vmatpush1.msra.mxu0 0.0
        %6279 = vmatprep.subr.mxu0 0.0
        %6280 = vmatpush1.msra.mxu0 0.0
        %6281 = vmatprep.subr.mxu0 0.0
        %6282 = vmatpush1.msra.mxu0 0.0
        %6283 = vmatprep.subr.mxu0 0.0
        %6284 = vmatpush1.msra.mxu0 0.0
        %6285 = vmatprep.subr.mxu0 0.0
        %6286 = vmatpush1.msra.mxu0 0.0
        %6287 = vmatprep.subr.mxu0 0.0
        %6288 = vmatpush1.msra.mxu0 0.0
        %6289 = vmatprep.subr.mxu0 0.0
        %6290 = vmatpush1.msra.mxu0 0.0
        %6291 = vmatprep.subr.mxu0 0.0
        %6292 = vmatpush1.msra.mxu0 0.0
        %6293 = vmatprep.subr.mxu0 0.0
        %6294 = vmatpush1.msra.mxu0 0.0
        %6295 = vmatprep.subr.mxu0 0.0
        %6296 = vmatpush1.msra.mxu0 0.0
        %6297 = vmatprep.subr.mxu0 0.0
        %6298 = vmatpush1.msra.mxu0 0.0
        %6299 = vmatprep.subr.mxu0 0.0
        %6300 = vmatpush1.msra.mxu0 0.0
        %6301 = vmatprep.subr.mxu0 0.0
        %6302 = vmatpush1.msra.mxu0 0.0
        %6303 = vmatprep.subr.mxu0 0.0
        %6304 = vmatpush1.msra.mxu0 0.0
        %6305 = vmatprep.subr.mxu0 0.0
        %6306 = vmatpush1.msra.mxu0 0.0
        %6307 = vmatprep.subr.mxu0 0.0
        %6308 = vmatpush1.msra.mxu0 0.0
        %6309 = vmatprep.subr.mxu0 0.0
        %6310 = vmatpush1.msra.mxu0 0.0
        %6311 = vmatprep.subr.mxu0 0.0
        %6312 = vmatpush1.msra.mxu0 0.0
        %6313 = vmatprep.subr.mxu0 0.0
        %6314 = vmatpush1.msra.mxu0 0.0
        %6315 = vmatprep.subr.mxu0 0.0
        %6316 = vmatpush1.msra.mxu0 0.0
        %6317 = vmatprep.subr.mxu0 0.0
        %6318 = vmatpush1.msra.mxu0 0.0
        %6319 = vmatprep.mubr.f32.mxu0 0.0
        %v6320 = vand.u32 %v315, 4294901760
        %6321 = vmatmul.mubr.f32.gmra.mrb[0].mxu0 %v6320
        %v6322 = vpop.f32.mrb[0].mxu0
        %v6323 = vadd.f32 %v6250, %v6322
        %v6324 = vpop.f32.mrb[0].mxu0
        %6325 = vdwg.mxu0
        %v6327 = vsel %vm313, %v6323, 0
        %6329 = vmatprep.subr.mxu0 0.0
        %v6330 = vand.u32 %v306, 4294901760
        %6331 = vmatpush1.msra.mxu0 %v6330
        %6332 = vmatprep.subr.mxu0 0.0
        %v6333 = vand.u32 %v307, 4294901760
        %6334 = vmatpush1.msra.mxu0 %v6333
        %6335 = vmatprep.subr.mxu0 0.0
        %6336 = vmatpush1.msra.mxu0 0.0
        %6337 = vmatprep.subr.mxu0 0.0
        %6338 = vmatpush1.msra.mxu0 0.0
        %6339 = vmatprep.subr.mxu0 0.0
        %6340 = vmatpush1.msra.mxu0 0.0
        %6341 = vmatprep.subr.mxu0 0.0
        %6342 = vmatpush1.msra.mxu0 0.0
        %6343 = vmatprep.subr.mxu0 0.0
        %6344 = vmatpush1.msra.mxu0 0.0
        %6345 = vmatprep.subr.mxu0 0.0
        %6346 = vmatpush1.msra.mxu0 0.0
        %6347 = vmatprep.subr.mxu0 0.0
        %6348 = vmatpush1.msra.mxu0 0.0
        %6349 = vmatprep.subr.mxu0 0.0
        %6350 = vmatpush1.msra.mxu0 0.0
        %6351 = vmatprep.subr.mxu0 0.0
        %6352 = vmatpush1.msra.mxu0 0.0
        %6353 = vmatprep.subr.mxu0 0.0
        %6354 = vmatpush1.msra.mxu0 0.0
        %6355 = vmatprep.subr.mxu0 0.0
        %6356 = vmatpush1.msra.mxu0 0.0
        %6357 = vmatprep.subr.mxu0 0.0
        %6358 = vmatpush1.msra.mxu0 0.0
        %6359 = vmatprep.subr.mxu0 0.0
        %6360 = vmatpush1.msra.mxu0 0.0
        %6361 = vmatprep.subr.mxu0 0.0
        %6362 = vmatpush1.msra.mxu0 0.0
        %6363 = vmatprep.subr.mxu0 0.0
        %6364 = vmatpush1.msra.mxu0 0.0
        %6365 = vmatprep.subr.mxu0 0.0
        %6366 = vmatpush1.msra.mxu0 0.0
        %6367 = vmatprep.subr.mxu0 0.0
        %6368 = vmatpush1.msra.mxu0 0.0
        %6369 = vmatprep.subr.mxu0 0.0
        %6370 = vmatpush1.msra.mxu0 0.0
        %6371 = vmatprep.subr.mxu0 0.0
        %6372 = vmatpush1.msra.mxu0 0.0
        %6373 = vmatprep.subr.mxu0 0.0
        %6374 = vmatpush1.msra.mxu0 0.0
        %6375 = vmatprep.subr.mxu0 0.0
        %6376 = vmatpush1.msra.mxu0 0.0
        %6377 = vmatprep.subr.mxu0 0.0
        %6378 = vmatpush1.msra.mxu0 0.0
        %6379 = vmatprep.subr.mxu0 0.0
        %6380 = vmatpush1.msra.mxu0 0.0
        %6381 = vmatprep.subr.mxu0 0.0
        %6382 = vmatpush1.msra.mxu0 0.0
        %6383 = vmatprep.subr.mxu0 0.0
        %6384 = vmatpush1.msra.mxu0 0.0
        %6385 = vmatprep.subr.mxu0 0.0
        %6386 = vmatpush1.msra.mxu0 0.0
        %6387 = vmatprep.subr.mxu0 0.0
        %6388 = vmatpush1.msra.mxu0 0.0
        %6389 = vmatprep.subr.mxu0 0.0
        %6390 = vmatpush1.msra.mxu0 0.0
        %6391 = vmatprep.subr.mxu0 0.0
        %6392 = vmatpush1.msra.mxu0 0.0
        %6393 = vmatprep.subr.mxu0 0.0
        %6394 = vmatpush1.msra.mxu0 0.0
        %6395 = vmatprep.mubr.f32.mxu0 0.0
        %v6396 = vand.u32 %v6327, 4294901760
        %v6397 = vsub.f32 %v6327, %v6396
        %v6398 = vand.u32 %v6397, 4294901760
        %v6399 = vsub.f32 %v6397, %v6398
        %v6400 = vand.u32 %v6399, 4294901760
        %6401 = vmatmul.mubr.f32.gmra.mrb[0].mxu0 %v6400
        %v6402 = vpop.f32.mrb[0].mxu0
        %v6403 = vadd.f32 0.0, %v6402
        %v6404 = vpop.f32.mrb[0].mxu0
        %6405 = vdwg.mxu0
        %6406 = vmatprep.subr.mxu0 0.0
        %v6407 = vand.u32 %v306, 4294901760
        %v6408 = vsub.f32 %v306, %v6407
        %v6409 = vand.u32 %v6408, 4294901760
        %v6410 = vsub.f32 %v6408, %v6409
        %v6411 = vand.u32 %v6410, 4294901760
        %6412 = vmatpush1.msra.mxu0 %v6411
        %6413 = vmatprep.subr.mxu0 0.0
        %v6414 = vand.u32 %v307, 4294901760
        %v6415 = vsub.f32 %v307, %v6414
        %v6416 = vand.u32 %v6415, 4294901760
        %v6417 = vsub.f32 %v6415, %v6416
        %v6418 = vand.u32 %v6417, 4294901760
        %6419 = vmatpush1.msra.mxu0 %v6418
        %6420 = vmatprep.subr.mxu0 0.0
        %6421 = vmatpush1.msra.mxu0 0.0
        %6422 = vmatprep.subr.mxu0 0.0
        %6423 = vmatpush1.msra.mxu0 0.0
        %6424 = vmatprep.subr.mxu0 0.0
        %6425 = vmatpush1.msra.mxu0 0.0
        %6426 = vmatprep.subr.mxu0 0.0
        %6427 = vmatpush1.msra.mxu0 0.0
        %6428 = vmatprep.subr.mxu0 0.0
        %6429 = vmatpush1.msra.mxu0 0.0
        %6430 = vmatprep.subr.mxu0 0.0
        %6431 = vmatpush1.msra.mxu0 0.0
        %6432 = vmatprep.subr.mxu0 0.0
        %6433 = vmatpush1.msra.mxu0 0.0
        %6434 = vmatprep.subr.mxu0 0.0
        %6435 = vmatpush1.msra.mxu0 0.0
        %6436 = vmatprep.subr.mxu0 0.0
        %6437 = vmatpush1.msra.mxu0 0.0
        %6438 = vmatprep.subr.mxu0 0.0
        %6439 = vmatpush1.msra.mxu0 0.0
        %6440 = vmatprep.subr.mxu0 0.0
        %6441 = vmatpush1.msra.mxu0 0.0
        %6442 = vmatprep.subr.mxu0 0.0
        %6443 = vmatpush1.msra.mxu0 0.0
        %6444 = vmatprep.subr.mxu0 0.0
        %6445 = vmatpush1.msra.mxu0 0.0
        %6446 = vmatprep.subr.mxu0 0.0
        %6447 = vmatpush1.msra.mxu0 0.0
        %6448 = vmatprep.subr.mxu0 0.0
        %6449 = vmatpush1.msra.mxu0 0.0
        %6450 = vmatprep.subr.mxu0 0.0
        %6451 = vmatpush1.msra.mxu0 0.0
        %6452 = vmatprep.subr.mxu0 0.0
        %6453 = vmatpush1.msra.mxu0 0.0
        %6454 = vmatprep.subr.mxu0 0.0
        %6455 = vmatpush1.msra.mxu0 0.0
        %6456 = vmatprep.subr.mxu0 0.0
        %6457 = vmatpush1.msra.mxu0 0.0
        %6458 = vmatprep.subr.mxu0 0.0
        %6459 = vmatpush1.msra.mxu0 0.0
        %6460 = vmatprep.subr.mxu0 0.0
        %6461 = vmatpush1.msra.mxu0 0.0
        %6462 = vmatprep.subr.mxu0 0.0
        %6463 = vmatpush1.msra.mxu0 0.0
        %6464 = vmatprep.subr.mxu0 0.0
        %6465 = vmatpush1.msra.mxu0 0.0
        %6466 = vmatprep.subr.mxu0 0.0
        %6467 = vmatpush1.msra.mxu0 0.0
        %6468 = vmatprep.subr.mxu0 0.0
        %6469 = vmatpush1.msra.mxu0 0.0
        %6470 = vmatprep.subr.mxu0 0.0
        %6471 = vmatpush1.msra.mxu0 0.0
        %6472 = vmatprep.subr.mxu0 0.0
        %6473 = vmatpush1.msra.mxu0 0.0
        %6474 = vmatprep.subr.mxu0 0.0
        %6475 = vmatpush1.msra.mxu0 0.0
        %6476 = vmatprep.subr.mxu0 0.0
        %6477 = vmatpush1.msra.mxu0 0.0
        %6478 = vmatprep.subr.mxu0 0.0
        %6479 = vmatpush1.msra.mxu0 0.0
        %6480 = vmatprep.mubr.f32.mxu0 0.0
        %v6481 = vand.u32 %v6327, 4294901760
        %6482 = vmatmul.mubr.f32.gmra.mrb[0].mxu0 %v6481
        %v6483 = vpop.f32.mrb[0].mxu0
        %v6484 = vadd.f32 %v6403, %v6483
        %v6485 = vpop.f32.mrb[0].mxu0
        %6486 = vdwg.mxu0
        %6487 = vmatprep.subr.mxu0 0.0
        %v6488 = vand.u32 %v306, 4294901760
        %v6489 = vsub.f32 %v306, %v6488
        %6490 = vmatpush1.msra.mxu0 %v6489
        %6491 = vmatprep.subr.mxu0 0.0
        %v6492 = vand.u32 %v307, 4294901760
        %v6493 = vsub.f32 %v307, %v6492
        %6494 = vmatpush1.msra.mxu0 %v6493
        %6495 = vmatprep.subr.mxu0 0.0
        %6496 = vmatpush1.msra.mxu0 0.0
        %6497 = vmatprep.subr.mxu0 0.0
        %6498 = vmatpush1.msra.mxu0 0.0
        %6499 = vmatprep.subr.mxu0 0.0
        %6500 = vmatpush1.msra.mxu0 0.0
        %6501 = vmatprep.subr.mxu0 0.0
        %6502 = vmatpush1.msra.mxu0 0.0
        %6503 = vmatprep.subr.mxu0 0.0
        %6504 = vmatpush1.msra.mxu0 0.0
        %6505 = vmatprep.subr.mxu0 0.0
        %6506 = vmatpush1.msra.mxu0 0.0
        %6507 = vmatprep.subr.mxu0 0.0
        %6508 = vmatpush1.msra.mxu0 0.0
        %6509 = vmatprep.subr.mxu0 0.0
        %6510 = vmatpush1.msra.mxu0 0.0
        %6511 = vmatprep.subr.mxu0 0.0
        %6512 = vmatpush1.msra.mxu0 0.0
        %6513 = vmatprep.subr.mxu0 0.0
        %6514 = vmatpush1.msra.mxu0 0.0
        %6515 = vmatprep.subr.mxu0 0.0
        %6516 = vmatpush1.msra.mxu0 0.0
        %6517 = vmatprep.subr.mxu0 0.0
        %6518 = vmatpush1.msra.mxu0 0.0
        %6519 = vmatprep.subr.mxu0 0.0
        %6520 = vmatpush1.msra.mxu0 0.0
        %6521 = vmatprep.subr.mxu0 0.0
        %6522 = vmatpush1.msra.mxu0 0.0
        %6523 = vmatprep.subr.mxu0 0.0
        %6524 = vmatpush1.msra.mxu0 0.0
        %6525 = vmatprep.subr.mxu0 0.0
        %6526 = vmatpush1.msra.mxu0 0.0
        %6527 = vmatprep.subr.mxu0 0.0
        %6528 = vmatpush1.msra.mxu0 0.0
        %6529 = vmatprep.subr.mxu0 0.0
        %6530 = vmatpush1.msra.mxu0 0.0
        %6531 = vmatprep.subr.mxu0 0.0
        %6532 = vmatpush1.msra.mxu0 0.0
        %6533 = vmatprep.subr.mxu0 0.0
        %6534 = vmatpush1.msra.mxu0 0.0
        %6535 = vmatprep.subr.mxu0 0.0
        %6536 = vmatpush1.msra.mxu0 0.0
        %6537 = vmatprep.subr.mxu0 0.0
        %6538 = vmatpush1.msra.mxu0 0.0
        %6539 = vmatprep.subr.mxu0 0.0
        %6540 = vmatpush1.msra.mxu0 0.0
        %6541 = vmatprep.subr.mxu0 0.0
        %6542 = vmatpush1.msra.mxu0 0.0
        %6543 = vmatprep.subr.mxu0 0.0
        %6544 = vmatpush1.msra.mxu0 0.0
        %6545 = vmatprep.subr.mxu0 0.0
        %6546 = vmatpush1.msra.mxu0 0.0
        %6547 = vmatprep.subr.mxu0 0.0
        %6548 = vmatpush1.msra.mxu0 0.0
        %6549 = vmatprep.subr.mxu0 0.0
        %6550 = vmatpush1.msra.mxu0 0.0
        %6551 = vmatprep.subr.mxu0 0.0
        %6552 = vmatpush1.msra.mxu0 0.0
        %6553 = vmatprep.subr.mxu0 0.0
        %6554 = vmatpush1.msra.mxu0 0.0
        %6555 = vmatprep.mubr.f32.mxu0 0.0
        %v6556 = vand.u32 %v6327, 4294901760
        %v6557 = vsub.f32 %v6327, %v6556
        %6558 = vmatmul.mubr.f32.gmra.mrb[0].mxu0 %v6557
        %v6559 = vpop.f32.mrb[0].mxu0
        %v6560 = vadd.f32 %v6484, %v6559
        %v6561 = vpop.f32.mrb[0].mxu0
        %6562 = vdwg.mxu0
        %6563 = vmatprep.subr.mxu0 0.0
        %v6564 = vand.u32 %v306, 4294901760
        %6565 = vmatpush1.msra.mxu0 %v6564
        %6566 = vmatprep.subr.mxu0 0.0
        %v6567 = vand.u32 %v307, 4294901760
        %6568 = vmatpush1.msra.mxu0 %v6567
        %6569 = vmatprep.subr.mxu0 0.0
        %6570 = vmatpush1.msra.mxu0 0.0
        %6571 = vmatprep.subr.mxu0 0.0
        %6572 = vmatpush1.msra.mxu0 0.0
        %6573 = vmatprep.subr.mxu0 0.0
        %6574 = vmatpush1.msra.mxu0 0.0
        %6575 = vmatprep.subr.mxu0 0.0
        %6576 = vmatpush1.msra.mxu0 0.0
        %6577 = vmatprep.subr.mxu0 0.0
        %6578 = vmatpush1.msra.mxu0 0.0
        %6579 = vmatprep.subr.mxu0 0.0
        %6580 = vmatpush1.msra.mxu0 0.0
        %6581 = vmatprep.subr.mxu0 0.0
        %6582 = vmatpush1.msra.mxu0 0.0
        %6583 = vmatprep.subr.mxu0 0.0
        %6584 = vmatpush1.msra.mxu0 0.0
        %6585 = vmatprep.subr.mxu0 0.0
        %6586 = vmatpush1.msra.mxu0 0.0
        %6587 = vmatprep.subr.mxu0 0.0
        %6588 = vmatpush1.msra.mxu0 0.0
        %6589 = vmatprep.subr.mxu0 0.0
        %6590 = vmatpush1.msra.mxu0 0.0
        %6591 = vmatprep.subr.mxu0 0.0
        %6592 = vmatpush1.msra.mxu0 0.0
        %6593 = vmatprep.subr.mxu0 0.0
        %6594 = vmatpush1.msra.mxu0 0.0
        %6595 = vmatprep.subr.mxu0 0.0
        %6596 = vmatpush1.msra.mxu0 0.0
        %6597 = vmatprep.subr.mxu0 0.0
        %6598 = vmatpush1.msra.mxu0 0.0
        %6599 = vmatprep.subr.mxu0 0.0
        %6600 = vmatpush1.msra.mxu0 0.0
        %6601 = vmatprep.subr.mxu0 0.0
        %6602 = vmatpush1.msra.mxu0 0.0
        %6603 = vmatprep.subr.mxu0 0.0
        %6604 = vmatpush1.msra.mxu0 0.0
        %6605 = vmatprep.subr.mxu0 0.0
        %6606 = vmatpush1.msra.mxu0 0.0
        %6607 = vmatprep.subr.mxu0 0.0
        %6608 = vmatpush1.msra.mxu0 0.0
        %6609 = vmatprep.subr.mxu0 0.0
        %6610 = vmatpush1.msra.mxu0 0.0
        %6611 = vmatprep.subr.mxu0 0.0
        %6612 = vmatpush1.msra.mxu0 0.0
        %6613 = vmatprep.subr.mxu0 0.0
        %6614 = vmatpush1.msra.mxu0 0.0
        %6615 = vmatprep.subr.mxu0 0.0
        %6616 = vmatpush1.msra.mxu0 0.0
        %6617 = vmatprep.subr.mxu0 0.0
        %6618 = vmatpush1.msra.mxu0 0.0
        %6619 = vmatprep.subr.mxu0 0.0
        %6620 = vmatpush1.msra.mxu0 0.0
        %6621 = vmatprep.subr.mxu0 0.0
        %6622 = vmatpush1.msra.mxu0 0.0
        %6623 = vmatprep.subr.mxu0 0.0
        %6624 = vmatpush1.msra.mxu0 0.0
        %6625 = vmatprep.subr.mxu0 0.0
        %6626 = vmatpush1.msra.mxu0 0.0
        %6627 = vmatprep.subr.mxu0 0.0
        %6628 = vmatpush1.msra.mxu0 0.0
        %6629 = vmatprep.mubr.f32.mxu0 0.0
        %v6630 = vand.u32 %v6327, 4294901760
        %v6631 = vsub.f32 %v6327, %v6630
        %v6632 = vand.u32 %v6631, 4294901760
        %6633 = vmatmul.mubr.f32.gmra.mrb[0].mxu0 %v6632
        %v6634 = vpop.f32.mrb[0].mxu0
        %v6635 = vadd.f32 %v6560, %v6634
        %v6636 = vpop.f32.mrb[0].mxu0
        %6637 = vdwg.mxu0
        %6638 = vmatprep.subr.mxu0 0.0
        %v6639 = vand.u32 %v306, 4294901760
        %v6640 = vsub.f32 %v306, %v6639
        %v6641 = vand.u32 %v6640, 4294901760
        %6642 = vmatpush1.msra.mxu0 %v6641
        %6643 = vmatprep.subr.mxu0 0.0
        %v6644 = vand.u32 %v307, 4294901760
        %v6645 = vsub.f32 %v307, %v6644
        %v6646 = vand.u32 %v6645, 4294901760
        %6647 = vmatpush1.msra.mxu0 %v6646
        %6648 = vmatprep.subr.mxu0 0.0
        %6649 = vmatpush1.msra.mxu0 0.0
        %6650 = vmatprep.subr.mxu0 0.0
        %6651 = vmatpush1.msra.mxu0 0.0
        %6652 = vmatprep.subr.mxu0 0.0
        %6653 = vmatpush1.msra.mxu0 0.0
        %6654 = vmatprep.subr.mxu0 0.0
        %6655 = vmatpush1.msra.mxu0 0.0
        %6656 = vmatprep.subr.mxu0 0.0
        %6657 = vmatpush1.msra.mxu0 0.0
        %6658 = vmatprep.subr.mxu0 0.0
        %6659 = vmatpush1.msra.mxu0 0.0
        %6660 = vmatprep.subr.mxu0 0.0
        %6661 = vmatpush1.msra.mxu0 0.0
        %6662 = vmatprep.subr.mxu0 0.0
        %6663 = vmatpush1.msra.mxu0 0.0
        %6664 = vmatprep.subr.mxu0 0.0
        %6665 = vmatpush1.msra.mxu0 0.0
        %6666 = vmatprep.subr.mxu0 0.0
        %6667 = vmatpush1.msra.mxu0 0.0
        %6668 = vmatprep.subr.mxu0 0.0
        %6669 = vmatpush1.msra.mxu0 0.0
        %6670 = vmatprep.subr.mxu0 0.0
        %6671 = vmatpush1.msra.mxu0 0.0
        %6672 = vmatprep.subr.mxu0 0.0
        %6673 = vmatpush1.msra.mxu0 0.0
        %6674 = vmatprep.subr.mxu0 0.0
        %6675 = vmatpush1.msra.mxu0 0.0
        %6676 = vmatprep.subr.mxu0 0.0
        %6677 = vmatpush1.msra.mxu0 0.0
        %6678 = vmatprep.subr.mxu0 0.0
        %6679 = vmatpush1.msra.mxu0 0.0
        %6680 = vmatprep.subr.mxu0 0.0
        %6681 = vmatpush1.msra.mxu0 0.0
        %6682 = vmatprep.subr.mxu0 0.0
        %6683 = vmatpush1.msra.mxu0 0.0
        %6684 = vmatprep.subr.mxu0 0.0
        %6685 = vmatpush1.msra.mxu0 0.0
        %6686 = vmatprep.subr.mxu0 0.0
        %6687 = vmatpush1.msra.mxu0 0.0
        %6688 = vmatprep.subr.mxu0 0.0
        %6689 = vmatpush1.msra.mxu0 0.0
        %6690 = vmatprep.subr.mxu0 0.0
        %6691 = vmatpush1.msra.mxu0 0.0
        %6692 = vmatprep.subr.mxu0 0.0
        %6693 = vmatpush1.msra.mxu0 0.0
        %6694 = vmatprep.subr.mxu0 0.0
        %6695 = vmatpush1.msra.mxu0 0.0
        %6696 = vmatprep.subr.mxu0 0.0
        %6697 = vmatpush1.msra.mxu0 0.0
        %6698 = vmatprep.subr.mxu0 0.0
        %6699 = vmatpush1.msra.mxu0 0.0
        %6700 = vmatprep.subr.mxu0 0.0
        %6701 = vmatpush1.msra.mxu0 0.0
        %6702 = vmatprep.subr.mxu0 0.0
        %6703 = vmatpush1.msra.mxu0 0.0
        %6704 = vmatprep.subr.mxu0 0.0
        %6705 = vmatpush1.msra.mxu0 0.0
        %6706 = vmatprep.subr.mxu0 0.0
        %6707 = vmatpush1.msra.mxu0 0.0
        %6708 = vmatprep.mubr.f32.mxu0 0.0
        %v6709 = vand.u32 %v6327, 4294901760
        %6710 = vmatmul.mubr.f32.gmra.mrb[0].mxu0 %v6709
        %v6711 = vpop.f32.mrb[0].mxu0
        %v6712 = vadd.f32 %v6635, %v6711
        %v6713 = vpop.f32.mrb[0].mxu0
        %6714 = vdwg.mxu0
        %6715 = vmatprep.subr.mxu0 0.0
        %v6716 = vand.u32 %v306, 4294901760
        %6717 = vmatpush1.msra.mxu0 %v6716
        %6718 = vmatprep.subr.mxu0 0.0
        %v6719 = vand.u32 %v307, 4294901760
        %6720 = vmatpush1.msra.mxu0 %v6719
        %6721 = vmatprep.subr.mxu0 0.0
        %6722 = vmatpush1.msra.mxu0 0.0
        %6723 = vmatprep.subr.mxu0 0.0
        %6724 = vmatpush1.msra.mxu0 0.0
        %6725 = vmatprep.subr.mxu0 0.0
        %6726 = vmatpush1.msra.mxu0 0.0
        %6727 = vmatprep.subr.mxu0 0.0
        %6728 = vmatpush1.msra.mxu0 0.0
        %6729 = vmatprep.subr.mxu0 0.0
        %6730 = vmatpush1.msra.mxu0 0.0
        %6731 = vmatprep.subr.mxu0 0.0
        %6732 = vmatpush1.msra.mxu0 0.0
        %6733 = vmatprep.subr.mxu0 0.0
        %6734 = vmatpush1.msra.mxu0 0.0
        %6735 = vmatprep.subr.mxu0 0.0
        %6736 = vmatpush1.msra.mxu0 0.0
        %6737 = vmatprep.subr.mxu0 0.0
        %6738 = vmatpush1.msra.mxu0 0.0
        %6739 = vmatprep.subr.mxu0 0.0
        %6740 = vmatpush1.msra.mxu0 0.0
        %6741 = vmatprep.subr.mxu0 0.0
        %6742 = vmatpush1.msra.mxu0 0.0
        %6743 = vmatprep.subr.mxu0 0.0
        %6744 = vmatpush1.msra.mxu0 0.0
        %6745 = vmatprep.subr.mxu0 0.0
        %6746 = vmatpush1.msra.mxu0 0.0
        %6747 = vmatprep.subr.mxu0 0.0
        %6748 = vmatpush1.msra.mxu0 0.0
        %6749 = vmatprep.subr.mxu0 0.0
        %6750 = vmatpush1.msra.mxu0 0.0
        %6751 = vmatprep.subr.mxu0 0.0
        %6752 = vmatpush1.msra.mxu0 0.0
        %6753 = vmatprep.subr.mxu0 0.0
        %6754 = vmatpush1.msra.mxu0 0.0
        %6755 = vmatprep.subr.mxu0 0.0
        %6756 = vmatpush1.msra.mxu0 0.0
        %6757 = vmatprep.subr.mxu0 0.0
        %6758 = vmatpush1.msra.mxu0 0.0
        %6759 = vmatprep.subr.mxu0 0.0
        %6760 = vmatpush1.msra.mxu0 0.0
        %6761 = vmatprep.subr.mxu0 0.0
        %6762 = vmatpush1.msra.mxu0 0.0
        %6763 = vmatprep.subr.mxu0 0.0
        %6764 = vmatpush1.msra.mxu0 0.0
        %6765 = vmatprep.subr.mxu0 0.0
        %6766 = vmatpush1.msra.mxu0 0.0
        %6767 = vmatprep.subr.mxu0 0.0
        %6768 = vmatpush1.msra.mxu0 0.0
        %6769 = vmatprep.subr.mxu0 0.0
        %6770 = vmatpush1.msra.mxu0 0.0
        %6771 = vmatprep.subr.mxu0 0.0
        %6772 = vmatpush1.msra.mxu0 0.0
        %6773 = vmatprep.subr.mxu0 0.0
        %6774 = vmatpush1.msra.mxu0 0.0
        %6775 = vmatprep.subr.mxu0 0.0
        %6776 = vmatpush1.msra.mxu0 0.0
        %6777 = vmatprep.subr.mxu0 0.0
        %6778 = vmatpush1.msra.mxu0 0.0
        %6779 = vmatprep.subr.mxu0 0.0
        %6780 = vmatpush1.msra.mxu0 0.0
        %6781 = vmatprep.mubr.f32.mxu0 0.0
        %v6782 = vand.u32 %v6327, 4294901760
        %6783 = vmatmul.mubr.f32.gmra.mrb[0].mxu0 %v6782
        %v6784 = vpop.f32.mrb[0].mxu0
        %v6785 = vadd.f32 %v6712, %v6784
        %v6786 = vpop.f32.mrb[0].mxu0
        %6787 = vdwg.mxu0
        %s6788 = scalar_lea.vmem %s294, 24 [#allocation5]
        %6789 = vst.msk [vmem:[%s6788] sm:$0xff] %vm1238, %v6785
        %6790 = vmatprep.subr.mxu0 0.0
        %v6791 = vand.u32 %v5865, 4294901760
        %6792 = vmatpush1.msra.mxu0 %v6791
        %6793 = vmatprep.subr.mxu0 0.0
        %v6794 = vand.u32 %v5866, 4294901760
        %6795 = vmatpush1.msra.mxu0 %v6794
        %6796 = vmatprep.subr.mxu0 0.0
        %6797 = vmatpush1.msra.mxu0 0.0
        %6798 = vmatprep.subr.mxu0 0.0
        %6799 = vmatpush1.msra.mxu0 0.0
        %6800 = vmatprep.subr.mxu0 0.0
        %6801 = vmatpush1.msra.mxu0 0.0
        %6802 = vmatprep.subr.mxu0 0.0
        %6803 = vmatpush1.msra.mxu0 0.0
        %6804 = vmatprep.subr.mxu0 0.0
        %6805 = vmatpush1.msra.mxu0 0.0
        %6806 = vmatprep.subr.mxu0 0.0
        %6807 = vmatpush1.msra.mxu0 0.0
        %6808 = vmatprep.subr.mxu0 0.0
        %6809 = vmatpush1.msra.mxu0 0.0
        %6810 = vmatprep.subr.mxu0 0.0
        %6811 = vmatpush1.msra.mxu0 0.0
        %6812 = vmatprep.subr.mxu0 0.0
        %6813 = vmatpush1.msra.mxu0 0.0
        %6814 = vmatprep.subr.mxu0 0.0
        %6815 = vmatpush1.msra.mxu0 0.0
        %6816 = vmatprep.subr.mxu0 0.0
        %6817 = vmatpush1.msra.mxu0 0.0
        %6818 = vmatprep.subr.mxu0 0.0
        %6819 = vmatpush1.msra.mxu0 0.0
        %6820 = vmatprep.subr.mxu0 0.0
        %6821 = vmatpush1.msra.mxu0 0.0
        %6822 = vmatprep.subr.mxu0 0.0
        %6823 = vmatpush1.msra.mxu0 0.0
        %6824 = vmatprep.subr.mxu0 0.0
        %6825 = vmatpush1.msra.mxu0 0.0
        %6826 = vmatprep.subr.mxu0 0.0
        %6827 = vmatpush1.msra.mxu0 0.0
        %6828 = vmatprep.subr.mxu0 0.0
        %6829 = vmatpush1.msra.mxu0 0.0
        %6830 = vmatprep.subr.mxu0 0.0
        %6831 = vmatpush1.msra.mxu0 0.0
        %6832 = vmatprep.subr.mxu0 0.0
        %6833 = vmatpush1.msra.mxu0 0.0
        %6834 = vmatprep.subr.mxu0 0.0
        %6835 = vmatpush1.msra.mxu0 0.0
        %6836 = vmatprep.subr.mxu0 0.0
        %6837 = vmatpush1.msra.mxu0 0.0
        %6838 = vmatprep.subr.mxu0 0.0
        %6839 = vmatpush1.msra.mxu0 0.0
        %6840 = vmatprep.subr.mxu0 0.0
        %6841 = vmatpush1.msra.mxu0 0.0
        %6842 = vmatprep.subr.mxu0 0.0
        %6843 = vmatpush1.msra.mxu0 0.0
        %6844 = vmatprep.subr.mxu0 0.0
        %6845 = vmatpush1.msra.mxu0 0.0
        %6846 = vmatprep.subr.mxu0 0.0
        %6847 = vmatpush1.msra.mxu0 0.0
        %6848 = vmatprep.subr.mxu0 0.0
        %6849 = vmatpush1.msra.mxu0 0.0
        %6850 = vmatprep.subr.mxu0 0.0
        %6851 = vmatpush1.msra.mxu0 0.0
        %6852 = vmatprep.subr.mxu0 0.0
        %6853 = vmatpush1.msra.mxu0 0.0
        %6854 = vmatprep.subr.mxu0 0.0
        %6855 = vmatpush1.msra.mxu0 0.0
        %6856 = vmatprep.mubr.f32.mxu0 0.0
        %v6857 = vand.u32 %v1241, 4294901760
        %v6858 = vsub.f32 %v1241, %v6857
        %v6859 = vand.u32 %v6858, 4294901760
        %v6860 = vsub.f32 %v6858, %v6859
        %v6861 = vand.u32 %v6860, 4294901760
        %6862 = vmatmul.mubr.f32.gmra.mrb[0].mxu0 %v6861
        %v6863 = vpop.f32.mrb[0].mxu0
        %v6864 = vadd.f32 0.0, %v6863
        %v6865 = vpop.f32.mrb[0].mxu0
        %6866 = vdwg.mxu0
        %6867 = vmatprep.subr.mxu0 0.0
        %v6868 = vand.u32 %v5865, 4294901760
        %v6869 = vsub.f32 %v5865, %v6868
        %v6870 = vand.u32 %v6869, 4294901760
        %v6871 = vsub.f32 %v6869, %v6870
        %v6872 = vand.u32 %v6871, 4294901760
        %6873 = vmatpush1.msra.mxu0 %v6872
        %6874 = vmatprep.subr.mxu0 0.0
        %v6875 = vand.u32 %v5866, 4294901760
        %v6876 = vsub.f32 %v5866, %v6875
        %v6877 = vand.u32 %v6876, 4294901760
        %v6878 = vsub.f32 %v6876, %v6877
        %v6879 = vand.u32 %v6878, 4294901760
        %6880 = vmatpush1.msra.mxu0 %v6879
        %6881 = vmatprep.subr.mxu0 0.0
        %6882 = vmatpush1.msra.mxu0 0.0
        %6883 = vmatprep.subr.mxu0 0.0
        %6884 = vmatpush1.msra.mxu0 0.0
        %6885 = vmatprep.subr.mxu0 0.0
        %6886 = vmatpush1.msra.mxu0 0.0
        %6887 = vmatprep.subr.mxu0 0.0
        %6888 = vmatpush1.msra.mxu0 0.0
        %6889 = vmatprep.subr.mxu0 0.0
        %6890 = vmatpush1.msra.mxu0 0.0
        %6891 = vmatprep.subr.mxu0 0.0
        %6892 = vmatpush1.msra.mxu0 0.0
        %6893 = vmatprep.subr.mxu0 0.0
        %6894 = vmatpush1.msra.mxu0 0.0
        %6895 = vmatprep.subr.mxu0 0.0
        %6896 = vmatpush1.msra.mxu0 0.0
        %6897 = vmatprep.subr.mxu0 0.0
        %6898 = vmatpush1.msra.mxu0 0.0
        %6899 = vmatprep.subr.mxu0 0.0
        %6900 = vmatpush1.msra.mxu0 0.0
        %6901 = vmatprep.subr.mxu0 0.0
        %6902 = vmatpush1.msra.mxu0 0.0
        %6903 = vmatprep.subr.mxu0 0.0
        %6904 = vmatpush1.msra.mxu0 0.0
        %6905 = vmatprep.subr.mxu0 0.0
        %6906 = vmatpush1.msra.mxu0 0.0
        %6907 = vmatprep.subr.mxu0 0.0
        %6908 = vmatpush1.msra.mxu0 0.0
        %6909 = vmatprep.subr.mxu0 0.0
        %6910 = vmatpush1.msra.mxu0 0.0
        %6911 = vmatprep.subr.mxu0 0.0
        %6912 = vmatpush1.msra.mxu0 0.0
        %6913 = vmatprep.subr.mxu0 0.0
        %6914 = vmatpush1.msra.mxu0 0.0
        %6915 = vmatprep.subr.mxu0 0.0
        %6916 = vmatpush1.msra.mxu0 0.0
        %6917 = vmatprep.subr.mxu0 0.0
        %6918 = vmatpush1.msra.mxu0 0.0
        %6919 = vmatprep.subr.mxu0 0.0
        %6920 = vmatpush1.msra.mxu0 0.0
        %6921 = vmatprep.subr.mxu0 0.0
        %6922 = vmatpush1.msra.mxu0 0.0
        %6923 = vmatprep.subr.mxu0 0.0
        %6924 = vmatpush1.msra.mxu0 0.0
        %6925 = vmatprep.subr.mxu0 0.0
        %6926 = vmatpush1.msra.mxu0 0.0
        %6927 = vmatprep.subr.mxu0 0.0
        %6928 = vmatpush1.msra.mxu0 0.0
        %6929 = vmatprep.subr.mxu0 0.0
        %6930 = vmatpush1.msra.mxu0 0.0
        %6931 = vmatprep.subr.mxu0 0.0
        %6932 = vmatpush1.msra.mxu0 0.0
        %6933 = vmatprep.subr.mxu0 0.0
        %6934 = vmatpush1.msra.mxu0 0.0
        %6935 = vmatprep.subr.mxu0 0.0
        %6936 = vmatpush1.msra.mxu0 0.0
        %6937 = vmatprep.subr.mxu0 0.0
        %6938 = vmatpush1.msra.mxu0 0.0
        %6939 = vmatprep.subr.mxu0 0.0
        %6940 = vmatpush1.msra.mxu0 0.0
        %6941 = vmatprep.mubr.f32.mxu0 0.0
        %v6942 = vand.u32 %v1241, 4294901760
        %6943 = vmatmul.mubr.f32.gmra.mrb[0].mxu0 %v6942
        %v6944 = vpop.f32.mrb[0].mxu0
        %v6945 = vadd.f32 %v6864, %v6944
        %v6946 = vpop.f32.mrb[0].mxu0
        %6947 = vdwg.mxu0
        %6948 = vmatprep.subr.mxu0 0.0
        %v6949 = vand.u32 %v5865, 4294901760
        %v6950 = vsub.f32 %v5865, %v6949
        %6951 = vmatpush1.msra.mxu0 %v6950
        %6952 = vmatprep.subr.mxu0 0.0
        %v6953 = vand.u32 %v5866, 4294901760
        %v6954 = vsub.f32 %v5866, %v6953
        %6955 = vmatpush1.msra.mxu0 %v6954
        %6956 = vmatprep.subr.mxu0 0.0
        %6957 = vmatpush1.msra.mxu0 0.0
        %6958 = vmatprep.subr.mxu0 0.0
        %6959 = vmatpush1.msra.mxu0 0.0
        %6960 = vmatprep.subr.mxu0 0.0
        %6961 = vmatpush1.msra.mxu0 0.0
        %6962 = vmatprep.subr.mxu0 0.0
        %6963 = vmatpush1.msra.mxu0 0.0
        %6964 = vmatprep.subr.mxu0 0.0
        %6965 = vmatpush1.msra.mxu0 0.0
        %6966 = vmatprep.subr.mxu0 0.0
        %6967 = vmatpush1.msra.mxu0 0.0
        %6968 = vmatprep.subr.mxu0 0.0
        %6969 = vmatpush1.msra.mxu0 0.0
        %6970 = vmatprep.subr.mxu0 0.0
        %6971 = vmatpush1.msra.mxu0 0.0
        %6972 = vmatprep.subr.mxu0 0.0
        %6973 = vmatpush1.msra.mxu0 0.0
        %6974 = vmatprep.subr.mxu0 0.0
        %6975 = vmatpush1.msra.mxu0 0.0
        %6976 = vmatprep.subr.mxu0 0.0
        %6977 = vmatpush1.msra.mxu0 0.0
        %6978 = vmatprep.subr.mxu0 0.0
        %6979 = vmatpush1.msra.mxu0 0.0
        %6980 = vmatprep.subr.mxu0 0.0
        %6981 = vmatpush1.msra.mxu0 0.0
        %6982 = vmatprep.subr.mxu0 0.0
        %6983 = vmatpush1.msra.mxu0 0.0
        %6984 = vmatprep.subr.mxu0 0.0
        %6985 = vmatpush1.msra.mxu0 0.0
        %6986 = vmatprep.subr.mxu0 0.0
        %6987 = vmatpush1.msra.mxu0 0.0
        %6988 = vmatprep.subr.mxu0 0.0
        %6989 = vmatpush1.msra.mxu0 0.0
        %6990 = vmatprep.subr.mxu0 0.0
        %6991 = vmatpush1.msra.mxu0 0.0
        %6992 = vmatprep.subr.mxu0 0.0
        %6993 = vmatpush1.msra.mxu0 0.0
        %6994 = vmatprep.subr.mxu0 0.0
        %6995 = vmatpush1.msra.mxu0 0.0
        %6996 = vmatprep.subr.mxu0 0.0
        %6997 = vmatpush1.msra.mxu0 0.0
        %6998 = vmatprep.subr.mxu0 0.0
        %6999 = vmatpush1.msra.mxu0 0.0
        %7000 = vmatprep.subr.mxu0 0.0
        %7001 = vmatpush1.msra.mxu0 0.0
        %7002 = vmatprep.subr.mxu0 0.0
        %7003 = vmatpush1.msra.mxu0 0.0
        %7004 = vmatprep.subr.mxu0 0.0
        %7005 = vmatpush1.msra.mxu0 0.0
        %7006 = vmatprep.subr.mxu0 0.0
        %7007 = vmatpush1.msra.mxu0 0.0
        %7008 = vmatprep.subr.mxu0 0.0
        %7009 = vmatpush1.msra.mxu0 0.0
        %7010 = vmatprep.subr.mxu0 0.0
        %7011 = vmatpush1.msra.mxu0 0.0
        %7012 = vmatprep.subr.mxu0 0.0
        %7013 = vmatpush1.msra.mxu0 0.0
        %7014 = vmatprep.subr.mxu0 0.0
        %7015 = vmatpush1.msra.mxu0 0.0
        %7016 = vmatprep.mubr.f32.mxu0 0.0
        %v7017 = vand.u32 %v1241, 4294901760
        %v7018 = vsub.f32 %v1241, %v7017
        %7019 = vmatmul.mubr.f32.gmra.mrb[0].mxu0 %v7018
        %v7020 = vpop.f32.mrb[0].mxu0
        %v7021 = vadd.f32 %v6945, %v7020
        %v7022 = vpop.f32.mrb[0].mxu0
        %7023 = vdwg.mxu0
        %7024 = vmatprep.subr.mxu0 0.0
        %v7025 = vand.u32 %v5865, 4294901760
        %7026 = vmatpush1.msra.mxu0 %v7025
        %7027 = vmatprep.subr.mxu0 0.0
        %v7028 = vand.u32 %v5866, 4294901760
        %7029 = vmatpush1.msra.mxu0 %v7028
        %7030 = vmatprep.subr.mxu0 0.0
        %7031 = vmatpush1.msra.mxu0 0.0
        %7032 = vmatprep.subr.mxu0 0.0
        %7033 = vmatpush1.msra.mxu0 0.0
        %7034 = vmatprep.subr.mxu0 0.0
        %7035 = vmatpush1.msra.mxu0 0.0
        %7036 = vmatprep.subr.mxu0 0.0
        %7037 = vmatpush1.msra.mxu0 0.0
        %7038 = vmatprep.subr.mxu0 0.0
        %7039 = vmatpush1.msra.mxu0 0.0
        %7040 = vmatprep.subr.mxu0 0.0
        %7041 = vmatpush1.msra.mxu0 0.0
        %7042 = vmatprep.subr.mxu0 0.0
        %7043 = vmatpush1.msra.mxu0 0.0
        %7044 = vmatprep.subr.mxu0 0.0
        %7045 = vmatpush1.msra.mxu0 0.0
        %7046 = vmatprep.subr.mxu0 0.0
        %7047 = vmatpush1.msra.mxu0 0.0
        %7048 = vmatprep.subr.mxu0 0.0
        %7049 = vmatpush1.msra.mxu0 0.0
        %7050 = vmatprep.subr.mxu0 0.0
        %7051 = vmatpush1.msra.mxu0 0.0
        %7052 = vmatprep.subr.mxu0 0.0
        %7053 = vmatpush1.msra.mxu0 0.0
        %7054 = vmatprep.subr.mxu0 0.0
        %7055 = vmatpush1.msra.mxu0 0.0
        %7056 = vmatprep.subr.mxu0 0.0
        %7057 = vmatpush1.msra.mxu0 0.0
        %7058 = vmatprep.subr.mxu0 0.0
        %7059 = vmatpush1.msra.mxu0 0.0
        %7060 = vmatprep.subr.mxu0 0.0
        %7061 = vmatpush1.msra.mxu0 0.0
        %7062 = vmatprep.subr.mxu0 0.0
        %7063 = vmatpush1.msra.mxu0 0.0
        %7064 = vmatprep.subr.mxu0 0.0
        %7065 = vmatpush1.msra.mxu0 0.0
        %7066 = vmatprep.subr.mxu0 0.0
        %7067 = vmatpush1.msra.mxu0 0.0
        %7068 = vmatprep.subr.mxu0 0.0
        %7069 = vmatpush1.msra.mxu0 0.0
        %7070 = vmatprep.subr.mxu0 0.0
        %7071 = vmatpush1.msra.mxu0 0.0
        %7072 = vmatprep.subr.mxu0 0.0
        %7073 = vmatpush1.msra.mxu0 0.0
        %7074 = vmatprep.subr.mxu0 0.0
        %7075 = vmatpush1.msra.mxu0 0.0
        %7076 = vmatprep.subr.mxu0 0.0
        %7077 = vmatpush1.msra.mxu0 0.0
        %7078 = vmatprep.subr.mxu0 0.0
        %7079 = vmatpush1.msra.mxu0 0.0
        %7080 = vmatprep.subr.mxu0 0.0
        %7081 = vmatpush1.msra.mxu0 0.0
        %7082 = vmatprep.subr.mxu0 0.0
        %7083 = vmatpush1.msra.mxu0 0.0
        %7084 = vmatprep.subr.mxu0 0.0
        %7085 = vmatpush1.msra.mxu0 0.0
        %7086 = vmatprep.subr.mxu0 0.0
        %7087 = vmatpush1.msra.mxu0 0.0
        %7088 = vmatprep.subr.mxu0 0.0
        %7089 = vmatpush1.msra.mxu0 0.0
        %7090 = vmatprep.mubr.f32.mxu0 0.0
        %v7091 = vand.u32 %v1241, 4294901760
        %v7092 = vsub.f32 %v1241, %v7091
        %v7093 = vand.u32 %v7092, 4294901760
        %7094 = vmatmul.mubr.f32.gmra.mrb[0].mxu0 %v7093
        %v7095 = vpop.f32.mrb[0].mxu0
        %v7096 = vadd.f32 %v7021, %v7095
        %v7097 = vpop.f32.mrb[0].mxu0
        %7098 = vdwg.mxu0
        %7099 = vmatprep.subr.mxu0 0.0
        %v7100 = vand.u32 %v5865, 4294901760
        %v7101 = vsub.f32 %v5865, %v7100
        %v7102 = vand.u32 %v7101, 4294901760
        %7103 = vmatpush1.msra.mxu0 %v7102
        %7104 = vmatprep.subr.mxu0 0.0
        %v7105 = vand.u32 %v5866, 4294901760
        %v7106 = vsub.f32 %v5866, %v7105
        %v7107 = vand.u32 %v7106, 4294901760
        %7108 = vmatpush1.msra.mxu0 %v7107
        %7109 = vmatprep.subr.mxu0 0.0
        %7110 = vmatpush1.msra.mxu0 0.0
        %7111 = vmatprep.subr.mxu0 0.0
        %7112 = vmatpush1.msra.mxu0 0.0
        %7113 = vmatprep.subr.mxu0 0.0
        %7114 = vmatpush1.msra.mxu0 0.0
        %7115 = vmatprep.subr.mxu0 0.0
        %7116 = vmatpush1.msra.mxu0 0.0
        %7117 = vmatprep.subr.mxu0 0.0
        %7118 = vmatpush1.msra.mxu0 0.0
        %7119 = vmatprep.subr.mxu0 0.0
        %7120 = vmatpush1.msra.mxu0 0.0
        %7121 = vmatprep.subr.mxu0 0.0
        %7122 = vmatpush1.msra.mxu0 0.0
        %7123 = vmatprep.subr.mxu0 0.0
        %7124 = vmatpush1.msra.mxu0 0.0
        %7125 = vmatprep.subr.mxu0 0.0
        %7126 = vmatpush1.msra.mxu0 0.0
        %7127 = vmatprep.subr.mxu0 0.0
        %7128 = vmatpush1.msra.mxu0 0.0
        %7129 = vmatprep.subr.mxu0 0.0
        %7130 = vmatpush1.msra.mxu0 0.0
        %7131 = vmatprep.subr.mxu0 0.0
        %7132 = vmatpush1.msra.mxu0 0.0
        %7133 = vmatprep.subr.mxu0 0.0
        %7134 = vmatpush1.msra.mxu0 0.0
        %7135 = vmatprep.subr.mxu0 0.0
        %7136 = vmatpush1.msra.mxu0 0.0
        %7137 = vmatprep.subr.mxu0 0.0
        %7138 = vmatpush1.msra.mxu0 0.0
        %7139 = vmatprep.subr.mxu0 0.0
        %7140 = vmatpush1.msra.mxu0 0.0
        %7141 = vmatprep.subr.mxu0 0.0
        %7142 = vmatpush1.msra.mxu0 0.0
        %7143 = vmatprep.subr.mxu0 0.0
        %7144 = vmatpush1.msra.mxu0 0.0
        %7145 = vmatprep.subr.mxu0 0.0
        %7146 = vmatpush1.msra.mxu0 0.0
        %7147 = vmatprep.subr.mxu0 0.0
        %7148 = vmatpush1.msra.mxu0 0.0
        %7149 = vmatprep.subr.mxu0 0.0
        %7150 = vmatpush1.msra.mxu0 0.0
        %7151 = vmatprep.subr.mxu0 0.0
        %7152 = vmatpush1.msra.mxu0 0.0
        %7153 = vmatprep.subr.mxu0 0.0
        %7154 = vmatpush1.msra.mxu0 0.0
        %7155 = vmatprep.subr.mxu0 0.0
        %7156 = vmatpush1.msra.mxu0 0.0
        %7157 = vmatprep.subr.mxu0 0.0
        %7158 = vmatpush1.msra.mxu0 0.0
        %7159 = vmatprep.subr.mxu0 0.0
        %7160 = vmatpush1.msra.mxu0 0.0
        %7161 = vmatprep.subr.mxu0 0.0
        %7162 = vmatpush1.msra.mxu0 0.0
        %7163 = vmatprep.subr.mxu0 0.0
        %7164 = vmatpush1.msra.mxu0 0.0
        %7165 = vmatprep.subr.mxu0 0.0
        %7166 = vmatpush1.msra.mxu0 0.0
        %7167 = vmatprep.subr.mxu0 0.0
        %7168 = vmatpush1.msra.mxu0 0.0
        %7169 = vmatprep.mubr.f32.mxu0 0.0
        %v7170 = vand.u32 %v1241, 4294901760
        %7171 = vmatmul.mubr.f32.gmra.mrb[0].mxu0 %v7170
        %v7172 = vpop.f32.mrb[0].mxu0
        %v7173 = vadd.f32 %v7096, %v7172
        %v7174 = vpop.f32.mrb[0].mxu0
        %7175 = vdwg.mxu0
        %7176 = vmatprep.subr.mxu0 0.0
        %v7177 = vand.u32 %v5865, 4294901760
        %7178 = vmatpush1.msra.mxu0 %v7177
        %7179 = vmatprep.subr.mxu0 0.0
        %v7180 = vand.u32 %v5866, 4294901760
        %7181 = vmatpush1.msra.mxu0 %v7180
        %7182 = vmatprep.subr.mxu0 0.0
        %7183 = vmatpush1.msra.mxu0 0.0
        %7184 = vmatprep.subr.mxu0 0.0
        %7185 = vmatpush1.msra.mxu0 0.0
        %7186 = vmatprep.subr.mxu0 0.0
        %7187 = vmatpush1.msra.mxu0 0.0
        %7188 = vmatprep.subr.mxu0 0.0
        %7189 = vmatpush1.msra.mxu0 0.0
        %7190 = vmatprep.subr.mxu0 0.0
        %7191 = vmatpush1.msra.mxu0 0.0
        %7192 = vmatprep.subr.mxu0 0.0
        %7193 = vmatpush1.msra.mxu0 0.0
        %7194 = vmatprep.subr.mxu0 0.0
        %7195 = vmatpush1.msra.mxu0 0.0
        %7196 = vmatprep.subr.mxu0 0.0
        %7197 = vmatpush1.msra.mxu0 0.0
        %7198 = vmatprep.subr.mxu0 0.0
        %7199 = vmatpush1.msra.mxu0 0.0
        %7200 = vmatprep.subr.mxu0 0.0
        %7201 = vmatpush1.msra.mxu0 0.0
        %7202 = vmatprep.subr.mxu0 0.0
        %7203 = vmatpush1.msra.mxu0 0.0
        %7204 = vmatprep.subr.mxu0 0.0
        %7205 = vmatpush1.msra.mxu0 0.0
        %7206 = vmatprep.subr.mxu0 0.0
        %7207 = vmatpush1.msra.mxu0 0.0
        %7208 = vmatprep.subr.mxu0 0.0
        %7209 = vmatpush1.msra.mxu0 0.0
        %7210 = vmatprep.subr.mxu0 0.0
        %7211 = vmatpush1.msra.mxu0 0.0
        %7212 = vmatprep.subr.mxu0 0.0
        %7213 = vmatpush1.msra.mxu0 0.0
        %7214 = vmatprep.subr.mxu0 0.0
        %7215 = vmatpush1.msra.mxu0 0.0
        %7216 = vmatprep.subr.mxu0 0.0
        %7217 = vmatpush1.msra.mxu0 0.0
        %7218 = vmatprep.subr.mxu0 0.0
        %7219 = vmatpush1.msra.mxu0 0.0
        %7220 = vmatprep.subr.mxu0 0.0
        %7221 = vmatpush1.msra.mxu0 0.0
        %7222 = vmatprep.subr.mxu0 0.0
        %7223 = vmatpush1.msra.mxu0 0.0
        %7224 = vmatprep.subr.mxu0 0.0
        %7225 = vmatpush1.msra.mxu0 0.0
        %7226 = vmatprep.subr.mxu0 0.0
        %7227 = vmatpush1.msra.mxu0 0.0
        %7228 = vmatprep.subr.mxu0 0.0
        %7229 = vmatpush1.msra.mxu0 0.0
        %7230 = vmatprep.subr.mxu0 0.0
        %7231 = vmatpush1.msra.mxu0 0.0
        %7232 = vmatprep.subr.mxu0 0.0
        %7233 = vmatpush1.msra.mxu0 0.0
        %7234 = vmatprep.subr.mxu0 0.0
        %7235 = vmatpush1.msra.mxu0 0.0
        %7236 = vmatprep.subr.mxu0 0.0
        %7237 = vmatpush1.msra.mxu0 0.0
        %7238 = vmatprep.subr.mxu0 0.0
        %7239 = vmatpush1.msra.mxu0 0.0
        %7240 = vmatprep.subr.mxu0 0.0
        %7241 = vmatpush1.msra.mxu0 0.0
        %7242 = vmatprep.mubr.f32.mxu0 0.0
        %v7243 = vand.u32 %v1241, 4294901760
        %7244 = vmatmul.mubr.f32.gmra.mrb[0].mxu0 %v7243
        %v7245 = vpop.f32.mrb[0].mxu0
        %v7246 = vadd.f32 %v7173, %v7245
        %v7247 = vpop.f32.mrb[0].mxu0
        %7248 = vdwg.mxu0
        %v7250 = vsel %vm313, %v7246, 0
        %7252 = vmatprep.subr.mxu0 0.0
        %v7253 = vand.u32 %v309, 4294901760
        %7254 = vmatpush1.msra.mxu0 %v7253
        %7255 = vmatprep.subr.mxu0 0.0
        %v7256 = vand.u32 %v310, 4294901760
        %7257 = vmatpush1.msra.mxu0 %v7256
        %7258 = vmatprep.subr.mxu0 0.0
        %7259 = vmatpush1.msra.mxu0 0.0
        %7260 = vmatprep.subr.mxu0 0.0
        %7261 = vmatpush1.msra.mxu0 0.0
        %7262 = vmatprep.subr.mxu0 0.0
        %7263 = vmatpush1.msra.mxu0 0.0
        %7264 = vmatprep.subr.mxu0 0.0
        %7265 = vmatpush1.msra.mxu0 0.0
        %7266 = vmatprep.subr.mxu0 0.0
        %7267 = vmatpush1.msra.mxu0 0.0
        %7268 = vmatprep.subr.mxu0 0.0
        %7269 = vmatpush1.msra.mxu0 0.0
        %7270 = vmatprep.subr.mxu0 0.0
        %7271 = vmatpush1.msra.mxu0 0.0
        %7272 = vmatprep.subr.mxu0 0.0
        %7273 = vmatpush1.msra.mxu0 0.0
        %7274 = vmatprep.subr.mxu0 0.0
        %7275 = vmatpush1.msra.mxu0 0.0
        %7276 = vmatprep.subr.mxu0 0.0
        %7277 = vmatpush1.msra.mxu0 0.0
        %7278 = vmatprep.subr.mxu0 0.0
        %7279 = vmatpush1.msra.mxu0 0.0
        %7280 = vmatprep.subr.mxu0 0.0
        %7281 = vmatpush1.msra.mxu0 0.0
        %7282 = vmatprep.subr.mxu0 0.0
        %7283 = vmatpush1.msra.mxu0 0.0
        %7284 = vmatprep.subr.mxu0 0.0
        %7285 = vmatpush1.msra.mxu0 0.0
        %7286 = vmatprep.subr.mxu0 0.0
        %7287 = vmatpush1.msra.mxu0 0.0
        %7288 = vmatprep.subr.mxu0 0.0
        %7289 = vmatpush1.msra.mxu0 0.0
        %7290 = vmatprep.subr.mxu0 0.0
        %7291 = vmatpush1.msra.mxu0 0.0
        %7292 = vmatprep.subr.mxu0 0.0
        %7293 = vmatpush1.msra.mxu0 0.0
        %7294 = vmatprep.subr.mxu0 0.0
        %7295 = vmatpush1.msra.mxu0 0.0
        %7296 = vmatprep.subr.mxu0 0.0
        %7297 = vmatpush1.msra.mxu0 0.0
        %7298 = vmatprep.subr.mxu0 0.0
        %7299 = vmatpush1.msra.mxu0 0.0
        %7300 = vmatprep.subr.mxu0 0.0
        %7301 = vmatpush1.msra.mxu0 0.0
        %7302 = vmatprep.subr.mxu0 0.0
        %7303 = vmatpush1.msra.mxu0 0.0
        %7304 = vmatprep.subr.mxu0 0.0
        %7305 = vmatpush1.msra.mxu0 0.0
        %7306 = vmatprep.subr.mxu0 0.0
        %7307 = vmatpush1.msra.mxu0 0.0
        %7308 = vmatprep.subr.mxu0 0.0
        %7309 = vmatpush1.msra.mxu0 0.0
        %7310 = vmatprep.subr.mxu0 0.0
        %7311 = vmatpush1.msra.mxu0 0.0
        %7312 = vmatprep.subr.mxu0 0.0
        %7313 = vmatpush1.msra.mxu0 0.0
        %7314 = vmatprep.subr.mxu0 0.0
        %7315 = vmatpush1.msra.mxu0 0.0
        %7316 = vmatprep.subr.mxu0 0.0
        %7317 = vmatpush1.msra.mxu0 0.0
        %7318 = vmatprep.mubr.f32.mxu0 0.0
        %v7319 = vand.u32 %v7250, 4294901760
        %v7320 = vsub.f32 %v7250, %v7319
        %v7321 = vand.u32 %v7320, 4294901760
        %v7322 = vsub.f32 %v7320, %v7321
        %v7323 = vand.u32 %v7322, 4294901760
        %7324 = vmatmul.mubr.f32.gmra.mrb[0].mxu0 %v7323
        %v7325 = vpop.f32.mrb[0].mxu0
        %v7326 = vadd.f32 0.0, %v7325
        %v7327 = vpop.f32.mrb[0].mxu0
        %7328 = vdwg.mxu0
        %7329 = vmatprep.subr.mxu0 0.0
        %v7330 = vand.u32 %v309, 4294901760
        %v7331 = vsub.f32 %v309, %v7330
        %v7332 = vand.u32 %v7331, 4294901760
        %v7333 = vsub.f32 %v7331, %v7332
        %v7334 = vand.u32 %v7333, 4294901760
        %7335 = vmatpush1.msra.mxu0 %v7334
        %7336 = vmatprep.subr.mxu0 0.0
        %v7337 = vand.u32 %v310, 4294901760
        %v7338 = vsub.f32 %v310, %v7337
        %v7339 = vand.u32 %v7338, 4294901760
        %v7340 = vsub.f32 %v7338, %v7339
        %v7341 = vand.u32 %v7340, 4294901760
        %7342 = vmatpush1.msra.mxu0 %v7341
        %7343 = vmatprep.subr.mxu0 0.0
        %7344 = vmatpush1.msra.mxu0 0.0
        %7345 = vmatprep.subr.mxu0 0.0
        %7346 = vmatpush1.msra.mxu0 0.0
        %7347 = vmatprep.subr.mxu0 0.0
        %7348 = vmatpush1.msra.mxu0 0.0
        %7349 = vmatprep.subr.mxu0 0.0
        %7350 = vmatpush1.msra.mxu0 0.0
        %7351 = vmatprep.subr.mxu0 0.0
        %7352 = vmatpush1.msra.mxu0 0.0
        %7353 = vmatprep.subr.mxu0 0.0
        %7354 = vmatpush1.msra.mxu0 0.0
        %7355 = vmatprep.subr.mxu0 0.0
        %7356 = vmatpush1.msra.mxu0 0.0
        %7357 = vmatprep.subr.mxu0 0.0
        %7358 = vmatpush1.msra.mxu0 0.0
        %7359 = vmatprep.subr.mxu0 0.0
        %7360 = vmatpush1.msra.mxu0 0.0
        %7361 = vmatprep.subr.mxu0 0.0
        %7362 = vmatpush1.msra.mxu0 0.0
        %7363 = vmatprep.subr.mxu0 0.0
        %7364 = vmatpush1.msra.mxu0 0.0
        %7365 = vmatprep.subr.mxu0 0.0
        %7366 = vmatpush1.msra.mxu0 0.0
        %7367 = vmatprep.subr.mxu0 0.0
        %7368 = vmatpush1.msra.mxu0 0.0
        %7369 = vmatprep.subr.mxu0 0.0
        %7370 = vmatpush1.msra.mxu0 0.0
        %7371 = vmatprep.subr.mxu0 0.0
        %7372 = vmatpush1.msra.mxu0 0.0
        %7373 = vmatprep.subr.mxu0 0.0
        %7374 = vmatpush1.msra.mxu0 0.0
        %7375 = vmatprep.subr.mxu0 0.0
        %7376 = vmatpush1.msra.mxu0 0.0
        %7377 = vmatprep.subr.mxu0 0.0
        %7378 = vmatpush1.msra.mxu0 0.0
        %7379 = vmatprep.subr.mxu0 0.0
        %7380 = vmatpush1.msra.mxu0 0.0
        %7381 = vmatprep.subr.mxu0 0.0
        %7382 = vmatpush1.msra.mxu0 0.0
        %7383 = vmatprep.subr.mxu0 0.0
        %7384 = vmatpush1.msra.mxu0 0.0
        %7385 = vmatprep.subr.mxu0 0.0
        %7386 = vmatpush1.msra.mxu0 0.0
        %7387 = vmatprep.subr.mxu0 0.0
        %7388 = vmatpush1.msra.mxu0 0.0
        %7389 = vmatprep.subr.mxu0 0.0
        %7390 = vmatpush1.msra.mxu0 0.0
        %7391 = vmatprep.subr.mxu0 0.0
        %7392 = vmatpush1.msra.mxu0 0.0
        %7393 = vmatprep.subr.mxu0 0.0
        %7394 = vmatpush1.msra.mxu0 0.0
        %7395 = vmatprep.subr.mxu0 0.0
        %7396 = vmatpush1.msra.mxu0 0.0
        %7397 = vmatprep.subr.mxu0 0.0
        %7398 = vmatpush1.msra.mxu0 0.0
        %7399 = vmatprep.subr.mxu0 0.0
        %7400 = vmatpush1.msra.mxu0 0.0
        %7401 = vmatprep.subr.mxu0 0.0
        %7402 = vmatpush1.msra.mxu0 0.0
        %7403 = vmatprep.mubr.f32.mxu0 0.0
        %v7404 = vand.u32 %v7250, 4294901760
        %7405 = vmatmul.mubr.f32.gmra.mrb[0].mxu0 %v7404
        %v7406 = vpop.f32.mrb[0].mxu0
        %v7407 = vadd.f32 %v7326, %v7406
        %v7408 = vpop.f32.mrb[0].mxu0
        %7409 = vdwg.mxu0
        %7410 = vmatprep.subr.mxu0 0.0
        %v7411 = vand.u32 %v309, 4294901760
        %v7412 = vsub.f32 %v309, %v7411
        %7413 = vmatpush1.msra.mxu0 %v7412
        %7414 = vmatprep.subr.mxu0 0.0
        %v7415 = vand.u32 %v310, 4294901760
        %v7416 = vsub.f32 %v310, %v7415
        %7417 = vmatpush1.msra.mxu0 %v7416
        %7418 = vmatprep.subr.mxu0 0.0
        %7419 = vmatpush1.msra.mxu0 0.0
        %7420 = vmatprep.subr.mxu0 0.0
        %7421 = vmatpush1.msra.mxu0 0.0
        %7422 = vmatprep.subr.mxu0 0.0
        %7423 = vmatpush1.msra.mxu0 0.0
        %7424 = vmatprep.subr.mxu0 0.0
        %7425 = vmatpush1.msra.mxu0 0.0
        %7426 = vmatprep.subr.mxu0 0.0
        %7427 = vmatpush1.msra.mxu0 0.0
        %7428 = vmatprep.subr.mxu0 0.0
        %7429 = vmatpush1.msra.mxu0 0.0
        %7430 = vmatprep.subr.mxu0 0.0
        %7431 = vmatpush1.msra.mxu0 0.0
        %7432 = vmatprep.subr.mxu0 0.0
        %7433 = vmatpush1.msra.mxu0 0.0
        %7434 = vmatprep.subr.mxu0 0.0
        %7435 = vmatpush1.msra.mxu0 0.0
        %7436 = vmatprep.subr.mxu0 0.0
        %7437 = vmatpush1.msra.mxu0 0.0
        %7438 = vmatprep.subr.mxu0 0.0
        %7439 = vmatpush1.msra.mxu0 0.0
        %7440 = vmatprep.subr.mxu0 0.0
        %7441 = vmatpush1.msra.mxu0 0.0
        %7442 = vmatprep.subr.mxu0 0.0
        %7443 = vmatpush1.msra.mxu0 0.0
        %7444 = vmatprep.subr.mxu0 0.0
        %7445 = vmatpush1.msra.mxu0 0.0
        %7446 = vmatprep.subr.mxu0 0.0
        %7447 = vmatpush1.msra.mxu0 0.0
        %7448 = vmatprep.subr.mxu0 0.0
        %7449 = vmatpush1.msra.mxu0 0.0
        %7450 = vmatprep.subr.mxu0 0.0
        %7451 = vmatpush1.msra.mxu0 0.0
        %7452 = vmatprep.subr.mxu0 0.0
        %7453 = vmatpush1.msra.mxu0 0.0
        %7454 = vmatprep.subr.mxu0 0.0
        %7455 = vmatpush1.msra.mxu0 0.0
        %7456 = vmatprep.subr.mxu0 0.0
        %7457 = vmatpush1.msra.mxu0 0.0
        %7458 = vmatprep.subr.mxu0 0.0
        %7459 = vmatpush1.msra.mxu0 0.0
        %7460 = vmatprep.subr.mxu0 0.0
        %7461 = vmatpush1.msra.mxu0 0.0
        %7462 = vmatprep.subr.mxu0 0.0
        %7463 = vmatpush1.msra.mxu0 0.0
        %7464 = vmatprep.subr.mxu0 0.0
        %7465 = vmatpush1.msra.mxu0 0.0
        %7466 = vmatprep.subr.mxu0 0.0
        %7467 = vmatpush1.msra.mxu0 0.0
        %7468 = vmatprep.subr.mxu0 0.0
        %7469 = vmatpush1.msra.mxu0 0.0
        %7470 = vmatprep.subr.mxu0 0.0
        %7471 = vmatpush1.msra.mxu0 0.0
        %7472 = vmatprep.subr.mxu0 0.0
        %7473 = vmatpush1.msra.mxu0 0.0
        %7474 = vmatprep.subr.mxu0 0.0
        %7475 = vmatpush1.msra.mxu0 0.0
        %7476 = vmatprep.subr.mxu0 0.0
        %7477 = vmatpush1.msra.mxu0 0.0
        %7478 = vmatprep.mubr.f32.mxu0 0.0
        %v7479 = vand.u32 %v7250, 4294901760
        %v7480 = vsub.f32 %v7250, %v7479
        %7481 = vmatmul.mubr.f32.gmra.mrb[0].mxu0 %v7480
        %v7482 = vpop.f32.mrb[0].mxu0
        %v7483 = vadd.f32 %v7407, %v7482
        %v7484 = vpop.f32.mrb[0].mxu0
        %7485 = vdwg.mxu0
        %7486 = vmatprep.subr.mxu0 0.0
        %v7487 = vand.u32 %v309, 4294901760
        %7488 = vmatpush1.msra.mxu0 %v7487
        %7489 = vmatprep.subr.mxu0 0.0
        %v7490 = vand.u32 %v310, 4294901760
        %7491 = vmatpush1.msra.mxu0 %v7490
        %7492 = vmatprep.subr.mxu0 0.0
        %7493 = vmatpush1.msra.mxu0 0.0
        %7494 = vmatprep.subr.mxu0 0.0
        %7495 = vmatpush1.msra.mxu0 0.0
        %7496 = vmatprep.subr.mxu0 0.0
        %7497 = vmatpush1.msra.mxu0 0.0
        %7498 = vmatprep.subr.mxu0 0.0
        %7499 = vmatpush1.msra.mxu0 0.0
        %7500 = vmatprep.subr.mxu0 0.0
        %7501 = vmatpush1.msra.mxu0 0.0
        %7502 = vmatprep.subr.mxu0 0.0
        %7503 = vmatpush1.msra.mxu0 0.0
        %7504 = vmatprep.subr.mxu0 0.0
        %7505 = vmatpush1.msra.mxu0 0.0
        %7506 = vmatprep.subr.mxu0 0.0
        %7507 = vmatpush1.msra.mxu0 0.0
        %7508 = vmatprep.subr.mxu0 0.0
        %7509 = vmatpush1.msra.mxu0 0.0
        %7510 = vmatprep.subr.mxu0 0.0
        %7511 = vmatpush1.msra.mxu0 0.0
        %7512 = vmatprep.subr.mxu0 0.0
        %7513 = vmatpush1.msra.mxu0 0.0
        %7514 = vmatprep.subr.mxu0 0.0
        %7515 = vmatpush1.msra.mxu0 0.0
        %7516 = vmatprep.subr.mxu0 0.0
        %7517 = vmatpush1.msra.mxu0 0.0
        %7518 = vmatprep.subr.mxu0 0.0
        %7519 = vmatpush1.msra.mxu0 0.0
        %7520 = vmatprep.subr.mxu0 0.0
        %7521 = vmatpush1.msra.mxu0 0.0
        %7522 = vmatprep.subr.mxu0 0.0
        %7523 = vmatpush1.msra.mxu0 0.0
        %7524 = vmatprep.subr.mxu0 0.0
        %7525 = vmatpush1.msra.mxu0 0.0
        %7526 = vmatprep.subr.mxu0 0.0
        %7527 = vmatpush1.msra.mxu0 0.0
        %7528 = vmatprep.subr.mxu0 0.0
        %7529 = vmatpush1.msra.mxu0 0.0
        %7530 = vmatprep.subr.mxu0 0.0
        %7531 = vmatpush1.msra.mxu0 0.0
        %7532 = vmatprep.subr.mxu0 0.0
        %7533 = vmatpush1.msra.mxu0 0.0
        %7534 = vmatprep.subr.mxu0 0.0
        %7535 = vmatpush1.msra.mxu0 0.0
        %7536 = vmatprep.subr.mxu0 0.0
        %7537 = vmatpush1.msra.mxu0 0.0
        %7538 = vmatprep.subr.mxu0 0.0
        %7539 = vmatpush1.msra.mxu0 0.0
        %7540 = vmatprep.subr.mxu0 0.0
        %7541 = vmatpush1.msra.mxu0 0.0
        %7542 = vmatprep.subr.mxu0 0.0
        %7543 = vmatpush1.msra.mxu0 0.0
        %7544 = vmatprep.subr.mxu0 0.0
        %7545 = vmatpush1.msra.mxu0 0.0
        %7546 = vmatprep.subr.mxu0 0.0
        %7547 = vmatpush1.msra.mxu0 0.0
        %7548 = vmatprep.subr.mxu0 0.0
        %7549 = vmatpush1.msra.mxu0 0.0
        %7550 = vmatprep.subr.mxu0 0.0
        %7551 = vmatpush1.msra.mxu0 0.0
        %7552 = vmatprep.mubr.f32.mxu0 0.0
        %v7553 = vand.u32 %v7250, 4294901760
        %v7554 = vsub.f32 %v7250, %v7553
        %v7555 = vand.u32 %v7554, 4294901760
        %7556 = vmatmul.mubr.f32.gmra.mrb[0].mxu0 %v7555
        %v7557 = vpop.f32.mrb[0].mxu0
        %v7558 = vadd.f32 %v7483, %v7557
        %v7559 = vpop.f32.mrb[0].mxu0
        %7560 = vdwg.mxu0
        %7561 = vmatprep.subr.mxu0 0.0
        %v7562 = vand.u32 %v309, 4294901760
        %v7563 = vsub.f32 %v309, %v7562
        %v7564 = vand.u32 %v7563, 4294901760
        %7565 = vmatpush1.msra.mxu0 %v7564
        %7566 = vmatprep.subr.mxu0 0.0
        %v7567 = vand.u32 %v310, 4294901760
        %v7568 = vsub.f32 %v310, %v7567
        %v7569 = vand.u32 %v7568, 4294901760
        %7570 = vmatpush1.msra.mxu0 %v7569
        %7571 = vmatprep.subr.mxu0 0.0
        %7572 = vmatpush1.msra.mxu0 0.0
        %7573 = vmatprep.subr.mxu0 0.0
        %7574 = vmatpush1.msra.mxu0 0.0
        %7575 = vmatprep.subr.mxu0 0.0
        %7576 = vmatpush1.msra.mxu0 0.0
        %7577 = vmatprep.subr.mxu0 0.0
        %7578 = vmatpush1.msra.mxu0 0.0
        %7579 = vmatprep.subr.mxu0 0.0
        %7580 = vmatpush1.msra.mxu0 0.0
        %7581 = vmatprep.subr.mxu0 0.0
        %7582 = vmatpush1.msra.mxu0 0.0
        %7583 = vmatprep.subr.mxu0 0.0
        %7584 = vmatpush1.msra.mxu0 0.0
        %7585 = vmatprep.subr.mxu0 0.0
        %7586 = vmatpush1.msra.mxu0 0.0
        %7587 = vmatprep.subr.mxu0 0.0
        %7588 = vmatpush1.msra.mxu0 0.0
        %7589 = vmatprep.subr.mxu0 0.0
        %7590 = vmatpush1.msra.mxu0 0.0
        %7591 = vmatprep.subr.mxu0 0.0
        %7592 = vmatpush1.msra.mxu0 0.0
        %7593 = vmatprep.subr.mxu0 0.0
        %7594 = vmatpush1.msra.mxu0 0.0
        %7595 = vmatprep.subr.mxu0 0.0
        %7596 = vmatpush1.msra.mxu0 0.0
        %7597 = vmatprep.subr.mxu0 0.0
        %7598 = vmatpush1.msra.mxu0 0.0
        %7599 = vmatprep.subr.mxu0 0.0
        %7600 = vmatpush1.msra.mxu0 0.0
        %7601 = vmatprep.subr.mxu0 0.0
        %7602 = vmatpush1.msra.mxu0 0.0
        %7603 = vmatprep.subr.mxu0 0.0
        %7604 = vmatpush1.msra.mxu0 0.0
        %7605 = vmatprep.subr.mxu0 0.0
        %7606 = vmatpush1.msra.mxu0 0.0
        %7607 = vmatprep.subr.mxu0 0.0
        %7608 = vmatpush1.msra.mxu0 0.0
        %7609 = vmatprep.subr.mxu0 0.0
        %7610 = vmatpush1.msra.mxu0 0.0
        %7611 = vmatprep.subr.mxu0 0.0
        %7612 = vmatpush1.msra.mxu0 0.0
        %7613 = vmatprep.subr.mxu0 0.0
        %7614 = vmatpush1.msra.mxu0 0.0
        %7615 = vmatprep.subr.mxu0 0.0
        %7616 = vmatpush1.msra.mxu0 0.0
        %7617 = vmatprep.subr.mxu0 0.0
        %7618 = vmatpush1.msra.mxu0 0.0
        %7619 = vmatprep.subr.mxu0 0.0
        %7620 = vmatpush1.msra.mxu0 0.0
        %7621 = vmatprep.subr.mxu0 0.0
        %7622 = vmatpush1.msra.mxu0 0.0
        %7623 = vmatprep.subr.mxu0 0.0
        %7624 = vmatpush1.msra.mxu0 0.0
        %7625 = vmatprep.subr.mxu0 0.0
        %7626 = vmatpush1.msra.mxu0 0.0
        %7627 = vmatprep.subr.mxu0 0.0
        %7628 = vmatpush1.msra.mxu0 0.0
        %7629 = vmatprep.subr.mxu0 0.0
        %7630 = vmatpush1.msra.mxu0 0.0
        %7631 = vmatprep.mubr.f32.mxu0 0.0
        %v7632 = vand.u32 %v7250, 4294901760
        %7633 = vmatmul.mubr.f32.gmra.mrb[0].mxu0 %v7632
        %v7634 = vpop.f32.mrb[0].mxu0
        %v7635 = vadd.f32 %v7558, %v7634
        %v7636 = vpop.f32.mrb[0].mxu0
        %7637 = vdwg.mxu0
        %7638 = vmatprep.subr.mxu0 0.0
        %v7639 = vand.u32 %v309, 4294901760
        %7640 = vmatpush1.msra.mxu0 %v7639
        %7641 = vmatprep.subr.mxu0 0.0
        %v7642 = vand.u32 %v310, 4294901760
        %7643 = vmatpush1.msra.mxu0 %v7642
        %7644 = vmatprep.subr.mxu0 0.0
        %7645 = vmatpush1.msra.mxu0 0.0
        %7646 = vmatprep.subr.mxu0 0.0
        %7647 = vmatpush1.msra.mxu0 0.0
        %7648 = vmatprep.subr.mxu0 0.0
        %7649 = vmatpush1.msra.mxu0 0.0
        %7650 = vmatprep.subr.mxu0 0.0
        %7651 = vmatpush1.msra.mxu0 0.0
        %7652 = vmatprep.subr.mxu0 0.0
        %7653 = vmatpush1.msra.mxu0 0.0
        %7654 = vmatprep.subr.mxu0 0.0
        %7655 = vmatpush1.msra.mxu0 0.0
        %7656 = vmatprep.subr.mxu0 0.0
        %7657 = vmatpush1.msra.mxu0 0.0
        %7658 = vmatprep.subr.mxu0 0.0
        %7659 = vmatpush1.msra.mxu0 0.0
        %7660 = vmatprep.subr.mxu0 0.0
        %7661 = vmatpush1.msra.mxu0 0.0
        %7662 = vmatprep.subr.mxu0 0.0
        %7663 = vmatpush1.msra.mxu0 0.0
        %7664 = vmatprep.subr.mxu0 0.0
        %7665 = vmatpush1.msra.mxu0 0.0
        %7666 = vmatprep.subr.mxu0 0.0
        %7667 = vmatpush1.msra.mxu0 0.0
        %7668 = vmatprep.subr.mxu0 0.0
        %7669 = vmatpush1.msra.mxu0 0.0
        %7670 = vmatprep.subr.mxu0 0.0
        %7671 = vmatpush1.msra.mxu0 0.0
        %7672 = vmatprep.subr.mxu0 0.0
        %7673 = vmatpush1.msra.mxu0 0.0
        %7674 = vmatprep.subr.mxu0 0.0
        %7675 = vmatpush1.msra.mxu0 0.0
        %7676 = vmatprep.subr.mxu0 0.0
        %7677 = vmatpush1.msra.mxu0 0.0
        %7678 = vmatprep.subr.mxu0 0.0
        %7679 = vmatpush1.msra.mxu0 0.0
        %7680 = vmatprep.subr.mxu0 0.0
        %7681 = vmatpush1.msra.mxu0 0.0
        %7682 = vmatprep.subr.mxu0 0.0
        %7683 = vmatpush1.msra.mxu0 0.0
        %7684 = vmatprep.subr.mxu0 0.0
        %7685 = vmatpush1.msra.mxu0 0.0
        %7686 = vmatprep.subr.mxu0 0.0
        %7687 = vmatpush1.msra.mxu0 0.0
        %7688 = vmatprep.subr.mxu0 0.0
        %7689 = vmatpush1.msra.mxu0 0.0
        %7690 = vmatprep.subr.mxu0 0.0
        %7691 = vmatpush1.msra.mxu0 0.0
        %7692 = vmatprep.subr.mxu0 0.0
        %7693 = vmatpush1.msra.mxu0 0.0
        %7694 = vmatprep.subr.mxu0 0.0
        %7695 = vmatpush1.msra.mxu0 0.0
        %7696 = vmatprep.subr.mxu0 0.0
        %7697 = vmatpush1.msra.mxu0 0.0
        %7698 = vmatprep.subr.mxu0 0.0
        %7699 = vmatpush1.msra.mxu0 0.0
        %7700 = vmatprep.subr.mxu0 0.0
        %7701 = vmatpush1.msra.mxu0 0.0
        %7702 = vmatprep.subr.mxu0 0.0
        %7703 = vmatpush1.msra.mxu0 0.0
        %7704 = vmatprep.mubr.f32.mxu0 0.0
        %v7705 = vand.u32 %v7250, 4294901760
        %7706 = vmatmul.mubr.f32.gmra.mrb[0].mxu0 %v7705
        %v7707 = vpop.f32.mrb[0].mxu0
        %v7708 = vadd.f32 %v7635, %v7707
        %v7709 = vpop.f32.mrb[0].mxu0
        %7710 = vdwg.mxu0
        %s7711 = scalar_lea.vmem %s301, 12 [#allocation6]
        %7712 = vst.msk [vmem:[%s7711] sm:$0xf] %vm2164, %v7708
        %s7713 = sand.u32 %s161, 1
        %s7714 = scalar_lea.sflag [#allocation4], %s7713
        %s7715 = sand.u32 %s161, 1
        %s7716 = smul.addr %s7715, 32
        %s7717 = scalar_lea.vmem [#allocation5], %s7716
        %s7718 = sand.u32 %s189, 1
        %s7719 = scalar_lea.sflag [#allocation7], %s7718
        %s7720 = sand.u32 %s189, 1
        %s7721 = smul.addr %s7720, 16
        %s7722 = scalar_lea.vmem [#allocation6], %s7721
        // Predicated region
        $region45: #{tpu_custom_call.1} parent=39 // pred_check
          %p7723 = pneg %p171
        $region46: #{tpu_custom_call.1} parent=39 // pred_check_branch
          %7725 = sbr.rel (%p7723) target = $region48
        $region47: #{tpu_custom_call.1} parent=39 // pred_region
          %s7726 = smul.u32 4, %s32
          %s7728 = ssub.s32 512, 512
          %7729 = vsyncadd %s7714, %s7728
          %s7730 = smul.addr %s31, 4
          %s7731 = sadd.s32 %s7726, %s7730
          %s7732 = smul.addr %s7731, 128
          %s7733 = scalar_lea.hbm %s5, %s7732
          %s7734 = sshll.u32 %s7717, 4
          %s7735 = int_to_ptr.vmem [resolvable:$true] %s7734
          %7740 = dma.vmem_to_hbm [thread:$0]  %s7735, 512, %s7733, %s7714, 128, 128, 8
        $region48: #{tpu_custom_call.1} parent=39 // pred_fallthru
          _
        // Predicated region
        $region49: #{tpu_custom_call.1} parent=39 // pred_check
          %p7741 = pneg %p199
        $region50: #{tpu_custom_call.1} parent=39 // pred_check_branch
          %7743 = sbr.rel (%p7741) target = $region52
        $region51: #{tpu_custom_call.1} parent=39 // pred_region
          %s7744 = smul.u32 4, %s32
          %s7746 = ssub.s32 256, 256
          %7747 = vsyncadd %s7719, %s7746
          %s7748 = smul.addr %s31, 4
          %s7749 = sadd.s32 %s7744, %s7748
          %s7750 = smul.addr %s7749, 64
          %s7751 = scalar_lea.hbm %s6, %s7750
          %s7752 = sshll.u32 %s7722, 4
          %s7753 = int_to_ptr.vmem [resolvable:$true] %s7752
          %7758 = dma.vmem_to_hbm [thread:$0]  %s7753, 256, %s7751, %s7719, 64, 64, 4
        $region52: #{tpu_custom_call.1} parent=39 // pred_fallthru
          _
      $region40: #{tpu_custom_call.1} parent=5 // pred_fallthru
        _
      %p7759 = scmp.le.s32.totalorder 2, %s22
      // Predicated region
      $region53: #{tpu_custom_call.1} parent=5 // pred_check
        %p7760 = pneg %p7759
      $region54: #{tpu_custom_call.1} parent=5 // pred_check_branch
        %7762 = sbr.rel (%p7760) target = $region56
      $region55: #{tpu_custom_call.1} parent=5 // pred_region
        %s7763 = ssub.s32 %s22, 2
        // Predicated region
        $region57: #{tpu_custom_call.1} parent=55 // pred_check
          %p7764 = pneg %p177
        $region58: #{tpu_custom_call.1} parent=55 // pred_check_branch
          %7766 = sbr.rel (%p7764) target = $region60
        $region59: #{tpu_custom_call.1} parent=55 // pred_region
          %s7767 = sand.u32 %s162, 1
          %s7768 = scalar_lea.sflag [#allocation4], %s7767
          %s7769 = sand.u32 %s162, 1
          %s7770 = smul.addr %s7769, 32
          %s7771 = scalar_lea.vmem [#allocation5], %s7770
          %7772 = dma.done %s7768, 512
        $region60: #{tpu_custom_call.1} parent=55 // pred_fallthru
          _
        // Predicated region
        $region61: #{tpu_custom_call.1} parent=55 // pred_check
          %p7773 = pneg %p205
        $region62: #{tpu_custom_call.1} parent=55 // pred_check_branch
          %7775 = sbr.rel (%p7773) target = $region64
        $region63: #{tpu_custom_call.1} parent=55 // pred_region
          %s7776 = sand.u32 %s190, 1
          %s7777 = scalar_lea.sflag [#allocation7], %s7776
          %s7778 = sand.u32 %s190, 1
          %s7779 = smul.addr %s7778, 16
          %s7780 = scalar_lea.vmem [#allocation6], %s7779
          %7781 = dma.done %s7777, 256
        $region64: #{tpu_custom_call.1} parent=55 // pred_fallthru
          _
      $region56: #{tpu_custom_call.1} parent=5 // pred_fallthru
        _
    $region6: #{tpu_custom_call.1} parent=1 // loop_footer
      %s26 = sadd.s32 1, %s22
    $region7: #{tpu_custom_call.1} parent=1 // loop_footer_branch
      %21 = sbr.rel target = $region3
    $region8: #{tpu_custom_call.1} parent=1 // loop_exit
      _
    %7782 = vsyncpa [#allocation3], 1
    %s7783 = scalar_lea.sflag [#allocation3], 1
    %7784 = vsyncpa %s7783, 1
    %7785 = vsyncpa [#allocation4], 1
    %s7786 = scalar_lea.sflag [#allocation4], 1
    %7787 = vsyncpa %s7786, 1
    %7788 = vsyncpa [#allocation7], 1
    %s7789 = scalar_lea.sflag [#allocation7], 1
    %7790 = vsyncpa %s7789, 1

</llo_original>
